<compile_context>
chip_gen: v5e
topology: v5e:2x2
jax: 0.10.0
libtpu: 0.0.40
codegen_flags: <defaults>
</compile_context>

<pallas_src>
import functools

import jax
import jax.numpy as jnp
from jax import lax
from jax.experimental import pallas as pl
from jax.experimental.pallas import tpu as pltpu


# ---------------------------------------------------------------------------
# Fused Pallas kernel
# ---------------------------------------------------------------------------
def dncnn_fused_kernel(x_ref, w_all_ref, scale_ref, bias_ref, w_last_ref,
                       mask_ref, o_ref, act0_ref, act1_ref, slab0_ref,
                       slab1_ref, *, H, W, TR):
    """Whole DnCNN forward for one image (grid iterates over batch).

    Layout: "flat padded frame" = spatially padded image flattened row-major
    with row stride Wp = W+2 (plus a small tail so shifted tap reads stay in
    bounds).  Output pixel (y, x) lives at flat column y*Wp + x; its 3x3 tap
    (kh, kw) is the contiguous slice starting at kh*Wp + kw.

    x_ref      : (C, S)        f32   padded+flattened input image
    w_all_ref  : (L-1, F, 9F)  bf16  conv0 (Cin zero-padded) + middle convs, transposed
    scale_ref  : (L-1, F, 1)   f32   folded BN scale (1.0 for layer 0)
    bias_ref   : (L-1, F, 1)   f32   folded BN bias  (0.0 for layer 0)
    w_last_ref : (C, 9F)       bf16  final conv F -> C, transposed
    mask_ref   : (1, TR*Wp)    f32   1.0 on real pixel columns, 0.0 on pad columns
    o_ref      : (C, H*Wp)     f32   x - dncnn(x) in the flat frame (pad cols dropped by host)
    act0/1_ref : (F, S)        bf16  ping-pong channel-major activations
    slab0/1    : (9F, TR*Wp)   bf16  im2col tiles (MXU RHS), alternated per tile
    """
    C = x_ref.shape[0]
    F, S = act0_ref.shape
    Wp = W + 2
    TC = TR * Wp
    n_tiles = H // TR
    n_pre = w_all_ref.shape[0]
    INT0 = Wp + 1                       # flat offset of interior pixel (0, 0)

    # ---- per-image init ---------------------------------------------------
    # Image into channels [0:C) (its halo columns/rows are already zero from
    # the host-side spatial pad); re-zero channels [C:F) which hold stale
    # activations from the previous grid step (scratch persists).
    act0_ref[0:C, :] = x_ref[...].astype(act0_ref.dtype)
    act0_ref[C:F, :] = jnp.zeros((F - C, S), act0_ref.dtype)
    # act1: only the never-written halo head/tail must be zero; its interior is
    # fully overwritten by layer 0 before it is ever read.
    act1_ref[:, 0:INT0] = jnp.zeros((F, INT0), act1_ref.dtype)
    act1_ref[:, INT0 + H * Wp:] = jnp.zeros((F, S - INT0 - H * Wp),
                                            act1_ref.dtype)

    mask = mask_ref[...]                # (1, TC)
    taps = [kh * Wp + kw for kh in range(3) for kw in range(3)]

    def conv_tiles(src_ref, w, emit):
        # Static unroll over row tiles; two slab buffers so the scheduler can
        # overlap building slab(j+1) with the MXU pass of tile j.
        for j in range(n_tiles):
            slab = slab0_ref if j % 2 == 0 else slab1_ref
            c0 = j * TC
            for t, off in enumerate(taps):
                # Each 3x3 tap is ONE contiguous slice of the flat frame.
                slab[t * F:(t + 1) * F, :] = src_ref[:, c0 + off:c0 + off + TC]
            acc = jnp.dot(w, slab[...], preferred_element_type=jnp.float32)
            emit(acc, c0)               # (Cout, TC) f32

    def layer(src_ref, dst_ref, i):
        # Conv2d(no bias) -> folded BN (identity for layer 0) -> ReLU.
        w = w_all_ref[i]                # (F, 9F) bf16
        sc = scale_ref[i]               # (F, 1)  f32
        bi = bias_ref[i]                # (F, 1)  f32

        def emit(acc, c0):
            y = jnp.maximum(acc * sc + bi, 0.0) * mask   # mask keeps halo zero
            dst_ref[:, INT0 + c0:INT0 + c0 + TC] = y.astype(dst_ref.dtype)

        conv_tiles(src_ref, w, emit)

    def pair_body(p, carry):
        layer(act0_ref, act1_ref, 2 * p)
        layer(act1_ref, act0_ref, 2 * p + 1)
        return carry

    lax.fori_loop(0, n_pre // 2, pair_body, 0)

    final_src = act0_ref
    if n_pre % 2 == 1:                  # static; default num_of_layers=17 -> even n_pre
        layer(act0_ref, act1_ref, n_pre - 1)
        final_src = act1_ref

    # ---- final conv (F -> C), no BN/ReLU, fused residual out = x - conv(h) --
    def emit_last(acc, c0):
        x_t = x_ref[:, INT0 + c0:INT0 + c0 + TC]
        o_ref[:, c0:c0 + TC] = x_t - acc          # lane-dense contiguous store

    conv_tiles(final_src, w_last_ref[...], emit_last)


# ---------------------------------------------------------------------------
# Parameter construction (mirrors nn.Conv2d / eval-mode nn.BatchNorm2d init),
# pre-packed on the host into the transposed im2col layouts the kernel uses.
# ---------------------------------------------------------------------------
def init_dncnn_params(key, channels, num_of_layers=17, features=64, eps=1e-5):
    C, F, L = channels, features, num_of_layers
    assert C <= F
    keys = jax.random.split(key, L)

    def conv_w(k, cin, cout):
        # PyTorch Conv2d default init: U(-1/sqrt(fan_in), 1/sqrt(fan_in)).
        bound = 1.0 / (cin * 9) ** 0.5
        return jax.random.uniform(k, (3, 3, cin, cout), jnp.float32, -bound, bound)

    # Layer 0 (C -> F): embed Cin into an F-wide slot; the extra weight rows
    # are zero so stale/zero padding channels contribute nothing.
    w0 = conv_w(keys[0], C, F)
    w0_full = jnp.zeros((3, 3, F, F), jnp.float32).at[:, :, :C, :].set(w0)
    mids = [conv_w(keys[i], F, F) for i in range(1, L - 1)]
    w_last = conv_w(keys[L - 1], F, C)

    # im2col row index r = (kh*3 + kw)*Cin + ci, then transpose so Cout is the
    # MXU M (sublane) dim and the im2col K dim is minor on the LHS.
    w_all = jnp.stack([w0_full] + mids, axis=0).reshape(L - 1, 9 * F, F)
    w_all_t = jnp.transpose(w_all, (0, 2, 1))                 # (L-1, F, 9F)
    w_last_t = w_last.reshape(9 * F, C).T                     # (C, 9F)

    # BatchNorm2d eval-mode defaults folded to per-channel scale/bias; layer 0
    # has no BN -> scale=1, bias=0.
    gamma = jnp.ones((F,), jnp.float32)
    beta = jnp.zeros((F,), jnp.float32)
    rmean = jnp.zeros((F,), jnp.float32)
    rvar = jnp.ones((F,), jnp.float32)
    bn_scale = gamma / jnp.sqrt(rvar + eps)
    bn_bias = beta - rmean * bn_scale
    scale = jnp.concatenate(
        [jnp.ones((1, F), jnp.float32), jnp.tile(bn_scale[None, :], (L - 2, 1))], 0)
    bias = jnp.concatenate(
        [jnp.zeros((1, F), jnp.float32), jnp.tile(bn_bias[None, :], (L - 2, 1))], 0)

    return {
        "w_all_t": w_all_t.astype(jnp.bfloat16),              # (L-1, F, 9F)
        "scale": scale.reshape(L - 1, F, 1),                   # (L-1, F, 1)
        "bias": bias.reshape(L - 1, F, 1),                     # (L-1, F, 1)
        "w_last_t": w_last_t.astype(jnp.bfloat16),             # (C, 9F)
    }


# ---------------------------------------------------------------------------
# Forward: matches DnCNN.forward(x) = x - dncnn(x)   (x is NCHW like PyTorch)
# ---------------------------------------------------------------------------
@jax.jit
def dncnn_forward(x_nchw, params):
    w_all_t, scale, bias, w_last_t = (params["w_all_t"], params["scale"],
                                      params["bias"], params["w_last_t"])
    N, C, H, W = x_nchw.shape
    n_pre, F, _ = w_all_t.shape
    Wp = W + 2
    S = (H + 3) * Wp                    # flat padded frame + tail for shifted taps

    # Rows per tile: largest divisor of H up to 8 (keeps the slab a few MB at
    # document sizes while giving a wide MXU N = TR*Wp per dot).
    TR = max(d for d in range(1, min(H, 8) + 1) if H % d == 0)
    TC = TR * Wp

    x = x_nchw.astype(jnp.float32)
    # One small spatial pad of the C-channel input (no channel padding to F).
    x_flat = jnp.pad(x, ((0, 0), (0, 0), (1, 2), (1, 1))).reshape(N, C, S)
    # 1.0 on real-pixel columns of a tile, 0.0 on the 2 pad columns per row.
    mask = (jnp.arange(TC) % Wp < W).astype(jnp.float32).reshape(1, TC)

    kernel = functools.partial(dncnn_fused_kernel, H=H, W=W, TR=TR)

    out_flat = pl.pallas_call(
        kernel,
        out_shape=jax.ShapeDtypeStruct((N, C, H * Wp), jnp.float32),
        grid=(N,),
        in_specs=[
            pl.BlockSpec((None, C, S), lambda n: (n, 0, 0)),
            pl.BlockSpec(w_all_t.shape, lambda n: (0, 0, 0)),   # constants
            pl.BlockSpec(scale.shape, lambda n: (0, 0, 0)),
            pl.BlockSpec(bias.shape, lambda n: (0, 0, 0)),
            pl.BlockSpec(w_last_t.shape, lambda n: (0, 0)),
            pl.BlockSpec(mask.shape, lambda n: (0, 0)),
        ],
        out_specs=pl.BlockSpec((None, C, H * Wp), lambda n: (n, 0, 0)),
        scratch_shapes=[
            pltpu.VMEM((F, S), jnp.bfloat16),        # ping activation buffer
            pltpu.VMEM((F, S), jnp.bfloat16),        # pong activation buffer
            pltpu.VMEM((9 * F, TC), jnp.bfloat16),   # im2col tile (even tiles)
            pltpu.VMEM((9 * F, TC), jnp.bfloat16),   # im2col tile (odd tiles)
        ],
        compiler_params=pltpu.CompilerParams(
            dimension_semantics=("parallel",),
            # Explicit scoped-VMEM budget (<= physical on all of v5e/v6e/v7x).
            vmem_limit_bytes=64 * 1024 * 1024,
        ),
    )(x_flat, w_all_t, scale, bias, w_last_t, mask)

    # Drop the 2 pad columns per row; output is already NCHW (no transpose).
    return out_flat.reshape(N, C, H, Wp)[:, :, :, :W]


# ---------------------------------------------------------------------------
# Pure-JAX reference (f32 activations) for correctness checking
# ---------------------------------------------------------------------------
def _conv3x3_ref(h, w_flat):
    N, H, W, Cin = h.shape
    hp = jnp.pad(h, ((0, 0), (1, 1), (1, 1), (0, 0)))
    cols = jnp.concatenate(
        [hp[:, kh:kh + H, kw:kw + W, :] for kh in range(3) for kw in range(3)],
        axis=-1)                                               # (N, H, W, 9*Cin)
    return cols.reshape(N * H * W, 9 * Cin) @ w_flat


@jax.jit
def dncnn_reference(x_nchw, params):
    w_all_t = params["w_all_t"].astype(jnp.float32)            # (L-1, F, 9F)
    scale = params["scale"][..., 0]                            # (L-1, F)
    bias = params["bias"][..., 0]
    w_last_t = params["w_last_t"].astype(jnp.float32)          # (C, 9F)
    N, C, H, W = x_nchw.shape
    F = w_all_t.shape[1]
    x = jnp.transpose(x_nchw, (0, 2, 3, 1)).astype(jnp.float32)
    h = jnp.pad(x, ((0, 0), (0, 0), (0, 0), (0, F - C)))
    for i in range(w_all_t.shape[0]):
        y = _conv3x3_ref(h, w_all_t[i].T)
        h = jnp.maximum(y * scale[i] + bias[i], 0.0).reshape(N, H, W, F)
    out = x - _conv3x3_ref(h, w_last_t.T).reshape(N, H, W, C)
    return jnp.transpose(out, (0, 3, 1, 2))


if __name__ == "__main__":
    key = jax.random.PRNGKey(0)
    kx, kp = jax.random.split(key)

    channels, batch, height, width = 4, 2, 16, 16
    x = jax.random.normal(kx, (batch, channels, height, width), jnp.float32)
    params = init_dncnn_params(kp, channels=channels, num_of_layers=17)

    out = jax.block_until_ready(dncnn_forward(x, params))

    assert out.shape == x.shape and out.dtype == jnp.float32
    assert bool(jnp.all(jnp.isfinite(out)))
    ref = dncnn_reference(x, params)
    assert bool(jnp.allclose(out, ref, rtol=2e-2, atol=2e-2)), "mismatch vs f32 reference"
    print("KERNEL_OK")
</pallas_src>

<mosaic_0001>
module attributes {stable_mosaic.version = 11 : i64} {
  func.func @dncnn_fused_kernel(%arg0: i32, %arg1: memref<1x4x342xf32, #tpu.memory_space<vmem>>, %arg2: memref<16x64x576xbf16, #tpu.memory_space<vmem>>, %arg3: memref<16x64x1xf32, #tpu.memory_space<vmem>>, %arg4: memref<16x64x1xf32, #tpu.memory_space<vmem>>, %arg5: memref<4x576xbf16, #tpu.memory_space<vmem>>, %arg6: memref<1x144xf32, #tpu.memory_space<vmem>>, %arg7: memref<1x4x288xf32, #tpu.memory_space<vmem>>, %arg8: memref<64x342xbf16, #tpu.memory_space<vmem>>, %arg9: memref<64x342xbf16, #tpu.memory_space<vmem>>, %arg10: memref<576x144xbf16, #tpu.memory_space<vmem>>, %arg11: memref<576x144xbf16, #tpu.memory_space<vmem>>) attributes {dimension_semantics = [#tpu.dimension_semantics<parallel>], iteration_bounds = array<i64: 2>, scalar_prefetch = 0 : i64, scratch_operands = 4 : i64, tpu.core_type = #tpu.core_type<tc>, window_params = [{transform_indices = @transform_0, window_bounds = array<i64: 1, 4, 342>}, {pipeline_mode = #tpu.pipeline_mode<synchronous>, transform_indices = @transform_1, window_bounds = array<i64: 16, 64, 576>}, {pipeline_mode = #tpu.pipeline_mode<synchronous>, transform_indices = @transform_2, window_bounds = array<i64: 16, 64, 1>}, {pipeline_mode = #tpu.pipeline_mode<synchronous>, transform_indices = @transform_3, window_bounds = array<i64: 16, 64, 1>}, {pipeline_mode = #tpu.pipeline_mode<synchronous>, transform_indices = @transform_4, window_bounds = array<i64: 4, 576>}, {pipeline_mode = #tpu.pipeline_mode<synchronous>, transform_indices = @transform_5, window_bounds = array<i64: 1, 144>}, {transform_indices = @transform_6, window_bounds = array<i64: 1, 4, 288>}]} {
    %c0 = arith.constant 0 : index
    %c0_0 = arith.constant 0 : index
    %c0_1 = arith.constant 0 : index
    %0 = vector.load %arg1[%c0, %c0_0, %c0_1] : memref<1x4x342xf32, #tpu.memory_space<vmem>>, vector<1x4x342xf32>
    %1 = vector.shape_cast %0 : vector<1x4x342xf32> to vector<4x342xf32>
    %2 = arith.truncf %1 : vector<4x342xf32> to vector<4x342xbf16>
    %c0_2 = arith.constant 0 : index
    %c0_3 = arith.constant 0 : index
    %3 = vector.load %arg8[%c0_2, %c0_3] : memref<64x342xbf16, #tpu.memory_space<vmem>>, vector<4x342xbf16>
    tpu.vector_store %arg8[%c0_2, %c0_3], %2 {strides = array<i32>} : memref<64x342xbf16, #tpu.memory_space<vmem>>, vector<4x342xbf16>,
    %cst = arith.constant 0.000000e+00 : bf16
    %4 = vector.broadcast %cst : bf16 to vector<60x342xbf16>
    %c4 = arith.constant 4 : index
    %c0_4 = arith.constant 0 : index
    %5 = vector.load %arg8[%c4, %c0_4] : memref<64x342xbf16, #tpu.memory_space<vmem>>, vector<60x342xbf16>
    tpu.vector_store %arg8[%c4, %c0_4], %4 {strides = array<i32>} : memref<64x342xbf16, #tpu.memory_space<vmem>>, vector<60x342xbf16>,
    %cst_5 = arith.constant 0.000000e+00 : bf16
    %6 = vector.broadcast %cst_5 : bf16 to vector<64x19xbf16>
    %c0_6 = arith.constant 0 : index
    %c0_7 = arith.constant 0 : index
    %7 = vector.load %arg9[%c0_6, %c0_7] : memref<64x342xbf16, #tpu.memory_space<vmem>>, vector<64x19xbf16>
    tpu.vector_store %arg9[%c0_6, %c0_7], %6 {strides = array<i32>} : memref<64x342xbf16, #tpu.memory_space<vmem>>, vector<64x19xbf16>,
    %cst_8 = arith.constant 0.000000e+00 : bf16
    %8 = vector.broadcast %cst_8 : bf16 to vector<64x35xbf16>
    %c0_9 = arith.constant 0 : index
    %c307 = arith.constant 307 : index
    %9 = vector.load %arg9[%c0_9, %c307] : memref<64x342xbf16, #tpu.memory_space<vmem>>, vector<64x35xbf16>
    tpu.vector_store %arg9[%c0_9, %c307], %8 {strides = array<i32>} : memref<64x342xbf16, #tpu.memory_space<vmem>>, vector<64x35xbf16>,
    %c0_10 = arith.constant 0 : index
    %c0_11 = arith.constant 0 : index
    %10 = vector.load %arg6[%c0_10, %c0_11] : memref<1x144xf32, #tpu.memory_space<vmem>>, vector<1x144xf32>
    %c0_i32 = arith.constant 0 : i32
    %c8_i32 = arith.constant 8 : i32
    %11 = arith.addi %c0_i32, %c8_i32 : i32
    %c1_i32 = arith.constant 1 : i32
    scf.for %arg12 = %c0_i32 to %11 step %c1_i32  : i32 {
      %c2_i32 = arith.constant 2 : i32
      %65 = arith.muli %c2_i32, %arg12 : i32
      %66 = arith.index_cast %65 : i32 to index
      %c0_80 = arith.constant 0 : index
      %c0_81 = arith.constant 0 : index
      %67 = vector.load %arg2[%66, %c0_80, %c0_81] : memref<16x64x576xbf16, #tpu.memory_space<vmem>>, vector<1x64x576xbf16>
      %68 = vector.shape_cast %67 : vector<1x64x576xbf16> to vector<64x576xbf16>
      %69 = arith.index_cast %65 : i32 to index
      %c0_82 = arith.constant 0 : index
      %c0_83 = arith.constant 0 : index
      %70 = vector.load %arg3[%69, %c0_82, %c0_83] : memref<16x64x1xf32, #tpu.memory_space<vmem>>, vector<1x64x1xf32>
      %71 = vector.shape_cast %70 : vector<1x64x1xf32> to vector<64x1xf32>
      %72 = arith.index_cast %65 : i32 to index
      %c0_84 = arith.constant 0 : index
      %c0_85 = arith.constant 0 : index
      %73 = vector.load %arg4[%72, %c0_84, %c0_85] : memref<16x64x1xf32, #tpu.memory_space<vmem>>, vector<1x64x1xf32>
      %74 = vector.shape_cast %73 : vector<1x64x1xf32> to vector<64x1xf32>
      %c0_86 = arith.constant 0 : index
      %c0_87 = arith.constant 0 : index
      %75 = vector.load %arg8[%c0_86, %c0_87] : memref<64x342xbf16, #tpu.memory_space<vmem>>, vector<64x144xbf16>
      %c0_88 = arith.constant 0 : index
      %c0_89 = arith.constant 0 : index
      %76 = vector.load %arg10[%c0_88, %c0_89] : memref<576x144xbf16, #tpu.memory_space<vmem>>, vector<64x144xbf16>
      tpu.vector_store %arg10[%c0_88, %c0_89], %75 {strides = array<i32>} : memref<576x144xbf16, #tpu.memory_space<vmem>>, vector<64x144xbf16>,
      %c0_90 = arith.constant 0 : index
      %c1_91 = arith.constant 1 : index
      %77 = vector.load %arg8[%c0_90, %c1_91] : memref<64x342xbf16, #tpu.memory_space<vmem>>, vector<64x144xbf16>
      %c64_92 = arith.constant 64 : index
      %c0_93 = arith.constant 0 : index
      %78 = vector.load %arg10[%c64_92, %c0_93] : memref<576x144xbf16, #tpu.memory_space<vmem>>, vector<64x144xbf16>
      tpu.vector_store %arg10[%c64_92, %c0_93], %77 {strides = array<i32>} : memref<576x144xbf16, #tpu.memory_space<vmem>>, vector<64x144xbf16>,
      %c0_94 = arith.constant 0 : index
      %c2_95 = arith.constant 2 : index
      %79 = vector.load %arg8[%c0_94, %c2_95] : memref<64x342xbf16, #tpu.memory_space<vmem>>, vector<64x144xbf16>
      %c128_96 = arith.constant 128 : index
      %c0_97 = arith.constant 0 : index
      %80 = vector.load %arg10[%c128_96, %c0_97] : memref<576x144xbf16, #tpu.memory_space<vmem>>, vector<64x144xbf16>
      tpu.vector_store %arg10[%c128_96, %c0_97], %79 {strides = array<i32>} : memref<576x144xbf16, #tpu.memory_space<vmem>>, vector<64x144xbf16>,
      %c0_98 = arith.constant 0 : index
      %c18_99 = arith.constant 18 : index
      %81 = vector.load %arg8[%c0_98, %c18_99] : memref<64x342xbf16, #tpu.memory_space<vmem>>, vector<64x144xbf16>
      %c192_100 = arith.constant 192 : index
      %c0_101 = arith.constant 0 : index
      %82 = vector.load %arg10[%c192_100, %c0_101] : memref<576x144xbf16, #tpu.memory_space<vmem>>, vector<64x144xbf16>
      tpu.vector_store %arg10[%c192_100, %c0_101], %81 {strides = array<i32>} : memref<576x144xbf16, #tpu.memory_space<vmem>>, vector<64x144xbf16>,
      %c0_102 = arith.constant 0 : index
      %c19_103 = arith.constant 19 : index
      %83 = vector.load %arg8[%c0_102, %c19_103] : memref<64x342xbf16, #tpu.memory_space<vmem>>, vector<64x144xbf16>
      %c256_104 = arith.constant 256 : index
      %c0_105 = arith.constant 0 : index
      %84 = vector.load %arg10[%c256_104, %c0_105] : memref<576x144xbf16, #tpu.memory_space<vmem>>, vector<64x144xbf16>
      tpu.vector_store %arg10[%c256_104, %c0_105], %83 {strides = array<i32>} : memref<576x144xbf16, #tpu.memory_space<vmem>>, vector<64x144xbf16>,
      %c0_106 = arith.constant 0 : index
      %c20_107 = arith.constant 20 : index
      %85 = vector.load %arg8[%c0_106, %c20_107] : memref<64x342xbf16, #tpu.memory_space<vmem>>, vector<64x144xbf16>
      %c320_108 = arith.constant 320 : index
      %c0_109 = arith.constant 0 : index
      %86 = vector.load %arg10[%c320_108, %c0_109] : memref<576x144xbf16, #tpu.memory_space<vmem>>, vector<64x144xbf16>
      tpu.vector_store %arg10[%c320_108, %c0_109], %85 {strides = array<i32>} : memref<576x144xbf16, #tpu.memory_space<vmem>>, vector<64x144xbf16>,
      %c0_110 = arith.constant 0 : index
      %c36_111 = arith.constant 36 : index
      %87 = vector.load %arg8[%c0_110, %c36_111] : memref<64x342xbf16, #tpu.memory_space<vmem>>, vector<64x144xbf16>
      %c384_112 = arith.constant 384 : index
      %c0_113 = arith.constant 0 : index
      %88 = vector.load %arg10[%c384_112, %c0_113] : memref<576x144xbf16, #tpu.memory_space<vmem>>, vector<64x144xbf16>
      tpu.vector_store %arg10[%c384_112, %c0_113], %87 {strides = array<i32>} : memref<576x144xbf16, #tpu.memory_space<vmem>>, vector<64x144xbf16>,
      %c0_114 = arith.constant 0 : index
      %c37_115 = arith.constant 37 : index
      %89 = vector.load %arg8[%c0_114, %c37_115] : memref<64x342xbf16, #tpu.memory_space<vmem>>, vector<64x144xbf16>
      %c448_116 = arith.constant 448 : index
      %c0_117 = arith.constant 0 : index
      %90 = vector.load %arg10[%c448_116, %c0_117] : memref<576x144xbf16, #tpu.memory_space<vmem>>, vector<64x144xbf16>
      tpu.vector_store %arg10[%c448_116, %c0_117], %89 {strides = array<i32>} : memref<576x144xbf16, #tpu.memory_space<vmem>>, vector<64x144xbf16>,
      %c0_118 = arith.constant 0 : index
      %c38_119 = arith.constant 38 : index
      %91 = vector.load %arg8[%c0_118, %c38_119] : memref<64x342xbf16, #tpu.memory_space<vmem>>, vector<64x144xbf16>
      %c512_120 = arith.constant 512 : index
      %c0_121 = arith.constant 0 : index
      %92 = vector.load %arg10[%c512_120, %c0_121] : memref<576x144xbf16, #tpu.memory_space<vmem>>, vector<64x144xbf16>
      tpu.vector_store %arg10[%c512_120, %c0_121], %91 {strides = array<i32>} : memref<576x144xbf16, #tpu.memory_space<vmem>>, vector<64x144xbf16>,
      %c0_122 = arith.constant 0 : index
      %c0_123 = arith.constant 0 : index
      %93 = vector.load %arg10[%c0_122, %c0_123] : memref<576x144xbf16, #tpu.memory_space<vmem>>, vector<576x144xbf16>
      %cst_124 = arith.constant dense<0.000000e+00> : vector<64x144xf32>
      %94 = tpu.matmul %68, %93, %cst_124 {dimension_numbers = #tpu.dot_dimension_numbers<[1], [0], [0], [1], [0, 0, 1, 1], [], []>} : vector<64x576xbf16>, vector<576x144xbf16>, vector<64x144xf32> -> vector<64x144xf32>
      %95 = vector.broadcast %71 : vector<64x1xf32> to vector<64x144xf32>
      %96 = arith.mulf %94, %95 : vector<64x144xf32>
      %97 = vector.broadcast %74 : vector<64x1xf32> to vector<64x144xf32>
      %98 = arith.addf %96, %97 : vector<64x144xf32>
      %cst_125 = arith.constant 0.000000e+00 : f32
      %99 = vector.broadcast %cst_125 : f32 to vector<64x144xf32>
      %100 = arith.maximumf %98, %99 : vector<64x144xf32>
      %101 = vector.broadcast %10 : vector<1x144xf32> to vector<64x144xf32>
      %102 = arith.mulf %100, %101 : vector<64x144xf32>
      %103 = arith.truncf %102 : vector<64x144xf32> to vector<64x144xbf16>
      %c0_126 = arith.constant 0 : index
      %c19_127 = arith.constant 19 : index
      %104 = vector.load %arg9[%c0_126, %c19_127] : memref<64x342xbf16, #tpu.memory_space<vmem>>, vector<64x144xbf16>
      tpu.vector_store %arg9[%c0_126, %c19_127], %103 {strides = array<i32>} : memref<64x342xbf16, #tpu.memory_space<vmem>>, vector<64x144xbf16>,
      %c0_128 = arith.constant 0 : index
      %c144_129 = arith.constant 144 : index
      %105 = vector.load %arg8[%c0_128, %c144_129] : memref<64x342xbf16, #tpu.memory_space<vmem>>, vector<64x144xbf16>
      %c0_130 = arith.constant 0 : index
      %c0_131 = arith.constant 0 : index
      %106 = vector.load %arg11[%c0_130, %c0_131] : memref<576x144xbf16, #tpu.memory_space<vmem>>, vector<64x144xbf16>
      tpu.vector_store %arg11[%c0_130, %c0_131], %105 {strides = array<i32>} : memref<576x144xbf16, #tpu.memory_space<vmem>>, vector<64x144xbf16>,
      %c0_132 = arith.constant 0 : index
      %c145_133 = arith.constant 145 : index
      %107 = vector.load %arg8[%c0_132, %c145_133] : memref<64x342xbf16, #tpu.memory_space<vmem>>, vector<64x144xbf16>
      %c64_134 = arith.constant 64 : index
      %c0_135 = arith.constant 0 : index
      %108 = vector.load %arg11[%c64_134, %c0_135] : memref<576x144xbf16, #tpu.memory_space<vmem>>, vector<64x144xbf16>
      tpu.vector_store %arg11[%c64_134, %c0_135], %107 {strides = array<i32>} : memref<576x144xbf16, #tpu.memory_space<vmem>>, vector<64x144xbf16>,
      %c0_136 = arith.constant 0 : index
      %c146_137 = arith.constant 146 : index
      %109 = vector.load %arg8[%c0_136, %c146_137] : memref<64x342xbf16, #tpu.memory_space<vmem>>, vector<64x144xbf16>
      %c128_138 = arith.constant 128 : index
      %c0_139 = arith.constant 0 : index
      %110 = vector.load %arg11[%c128_138, %c0_139] : memref<576x144xbf16, #tpu.memory_space<vmem>>, vector<64x144xbf16>
      tpu.vector_store %arg11[%c128_138, %c0_139], %109 {strides = array<i32>} : memref<576x144xbf16, #tpu.memory_space<vmem>>, vector<64x144xbf16>,
      %c0_140 = arith.constant 0 : index
      %c162_141 = arith.constant 162 : index
      %111 = vector.load %arg8[%c0_140, %c162_141] : memref<64x342xbf16, #tpu.memory_space<vmem>>, vector<64x144xbf16>
      %c192_142 = arith.constant 192 : index
      %c0_143 = arith.constant 0 : index
      %112 = vector.load %arg11[%c192_142, %c0_143] : memref<576x144xbf16, #tpu.memory_space<vmem>>, vector<64x144xbf16>
      tpu.vector_store %arg11[%c192_142, %c0_143], %111 {strides = array<i32>} : memref<576x144xbf16, #tpu.memory_space<vmem>>, vector<64x144xbf16>,
      %c0_144 = arith.constant 0 : index
      %c163_145 = arith.constant 163 : index
      %113 = vector.load %arg8[%c0_144, %c163_145] : memref<64x342xbf16, #tpu.memory_space<vmem>>, vector<64x144xbf16>
      %c256_146 = arith.constant 256 : index
      %c0_147 = arith.constant 0 : index
      %114 = vector.load %arg11[%c256_146, %c0_147] : memref<576x144xbf16, #tpu.memory_space<vmem>>, vector<64x144xbf16>
      tpu.vector_store %arg11[%c256_146, %c0_147], %113 {strides = array<i32>} : memref<576x144xbf16, #tpu.memory_space<vmem>>, vector<64x144xbf16>,
      %c0_148 = arith.constant 0 : index
      %c164_149 = arith.constant 164 : index
      %115 = vector.load %arg8[%c0_148, %c164_149] : memref<64x342xbf16, #tpu.memory_space<vmem>>, vector<64x144xbf16>
      %c320_150 = arith.constant 320 : index
      %c0_151 = arith.constant 0 : index
      %116 = vector.load %arg11[%c320_150, %c0_151] : memref<576x144xbf16, #tpu.memory_space<vmem>>, vector<64x144xbf16>
      tpu.vector_store %arg11[%c320_150, %c0_151], %115 {strides = array<i32>} : memref<576x144xbf16, #tpu.memory_space<vmem>>, vector<64x144xbf16>,
      %c0_152 = arith.constant 0 : index
      %c180_153 = arith.constant 180 : index
      %117 = vector.load %arg8[%c0_152, %c180_153] : memref<64x342xbf16, #tpu.memory_space<vmem>>, vector<64x144xbf16>
      %c384_154 = arith.constant 384 : index
      %c0_155 = arith.constant 0 : index
      %118 = vector.load %arg11[%c384_154, %c0_155] : memref<576x144xbf16, #tpu.memory_space<vmem>>, vector<64x144xbf16>
      tpu.vector_store %arg11[%c384_154, %c0_155], %117 {strides = array<i32>} : memref<576x144xbf16, #tpu.memory_space<vmem>>, vector<64x144xbf16>,
      %c0_156 = arith.constant 0 : index
      %c181_157 = arith.constant 181 : index
      %119 = vector.load %arg8[%c0_156, %c181_157] : memref<64x342xbf16, #tpu.memory_space<vmem>>, vector<64x144xbf16>
      %c448_158 = arith.constant 448 : index
      %c0_159 = arith.constant 0 : index
      %120 = vector.load %arg11[%c448_158, %c0_159] : memref<576x144xbf16, #tpu.memory_space<vmem>>, vector<64x144xbf16>
      tpu.vector_store %arg11[%c448_158, %c0_159], %119 {strides = array<i32>} : memref<576x144xbf16, #tpu.memory_space<vmem>>, vector<64x144xbf16>,
      %c0_160 = arith.constant 0 : index
      %c182_161 = arith.constant 182 : index
      %121 = vector.load %arg8[%c0_160, %c182_161] : memref<64x342xbf16, #tpu.memory_space<vmem>>, vector<64x144xbf16>
      %c512_162 = arith.constant 512 : index
      %c0_163 = arith.constant 0 : index
      %122 = vector.load %arg11[%c512_162, %c0_163] : memref<576x144xbf16, #tpu.memory_space<vmem>>, vector<64x144xbf16>
      tpu.vector_store %arg11[%c512_162, %c0_163], %121 {strides = array<i32>} : memref<576x144xbf16, #tpu.memory_space<vmem>>, vector<64x144xbf16>,
      %c0_164 = arith.constant 0 : index
      %c0_165 = arith.constant 0 : index
      %123 = vector.load %arg11[%c0_164, %c0_165] : memref<576x144xbf16, #tpu.memory_space<vmem>>, vector<576x144xbf16>
      %cst_166 = arith.constant dense<0.000000e+00> : vector<64x144xf32>
      %124 = tpu.matmul %68, %123, %cst_166 {dimension_numbers = #tpu.dot_dimension_numbers<[1], [0], [0], [1], [0, 0, 1, 1], [], []>} : vector<64x576xbf16>, vector<576x144xbf16>, vector<64x144xf32> -> vector<64x144xf32>
      %125 = vector.broadcast %71 : vector<64x1xf32> to vector<64x144xf32>
      %126 = arith.mulf %124, %125 : vector<64x144xf32>
      %127 = vector.broadcast %74 : vector<64x1xf32> to vector<64x144xf32>
      %128 = arith.addf %126, %127 : vector<64x144xf32>
      %cst_167 = arith.constant 0.000000e+00 : f32
      %129 = vector.broadcast %cst_167 : f32 to vector<64x144xf32>
      %130 = arith.maximumf %128, %129 : vector<64x144xf32>
      %131 = vector.broadcast %10 : vector<1x144xf32> to vector<64x144xf32>
      %132 = arith.mulf %130, %131 : vector<64x144xf32>
      %133 = arith.truncf %132 : vector<64x144xf32> to vector<64x144xbf16>
      %c0_168 = arith.constant 0 : index
      %c163_169 = arith.constant 163 : index
      %134 = vector.load %arg9[%c0_168, %c163_169] : memref<64x342xbf16, #tpu.memory_space<vmem>>, vector<64x144xbf16>
      tpu.vector_store %arg9[%c0_168, %c163_169], %133 {strides = array<i32>} : memref<64x342xbf16, #tpu.memory_space<vmem>>, vector<64x144xbf16>,
      %c2_i32_170 = arith.constant 2 : i32
      %135 = arith.muli %c2_i32_170, %arg12 : i32
      %c1_i32_171 = arith.constant 1 : i32
      %136 = arith.addi %135, %c1_i32_171 : i32
      %137 = arith.index_cast %136 : i32 to index
      %c0_172 = arith.constant 0 : index
      %c0_173 = arith.constant 0 : index
      %138 = vector.load %arg2[%137, %c0_172, %c0_173] : memref<16x64x576xbf16, #tpu.memory_space<vmem>>, vector<1x64x576xbf16>
      %139 = vector.shape_cast %138 : vector<1x64x576xbf16> to vector<64x576xbf16>
      %140 = arith.index_cast %136 : i32 to index
      %c0_174 = arith.constant 0 : index
      %c0_175 = arith.constant 0 : index
      %141 = vector.load %arg3[%140, %c0_174, %c0_175] : memref<16x64x1xf32, #tpu.memory_space<vmem>>, vector<1x64x1xf32>
      %142 = vector.shape_cast %141 : vector<1x64x1xf32> to vector<64x1xf32>
      %143 = arith.index_cast %136 : i32 to index
      %c0_176 = arith.constant 0 : index
      %c0_177 = arith.constant 0 : index
      %144 = vector.load %arg4[%143, %c0_176, %c0_177] : memref<16x64x1xf32, #tpu.memory_space<vmem>>, vector<1x64x1xf32>
      %145 = vector.shape_cast %144 : vector<1x64x1xf32> to vector<64x1xf32>
      %c0_178 = arith.constant 0 : index
      %c0_179 = arith.constant 0 : index
      %146 = vector.load %arg9[%c0_178, %c0_179] : memref<64x342xbf16, #tpu.memory_space<vmem>>, vector<64x144xbf16>
      %c0_180 = arith.constant 0 : index
      %c0_181 = arith.constant 0 : index
      %147 = vector.load %arg10[%c0_180, %c0_181] : memref<576x144xbf16, #tpu.memory_space<vmem>>, vector<64x144xbf16>
      tpu.vector_store %arg10[%c0_180, %c0_181], %146 {strides = array<i32>} : memref<576x144xbf16, #tpu.memory_space<vmem>>, vector<64x144xbf16>,
      %c0_182 = arith.constant 0 : index
      %c1_183 = arith.constant 1 : index
      %148 = vector.load %arg9[%c0_182, %c1_183] : memref<64x342xbf16, #tpu.memory_space<vmem>>, vector<64x144xbf16>
      %c64_184 = arith.constant 64 : index
      %c0_185 = arith.constant 0 : index
      %149 = vector.load %arg10[%c64_184, %c0_185] : memref<576x144xbf16, #tpu.memory_space<vmem>>, vector<64x144xbf16>
      tpu.vector_store %arg10[%c64_184, %c0_185], %148 {strides = array<i32>} : memref<576x144xbf16, #tpu.memory_space<vmem>>, vector<64x144xbf16>,
      %c0_186 = arith.constant 0 : index
      %c2_187 = arith.constant 2 : index
      %150 = vector.load %arg9[%c0_186, %c2_187] : memref<64x342xbf16, #tpu.memory_space<vmem>>, vector<64x144xbf16>
      %c128_188 = arith.constant 128 : index
      %c0_189 = arith.constant 0 : index
      %151 = vector.load %arg10[%c128_188, %c0_189] : memref<576x144xbf16, #tpu.memory_space<vmem>>, vector<64x144xbf16>
      tpu.vector_store %arg10[%c128_188, %c0_189], %150 {strides = array<i32>} : memref<576x144xbf16, #tpu.memory_space<vmem>>, vector<64x144xbf16>,
      %c0_190 = arith.constant 0 : index
      %c18_191 = arith.constant 18 : index
      %152 = vector.load %arg9[%c0_190, %c18_191] : memref<64x342xbf16, #tpu.memory_space<vmem>>, vector<64x144xbf16>
      %c192_192 = arith.constant 192 : index
      %c0_193 = arith.constant 0 : index
      %153 = vector.load %arg10[%c192_192, %c0_193] : memref<576x144xbf16, #tpu.memory_space<vmem>>, vector<64x144xbf16>
      tpu.vector_store %arg10[%c192_192, %c0_193], %152 {strides = array<i32>} : memref<576x144xbf16, #tpu.memory_space<vmem>>, vector<64x144xbf16>,
      %c0_194 = arith.constant 0 : index
      %c19_195 = arith.constant 19 : index
      %154 = vector.load %arg9[%c0_194, %c19_195] : memref<64x342xbf16, #tpu.memory_space<vmem>>, vector<64x144xbf16>
      %c256_196 = arith.constant 256 : index
      %c0_197 = arith.constant 0 : index
      %155 = vector.load %arg10[%c256_196, %c0_197] : memref<576x144xbf16, #tpu.memory_space<vmem>>, vector<64x144xbf16>
      tpu.vector_store %arg10[%c256_196, %c0_197], %154 {strides = array<i32>} : memref<576x144xbf16, #tpu.memory_space<vmem>>, vector<64x144xbf16>,
      %c0_198 = arith.constant 0 : index
      %c20_199 = arith.constant 20 : index
      %156 = vector.load %arg9[%c0_198, %c20_199] : memref<64x342xbf16, #tpu.memory_space<vmem>>, vector<64x144xbf16>
      %c320_200 = arith.constant 320 : index
      %c0_201 = arith.constant 0 : index
      %157 = vector.load %arg10[%c320_200, %c0_201] : memref<576x144xbf16, #tpu.memory_space<vmem>>, vector<64x144xbf16>
      tpu.vector_store %arg10[%c320_200, %c0_201], %156 {strides = array<i32>} : memref<576x144xbf16, #tpu.memory_space<vmem>>, vector<64x144xbf16>,
      %c0_202 = arith.constant 0 : index
      %c36_203 = arith.constant 36 : index
      %158 = vector.load %arg9[%c0_202, %c36_203] : memref<64x342xbf16, #tpu.memory_space<vmem>>, vector<64x144xbf16>
      %c384_204 = arith.constant 384 : index
      %c0_205 = arith.constant 0 : index
      %159 = vector.load %arg10[%c384_204, %c0_205] : memref<576x144xbf16, #tpu.memory_space<vmem>>, vector<64x144xbf16>
      tpu.vector_store %arg10[%c384_204, %c0_205], %158 {strides = array<i32>} : memref<576x144xbf16, #tpu.memory_space<vmem>>, vector<64x144xbf16>,
      %c0_206 = arith.constant 0 : index
      %c37_207 = arith.constant 37 : index
      %160 = vector.load %arg9[%c0_206, %c37_207] : memref<64x342xbf16, #tpu.memory_space<vmem>>, vector<64x144xbf16>
      %c448_208 = arith.constant 448 : index
      %c0_209 = arith.constant 0 : index
      %161 = vector.load %arg10[%c448_208, %c0_209] : memref<576x144xbf16, #tpu.memory_space<vmem>>, vector<64x144xbf16>
      tpu.vector_store %arg10[%c448_208, %c0_209], %160 {strides = array<i32>} : memref<576x144xbf16, #tpu.memory_space<vmem>>, vector<64x144xbf16>,
      %c0_210 = arith.constant 0 : index
      %c38_211 = arith.constant 38 : index
      %162 = vector.load %arg9[%c0_210, %c38_211] : memref<64x342xbf16, #tpu.memory_space<vmem>>, vector<64x144xbf16>
      %c512_212 = arith.constant 512 : index
      %c0_213 = arith.constant 0 : index
      %163 = vector.load %arg10[%c512_212, %c0_213] : memref<576x144xbf16, #tpu.memory_space<vmem>>, vector<64x144xbf16>
      tpu.vector_store %arg10[%c512_212, %c0_213], %162 {strides = array<i32>} : memref<576x144xbf16, #tpu.memory_space<vmem>>, vector<64x144xbf16>,
      %c0_214 = arith.constant 0 : index
      %c0_215 = arith.constant 0 : index
      %164 = vector.load %arg10[%c0_214, %c0_215] : memref<576x144xbf16, #tpu.memory_space<vmem>>, vector<576x144xbf16>
      %cst_216 = arith.constant dense<0.000000e+00> : vector<64x144xf32>
      %165 = tpu.matmul %139, %164, %cst_216 {dimension_numbers = #tpu.dot_dimension_numbers<[1], [0], [0], [1], [0, 0, 1, 1], [], []>} : vector<64x576xbf16>, vector<576x144xbf16>, vector<64x144xf32> -> vector<64x144xf32>
      %166 = vector.broadcast %142 : vector<64x1xf32> to vector<64x144xf32>
      %167 = arith.mulf %165, %166 : vector<64x144xf32>
      %168 = vector.broadcast %145 : vector<64x1xf32> to vector<64x144xf32>
      %169 = arith.addf %167, %168 : vector<64x144xf32>
      %cst_217 = arith.constant 0.000000e+00 : f32
      %170 = vector.broadcast %cst_217 : f32 to vector<64x144xf32>
      %171 = arith.maximumf %169, %170 : vector<64x144xf32>
      %172 = vector.broadcast %10 : vector<1x144xf32> to vector<64x144xf32>
      %173 = arith.mulf %171, %172 : vector<64x144xf32>
      %174 = arith.truncf %173 : vector<64x144xf32> to vector<64x144xbf16>
      %c0_218 = arith.constant 0 : index
      %c19_219 = arith.constant 19 : index
      %175 = vector.load %arg8[%c0_218, %c19_219] : memref<64x342xbf16, #tpu.memory_space<vmem>>, vector<64x144xbf16>
      tpu.vector_store %arg8[%c0_218, %c19_219], %174 {strides = array<i32>} : memref<64x342xbf16, #tpu.memory_space<vmem>>, vector<64x144xbf16>,
      %c0_220 = arith.constant 0 : index
      %c144_221 = arith.constant 144 : index
      %176 = vector.load %arg9[%c0_220, %c144_221] : memref<64x342xbf16, #tpu.memory_space<vmem>>, vector<64x144xbf16>
      %c0_222 = arith.constant 0 : index
      %c0_223 = arith.constant 0 : index
      %177 = vector.load %arg11[%c0_222, %c0_223] : memref<576x144xbf16, #tpu.memory_space<vmem>>, vector<64x144xbf16>
      tpu.vector_store %arg11[%c0_222, %c0_223], %176 {strides = array<i32>} : memref<576x144xbf16, #tpu.memory_space<vmem>>, vector<64x144xbf16>,
      %c0_224 = arith.constant 0 : index
      %c145_225 = arith.constant 145 : index
      %178 = vector.load %arg9[%c0_224, %c145_225] : memref<64x342xbf16, #tpu.memory_space<vmem>>, vector<64x144xbf16>
      %c64_226 = arith.constant 64 : index
      %c0_227 = arith.constant 0 : index
      %179 = vector.load %arg11[%c64_226, %c0_227] : memref<576x144xbf16, #tpu.memory_space<vmem>>, vector<64x144xbf16>
      tpu.vector_store %arg11[%c64_226, %c0_227], %178 {strides = array<i32>} : memref<576x144xbf16, #tpu.memory_space<vmem>>, vector<64x144xbf16>,
      %c0_228 = arith.constant 0 : index
      %c146_229 = arith.constant 146 : index
      %180 = vector.load %arg9[%c0_228, %c146_229] : memref<64x342xbf16, #tpu.memory_space<vmem>>, vector<64x144xbf16>
      %c128_230 = arith.constant 128 : index
      %c0_231 = arith.constant 0 : index
      %181 = vector.load %arg11[%c128_230, %c0_231] : memref<576x144xbf16, #tpu.memory_space<vmem>>, vector<64x144xbf16>
      tpu.vector_store %arg11[%c128_230, %c0_231], %180 {strides = array<i32>} : memref<576x144xbf16, #tpu.memory_space<vmem>>, vector<64x144xbf16>,
      %c0_232 = arith.constant 0 : index
      %c162_233 = arith.constant 162 : index
      %182 = vector.load %arg9[%c0_232, %c162_233] : memref<64x342xbf16, #tpu.memory_space<vmem>>, vector<64x144xbf16>
      %c192_234 = arith.constant 192 : index
      %c0_235 = arith.constant 0 : index
      %183 = vector.load %arg11[%c192_234, %c0_235] : memref<576x144xbf16, #tpu.memory_space<vmem>>, vector<64x144xbf16>
      tpu.vector_store %arg11[%c192_234, %c0_235], %182 {strides = array<i32>} : memref<576x144xbf16, #tpu.memory_space<vmem>>, vector<64x144xbf16>,
      %c0_236 = arith.constant 0 : index
      %c163_237 = arith.constant 163 : index
      %184 = vector.load %arg9[%c0_236, %c163_237] : memref<64x342xbf16, #tpu.memory_space<vmem>>, vector<64x144xbf16>
      %c256_238 = arith.constant 256 : index
      %c0_239 = arith.constant 0 : index
      %185 = vector.load %arg11[%c256_238, %c0_239] : memref<576x144xbf16, #tpu.memory_space<vmem>>, vector<64x144xbf16>
      tpu.vector_store %arg11[%c256_238, %c0_239], %184 {strides = array<i32>} : memref<576x144xbf16, #tpu.memory_space<vmem>>, vector<64x144xbf16>,
      %c0_240 = arith.constant 0 : index
      %c164_241 = arith.constant 164 : index
      %186 = vector.load %arg9[%c0_240, %c164_241] : memref<64x342xbf16, #tpu.memory_space<vmem>>, vector<64x144xbf16>
      %c320_242 = arith.constant 320 : index
      %c0_243 = arith.constant 0 : index
      %187 = vector.load %arg11[%c320_242, %c0_243] : memref<576x144xbf16, #tpu.memory_space<vmem>>, vector<64x144xbf16>
      tpu.vector_store %arg11[%c320_242, %c0_243], %186 {strides = array<i32>} : memref<576x144xbf16, #tpu.memory_space<vmem>>, vector<64x144xbf16>,
      %c0_244 = arith.constant 0 : index
      %c180_245 = arith.constant 180 : index
      %188 = vector.load %arg9[%c0_244, %c180_245] : memref<64x342xbf16, #tpu.memory_space<vmem>>, vector<64x144xbf16>
      %c384_246 = arith.constant 384 : index
      %c0_247 = arith.constant 0 : index
      %189 = vector.load %arg11[%c384_246, %c0_247] : memref<576x144xbf16, #tpu.memory_space<vmem>>, vector<64x144xbf16>
      tpu.vector_store %arg11[%c384_246, %c0_247], %188 {strides = array<i32>} : memref<576x144xbf16, #tpu.memory_space<vmem>>, vector<64x144xbf16>,
      %c0_248 = arith.constant 0 : index
      %c181_249 = arith.constant 181 : index
      %190 = vector.load %arg9[%c0_248, %c181_249] : memref<64x342xbf16, #tpu.memory_space<vmem>>, vector<64x144xbf16>
      %c448_250 = arith.constant 448 : index
      %c0_251 = arith.constant 0 : index
      %191 = vector.load %arg11[%c448_250, %c0_251] : memref<576x144xbf16, #tpu.memory_space<vmem>>, vector<64x144xbf16>
      tpu.vector_store %arg11[%c448_250, %c0_251], %190 {strides = array<i32>} : memref<576x144xbf16, #tpu.memory_space<vmem>>, vector<64x144xbf16>,
      %c0_252 = arith.constant 0 : index
      %c182_253 = arith.constant 182 : index
      %192 = vector.load %arg9[%c0_252, %c182_253] : memref<64x342xbf16, #tpu.memory_space<vmem>>, vector<64x144xbf16>
      %c512_254 = arith.constant 512 : index
      %c0_255 = arith.constant 0 : index
      %193 = vector.load %arg11[%c512_254, %c0_255] : memref<576x144xbf16, #tpu.memory_space<vmem>>, vector<64x144xbf16>
      tpu.vector_store %arg11[%c512_254, %c0_255], %192 {strides = array<i32>} : memref<576x144xbf16, #tpu.memory_space<vmem>>, vector<64x144xbf16>,
      %c0_256 = arith.constant 0 : index
      %c0_257 = arith.constant 0 : index
      %194 = vector.load %arg11[%c0_256, %c0_257] : memref<576x144xbf16, #tpu.memory_space<vmem>>, vector<576x144xbf16>
      %cst_258 = arith.constant dense<0.000000e+00> : vector<64x144xf32>
      %195 = tpu.matmul %139, %194, %cst_258 {dimension_numbers = #tpu.dot_dimension_numbers<[1], [0], [0], [1], [0, 0, 1, 1], [], []>} : vector<64x576xbf16>, vector<576x144xbf16>, vector<64x144xf32> -> vector<64x144xf32>
      %196 = vector.broadcast %142 : vector<64x1xf32> to vector<64x144xf32>
      %197 = arith.mulf %195, %196 : vector<64x144xf32>
      %198 = vector.broadcast %145 : vector<64x1xf32> to vector<64x144xf32>
      %199 = arith.addf %197, %198 : vector<64x144xf32>
      %cst_259 = arith.constant 0.000000e+00 : f32
      %200 = vector.broadcast %cst_259 : f32 to vector<64x144xf32>
      %201 = arith.maximumf %199, %200 : vector<64x144xf32>
      %202 = vector.broadcast %10 : vector<1x144xf32> to vector<64x144xf32>
      %203 = arith.mulf %201, %202 : vector<64x144xf32>
      %204 = arith.truncf %203 : vector<64x144xf32> to vector<64x144xbf16>
      %c0_260 = arith.constant 0 : index
      %c163_261 = arith.constant 163 : index
      %205 = vector.load %arg8[%c0_260, %c163_261] : memref<64x342xbf16, #tpu.memory_space<vmem>>, vector<64x144xbf16>
      tpu.vector_store %arg8[%c0_260, %c163_261], %204 {strides = array<i32>} : memref<64x342xbf16, #tpu.memory_space<vmem>>, vector<64x144xbf16>,
    }
    %c8_i32_12 = arith.constant 8 : i32
    %c0_13 = arith.constant 0 : index
    %c0_14 = arith.constant 0 : index
    %12 = vector.load %arg5[%c0_13, %c0_14] : memref<4x576xbf16, #tpu.memory_space<vmem>>, vector<4x576xbf16>
    %c0_15 = arith.constant 0 : index
    %c0_16 = arith.constant 0 : index
    %13 = vector.load %arg8[%c0_15, %c0_16] : memref<64x342xbf16, #tpu.memory_space<vmem>>, vector<64x144xbf16>
    %c0_17 = arith.constant 0 : index
    %c0_18 = arith.constant 0 : index
    %14 = vector.load %arg10[%c0_17, %c0_18] : memref<576x144xbf16, #tpu.memory_space<vmem>>, vector<64x144xbf16>
    tpu.vector_store %arg10[%c0_17, %c0_18], %13 {strides = array<i32>} : memref<576x144xbf16, #tpu.memory_space<vmem>>, vector<64x144xbf16>,
    %c0_19 = arith.constant 0 : index
    %c1 = arith.constant 1 : index
    %15 = vector.load %arg8[%c0_19, %c1] : memref<64x342xbf16, #tpu.memory_space<vmem>>, vector<64x144xbf16>
    %c64 = arith.constant 64 : index
    %c0_20 = arith.constant 0 : index
    %16 = vector.load %arg10[%c64, %c0_20] : memref<576x144xbf16, #tpu.memory_space<vmem>>, vector<64x144xbf16>
    tpu.vector_store %arg10[%c64, %c0_20], %15 {strides = array<i32>} : memref<576x144xbf16, #tpu.memory_space<vmem>>, vector<64x144xbf16>,
    %c0_21 = arith.constant 0 : index
    %c2 = arith.constant 2 : index
    %17 = vector.load %arg8[%c0_21, %c2] : memref<64x342xbf16, #tpu.memory_space<vmem>>, vector<64x144xbf16>
    %c128 = arith.constant 128 : index
    %c0_22 = arith.constant 0 : index
    %18 = vector.load %arg10[%c128, %c0_22] : memref<576x144xbf16, #tpu.memory_space<vmem>>, vector<64x144xbf16>
    tpu.vector_store %arg10[%c128, %c0_22], %17 {strides = array<i32>} : memref<576x144xbf16, #tpu.memory_space<vmem>>, vector<64x144xbf16>,
    %c0_23 = arith.constant 0 : index
    %c18 = arith.constant 18 : index
    %19 = vector.load %arg8[%c0_23, %c18] : memref<64x342xbf16, #tpu.memory_space<vmem>>, vector<64x144xbf16>
    %c192 = arith.constant 192 : index
    %c0_24 = arith.constant 0 : index
    %20 = vector.load %arg10[%c192, %c0_24] : memref<576x144xbf16, #tpu.memory_space<vmem>>, vector<64x144xbf16>
    tpu.vector_store %arg10[%c192, %c0_24], %19 {strides = array<i32>} : memref<576x144xbf16, #tpu.memory_space<vmem>>, vector<64x144xbf16>,
    %c0_25 = arith.constant 0 : index
    %c19 = arith.constant 19 : index
    %21 = vector.load %arg8[%c0_25, %c19] : memref<64x342xbf16, #tpu.memory_space<vmem>>, vector<64x144xbf16>
    %c256 = arith.constant 256 : index
    %c0_26 = arith.constant 0 : index
    %22 = vector.load %arg10[%c256, %c0_26] : memref<576x144xbf16, #tpu.memory_space<vmem>>, vector<64x144xbf16>
    tpu.vector_store %arg10[%c256, %c0_26], %21 {strides = array<i32>} : memref<576x144xbf16, #tpu.memory_space<vmem>>, vector<64x144xbf16>,
    %c0_27 = arith.constant 0 : index
    %c20 = arith.constant 20 : index
    %23 = vector.load %arg8[%c0_27, %c20] : memref<64x342xbf16, #tpu.memory_space<vmem>>, vector<64x144xbf16>
    %c320 = arith.constant 320 : index
    %c0_28 = arith.constant 0 : index
    %24 = vector.load %arg10[%c320, %c0_28] : memref<576x144xbf16, #tpu.memory_space<vmem>>, vector<64x144xbf16>
    tpu.vector_store %arg10[%c320, %c0_28], %23 {strides = array<i32>} : memref<576x144xbf16, #tpu.memory_space<vmem>>, vector<64x144xbf16>,
    %c0_29 = arith.constant 0 : index
    %c36 = arith.constant 36 : index
    %25 = vector.load %arg8[%c0_29, %c36] : memref<64x342xbf16, #tpu.memory_space<vmem>>, vector<64x144xbf16>
    %c384 = arith.constant 384 : index
    %c0_30 = arith.constant 0 : index
    %26 = vector.load %arg10[%c384, %c0_30] : memref<576x144xbf16, #tpu.memory_space<vmem>>, vector<64x144xbf16>
    tpu.vector_store %arg10[%c384, %c0_30], %25 {strides = array<i32>} : memref<576x144xbf16, #tpu.memory_space<vmem>>, vector<64x144xbf16>,
    %c0_31 = arith.constant 0 : index
    %c37 = arith.constant 37 : index
    %27 = vector.load %arg8[%c0_31, %c37] : memref<64x342xbf16, #tpu.memory_space<vmem>>, vector<64x144xbf16>
    %c448 = arith.constant 448 : index
    %c0_32 = arith.constant 0 : index
    %28 = vector.load %arg10[%c448, %c0_32] : memref<576x144xbf16, #tpu.memory_space<vmem>>, vector<64x144xbf16>
    tpu.vector_store %arg10[%c448, %c0_32], %27 {strides = array<i32>} : memref<576x144xbf16, #tpu.memory_space<vmem>>, vector<64x144xbf16>,
    %c0_33 = arith.constant 0 : index
    %c38 = arith.constant 38 : index
    %29 = vector.load %arg8[%c0_33, %c38] : memref<64x342xbf16, #tpu.memory_space<vmem>>, vector<64x144xbf16>
    %c512 = arith.constant 512 : index
    %c0_34 = arith.constant 0 : index
    %30 = vector.load %arg10[%c512, %c0_34] : memref<576x144xbf16, #tpu.memory_space<vmem>>, vector<64x144xbf16>
    tpu.vector_store %arg10[%c512, %c0_34], %29 {strides = array<i32>} : memref<576x144xbf16, #tpu.memory_space<vmem>>, vector<64x144xbf16>,
    %c0_35 = arith.constant 0 : index
    %c0_36 = arith.constant 0 : index
    %31 = vector.load %arg10[%c0_35, %c0_36] : memref<576x144xbf16, #tpu.memory_space<vmem>>, vector<576x144xbf16>
    %cst_37 = arith.constant dense<0.000000e+00> : vector<4x144xf32>
    %32 = tpu.matmul %12, %31, %cst_37 {dimension_numbers = #tpu.dot_dimension_numbers<[1], [0], [0], [1], [0, 0, 1, 1], [], []>} : vector<4x576xbf16>, vector<576x144xbf16>, vector<4x144xf32> -> vector<4x144xf32>
    %c0_38 = arith.constant 0 : index
    %c0_39 = arith.constant 0 : index
    %c19_40 = arith.constant 19 : index
    %33 = vector.load %arg1[%c0_38, %c0_39, %c19_40] : memref<1x4x342xf32, #tpu.memory_space<vmem>>, vector<1x4x144xf32>
    %34 = vector.shape_cast %33 : vector<1x4x144xf32> to vector<4x144xf32>
    %35 = arith.subf %34, %32 : vector<4x144xf32>
    %c0_41 = arith.constant 0 : index
    %c0_42 = arith.constant 0 : index
    %c0_43 = arith.constant 0 : index
    %36 = vector.load %arg7[%c0_41, %c0_42, %c0_43] : memref<1x4x288xf32, #tpu.memory_space<vmem>>, vector<1x4x144xf32>
    %37 = vector.shape_cast %36 : vector<1x4x144xf32> to vector<4x144xf32>
    %38 = vector.shape_cast %35 : vector<4x144xf32> to vector<1x4x144xf32>
    tpu.vector_store %arg7[%c0_41, %c0_42, %c0_43], %38 {strides = array<i32>} : memref<1x4x288xf32, #tpu.memory_space<vmem>>, vector<1x4x144xf32>,
    %c0_44 = arith.constant 0 : index
    %c144 = arith.constant 144 : index
    %39 = vector.load %arg8[%c0_44, %c144] : memref<64x342xbf16, #tpu.memory_space<vmem>>, vector<64x144xbf16>
    %c0_45 = arith.constant 0 : index
    %c0_46 = arith.constant 0 : index
    %40 = vector.load %arg11[%c0_45, %c0_46] : memref<576x144xbf16, #tpu.memory_space<vmem>>, vector<64x144xbf16>
    tpu.vector_store %arg11[%c0_45, %c0_46], %39 {strides = array<i32>} : memref<576x144xbf16, #tpu.memory_space<vmem>>, vector<64x144xbf16>,
    %c0_47 = arith.constant 0 : index
    %c145 = arith.constant 145 : index
    %41 = vector.load %arg8[%c0_47, %c145] : memref<64x342xbf16, #tpu.memory_space<vmem>>, vector<64x144xbf16>
    %c64_48 = arith.constant 64 : index
    %c0_49 = arith.constant 0 : index
    %42 = vector.load %arg11[%c64_48, %c0_49] : memref<576x144xbf16, #tpu.memory_space<vmem>>, vector<64x144xbf16>
    tpu.vector_store %arg11[%c64_48, %c0_49], %41 {strides = array<i32>} : memref<576x144xbf16, #tpu.memory_space<vmem>>, vector<64x144xbf16>,
    %c0_50 = arith.constant 0 : index
    %c146 = arith.constant 146 : index
    %43 = vector.load %arg8[%c0_50, %c146] : memref<64x342xbf16, #tpu.memory_space<vmem>>, vector<64x144xbf16>
    %c128_51 = arith.constant 128 : index
    %c0_52 = arith.constant 0 : index
    %44 = vector.load %arg11[%c128_51, %c0_52] : memref<576x144xbf16, #tpu.memory_space<vmem>>, vector<64x144xbf16>
    tpu.vector_store %arg11[%c128_51, %c0_52], %43 {strides = array<i32>} : memref<576x144xbf16, #tpu.memory_space<vmem>>, vector<64x144xbf16>,
    %c0_53 = arith.constant 0 : index
    %c162 = arith.constant 162 : index
    %45 = vector.load %arg8[%c0_53, %c162] : memref<64x342xbf16, #tpu.memory_space<vmem>>, vector<64x144xbf16>
    %c192_54 = arith.constant 192 : index
    %c0_55 = arith.constant 0 : index
    %46 = vector.load %arg11[%c192_54, %c0_55] : memref<576x144xbf16, #tpu.memory_space<vmem>>, vector<64x144xbf16>
    tpu.vector_store %arg11[%c192_54, %c0_55], %45 {strides = array<i32>} : memref<576x144xbf16, #tpu.memory_space<vmem>>, vector<64x144xbf16>,
    %c0_56 = arith.constant 0 : index
    %c163 = arith.constant 163 : index
    %47 = vector.load %arg8[%c0_56, %c163] : memref<64x342xbf16, #tpu.memory_space<vmem>>, vector<64x144xbf16>
    %c256_57 = arith.constant 256 : index
    %c0_58 = arith.constant 0 : index
    %48 = vector.load %arg11[%c256_57, %c0_58] : memref<576x144xbf16, #tpu.memory_space<vmem>>, vector<64x144xbf16>
    tpu.vector_store %arg11[%c256_57, %c0_58], %47 {strides = array<i32>} : memref<576x144xbf16, #tpu.memory_space<vmem>>, vector<64x144xbf16>,
    %c0_59 = arith.constant 0 : index
    %c164 = arith.constant 164 : index
    %49 = vector.load %arg8[%c0_59, %c164] : memref<64x342xbf16, #tpu.memory_space<vmem>>, vector<64x144xbf16>
    %c320_60 = arith.constant 320 : index
    %c0_61 = arith.constant 0 : index
    %50 = vector.load %arg11[%c320_60, %c0_61] : memref<576x144xbf16, #tpu.memory_space<vmem>>, vector<64x144xbf16>
    tpu.vector_store %arg11[%c320_60, %c0_61], %49 {strides = array<i32>} : memref<576x144xbf16, #tpu.memory_space<vmem>>, vector<64x144xbf16>,
    %c0_62 = arith.constant 0 : index
    %c180 = arith.constant 180 : index
    %51 = vector.load %arg8[%c0_62, %c180] : memref<64x342xbf16, #tpu.memory_space<vmem>>, vector<64x144xbf16>
    %c384_63 = arith.constant 384 : index
    %c0_64 = arith.constant 0 : index
    %52 = vector.load %arg11[%c384_63, %c0_64] : memref<576x144xbf16, #tpu.memory_space<vmem>>, vector<64x144xbf16>
    tpu.vector_store %arg11[%c384_63, %c0_64], %51 {strides = array<i32>} : memref<576x144xbf16, #tpu.memory_space<vmem>>, vector<64x144xbf16>,
    %c0_65 = arith.constant 0 : index
    %c181 = arith.constant 181 : index
    %53 = vector.load %arg8[%c0_65, %c181] : memref<64x342xbf16, #tpu.memory_space<vmem>>, vector<64x144xbf16>
    %c448_66 = arith.constant 448 : index
    %c0_67 = arith.constant 0 : index
    %54 = vector.load %arg11[%c448_66, %c0_67] : memref<576x144xbf16, #tpu.memory_space<vmem>>, vector<64x144xbf16>
    tpu.vector_store %arg11[%c448_66, %c0_67], %53 {strides = array<i32>} : memref<576x144xbf16, #tpu.memory_space<vmem>>, vector<64x144xbf16>,
    %c0_68 = arith.constant 0 : index
    %c182 = arith.constant 182 : index
    %55 = vector.load %arg8[%c0_68, %c182] : memref<64x342xbf16, #tpu.memory_space<vmem>>, vector<64x144xbf16>
    %c512_69 = arith.constant 512 : index
    %c0_70 = arith.constant 0 : index
    %56 = vector.load %arg11[%c512_69, %c0_70] : memref<576x144xbf16, #tpu.memory_space<vmem>>, vector<64x144xbf16>
    tpu.vector_store %arg11[%c512_69, %c0_70], %55 {strides = array<i32>} : memref<576x144xbf16, #tpu.memory_space<vmem>>, vector<64x144xbf16>,
    %c0_71 = arith.constant 0 : index
    %c0_72 = arith.constant 0 : index
    %57 = vector.load %arg11[%c0_71, %c0_72] : memref<576x144xbf16, #tpu.memory_space<vmem>>, vector<576x144xbf16>
    %cst_73 = arith.constant dense<0.000000e+00> : vector<4x144xf32>
    %58 = tpu.matmul %12, %57, %cst_73 {dimension_numbers = #tpu.dot_dimension_numbers<[1], [0], [0], [1], [0, 0, 1, 1], [], []>} : vector<4x576xbf16>, vector<576x144xbf16>, vector<4x144xf32> -> vector<4x144xf32>
    %c0_74 = arith.constant 0 : index
    %c0_75 = arith.constant 0 : index
    %c163_76 = arith.constant 163 : index
    %59 = vector.load %arg1[%c0_74, %c0_75, %c163_76] : memref<1x4x342xf32, #tpu.memory_space<vmem>>, vector<1x4x144xf32>
    %60 = vector.shape_cast %59 : vector<1x4x144xf32> to vector<4x144xf32>
    %61 = arith.subf %60, %58 : vector<4x144xf32>
    %c0_77 = arith.constant 0 : index
    %c0_78 = arith.constant 0 : index
    %c144_79 = arith.constant 144 : index
    %62 = vector.load %arg7[%c0_77, %c0_78, %c144_79] : memref<1x4x288xf32, #tpu.memory_space<vmem>>, vector<1x4x144xf32>
    %63 = vector.shape_cast %62 : vector<1x4x144xf32> to vector<4x144xf32>
    %64 = vector.shape_cast %61 : vector<4x144xf32> to vector<1x4x144xf32>
    tpu.vector_store %arg7[%c0_77, %c0_78, %c144_79], %64 {strides = array<i32>} : memref<1x4x288xf32, #tpu.memory_space<vmem>>, vector<1x4x144xf32>,
    return
  }
  func.func @transform_0(%arg0: i32) -> (i32, i32, i32) {
    %c0_i32 = arith.constant 0 : i32
    %c0_i32_0 = arith.constant 0 : i32
    %c0_i32_1 = arith.constant 0 : i32
    return %arg0, %c0_i32, %c0_i32_0 : i32, i32, i32
  }
  func.func @transform_1(%arg0: i32) -> (i32, i32, i32) {
    %c0_i32 = arith.constant 0 : i32
    %c0_i32_0 = arith.constant 0 : i32
    %c0_i32_1 = arith.constant 0 : i32
    %c0_i32_2 = arith.constant 0 : i32
    return %c0_i32, %c0_i32_0, %c0_i32_1 : i32, i32, i32
  }
  func.func @transform_2(%arg0: i32) -> (i32, i32, i32) {
    %c0_i32 = arith.constant 0 : i32
    %c0_i32_0 = arith.constant 0 : i32
    %c0_i32_1 = arith.constant 0 : i32
    %c0_i32_2 = arith.constant 0 : i32
    return %c0_i32, %c0_i32_0, %c0_i32_1 : i32, i32, i32
  }
  func.func @transform_3(%arg0: i32) -> (i32, i32, i32) {
    %c0_i32 = arith.constant 0 : i32
    %c0_i32_0 = arith.constant 0 : i32
    %c0_i32_1 = arith.constant 0 : i32
    %c0_i32_2 = arith.constant 0 : i32
    return %c0_i32, %c0_i32_0, %c0_i32_1 : i32, i32, i32
  }
  func.func @transform_4(%arg0: i32) -> (i32, i32) {
    %c0_i32 = arith.constant 0 : i32
    %c0_i32_0 = arith.constant 0 : i32
    %c0_i32_1 = arith.constant 0 : i32
    return %c0_i32, %c0_i32_0 : i32, i32
  }
  func.func @transform_5(%arg0: i32) -> (i32, i32) {
    %c0_i32 = arith.constant 0 : i32
    %c0_i32_0 = arith.constant 0 : i32
    %c0_i32_1 = arith.constant 0 : i32
    return %c0_i32, %c0_i32_0 : i32, i32
  }
  func.func @transform_6(%arg0: i32) -> (i32, i32, i32) {
    %c0_i32 = arith.constant 0 : i32
    %c0_i32_0 = arith.constant 0 : i32
    %c0_i32_1 = arith.constant 0 : i32
    return %arg0, %c0_i32, %c0_i32_0 : i32, i32, i32
  }
}

</mosaic_0001>

<llo_original>
// kernel: dncnn_forward.1
$region0: #{dncnn_forward.1}
  #allocation0 [shape = 'u32[]', space=smem, size = 0x4, offset = 0x4, fixed_abs, tag = 'smem constant byte address 0x4 - core index']
  #allocation1 [shape = 'u32[72,128]{1,0:T(1,128)}', space=vmem, size = 0x9000, scoped, tag = 'internal scratch']
  #allocation2 [shape = 'bf16[64,342]{1,0:T(8,128)(2,1)}', space=vmem, size = 0xc000, scoped, tag = 'scratch operand']
  #allocation3 [shape = 'bf16[64,342]{1,0:T(8,128)(2,1)}', space=vmem, size = 0xc000, scoped, tag = 'scratch operand']
  #allocation4 [shape = 'bf16[576,144]{1,0:T(8,128)(2,1)}', space=vmem, size = 0x48000, scoped, tag = 'scratch operand']
  #allocation5 [shape = 'bf16[576,144]{1,0:T(8,128)(2,1)}', space=vmem, size = 0x48000, scoped, tag = 'scratch operand']
  %s0 = inlined_call_operand.vmem [shape: f32[2,4,342], index: 0, kind: input, shape index: {}]
  %s1 = inlined_call_operand.vmem [shape: bf16[16,64,576], index: 1, kind: input, shape index: {}]
  %s2 = inlined_call_operand.vmem [shape: f32[16,64,1], index: 2, kind: input, shape index: {}]
  %s3 = inlined_call_operand.vmem [shape: f32[16,64,1], index: 3, kind: input, shape index: {}]
  %s4 = inlined_call_operand.vmem [shape: bf16[4,576], index: 4, kind: input, shape index: {}]
  %s5 = inlined_call_operand.vmem [shape: f32[1,144], index: 5, kind: input, shape index: {}]
  %s6 = inlined_call_operand.vmem [shape: f32[2,4,288], index: 6, kind: output, shape index: {}]
  %s7 = sld [smem:[#allocation0]]
  $region64: #{dncnn_forward.1} parent=0
    _
  %s9 = ssub.s32 1, %s7
  %s10 = scalar_select 0, %s9, %s7
  loop: start=0, step=1, limit=4
  $region2: #{dncnn_forward.1} parent=0 // loop_pre_header
    _
  $region3: #{dncnn_forward.1} parent=0 // loop_header
    %s12 = sphi 0, %s16
    %p13 = scmp.ge.s32.totalorder %s12, 4
    %s22 = sphi 0, %s24
    %s25 = sphi 0, %s22
    %s26 = sphi 0, %s25
    %s42 = sphi 0, %s26
    %s46 = sphi 0, %s46
    %s48 = sphi 0, %s46
    %s49 = sphi 0, %s48
    %s63 = sphi 0, %s49
    %s67 = sphi 0, %s67
    %s69 = sphi 0, %s67
    %s70 = sphi 0, %s69
    %s84 = sphi 0, %s70
    %s88 = sphi 0, %s88
    %s90 = sphi 0, %s88
    %s91 = sphi 0, %s90
    %s105 = sphi 0, %s91
    %s109 = sphi 0, %s109
    %s111 = sphi 0, %s109
    %s112 = sphi 0, %s111
    %s126 = sphi 0, %s112
    %s130 = sphi 0, %s130
    %s132 = sphi 0, %s130
    %s133 = sphi 0, %s132
    %s147 = sphi 0, %s133
    %s153 = sphi 0, %s155
    %s156 = sphi 0, %s153
    %s157 = sphi 0, %s156
    %s173 = sphi 0, %s157
  $region4: #{dncnn_forward.1} parent=0 // loop_header_branch
    %15 = sbr.rel (%p13) target = $region8
  $region5: #{dncnn_forward.1} parent=0 // loop_body
    %s17 = ssub.s32 %s12, 1
    %s18 = ssub.s32 %s12, 2
    %s19 = sadd.s32 %s12, 1
    %s20 = ssub.s32 %s12, %s19
    %p21 = scmp.eq.s32.totalorder %s20, 0
    %s23 = sadd.s32 %s22, 1
    %s24 = scalar_select %p21, %s22, %s23
    %p27 = pneg %p21
    %p28 = scmp.eq.s32.totalorder %s12, 1
    %p29 = por %p27, %p28
    %p30 = scmp.ne.s32.totalorder %s22, %s25
    %p31 = scmp.eq.s32.totalorder %s12, 0
    %p32 = por %p30, %p31
    %p33 = scmp.ne.s32.totalorder %s22, %s25
    %p34 = scmp.eq.s32.totalorder %s17, 1
    %p35 = por %p33, %p34
    %p36 = scmp.ne.s32.totalorder %s25, %s26
    %p37 = scmp.eq.s32.totalorder %s17, 0
    %p38 = por %p36, %p37
    %p39 = scmp.ne.s32.totalorder %s25, %s26
    %p40 = scmp.eq.s32.totalorder %s18, 1
    %p41 = por %p39, %p40
    %p43 = scmp.ne.s32.totalorder %s26, %s42
    %p44 = scmp.eq.s32.totalorder %s18, 0
    %p45 = por %p43, %p44
    %s47 = sadd.s32 %s46, 1
    %p50 = scmp.eq.s32.totalorder %s12, 1
    %p51 = scmp.ne.s32.totalorder %s46, %s48
    %p52 = scmp.eq.s32.totalorder %s12, 0
    %p53 = por %p51, %p52
    %p54 = scmp.ne.s32.totalorder %s46, %s48
    %p55 = scmp.eq.s32.totalorder %s17, 1
    %p56 = por %p54, %p55
    %p57 = scmp.ne.s32.totalorder %s48, %s49
    %p58 = scmp.eq.s32.totalorder %s17, 0
    %p59 = por %p57, %p58
    %p60 = scmp.ne.s32.totalorder %s48, %s49
    %p61 = scmp.eq.s32.totalorder %s18, 1
    %p62 = por %p60, %p61
    %p64 = scmp.ne.s32.totalorder %s49, %s63
    %p65 = scmp.eq.s32.totalorder %s18, 0
    %p66 = por %p64, %p65
    %s68 = sadd.s32 %s67, 1
    %p71 = scmp.eq.s32.totalorder %s12, 1
    %p72 = scmp.ne.s32.totalorder %s67, %s69
    %p73 = scmp.eq.s32.totalorder %s12, 0
    %p74 = por %p72, %p73
    %p75 = scmp.ne.s32.totalorder %s67, %s69
    %p76 = scmp.eq.s32.totalorder %s17, 1
    %p77 = por %p75, %p76
    %p78 = scmp.ne.s32.totalorder %s69, %s70
    %p79 = scmp.eq.s32.totalorder %s17, 0
    %p80 = por %p78, %p79
    %p81 = scmp.ne.s32.totalorder %s69, %s70
    %p82 = scmp.eq.s32.totalorder %s18, 1
    %p83 = por %p81, %p82
    %p85 = scmp.ne.s32.totalorder %s70, %s84
    %p86 = scmp.eq.s32.totalorder %s18, 0
    %p87 = por %p85, %p86
    %s89 = sadd.s32 %s88, 1
    %p92 = scmp.eq.s32.totalorder %s12, 1
    %p93 = scmp.ne.s32.totalorder %s88, %s90
    %p94 = scmp.eq.s32.totalorder %s12, 0
    %p95 = por %p93, %p94
    %p96 = scmp.ne.s32.totalorder %s88, %s90
    %p97 = scmp.eq.s32.totalorder %s17, 1
    %p98 = por %p96, %p97
    %p99 = scmp.ne.s32.totalorder %s90, %s91
    %p100 = scmp.eq.s32.totalorder %s17, 0
    %p101 = por %p99, %p100
    %p102 = scmp.ne.s32.totalorder %s90, %s91
    %p103 = scmp.eq.s32.totalorder %s18, 1
    %p104 = por %p102, %p103
    %p106 = scmp.ne.s32.totalorder %s91, %s105
    %p107 = scmp.eq.s32.totalorder %s18, 0
    %p108 = por %p106, %p107
    %s110 = sadd.s32 %s109, 1
    %p113 = scmp.eq.s32.totalorder %s12, 1
    %p114 = scmp.ne.s32.totalorder %s109, %s111
    %p115 = scmp.eq.s32.totalorder %s12, 0
    %p116 = por %p114, %p115
    %p117 = scmp.ne.s32.totalorder %s109, %s111
    %p118 = scmp.eq.s32.totalorder %s17, 1
    %p119 = por %p117, %p118
    %p120 = scmp.ne.s32.totalorder %s111, %s112
    %p121 = scmp.eq.s32.totalorder %s17, 0
    %p122 = por %p120, %p121
    %p123 = scmp.ne.s32.totalorder %s111, %s112
    %p124 = scmp.eq.s32.totalorder %s18, 1
    %p125 = por %p123, %p124
    %p127 = scmp.ne.s32.totalorder %s112, %s126
    %p128 = scmp.eq.s32.totalorder %s18, 0
    %p129 = por %p127, %p128
    %s131 = sadd.s32 %s130, 1
    %p134 = scmp.eq.s32.totalorder %s12, 1
    %p135 = scmp.ne.s32.totalorder %s130, %s132
    %p136 = scmp.eq.s32.totalorder %s12, 0
    %p137 = por %p135, %p136
    %p138 = scmp.ne.s32.totalorder %s130, %s132
    %p139 = scmp.eq.s32.totalorder %s17, 1
    %p140 = por %p138, %p139
    %p141 = scmp.ne.s32.totalorder %s132, %s133
    %p142 = scmp.eq.s32.totalorder %s17, 0
    %p143 = por %p141, %p142
    %p144 = scmp.ne.s32.totalorder %s132, %s133
    %p145 = scmp.eq.s32.totalorder %s18, 1
    %p146 = por %p144, %p145
    %p148 = scmp.ne.s32.totalorder %s133, %s147
    %p149 = scmp.eq.s32.totalorder %s18, 0
    %p150 = por %p148, %p149
    %s151 = ssub.s32 %s12, %s19
    %p152 = scmp.eq.s32.totalorder %s151, 0
    %s154 = sadd.s32 %s153, 1
    %s155 = scalar_select %p152, %s153, %s154
    %p158 = pneg %p152
    %p159 = scmp.eq.s32.totalorder %s12, 1
    %p160 = por %p158, %p159
    %p161 = scmp.ne.s32.totalorder %s153, %s156
    %p162 = scmp.eq.s32.totalorder %s12, 0
    %p163 = por %p161, %p162
    %p164 = scmp.ne.s32.totalorder %s153, %s156
    %p165 = scmp.eq.s32.totalorder %s17, 1
    %p166 = por %p164, %p165
    %p167 = scmp.ne.s32.totalorder %s156, %s157
    %p168 = scmp.eq.s32.totalorder %s17, 0
    %p169 = por %p167, %p168
    %p170 = scmp.ne.s32.totalorder %s156, %s157
    %p171 = scmp.eq.s32.totalorder %s18, 1
    %p172 = por %p170, %p171
    %p174 = scmp.ne.s32.totalorder %s157, %s173
    %p175 = scmp.eq.s32.totalorder %s18, 0
    %p176 = por %p174, %p175
    %p177 = scmp.le.s32.totalorder 1, %s12
    %p178 = scmp.lt.s32.totalorder %s12, 3
    %p179 = pnand %p177, %p178
    %p180 = pneg %p179
    // Predicated region
    $region9: #{dncnn_forward.1} parent=5 // pred_check
      _
    $region10: #{dncnn_forward.1} parent=5 // pred_check_branch
      %182 = sbr.rel (%p179) target = $region12
    $region11: #{dncnn_forward.1} parent=5 // pred_region
      %s183 = ssub.s32 %s12, 1
      // Predicated region
      $region13: #{dncnn_forward.1} parent=11 // pred_check
        %p184 = pneg %p59
      $region14: #{dncnn_forward.1} parent=11 // pred_check_branch
        %186 = sbr.rel (%p184) target = $region16
      $region15: #{dncnn_forward.1} parent=11 // pred_region
        _
      $region16: #{dncnn_forward.1} parent=11 // pred_fallthru
        _
      // Predicated region
      $region17: #{dncnn_forward.1} parent=11 // pred_check
        %p187 = pneg %p80
      $region18: #{dncnn_forward.1} parent=11 // pred_check_branch
        %189 = sbr.rel (%p187) target = $region20
      $region19: #{dncnn_forward.1} parent=11 // pred_region
        _
      $region20: #{dncnn_forward.1} parent=11 // pred_fallthru
        _
      // Predicated region
      $region21: #{dncnn_forward.1} parent=11 // pred_check
        %p190 = pneg %p101
      $region22: #{dncnn_forward.1} parent=11 // pred_check_branch
        %192 = sbr.rel (%p190) target = $region24
      $region23: #{dncnn_forward.1} parent=11 // pred_region
        _
      $region24: #{dncnn_forward.1} parent=11 // pred_fallthru
        _
      // Predicated region
      $region25: #{dncnn_forward.1} parent=11 // pred_check
        %p193 = pneg %p122
      $region26: #{dncnn_forward.1} parent=11 // pred_check_branch
        %195 = sbr.rel (%p193) target = $region28
      $region27: #{dncnn_forward.1} parent=11 // pred_region
        _
      $region28: #{dncnn_forward.1} parent=11 // pred_fallthru
        _
      // Predicated region
      $region29: #{dncnn_forward.1} parent=11 // pred_check
        %p196 = pneg %p143
      $region30: #{dncnn_forward.1} parent=11 // pred_check_branch
        %198 = sbr.rel (%p196) target = $region32
      $region31: #{dncnn_forward.1} parent=11 // pred_region
        _
      $region32: #{dncnn_forward.1} parent=11 // pred_fallthru
        _
    $region12: #{dncnn_forward.1} parent=5 // pred_fallthru
      _
    %p199 = scmp.lt.s32.totalorder %s12, 2
    // Predicated region
    $region33: #{dncnn_forward.1} parent=5 // pred_check
      %p200 = pneg %p199
    $region34: #{dncnn_forward.1} parent=5 // pred_check_branch
      %202 = sbr.rel (%p200) target = $region36
    $region35: #{dncnn_forward.1} parent=5 // pred_region
      // Predicated region
      $region37: #{dncnn_forward.1} parent=35 // pred_check
        %p203 = pneg %p32
      $region38: #{dncnn_forward.1} parent=35 // pred_check_branch
        %205 = sbr.rel (%p203) target = $region40
      $region39: #{dncnn_forward.1} parent=35 // pred_region
        %p206 = scmp.lt.s32.totalorder %s12, 1
        %s207 = scalar_select %p206, %s12, 1
        %s208 = smul.addr %s207, 3
        %s209 = smul.addr %s208, 4
        %s210 = scalar_lea.vmem %s0, %s209
      $region40: #{dncnn_forward.1} parent=35 // pred_fallthru
        _
    $region36: #{dncnn_forward.1} parent=5 // pred_fallthru
      _
    %p211 = scmp.le.s32.totalorder 1, %s12
    %p212 = scmp.lt.s32.totalorder %s12, 3
    %p213 = pnand %p211, %p212
    %p214 = pneg %p213
    // Predicated region
    $region41: #{dncnn_forward.1} parent=5 // pred_check
      _
    $region42: #{dncnn_forward.1} parent=5 // pred_check_branch
      %216 = sbr.rel (%p213) target = $region44
    $region43: #{dncnn_forward.1} parent=5 // pred_region
      %s217 = ssub.s32 %s12, 1
      %p218 = scmp.lt.s32.totalorder %s17, 1
      %s219 = scalar_select %p218, %s17, 1
      %s220 = smul.addr %s219, 3
      %s221 = smul.addr %s220, 4
      %s222 = scalar_lea.vmem %s0, %s221
      %p223 = pneg %p38
      %p224 = pneg %p35
      %p225 = pneg %p59
      %p226 = pneg %p56
      %p227 = pneg %p80
      %p228 = pneg %p77
      %p229 = pneg %p101
      %p230 = pneg %p98
      %p231 = pneg %p122
      %p232 = pneg %p119
      %p233 = pneg %p143
      %p234 = pneg %p140
      %p235 = pneg %p169
      %p236 = pneg %p166
      %p237 = scmp.lt.s32.totalorder %s17, 1
      %s238 = scalar_select %p237, %s17, 1
      %s239 = smul.addr %s238, 3
      %s240 = smul.addr %s239, 4
      %s241 = scalar_lea.vmem %s6, %s240
      %p242 = scmp.lt.s32.totalorder %s17, 1
      %s243 = scalar_select %p242, %s17, 1
      %s244 = smul.addr %s243, 3
      %s245 = smul.addr %s244, 4
      %s246 = scalar_lea.vmem %s0, %s245
      %p247 = scmp.lt.s32.totalorder %s17, 1
      %s248 = scalar_select %p247, %s17, 1
      %s249 = smul.addr %s248, 3
      %s250 = smul.addr %s249, 4
      %s251 = scalar_lea.vmem %s6, %s250
      %v253 = vld [vmem:[%s246] sm:$0xff]
      %v254 = vld [vmem:[%s246 + $0x8] sm:$0xf]
      %257 = vst [vmem:[#allocation1] ss:$2 sm:$0xff] %v253
      %s258 = scalar_lea.vmem [#allocation1], 16
      %259 = vst [vmem:[%s258] ss:$2 sm:$0xff] %v254
      %v260 = vld.sshfl [vmem:[#allocation1] sm:$0xff pattern:$0x75316420]
      %v261 = vld.sshfl [vmem:[#allocation1 + $0x8] sm:$0xff pattern:$0x75316420]
      %v262 = vld.sshfl [vmem:[#allocation1 + $0x10] sm:$0xff pattern:$0x75316420]
      %v266 = vpack.c.bf16 %v261, %v260
      %v267 = vpack.c.bf16 %v262, %v262
      %268 = vst [vmem:[#allocation2] sm:$0x33] %v266
      %vm269 = vcmask 697344
      %270 = vst.msk [vmem:[#allocation2 + $0x8] sm:$0x3] %vm269, %v267
      %271 = vst [vmem:[#allocation2] sm:$0xcc] 0
      %vm272 = vcmask 699394
      %273 = vst.msk [vmem:[#allocation2 + $0x8] sm:$0xc] %vm272, 0
      %274 = vst [vmem:[#allocation2 + $0xc] sm:$0xff] 0
      %vm275 = vcmask 699392
      %276 = vst.msk [vmem:[#allocation2 + $0x14] sm:$0xf] %vm275, 0
      %277 = vst [vmem:[#allocation2 + $0x18] sm:$0xff] 0
      %278 = vst.msk [vmem:[#allocation2 + $0x20] sm:$0xf] %vm275, 0
      %279 = vst [vmem:[#allocation2 + $0x24] sm:$0xff] 0
      %280 = vst.msk [vmem:[#allocation2 + $0x2c] sm:$0xf] %vm275, 0
      %281 = vst [vmem:[#allocation2 + $0x30] sm:$0xff] 0
      %282 = vst.msk [vmem:[#allocation2 + $0x38] sm:$0xf] %vm275, 0
      %283 = vst [vmem:[#allocation2 + $0x3c] sm:$0xff] 0
      %284 = vst.msk [vmem:[#allocation2 + $0x44] sm:$0xf] %vm275, 0
      %285 = vst [vmem:[#allocation2 + $0x48] sm:$0xff] 0
      %286 = vst.msk [vmem:[#allocation2 + $0x50] sm:$0xf] %vm275, 0
      %287 = vst [vmem:[#allocation2 + $0x54] sm:$0xff] 0
      %288 = vst.msk [vmem:[#allocation2 + $0x5c] sm:$0xf] %vm275, 0
      %vm289 = vcmask 150528
      %290 = vst.msk [vmem:[#allocation3] sm:$0xf] %vm289, 0
      %291 = vst.msk [vmem:[#allocation3 + $0xc] sm:$0xf] %vm289, 0
      %292 = vst.msk [vmem:[#allocation3 + $0x18] sm:$0xf] %vm289, 0
      %293 = vst.msk [vmem:[#allocation3 + $0x24] sm:$0xf] %vm289, 0
      %294 = vst.msk [vmem:[#allocation3 + $0x30] sm:$0xf] %vm289, 0
      %295 = vst.msk [vmem:[#allocation3 + $0x3c] sm:$0xf] %vm289, 0
      %296 = vst.msk [vmem:[#allocation3 + $0x48] sm:$0xf] %vm289, 0
      %297 = vst.msk [vmem:[#allocation3 + $0x54] sm:$0xf] %vm289, 0
      %vm298 = vcmask 699800
      %299 = vst.msk [vmem:[#allocation3 + $0x8] sm:$0xf] %vm298, 0
      %300 = vst.msk [vmem:[#allocation3 + $0x14] sm:$0xf] %vm298, 0
      %301 = vst.msk [vmem:[#allocation3 + $0x20] sm:$0xf] %vm298, 0
      %302 = vst.msk [vmem:[#allocation3 + $0x2c] sm:$0xf] %vm298, 0
      %303 = vst.msk [vmem:[#allocation3 + $0x38] sm:$0xf] %vm298, 0
      %304 = vst.msk [vmem:[#allocation3 + $0x44] sm:$0xf] %vm298, 0
      %305 = vst.msk [vmem:[#allocation3 + $0x50] sm:$0xf] %vm298, 0
      %306 = vst.msk [vmem:[#allocation3 + $0x5c] sm:$0xf] %vm298, 0
      %v307 = vld [vmem:[%s5] sm:$0x3]
      loop: start=0, step=1, limit=8
      $region45: #{dncnn_forward.1} parent=43 // loop_pre_header
        _
      $region46: #{dncnn_forward.1} parent=43 // loop_header
        %s309 = sphi 0, %s313
        %p310 = scmp.ge.s32.totalorder %s309, 8
      $region47: #{dncnn_forward.1} parent=43 // loop_header_branch
        %312 = sbr.rel (%p310) target = $region51
      $region48: #{dncnn_forward.1} parent=43 // loop_body
        %s314 = smul.u32 %s309, 2
        %s315 = smul.u32 %s314, 40
        %s316 = smul.addr %s315, 4
        %s317 = scalar_lea.vmem %s1, %s316
        %v318 = vld [vmem:[%s317] sm:$0xff]
        %v319 = vld [vmem:[%s317 + $0x8] sm:$0xff]
        %v320 = vld [vmem:[%s317 + $0x10] sm:$0xf]
        %v321 = vld [vmem:[%s317 + $0x14] sm:$0xff]
        %v322 = vld [vmem:[%s317 + $0x1c] sm:$0xff]
        %v323 = vld [vmem:[%s317 + $0x24] sm:$0xf]
        %v324 = vld [vmem:[%s317 + $0x28] sm:$0xff]
        %v325 = vld [vmem:[%s317 + $0x30] sm:$0xff]
        %v326 = vld [vmem:[%s317 + $0x38] sm:$0xf]
        %v327 = vld [vmem:[%s317 + $0x3c] sm:$0xff]
        %v328 = vld [vmem:[%s317 + $0x44] sm:$0xff]
        %v329 = vld [vmem:[%s317 + $0x4c] sm:$0xf]
        %v330 = vld [vmem:[%s317 + $0x50] sm:$0xff]
        %v331 = vld [vmem:[%s317 + $0x58] sm:$0xff]
        %v332 = vld [vmem:[%s317 + $0x60] sm:$0xf]
        %v333 = vld [vmem:[%s317 + $0x64] sm:$0xff]
        %v334 = vld [vmem:[%s317 + $0x6c] sm:$0xff]
        %v335 = vld [vmem:[%s317 + $0x74] sm:$0xf]
        %v336 = vld [vmem:[%s317 + $0x78] sm:$0xff]
        %v337 = vld [vmem:[%s317 + $0x80] sm:$0xff]
        %v338 = vld [vmem:[%s317 + $0x88] sm:$0xf]
        %v339 = vld [vmem:[%s317 + $0x8c] sm:$0xff]
        %v340 = vld [vmem:[%s317 + $0x94] sm:$0xff]
        %v341 = vld [vmem:[%s317 + $0x9c] sm:$0xf]
        %s342 = smul.u32 %s314, 64
        %s343 = scalar_lea.vmem %s2, %s342
        %v344 = vld [vmem:[%s343] sm:$0xff]
        %v345 = vld [vmem:[%s343 + $0x8] sm:$0xff]
        %v346 = vld [vmem:[%s343 + $0x10] sm:$0xff]
        %v347 = vld [vmem:[%s343 + $0x18] sm:$0xff]
        %v348 = vld [vmem:[%s343 + $0x20] sm:$0xff]
        %v349 = vld [vmem:[%s343 + $0x28] sm:$0xff]
        %v350 = vld [vmem:[%s343 + $0x30] sm:$0xff]
        %v351 = vld [vmem:[%s343 + $0x38] sm:$0xff]
        %s352 = scalar_lea.vmem %s3, %s342
        %v353 = vld [vmem:[%s352] sm:$0xff]
        %v354 = vld [vmem:[%s352 + $0x8] sm:$0xff]
        %v355 = vld [vmem:[%s352 + $0x10] sm:$0xff]
        %v356 = vld [vmem:[%s352 + $0x18] sm:$0xff]
        %v357 = vld [vmem:[%s352 + $0x20] sm:$0xff]
        %v358 = vld [vmem:[%s352 + $0x28] sm:$0xff]
        %v359 = vld [vmem:[%s352 + $0x30] sm:$0xff]
        %v360 = vld [vmem:[%s352 + $0x38] sm:$0xff]
        %v361 = vld [vmem:[#allocation2] sm:$0xff]
        %v362 = vld [vmem:[#allocation2 + $0xc] sm:$0xff]
        %v363 = vld [vmem:[#allocation2 + $0x18] sm:$0xff]
        %v364 = vld [vmem:[#allocation2 + $0x24] sm:$0xff]
        %v365 = vld [vmem:[#allocation2 + $0x30] sm:$0xff]
        %v366 = vld [vmem:[#allocation2 + $0x3c] sm:$0xff]
        %v367 = vld [vmem:[#allocation2 + $0x48] sm:$0xff]
        %v368 = vld [vmem:[#allocation2 + $0x54] sm:$0xff]
        %vm369 = vcmask 1043456
        %vm370 = vcmask 130052
        %vm371 = vmor %vm370, %vm369
        %372 = vst.msk [vmem:[#allocation4] sm:$0xff] %vm371, %v361
        %373 = vst.msk [vmem:[#allocation4 + $0x8] sm:$0xff] %vm371, %v362
        %374 = vst.msk [vmem:[#allocation4 + $0x10] sm:$0xff] %vm371, %v363
        %375 = vst.msk [vmem:[#allocation4 + $0x18] sm:$0xff] %vm371, %v364
        %376 = vst.msk [vmem:[#allocation4 + $0x20] sm:$0xff] %vm371, %v365
        %377 = vst.msk [vmem:[#allocation4 + $0x28] sm:$0xff] %vm371, %v366
        %378 = vst.msk [vmem:[#allocation4 + $0x30] sm:$0xff] %vm371, %v367
        %379 = vst.msk [vmem:[#allocation4 + $0x38] sm:$0xff] %vm371, %v368
        %v380 = vld [vmem:[#allocation2] sm:$0xff]
        %v381 = vld [vmem:[#allocation2 + $0xc] sm:$0xff]
        %v382 = vld [vmem:[#allocation2 + $0x18] sm:$0xff]
        %v383 = vld [vmem:[#allocation2 + $0x24] sm:$0xff]
        %v384 = vld [vmem:[#allocation2 + $0x30] sm:$0xff]
        %v385 = vld [vmem:[#allocation2 + $0x3c] sm:$0xff]
        %v386 = vld [vmem:[#allocation2 + $0x48] sm:$0xff]
        %v387 = vld [vmem:[#allocation2 + $0x54] sm:$0xff]
        %396 = vrot.lane.b32.xlu0 %v380, 127
        %v397 = vpop.permute.xlu0 %396
        %398 = vrot.lane.b32.xlu0 %v381, 127
        %v399 = vpop.permute.xlu0 %398
        %400 = vrot.lane.b32.xlu0 %v382, 127
        %v401 = vpop.permute.xlu0 %400
        %402 = vrot.lane.b32.xlu0 %v383, 127
        %v403 = vpop.permute.xlu0 %402
        %404 = vrot.lane.b32.xlu0 %v384, 127
        %v405 = vpop.permute.xlu0 %404
        %406 = vrot.lane.b32.xlu0 %v385, 127
        %v407 = vpop.permute.xlu0 %406
        %408 = vrot.lane.b32.xlu0 %v386, 127
        %v409 = vpop.permute.xlu0 %408
        %410 = vrot.lane.b32.xlu0 %v387, 127
        %v411 = vpop.permute.xlu0 %410
        %v412 = vrot.slane %v397, 4
        %v413 = vrot.slane %v399, 4
        %v414 = vrot.slane %v401, 4
        %v415 = vrot.slane %v403, 4
        %v416 = vrot.slane %v405, 4
        %v417 = vrot.slane %v407, 4
        %v418 = vrot.slane %v409, 4
        %v419 = vrot.slane %v411, 4
        %vm420 = vcmask 1039360
        %v421 = vsel %vm420, %v397, %v412
        %v422 = vsel %vm420, %v399, %v413
        %v423 = vsel %vm420, %v401, %v414
        %v424 = vsel %vm420, %v403, %v415
        %v425 = vsel %vm420, %v405, %v416
        %v426 = vsel %vm420, %v407, %v417
        %v427 = vsel %vm420, %v409, %v418
        %v428 = vsel %vm420, %v411, %v419
        %437 = vst.msk [vmem:[#allocation4 + $0x40] sm:$0xff] %vm371, %v421
        %438 = vst.msk [vmem:[#allocation4 + $0x48] sm:$0xff] %vm371, %v422
        %439 = vst.msk [vmem:[#allocation4 + $0x50] sm:$0xff] %vm371, %v423
        %440 = vst.msk [vmem:[#allocation4 + $0x58] sm:$0xff] %vm371, %v424
        %441 = vst.msk [vmem:[#allocation4 + $0x60] sm:$0xff] %vm371, %v425
        %442 = vst.msk [vmem:[#allocation4 + $0x68] sm:$0xff] %vm371, %v426
        %443 = vst.msk [vmem:[#allocation4 + $0x70] sm:$0xff] %vm371, %v427
        %444 = vst.msk [vmem:[#allocation4 + $0x78] sm:$0xff] %vm371, %v428
        %v445 = vld [vmem:[#allocation2] sm:$0xff]
        %v446 = vld [vmem:[#allocation2 + $0xc] sm:$0xff]
        %v447 = vld [vmem:[#allocation2 + $0x18] sm:$0xff]
        %v448 = vld [vmem:[#allocation2 + $0x24] sm:$0xff]
        %v449 = vld [vmem:[#allocation2 + $0x30] sm:$0xff]
        %v450 = vld [vmem:[#allocation2 + $0x3c] sm:$0xff]
        %v451 = vld [vmem:[#allocation2 + $0x48] sm:$0xff]
        %v452 = vld [vmem:[#allocation2 + $0x54] sm:$0xff]
        %461 = vrot.lane.b32.xlu0 %v445, 126
        %v462 = vpop.permute.xlu0 %461
        %463 = vrot.lane.b32.xlu0 %v446, 126
        %v464 = vpop.permute.xlu0 %463
        %465 = vrot.lane.b32.xlu0 %v447, 126
        %v466 = vpop.permute.xlu0 %465
        %467 = vrot.lane.b32.xlu0 %v448, 126
        %v468 = vpop.permute.xlu0 %467
        %469 = vrot.lane.b32.xlu0 %v449, 126
        %v470 = vpop.permute.xlu0 %469
        %471 = vrot.lane.b32.xlu0 %v450, 126
        %v472 = vpop.permute.xlu0 %471
        %473 = vrot.lane.b32.xlu0 %v451, 126
        %v474 = vpop.permute.xlu0 %473
        %475 = vrot.lane.b32.xlu0 %v452, 126
        %v476 = vpop.permute.xlu0 %475
        %v477 = vrot.slane %v462, 4
        %v478 = vrot.slane %v464, 4
        %v479 = vrot.slane %v466, 4
        %v480 = vrot.slane %v468, 4
        %v481 = vrot.slane %v470, 4
        %v482 = vrot.slane %v472, 4
        %v483 = vrot.slane %v474, 4
        %v484 = vrot.slane %v476, 4
        %vm485 = vcmask 1031168
        %v486 = vsel %vm485, %v462, %v477
        %v487 = vsel %vm485, %v464, %v478
        %v488 = vsel %vm485, %v466, %v479
        %v489 = vsel %vm485, %v468, %v480
        %v490 = vsel %vm485, %v470, %v481
        %v491 = vsel %vm485, %v472, %v482
        %v492 = vsel %vm485, %v474, %v483
        %v493 = vsel %vm485, %v476, %v484
        %502 = vst.msk [vmem:[#allocation4 + $0x80] sm:$0xff] %vm371, %v486
        %503 = vst.msk [vmem:[#allocation4 + $0x88] sm:$0xff] %vm371, %v487
        %504 = vst.msk [vmem:[#allocation4 + $0x90] sm:$0xff] %vm371, %v488
        %505 = vst.msk [vmem:[#allocation4 + $0x98] sm:$0xff] %vm371, %v489
        %506 = vst.msk [vmem:[#allocation4 + $0xa0] sm:$0xff] %vm371, %v490
        %507 = vst.msk [vmem:[#allocation4 + $0xa8] sm:$0xff] %vm371, %v491
        %508 = vst.msk [vmem:[#allocation4 + $0xb0] sm:$0xff] %vm371, %v492
        %509 = vst.msk [vmem:[#allocation4 + $0xb8] sm:$0xff] %vm371, %v493
        %v510 = vld [vmem:[#allocation2] sm:$0xff]
        %v511 = vld [vmem:[#allocation2 + $0xc] sm:$0xff]
        %v512 = vld [vmem:[#allocation2 + $0x18] sm:$0xff]
        %v513 = vld [vmem:[#allocation2 + $0x24] sm:$0xff]
        %v514 = vld [vmem:[#allocation2 + $0x30] sm:$0xff]
        %v515 = vld [vmem:[#allocation2 + $0x3c] sm:$0xff]
        %v516 = vld [vmem:[#allocation2 + $0x48] sm:$0xff]
        %v517 = vld [vmem:[#allocation2 + $0x54] sm:$0xff]
        %526 = vrot.lane.b32.xlu0 %v510, 110
        %v527 = vpop.permute.xlu0 %526
        %528 = vrot.lane.b32.xlu0 %v511, 110
        %v529 = vpop.permute.xlu0 %528
        %530 = vrot.lane.b32.xlu0 %v512, 110
        %v531 = vpop.permute.xlu0 %530
        %532 = vrot.lane.b32.xlu0 %v513, 110
        %v533 = vpop.permute.xlu0 %532
        %534 = vrot.lane.b32.xlu0 %v514, 110
        %v535 = vpop.permute.xlu0 %534
        %536 = vrot.lane.b32.xlu0 %v515, 110
        %v537 = vpop.permute.xlu0 %536
        %538 = vrot.lane.b32.xlu0 %v516, 110
        %v539 = vpop.permute.xlu0 %538
        %540 = vrot.lane.b32.xlu0 %v517, 110
        %v541 = vpop.permute.xlu0 %540
        %v542 = vrot.slane %v527, 4
        %v543 = vrot.slane %v529, 4
        %v544 = vrot.slane %v531, 4
        %v545 = vrot.slane %v533, 4
        %v546 = vrot.slane %v535, 4
        %v547 = vrot.slane %v537, 4
        %v548 = vrot.slane %v539, 4
        %v549 = vrot.slane %v541, 4
        %vm550 = vcmask 900096
        %v551 = vsel %vm550, %v527, %v542
        %v552 = vsel %vm550, %v529, %v543
        %v553 = vsel %vm550, %v531, %v544
        %v554 = vsel %vm550, %v533, %v545
        %v555 = vsel %vm550, %v535, %v546
        %v556 = vsel %vm550, %v537, %v547
        %v557 = vsel %vm550, %v539, %v548
        %v558 = vsel %vm550, %v541, %v549
        %567 = vst.msk [vmem:[#allocation4 + $0xc0] sm:$0xff] %vm371, %v551
        %568 = vst.msk [vmem:[#allocation4 + $0xc8] sm:$0xff] %vm371, %v552
        %569 = vst.msk [vmem:[#allocation4 + $0xd0] sm:$0xff] %vm371, %v553
        %570 = vst.msk [vmem:[#allocation4 + $0xd8] sm:$0xff] %vm371, %v554
        %571 = vst.msk [vmem:[#allocation4 + $0xe0] sm:$0xff] %vm371, %v555
        %572 = vst.msk [vmem:[#allocation4 + $0xe8] sm:$0xff] %vm371, %v556
        %573 = vst.msk [vmem:[#allocation4 + $0xf0] sm:$0xff] %vm371, %v557
        %574 = vst.msk [vmem:[#allocation4 + $0xf8] sm:$0xff] %vm371, %v558
        %v575 = vld [vmem:[#allocation2] sm:$0xff]
        %v576 = vld [vmem:[#allocation2 + $0xc] sm:$0xff]
        %v577 = vld [vmem:[#allocation2 + $0x18] sm:$0xff]
        %v578 = vld [vmem:[#allocation2 + $0x24] sm:$0xff]
        %v579 = vld [vmem:[#allocation2 + $0x30] sm:$0xff]
        %v580 = vld [vmem:[#allocation2 + $0x3c] sm:$0xff]
        %v581 = vld [vmem:[#allocation2 + $0x48] sm:$0xff]
        %v582 = vld [vmem:[#allocation2 + $0x54] sm:$0xff]
        %591 = vrot.lane.b32.xlu0 %v575, 109
        %v592 = vpop.permute.xlu0 %591
        %593 = vrot.lane.b32.xlu0 %v576, 109
        %v594 = vpop.permute.xlu0 %593
        %595 = vrot.lane.b32.xlu0 %v577, 109
        %v596 = vpop.permute.xlu0 %595
        %597 = vrot.lane.b32.xlu0 %v578, 109
        %v598 = vpop.permute.xlu0 %597
        %599 = vrot.lane.b32.xlu0 %v579, 109
        %v600 = vpop.permute.xlu0 %599
        %601 = vrot.lane.b32.xlu0 %v580, 109
        %v602 = vpop.permute.xlu0 %601
        %603 = vrot.lane.b32.xlu0 %v581, 109
        %v604 = vpop.permute.xlu0 %603
        %605 = vrot.lane.b32.xlu0 %v582, 109
        %v606 = vpop.permute.xlu0 %605
        %v607 = vrot.slane %v592, 4
        %v608 = vrot.slane %v594, 4
        %v609 = vrot.slane %v596, 4
        %v610 = vrot.slane %v598, 4
        %v611 = vrot.slane %v600, 4
        %v612 = vrot.slane %v602, 4
        %v613 = vrot.slane %v604, 4
        %v614 = vrot.slane %v606, 4
        %vm615 = vcmask 891904
        %v616 = vsel %vm615, %v592, %v607
        %v617 = vsel %vm615, %v594, %v608
        %v618 = vsel %vm615, %v596, %v609
        %v619 = vsel %vm615, %v598, %v610
        %v620 = vsel %vm615, %v600, %v611
        %v621 = vsel %vm615, %v602, %v612
        %v622 = vsel %vm615, %v604, %v613
        %v623 = vsel %vm615, %v606, %v614
        %632 = vst.msk [vmem:[#allocation4 + $0x100] sm:$0xff] %vm371, %v616
        %633 = vst.msk [vmem:[#allocation4 + $0x108] sm:$0xff] %vm371, %v617
        %634 = vst.msk [vmem:[#allocation4 + $0x110] sm:$0xff] %vm371, %v618
        %635 = vst.msk [vmem:[#allocation4 + $0x118] sm:$0xff] %vm371, %v619
        %636 = vst.msk [vmem:[#allocation4 + $0x120] sm:$0xff] %vm371, %v620
        %637 = vst.msk [vmem:[#allocation4 + $0x128] sm:$0xff] %vm371, %v621
        %638 = vst.msk [vmem:[#allocation4 + $0x130] sm:$0xff] %vm371, %v622
        %639 = vst.msk [vmem:[#allocation4 + $0x138] sm:$0xff] %vm371, %v623
        %v640 = vld [vmem:[#allocation2] sm:$0xff]
        %v641 = vld [vmem:[#allocation2 + $0xc] sm:$0xff]
        %v642 = vld [vmem:[#allocation2 + $0x18] sm:$0xff]
        %v643 = vld [vmem:[#allocation2 + $0x24] sm:$0xff]
        %v644 = vld [vmem:[#allocation2 + $0x30] sm:$0xff]
        %v645 = vld [vmem:[#allocation2 + $0x3c] sm:$0xff]
        %v646 = vld [vmem:[#allocation2 + $0x48] sm:$0xff]
        %v647 = vld [vmem:[#allocation2 + $0x54] sm:$0xff]
        %656 = vrot.lane.b32.xlu0 %v640, 108
        %v657 = vpop.permute.xlu0 %656
        %658 = vrot.lane.b32.xlu0 %v641, 108
        %v659 = vpop.permute.xlu0 %658
        %660 = vrot.lane.b32.xlu0 %v642, 108
        %v661 = vpop.permute.xlu0 %660
        %662 = vrot.lane.b32.xlu0 %v643, 108
        %v663 = vpop.permute.xlu0 %662
        %664 = vrot.lane.b32.xlu0 %v644, 108
        %v665 = vpop.permute.xlu0 %664
        %666 = vrot.lane.b32.xlu0 %v645, 108
        %v667 = vpop.permute.xlu0 %666
        %668 = vrot.lane.b32.xlu0 %v646, 108
        %v669 = vpop.permute.xlu0 %668
        %670 = vrot.lane.b32.xlu0 %v647, 108
        %v671 = vpop.permute.xlu0 %670
        %v672 = vrot.slane %v657, 4
        %v673 = vrot.slane %v659, 4
        %v674 = vrot.slane %v661, 4
        %v675 = vrot.slane %v663, 4
        %v676 = vrot.slane %v665, 4
        %v677 = vrot.slane %v667, 4
        %v678 = vrot.slane %v669, 4
        %v679 = vrot.slane %v671, 4
        %vm680 = vcmask 883712
        %v681 = vsel %vm680, %v657, %v672
        %v682 = vsel %vm680, %v659, %v673
        %v683 = vsel %vm680, %v661, %v674
        %v684 = vsel %vm680, %v663, %v675
        %v685 = vsel %vm680, %v665, %v676
        %v686 = vsel %vm680, %v667, %v677
        %v687 = vsel %vm680, %v669, %v678
        %v688 = vsel %vm680, %v671, %v679
        %697 = vst.msk [vmem:[#allocation4 + $0x140] sm:$0xff] %vm371, %v681
        %698 = vst.msk [vmem:[#allocation4 + $0x148] sm:$0xff] %vm371, %v682
        %699 = vst.msk [vmem:[#allocation4 + $0x150] sm:$0xff] %vm371, %v683
        %700 = vst.msk [vmem:[#allocation4 + $0x158] sm:$0xff] %vm371, %v684
        %701 = vst.msk [vmem:[#allocation4 + $0x160] sm:$0xff] %vm371, %v685
        %702 = vst.msk [vmem:[#allocation4 + $0x168] sm:$0xff] %vm371, %v686
        %703 = vst.msk [vmem:[#allocation4 + $0x170] sm:$0xff] %vm371, %v687
        %704 = vst.msk [vmem:[#allocation4 + $0x178] sm:$0xff] %vm371, %v688
        %v705 = vld [vmem:[#allocation2] sm:$0xff]
        %v706 = vld [vmem:[#allocation2 + $0xc] sm:$0xff]
        %v707 = vld [vmem:[#allocation2 + $0x18] sm:$0xff]
        %v708 = vld [vmem:[#allocation2 + $0x24] sm:$0xff]
        %v709 = vld [vmem:[#allocation2 + $0x30] sm:$0xff]
        %v710 = vld [vmem:[#allocation2 + $0x3c] sm:$0xff]
        %v711 = vld [vmem:[#allocation2 + $0x48] sm:$0xff]
        %v712 = vld [vmem:[#allocation2 + $0x54] sm:$0xff]
        %721 = vrot.lane.b32.xlu0 %v705, 92
        %v722 = vpop.permute.xlu0 %721
        %723 = vrot.lane.b32.xlu0 %v706, 92
        %v724 = vpop.permute.xlu0 %723
        %725 = vrot.lane.b32.xlu0 %v707, 92
        %v726 = vpop.permute.xlu0 %725
        %727 = vrot.lane.b32.xlu0 %v708, 92
        %v728 = vpop.permute.xlu0 %727
        %729 = vrot.lane.b32.xlu0 %v709, 92
        %v730 = vpop.permute.xlu0 %729
        %731 = vrot.lane.b32.xlu0 %v710, 92
        %v732 = vpop.permute.xlu0 %731
        %733 = vrot.lane.b32.xlu0 %v711, 92
        %v734 = vpop.permute.xlu0 %733
        %735 = vrot.lane.b32.xlu0 %v712, 92
        %v736 = vpop.permute.xlu0 %735
        %v737 = vrot.slane %v722, 4
        %v738 = vrot.slane %v724, 4
        %v739 = vrot.slane %v726, 4
        %v740 = vrot.slane %v728, 4
        %v741 = vrot.slane %v730, 4
        %v742 = vrot.slane %v732, 4
        %v743 = vrot.slane %v734, 4
        %v744 = vrot.slane %v736, 4
        %vm745 = vcmask 752640
        %v746 = vsel %vm745, %v722, %v737
        %v747 = vsel %vm745, %v724, %v738
        %v748 = vsel %vm745, %v726, %v739
        %v749 = vsel %vm745, %v728, %v740
        %v750 = vsel %vm745, %v730, %v741
        %v751 = vsel %vm745, %v732, %v742
        %v752 = vsel %vm745, %v734, %v743
        %v753 = vsel %vm745, %v736, %v744
        %762 = vst.msk [vmem:[#allocation4 + $0x180] sm:$0xff] %vm371, %v746
        %763 = vst.msk [vmem:[#allocation4 + $0x188] sm:$0xff] %vm371, %v747
        %764 = vst.msk [vmem:[#allocation4 + $0x190] sm:$0xff] %vm371, %v748
        %765 = vst.msk [vmem:[#allocation4 + $0x198] sm:$0xff] %vm371, %v749
        %766 = vst.msk [vmem:[#allocation4 + $0x1a0] sm:$0xff] %vm371, %v750
        %767 = vst.msk [vmem:[#allocation4 + $0x1a8] sm:$0xff] %vm371, %v751
        %768 = vst.msk [vmem:[#allocation4 + $0x1b0] sm:$0xff] %vm371, %v752
        %769 = vst.msk [vmem:[#allocation4 + $0x1b8] sm:$0xff] %vm371, %v753
        %v770 = vld [vmem:[#allocation2] sm:$0xff]
        %v771 = vld [vmem:[#allocation2 + $0xc] sm:$0xff]
        %v772 = vld [vmem:[#allocation2 + $0x18] sm:$0xff]
        %v773 = vld [vmem:[#allocation2 + $0x24] sm:$0xff]
        %v774 = vld [vmem:[#allocation2 + $0x30] sm:$0xff]
        %v775 = vld [vmem:[#allocation2 + $0x3c] sm:$0xff]
        %v776 = vld [vmem:[#allocation2 + $0x48] sm:$0xff]
        %v777 = vld [vmem:[#allocation2 + $0x54] sm:$0xff]
        %786 = vrot.lane.b32.xlu0 %v770, 91
        %v787 = vpop.permute.xlu0 %786
        %788 = vrot.lane.b32.xlu0 %v771, 91
        %v789 = vpop.permute.xlu0 %788
        %790 = vrot.lane.b32.xlu0 %v772, 91
        %v791 = vpop.permute.xlu0 %790
        %792 = vrot.lane.b32.xlu0 %v773, 91
        %v793 = vpop.permute.xlu0 %792
        %794 = vrot.lane.b32.xlu0 %v774, 91
        %v795 = vpop.permute.xlu0 %794
        %796 = vrot.lane.b32.xlu0 %v775, 91
        %v797 = vpop.permute.xlu0 %796
        %798 = vrot.lane.b32.xlu0 %v776, 91
        %v799 = vpop.permute.xlu0 %798
        %800 = vrot.lane.b32.xlu0 %v777, 91
        %v801 = vpop.permute.xlu0 %800
        %v802 = vrot.slane %v787, 4
        %v803 = vrot.slane %v789, 4
        %v804 = vrot.slane %v791, 4
        %v805 = vrot.slane %v793, 4
        %v806 = vrot.slane %v795, 4
        %v807 = vrot.slane %v797, 4
        %v808 = vrot.slane %v799, 4
        %v809 = vrot.slane %v801, 4
        %vm810 = vcmask 744448
        %v811 = vsel %vm810, %v787, %v802
        %v812 = vsel %vm810, %v789, %v803
        %v813 = vsel %vm810, %v791, %v804
        %v814 = vsel %vm810, %v793, %v805
        %v815 = vsel %vm810, %v795, %v806
        %v816 = vsel %vm810, %v797, %v807
        %v817 = vsel %vm810, %v799, %v808
        %v818 = vsel %vm810, %v801, %v809
        %827 = vst.msk [vmem:[#allocation4 + $0x1c0] sm:$0xff] %vm371, %v811
        %828 = vst.msk [vmem:[#allocation4 + $0x1c8] sm:$0xff] %vm371, %v812
        %829 = vst.msk [vmem:[#allocation4 + $0x1d0] sm:$0xff] %vm371, %v813
        %830 = vst.msk [vmem:[#allocation4 + $0x1d8] sm:$0xff] %vm371, %v814
        %831 = vst.msk [vmem:[#allocation4 + $0x1e0] sm:$0xff] %vm371, %v815
        %832 = vst.msk [vmem:[#allocation4 + $0x1e8] sm:$0xff] %vm371, %v816
        %833 = vst.msk [vmem:[#allocation4 + $0x1f0] sm:$0xff] %vm371, %v817
        %834 = vst.msk [vmem:[#allocation4 + $0x1f8] sm:$0xff] %vm371, %v818
        %v835 = vld [vmem:[#allocation2] sm:$0xff]
        %v836 = vld [vmem:[#allocation2 + $0xc] sm:$0xff]
        %v837 = vld [vmem:[#allocation2 + $0x18] sm:$0xff]
        %v838 = vld [vmem:[#allocation2 + $0x24] sm:$0xff]
        %v839 = vld [vmem:[#allocation2 + $0x30] sm:$0xff]
        %v840 = vld [vmem:[#allocation2 + $0x3c] sm:$0xff]
        %v841 = vld [vmem:[#allocation2 + $0x48] sm:$0xff]
        %v842 = vld [vmem:[#allocation2 + $0x54] sm:$0xff]
        %851 = vrot.lane.b32.xlu0 %v835, 90
        %v852 = vpop.permute.xlu0 %851
        %853 = vrot.lane.b32.xlu0 %v836, 90
        %v854 = vpop.permute.xlu0 %853
        %855 = vrot.lane.b32.xlu0 %v837, 90
        %v856 = vpop.permute.xlu0 %855
        %857 = vrot.lane.b32.xlu0 %v838, 90
        %v858 = vpop.permute.xlu0 %857
        %859 = vrot.lane.b32.xlu0 %v839, 90
        %v860 = vpop.permute.xlu0 %859
        %861 = vrot.lane.b32.xlu0 %v840, 90
        %v862 = vpop.permute.xlu0 %861
        %863 = vrot.lane.b32.xlu0 %v841, 90
        %v864 = vpop.permute.xlu0 %863
        %865 = vrot.lane.b32.xlu0 %v842, 90
        %v866 = vpop.permute.xlu0 %865
        %v867 = vrot.slane %v852, 4
        %v868 = vrot.slane %v854, 4
        %v869 = vrot.slane %v856, 4
        %v870 = vrot.slane %v858, 4
        %v871 = vrot.slane %v860, 4
        %v872 = vrot.slane %v862, 4
        %v873 = vrot.slane %v864, 4
        %v874 = vrot.slane %v866, 4
        %vm875 = vcmask 736256
        %v876 = vsel %vm875, %v852, %v867
        %v877 = vsel %vm875, %v854, %v868
        %v878 = vsel %vm875, %v856, %v869
        %v879 = vsel %vm875, %v858, %v870
        %v880 = vsel %vm875, %v860, %v871
        %v881 = vsel %vm875, %v862, %v872
        %v882 = vsel %vm875, %v864, %v873
        %v883 = vsel %vm875, %v866, %v874
        %892 = vst.msk [vmem:[#allocation4 + $0x200] sm:$0xff] %vm371, %v876
        %893 = vst.msk [vmem:[#allocation4 + $0x208] sm:$0xff] %vm371, %v877
        %894 = vst.msk [vmem:[#allocation4 + $0x210] sm:$0xff] %vm371, %v878
        %895 = vst.msk [vmem:[#allocation4 + $0x218] sm:$0xff] %vm371, %v879
        %896 = vst.msk [vmem:[#allocation4 + $0x220] sm:$0xff] %vm371, %v880
        %897 = vst.msk [vmem:[#allocation4 + $0x228] sm:$0xff] %vm371, %v881
        %898 = vst.msk [vmem:[#allocation4 + $0x230] sm:$0xff] %vm371, %v882
        %899 = vst.msk [vmem:[#allocation4 + $0x238] sm:$0xff] %vm371, %v883
        %v900 = vld [vmem:[#allocation4] sm:$0xff]
        %v901 = vld [vmem:[#allocation4 + $0x8] sm:$0xff]
        %v902 = vld [vmem:[#allocation4 + $0x10] sm:$0xff]
        %v903 = vld [vmem:[#allocation4 + $0x18] sm:$0xff]
        %v904 = vld [vmem:[#allocation4 + $0x20] sm:$0xff]
        %v905 = vld [vmem:[#allocation4 + $0x28] sm:$0xff]
        %v906 = vld [vmem:[#allocation4 + $0x30] sm:$0xff]
        %v907 = vld [vmem:[#allocation4 + $0x38] sm:$0xff]
        %v908 = vld [vmem:[#allocation4 + $0x40] sm:$0xff]
        %v909 = vld [vmem:[#allocation4 + $0x48] sm:$0xff]
        %v910 = vld [vmem:[#allocation4 + $0x50] sm:$0xff]
        %v911 = vld [vmem:[#allocation4 + $0x58] sm:$0xff]
        %v912 = vld [vmem:[#allocation4 + $0x60] sm:$0xff]
        %v913 = vld [vmem:[#allocation4 + $0x68] sm:$0xff]
        %v914 = vld [vmem:[#allocation4 + $0x70] sm:$0xff]
        %v915 = vld [vmem:[#allocation4 + $0x78] sm:$0xff]
        %v916 = vld [vmem:[#allocation4 + $0x80] sm:$0xff]
        %v917 = vld [vmem:[#allocation4 + $0x88] sm:$0xff]
        %v918 = vld [vmem:[#allocation4 + $0x90] sm:$0xff]
        %v919 = vld [vmem:[#allocation4 + $0x98] sm:$0xff]
        %v920 = vld [vmem:[#allocation4 + $0xa0] sm:$0xff]
        %v921 = vld [vmem:[#allocation4 + $0xa8] sm:$0xff]
        %v922 = vld [vmem:[#allocation4 + $0xb0] sm:$0xff]
        %v923 = vld [vmem:[#allocation4 + $0xb8] sm:$0xff]
        %v924 = vld [vmem:[#allocation4 + $0xc0] sm:$0xff]
        %v925 = vld [vmem:[#allocation4 + $0xc8] sm:$0xff]
        %v926 = vld [vmem:[#allocation4 + $0xd0] sm:$0xff]
        %v927 = vld [vmem:[#allocation4 + $0xd8] sm:$0xff]
        %v928 = vld [vmem:[#allocation4 + $0xe0] sm:$0xff]
        %v929 = vld [vmem:[#allocation4 + $0xe8] sm:$0xff]
        %v930 = vld [vmem:[#allocation4 + $0xf0] sm:$0xff]
        %v931 = vld [vmem:[#allocation4 + $0xf8] sm:$0xff]
        %v932 = vld [vmem:[#allocation4 + $0x100] sm:$0xff]
        %v933 = vld [vmem:[#allocation4 + $0x108] sm:$0xff]
        %v934 = vld [vmem:[#allocation4 + $0x110] sm:$0xff]
        %v935 = vld [vmem:[#allocation4 + $0x118] sm:$0xff]
        %v936 = vld [vmem:[#allocation4 + $0x120] sm:$0xff]
        %v937 = vld [vmem:[#allocation4 + $0x128] sm:$0xff]
        %v938 = vld [vmem:[#allocation4 + $0x130] sm:$0xff]
        %v939 = vld [vmem:[#allocation4 + $0x138] sm:$0xff]
        %v940 = vld [vmem:[#allocation4 + $0x140] sm:$0xff]
        %v941 = vld [vmem:[#allocation4 + $0x148] sm:$0xff]
        %v942 = vld [vmem:[#allocation4 + $0x150] sm:$0xff]
        %v943 = vld [vmem:[#allocation4 + $0x158] sm:$0xff]
        %v944 = vld [vmem:[#allocation4 + $0x160] sm:$0xff]
        %v945 = vld [vmem:[#allocation4 + $0x168] sm:$0xff]
        %v946 = vld [vmem:[#allocation4 + $0x170] sm:$0xff]
        %v947 = vld [vmem:[#allocation4 + $0x178] sm:$0xff]
        %v948 = vld [vmem:[#allocation4 + $0x180] sm:$0xff]
        %v949 = vld [vmem:[#allocation4 + $0x188] sm:$0xff]
        %v950 = vld [vmem:[#allocation4 + $0x190] sm:$0xff]
        %v951 = vld [vmem:[#allocation4 + $0x198] sm:$0xff]
        %v952 = vld [vmem:[#allocation4 + $0x1a0] sm:$0xff]
        %v953 = vld [vmem:[#allocation4 + $0x1a8] sm:$0xff]
        %v954 = vld [vmem:[#allocation4 + $0x1b0] sm:$0xff]
        %v955 = vld [vmem:[#allocation4 + $0x1b8] sm:$0xff]
        %v956 = vld [vmem:[#allocation4 + $0x1c0] sm:$0xff]
        %v957 = vld [vmem:[#allocation4 + $0x1c8] sm:$0xff]
        %v958 = vld [vmem:[#allocation4 + $0x1d0] sm:$0xff]
        %v959 = vld [vmem:[#allocation4 + $0x1d8] sm:$0xff]
        %v960 = vld [vmem:[#allocation4 + $0x1e0] sm:$0xff]
        %v961 = vld [vmem:[#allocation4 + $0x1e8] sm:$0xff]
        %v962 = vld [vmem:[#allocation4 + $0x1f0] sm:$0xff]
        %v963 = vld [vmem:[#allocation4 + $0x1f8] sm:$0xff]
        %v964 = vld [vmem:[#allocation4 + $0x200] sm:$0xff]
        %v965 = vld [vmem:[#allocation4 + $0x208] sm:$0xff]
        %v966 = vld [vmem:[#allocation4 + $0x210] sm:$0xff]
        %v967 = vld [vmem:[#allocation4 + $0x218] sm:$0xff]
        %v968 = vld [vmem:[#allocation4 + $0x220] sm:$0xff]
        %v969 = vld [vmem:[#allocation4 + $0x228] sm:$0xff]
        %v970 = vld [vmem:[#allocation4 + $0x230] sm:$0xff]
        %v971 = vld [vmem:[#allocation4 + $0x238] sm:$0xff]
        %v996 = vunpack.c.l.b16 %v318
        %v997 = vunpack.c.h.b16 %v318
        %v998 = vunpack.c.l.b16 %v319
        %v999 = vunpack.c.h.b16 %v319
        %v1000 = vunpack.c.l.b16 %v320
        %v1001 = vunpack.c.l.b16 %v321
        %v1002 = vunpack.c.h.b16 %v321
        %v1003 = vunpack.c.l.b16 %v322
        %v1004 = vunpack.c.h.b16 %v322
        %v1005 = vunpack.c.l.b16 %v323
        %v1006 = vunpack.c.l.b16 %v324
        %v1007 = vunpack.c.h.b16 %v324
        %v1008 = vunpack.c.l.b16 %v325
        %v1009 = vunpack.c.h.b16 %v325
        %v1010 = vunpack.c.l.b16 %v326
        %v1011 = vunpack.c.l.b16 %v327
        %v1012 = vunpack.c.h.b16 %v327
        %v1013 = vunpack.c.l.b16 %v328
        %v1014 = vunpack.c.h.b16 %v328
        %v1015 = vunpack.c.l.b16 %v329
        %v1016 = vunpack.c.l.b16 %v330
        %v1017 = vunpack.c.h.b16 %v330
        %v1018 = vunpack.c.l.b16 %v331
        %v1019 = vunpack.c.h.b16 %v331
        %v1020 = vunpack.c.l.b16 %v332
        %v1021 = vunpack.c.l.b16 %v333
        %v1022 = vunpack.c.h.b16 %v333
        %v1023 = vunpack.c.l.b16 %v334
        %v1024 = vunpack.c.h.b16 %v334
        %v1025 = vunpack.c.l.b16 %v335
        %v1026 = vunpack.c.l.b16 %v336
        %v1027 = vunpack.c.h.b16 %v336
        %v1028 = vunpack.c.l.b16 %v337
        %v1029 = vunpack.c.h.b16 %v337
        %v1030 = vunpack.c.l.b16 %v338
        %v1031 = vunpack.c.l.b16 %v339
        %v1032 = vunpack.c.h.b16 %v339
        %v1033 = vunpack.c.l.b16 %v340
        %v1034 = vunpack.c.h.b16 %v340
        %v1035 = vunpack.c.l.b16 %v341
        %v1036 = vpack.c.b16 %v1001, %v996
        %v1037 = vpack.c.b16 %v1002, %v997
        %v1038 = vpack.c.b16 %v1003, %v998
        %v1039 = vpack.c.b16 %v1004, %v999
        %v1040 = vpack.c.b16 %v1005, %v1000
        %v1041 = vpack.c.b16 %v1011, %v1006
        %v1042 = vpack.c.b16 %v1012, %v1007
        %v1043 = vpack.c.b16 %v1013, %v1008
        %v1044 = vpack.c.b16 %v1014, %v1009
        %v1045 = vpack.c.b16 %v1015, %v1010
        %v1046 = vpack.c.b16 %v1021, %v1016
        %v1047 = vpack.c.b16 %v1022, %v1017
        %v1048 = vpack.c.b16 %v1023, %v1018
        %v1049 = vpack.c.b16 %v1024, %v1019
        %v1050 = vpack.c.b16 %v1025, %v1020
        %v1051 = vpack.c.b16 %v1031, %v1026
        %v1052 = vpack.c.b16 %v1032, %v1027
        %v1053 = vpack.c.b16 %v1033, %v1028
        %v1054 = vpack.c.b16 %v1034, %v1029
        %v1055 = vpack.c.b16 %v1035, %v1030
        %v1144 = vunpack.c.l.b16 %v900
        %v1145 = vunpack.c.h.b16 %v900
        %v1146 = vunpack.c.l.b16 %v901
        %v1147 = vunpack.c.h.b16 %v901
        %v1148 = vunpack.c.l.b16 %v902
        %v1149 = vunpack.c.h.b16 %v902
        %v1150 = vunpack.c.l.b16 %v903
        %v1151 = vunpack.c.h.b16 %v903
        %v1152 = vunpack.c.l.b16 %v904
        %v1153 = vunpack.c.h.b16 %v904
        %v1154 = vunpack.c.l.b16 %v905
        %v1155 = vunpack.c.h.b16 %v905
        %v1156 = vunpack.c.l.b16 %v906
        %v1157 = vunpack.c.h.b16 %v906
        %v1158 = vunpack.c.l.b16 %v907
        %v1159 = vunpack.c.h.b16 %v907
        %v1160 = vunpack.c.l.b16 %v908
        %v1161 = vunpack.c.h.b16 %v908
        %v1162 = vunpack.c.l.b16 %v909
        %v1163 = vunpack.c.h.b16 %v909
        %v1164 = vunpack.c.l.b16 %v910
        %v1165 = vunpack.c.h.b16 %v910
        %v1166 = vunpack.c.l.b16 %v911
        %v1167 = vunpack.c.h.b16 %v911
        %v1168 = vunpack.c.l.b16 %v912
        %v1169 = vunpack.c.h.b16 %v912
        %v1170 = vunpack.c.l.b16 %v913
        %v1171 = vunpack.c.h.b16 %v913
        %v1172 = vunpack.c.l.b16 %v914
        %v1173 = vunpack.c.h.b16 %v914
        %v1174 = vunpack.c.l.b16 %v915
        %v1175 = vunpack.c.h.b16 %v915
        %v1176 = vunpack.c.l.b16 %v916
        %v1177 = vunpack.c.h.b16 %v916
        %v1178 = vunpack.c.l.b16 %v917
        %v1179 = vunpack.c.h.b16 %v917
        %v1180 = vunpack.c.l.b16 %v918
        %v1181 = vunpack.c.h.b16 %v918
        %v1182 = vunpack.c.l.b16 %v919
        %v1183 = vunpack.c.h.b16 %v919
        %v1184 = vunpack.c.l.b16 %v920
        %v1185 = vunpack.c.h.b16 %v920
        %v1186 = vunpack.c.l.b16 %v921
        %v1187 = vunpack.c.h.b16 %v921
        %v1188 = vunpack.c.l.b16 %v922
        %v1189 = vunpack.c.h.b16 %v922
        %v1190 = vunpack.c.l.b16 %v923
        %v1191 = vunpack.c.h.b16 %v923
        %v1192 = vunpack.c.l.b16 %v924
        %v1193 = vunpack.c.h.b16 %v924
        %v1194 = vunpack.c.l.b16 %v925
        %v1195 = vunpack.c.h.b16 %v925
        %v1196 = vunpack.c.l.b16 %v926
        %v1197 = vunpack.c.h.b16 %v926
        %v1198 = vunpack.c.l.b16 %v927
        %v1199 = vunpack.c.h.b16 %v927
        %v1200 = vunpack.c.l.b16 %v928
        %v1201 = vunpack.c.h.b16 %v928
        %v1202 = vunpack.c.l.b16 %v929
        %v1203 = vunpack.c.h.b16 %v929
        %v1204 = vunpack.c.l.b16 %v930
        %v1205 = vunpack.c.h.b16 %v930
        %v1206 = vunpack.c.l.b16 %v931
        %v1207 = vunpack.c.h.b16 %v931
        %v1208 = vunpack.c.l.b16 %v932
        %v1209 = vunpack.c.h.b16 %v932
        %v1210 = vunpack.c.l.b16 %v933
        %v1211 = vunpack.c.h.b16 %v933
        %v1212 = vunpack.c.l.b16 %v934
        %v1213 = vunpack.c.h.b16 %v934
        %v1214 = vunpack.c.l.b16 %v935
        %v1215 = vunpack.c.h.b16 %v935
        %v1216 = vunpack.c.l.b16 %v936
        %v1217 = vunpack.c.h.b16 %v936
        %v1218 = vunpack.c.l.b16 %v937
        %v1219 = vunpack.c.h.b16 %v937
        %v1220 = vunpack.c.l.b16 %v938
        %v1221 = vunpack.c.h.b16 %v938
        %v1222 = vunpack.c.l.b16 %v939
        %v1223 = vunpack.c.h.b16 %v939
        %v1224 = vunpack.c.l.b16 %v940
        %v1225 = vunpack.c.h.b16 %v940
        %v1226 = vunpack.c.l.b16 %v941
        %v1227 = vunpack.c.h.b16 %v941
        %v1228 = vunpack.c.l.b16 %v942
        %v1229 = vunpack.c.h.b16 %v942
        %v1230 = vunpack.c.l.b16 %v943
        %v1231 = vunpack.c.h.b16 %v943
        %v1232 = vunpack.c.l.b16 %v944
        %v1233 = vunpack.c.h.b16 %v944
        %v1234 = vunpack.c.l.b16 %v945
        %v1235 = vunpack.c.h.b16 %v945
        %v1236 = vunpack.c.l.b16 %v946
        %v1237 = vunpack.c.h.b16 %v946
        %v1238 = vunpack.c.l.b16 %v947
        %v1239 = vunpack.c.h.b16 %v947
        %v1240 = vunpack.c.l.b16 %v948
        %v1241 = vunpack.c.h.b16 %v948
        %v1242 = vunpack.c.l.b16 %v949
        %v1243 = vunpack.c.h.b16 %v949
        %v1244 = vunpack.c.l.b16 %v950
        %v1245 = vunpack.c.h.b16 %v950
        %v1246 = vunpack.c.l.b16 %v951
        %v1247 = vunpack.c.h.b16 %v951
        %v1248 = vunpack.c.l.b16 %v952
        %v1249 = vunpack.c.h.b16 %v952
        %v1250 = vunpack.c.l.b16 %v953
        %v1251 = vunpack.c.h.b16 %v953
        %v1252 = vunpack.c.l.b16 %v954
        %v1253 = vunpack.c.h.b16 %v954
        %v1254 = vunpack.c.l.b16 %v955
        %v1255 = vunpack.c.h.b16 %v955
        %v1256 = vunpack.c.l.b16 %v956
        %v1257 = vunpack.c.h.b16 %v956
        %v1258 = vunpack.c.l.b16 %v957
        %v1259 = vunpack.c.h.b16 %v957
        %v1260 = vunpack.c.l.b16 %v958
        %v1261 = vunpack.c.h.b16 %v958
        %v1262 = vunpack.c.l.b16 %v959
        %v1263 = vunpack.c.h.b16 %v959
        %v1264 = vunpack.c.l.b16 %v960
        %v1265 = vunpack.c.h.b16 %v960
        %v1266 = vunpack.c.l.b16 %v961
        %v1267 = vunpack.c.h.b16 %v961
        %v1268 = vunpack.c.l.b16 %v962
        %v1269 = vunpack.c.h.b16 %v962
        %v1270 = vunpack.c.l.b16 %v963
        %v1271 = vunpack.c.h.b16 %v963
        %v1272 = vunpack.c.l.b16 %v964
        %v1273 = vunpack.c.h.b16 %v964
        %v1274 = vunpack.c.l.b16 %v965
        %v1275 = vunpack.c.h.b16 %v965
        %v1276 = vunpack.c.l.b16 %v966
        %v1277 = vunpack.c.h.b16 %v966
        %v1278 = vunpack.c.l.b16 %v967
        %v1279 = vunpack.c.h.b16 %v967
        %v1280 = vunpack.c.l.b16 %v968
        %v1281 = vunpack.c.h.b16 %v968
        %v1282 = vunpack.c.l.b16 %v969
        %v1283 = vunpack.c.h.b16 %v969
        %v1284 = vunpack.c.l.b16 %v970
        %v1285 = vunpack.c.h.b16 %v970
        %v1286 = vunpack.c.l.b16 %v971
        %v1287 = vunpack.c.h.b16 %v971
        %v1288 = vpack.c.b16 %v1146, %v1144
        %v1289 = vpack.c.b16 %v1147, %v1145
        %v1290 = vpack.c.b16 %v1150, %v1148
        %v1291 = vpack.c.b16 %v1151, %v1149
        %v1292 = vpack.c.b16 %v1154, %v1152
        %v1293 = vpack.c.b16 %v1155, %v1153
        %v1294 = vpack.c.b16 %v1158, %v1156
        %v1295 = vpack.c.b16 %v1159, %v1157
        %v1296 = vpack.c.b16 %v1162, %v1160
        %v1297 = vpack.c.b16 %v1163, %v1161
        %v1298 = vpack.c.b16 %v1166, %v1164
        %v1299 = vpack.c.b16 %v1167, %v1165
        %v1300 = vpack.c.b16 %v1170, %v1168
        %v1301 = vpack.c.b16 %v1171, %v1169
        %v1302 = vpack.c.b16 %v1174, %v1172
        %v1303 = vpack.c.b16 %v1175, %v1173
        %v1304 = vpack.c.b16 %v1178, %v1176
        %v1305 = vpack.c.b16 %v1179, %v1177
        %v1306 = vpack.c.b16 %v1182, %v1180
        %v1307 = vpack.c.b16 %v1183, %v1181
        %v1308 = vpack.c.b16 %v1186, %v1184
        %v1309 = vpack.c.b16 %v1187, %v1185
        %v1310 = vpack.c.b16 %v1190, %v1188
        %v1311 = vpack.c.b16 %v1191, %v1189
        %v1312 = vpack.c.b16 %v1194, %v1192
        %v1313 = vpack.c.b16 %v1195, %v1193
        %v1314 = vpack.c.b16 %v1198, %v1196
        %v1315 = vpack.c.b16 %v1199, %v1197
        %v1316 = vpack.c.b16 %v1202, %v1200
        %v1317 = vpack.c.b16 %v1203, %v1201
        %v1318 = vpack.c.b16 %v1206, %v1204
        %v1319 = vpack.c.b16 %v1207, %v1205
        %v1320 = vpack.c.b16 %v1210, %v1208
        %v1321 = vpack.c.b16 %v1211, %v1209
        %v1322 = vpack.c.b16 %v1214, %v1212
        %v1323 = vpack.c.b16 %v1215, %v1213
        %v1324 = vpack.c.b16 %v1218, %v1216
        %v1325 = vpack.c.b16 %v1219, %v1217
        %v1326 = vpack.c.b16 %v1222, %v1220
        %v1327 = vpack.c.b16 %v1223, %v1221
        %v1328 = vpack.c.b16 %v1226, %v1224
        %v1329 = vpack.c.b16 %v1227, %v1225
        %v1330 = vpack.c.b16 %v1230, %v1228
        %v1331 = vpack.c.b16 %v1231, %v1229
        %v1332 = vpack.c.b16 %v1234, %v1232
        %v1333 = vpack.c.b16 %v1235, %v1233
        %v1334 = vpack.c.b16 %v1238, %v1236
        %v1335 = vpack.c.b16 %v1239, %v1237
        %v1336 = vpack.c.b16 %v1242, %v1240
        %v1337 = vpack.c.b16 %v1243, %v1241
        %v1338 = vpack.c.b16 %v1246, %v1244
        %v1339 = vpack.c.b16 %v1247, %v1245
        %v1340 = vpack.c.b16 %v1250, %v1248
        %v1341 = vpack.c.b16 %v1251, %v1249
        %v1342 = vpack.c.b16 %v1254, %v1252
        %v1343 = vpack.c.b16 %v1255, %v1253
        %v1344 = vpack.c.b16 %v1258, %v1256
        %v1345 = vpack.c.b16 %v1259, %v1257
        %v1346 = vpack.c.b16 %v1262, %v1260
        %v1347 = vpack.c.b16 %v1263, %v1261
        %v1348 = vpack.c.b16 %v1266, %v1264
        %v1349 = vpack.c.b16 %v1267, %v1265
        %v1350 = vpack.c.b16 %v1270, %v1268
        %v1351 = vpack.c.b16 %v1271, %v1269
        %v1352 = vpack.c.b16 %v1274, %v1272
        %v1353 = vpack.c.b16 %v1275, %v1273
        %v1354 = vpack.c.b16 %v1278, %v1276
        %v1355 = vpack.c.b16 %v1279, %v1277
        %v1356 = vpack.c.b16 %v1282, %v1280
        %v1357 = vpack.c.b16 %v1283, %v1281
        %v1358 = vpack.c.b16 %v1286, %v1284
        %v1359 = vpack.c.b16 %v1287, %v1285
        %vm1432 = vcmask 523264
        %v1434 = vsel %vm1432, %v1040, 0
        %v1437 = vsel %vm1432, %v1045, 0
        %v1440 = vsel %vm1432, %v1050, 0
        %v1443 = vsel %vm1432, %v1055, 0
        %1445 = vmatpush.bf16.msra.mxu0 %v1302
        %1446 = vmatpush.bf16.msra.mxu0 %v1300
        %1447 = vmatpush.bf16.msra.mxu0 %v1298
        %1448 = vmatpush.bf16.msra.mxu0 %v1296
        %1449 = vmatpush.bf16.msra.mxu0 %v1294
        %1450 = vmatpush.bf16.msra.mxu0 %v1292
        %1451 = vmatpush.bf16.msra.mxu0 %v1290
        %1452 = vmatpush.bf16.msra.mxu0 %v1288
        %1453 = vmatmul.bf16.gmra.mxu0 %v1036
        %v1454 = vpop.f32.mrf.mxu0
        %v1455 = vadd.f32 0.0, %v1454
        %v1456 = vpop.f32.mrf.mxu0
        %v1457 = vadd.f32 0.0, %v1456
        %1458 = vmatmul.bf16.gmra.mxu0 %v1041
        %v1459 = vpop.f32.mrf.mxu0
        %v1460 = vadd.f32 0.0, %v1459
        %v1461 = vpop.f32.mrf.mxu0
        %v1462 = vadd.f32 0.0, %v1461
        %1463 = vmatmul.bf16.gmra.mxu0 %v1046
        %v1464 = vpop.f32.mrf.mxu0
        %v1465 = vadd.f32 0.0, %v1464
        %v1466 = vpop.f32.mrf.mxu0
        %v1467 = vadd.f32 0.0, %v1466
        %1468 = vmatmul.bf16.gmra.mxu0 %v1051
        %v1469 = vpop.f32.mrf.mxu0
        %v1470 = vadd.f32 0.0, %v1469
        %v1471 = vpop.f32.mrf.mxu0
        %v1472 = vadd.f32 0.0, %v1471
        %1473 = vdwg.mxu0
        %1474 = vmatpush.bf16.msra.mxu0 %v1318
        %1475 = vmatpush.bf16.msra.mxu0 %v1316
        %1476 = vmatpush.bf16.msra.mxu0 %v1314
        %1477 = vmatpush.bf16.msra.mxu0 %v1312
        %1478 = vmatpush.bf16.msra.mxu0 %v1310
        %1479 = vmatpush.bf16.msra.mxu0 %v1308
        %1480 = vmatpush.bf16.msra.mxu0 %v1306
        %1481 = vmatpush.bf16.msra.mxu0 %v1304
        %1482 = vmatmul.bf16.gmra.mxu0 %v1037
        %v1483 = vpop.f32.mrf.mxu0
        %v1484 = vadd.f32 %v1455, %v1483
        %v1485 = vpop.f32.mrf.mxu0
        %v1486 = vadd.f32 %v1457, %v1485
        %1487 = vmatmul.bf16.gmra.mxu0 %v1042
        %v1488 = vpop.f32.mrf.mxu0
        %v1489 = vadd.f32 %v1460, %v1488
        %v1490 = vpop.f32.mrf.mxu0
        %v1491 = vadd.f32 %v1462, %v1490
        %1492 = vmatmul.bf16.gmra.mxu0 %v1047
        %v1493 = vpop.f32.mrf.mxu0
        %v1494 = vadd.f32 %v1465, %v1493
        %v1495 = vpop.f32.mrf.mxu0
        %v1496 = vadd.f32 %v1467, %v1495
        %1497 = vmatmul.bf16.gmra.mxu0 %v1052
        %v1498 = vpop.f32.mrf.mxu0
        %v1499 = vadd.f32 %v1470, %v1498
        %v1500 = vpop.f32.mrf.mxu0
        %v1501 = vadd.f32 %v1472, %v1500
        %1502 = vdwg.mxu0
        %1503 = vmatpush.bf16.msra.mxu0 %v1334
        %1504 = vmatpush.bf16.msra.mxu0 %v1332
        %1505 = vmatpush.bf16.msra.mxu0 %v1330
        %1506 = vmatpush.bf16.msra.mxu0 %v1328
        %1507 = vmatpush.bf16.msra.mxu0 %v1326
        %1508 = vmatpush.bf16.msra.mxu0 %v1324
        %1509 = vmatpush.bf16.msra.mxu0 %v1322
        %1510 = vmatpush.bf16.msra.mxu0 %v1320
        %1511 = vmatmul.bf16.gmra.mxu0 %v1038
        %v1512 = vpop.f32.mrf.mxu0
        %v1513 = vadd.f32 %v1484, %v1512
        %v1514 = vpop.f32.mrf.mxu0
        %v1515 = vadd.f32 %v1486, %v1514
        %1516 = vmatmul.bf16.gmra.mxu0 %v1043
        %v1517 = vpop.f32.mrf.mxu0
        %v1518 = vadd.f32 %v1489, %v1517
        %v1519 = vpop.f32.mrf.mxu0
        %v1520 = vadd.f32 %v1491, %v1519
        %1521 = vmatmul.bf16.gmra.mxu0 %v1048
        %v1522 = vpop.f32.mrf.mxu0
        %v1523 = vadd.f32 %v1494, %v1522
        %v1524 = vpop.f32.mrf.mxu0
        %v1525 = vadd.f32 %v1496, %v1524
        %1526 = vmatmul.bf16.gmra.mxu0 %v1053
        %v1527 = vpop.f32.mrf.mxu0
        %v1528 = vadd.f32 %v1499, %v1527
        %v1529 = vpop.f32.mrf.mxu0
        %v1530 = vadd.f32 %v1501, %v1529
        %1531 = vdwg.mxu0
        %1532 = vmatpush.bf16.msra.mxu0 %v1350
        %1533 = vmatpush.bf16.msra.mxu0 %v1348
        %1534 = vmatpush.bf16.msra.mxu0 %v1346
        %1535 = vmatpush.bf16.msra.mxu0 %v1344
        %1536 = vmatpush.bf16.msra.mxu0 %v1342
        %1537 = vmatpush.bf16.msra.mxu0 %v1340
        %1538 = vmatpush.bf16.msra.mxu0 %v1338
        %1539 = vmatpush.bf16.msra.mxu0 %v1336
        %1540 = vmatmul.bf16.gmra.mxu0 %v1039
        %v1541 = vpop.f32.mrf.mxu0
        %v1542 = vadd.f32 %v1513, %v1541
        %v1543 = vpop.f32.mrf.mxu0
        %v1544 = vadd.f32 %v1515, %v1543
        %1545 = vmatmul.bf16.gmra.mxu0 %v1044
        %v1546 = vpop.f32.mrf.mxu0
        %v1547 = vadd.f32 %v1518, %v1546
        %v1548 = vpop.f32.mrf.mxu0
        %v1549 = vadd.f32 %v1520, %v1548
        %1550 = vmatmul.bf16.gmra.mxu0 %v1049
        %v1551 = vpop.f32.mrf.mxu0
        %v1552 = vadd.f32 %v1523, %v1551
        %v1553 = vpop.f32.mrf.mxu0
        %v1554 = vadd.f32 %v1525, %v1553
        %1555 = vmatmul.bf16.gmra.mxu0 %v1054
        %v1556 = vpop.f32.mrf.mxu0
        %v1557 = vadd.f32 %v1528, %v1556
        %v1558 = vpop.f32.mrf.mxu0
        %v1559 = vadd.f32 %v1530, %v1558
        %1560 = vdwg.mxu0
        %1561 = vmatpush.bf16.msra.mxu0 0
        %1562 = vmatpush.bf16.msra.mxu0 0
        %1563 = vmatpush.bf16.msra.mxu0 0
        %1564 = vmatpush.bf16.msra.mxu0 0
        %1565 = vmatpush.bf16.msra.mxu0 %v1358
        %1566 = vmatpush.bf16.msra.mxu0 %v1356
        %1567 = vmatpush.bf16.msra.mxu0 %v1354
        %1568 = vmatpush.bf16.msra.mxu0 %v1352
        %1569 = vmatmul.bf16.gmra.mxu0 %v1434
        %v1570 = vpop.f32.mrf.mxu0
        %v1571 = vadd.f32 %v1542, %v1570
        %v1572 = vpop.f32.mrf.mxu0
        %v1573 = vadd.f32 %v1544, %v1572
        %1574 = vmatmul.bf16.gmra.mxu0 %v1437
        %v1575 = vpop.f32.mrf.mxu0
        %v1576 = vadd.f32 %v1547, %v1575
        %v1577 = vpop.f32.mrf.mxu0
        %v1578 = vadd.f32 %v1549, %v1577
        %1579 = vmatmul.bf16.gmra.mxu0 %v1440
        %v1580 = vpop.f32.mrf.mxu0
        %v1581 = vadd.f32 %v1552, %v1580
        %v1582 = vpop.f32.mrf.mxu0
        %v1583 = vadd.f32 %v1554, %v1582
        %1584 = vmatmul.bf16.gmra.mxu0 %v1443
        %v1585 = vpop.f32.mrf.mxu0
        %v1586 = vadd.f32 %v1557, %v1585
        %v1587 = vpop.f32.mrf.mxu0
        %v1588 = vadd.f32 %v1559, %v1587
        %1589 = vdwg.mxu0
        %1590 = vmatpush.bf16.msra.mxu0 %v1303
        %1591 = vmatpush.bf16.msra.mxu0 %v1301
        %1592 = vmatpush.bf16.msra.mxu0 %v1299
        %1593 = vmatpush.bf16.msra.mxu0 %v1297
        %1594 = vmatpush.bf16.msra.mxu0 %v1295
        %1595 = vmatpush.bf16.msra.mxu0 %v1293
        %1596 = vmatpush.bf16.msra.mxu0 %v1291
        %1597 = vmatpush.bf16.msra.mxu0 %v1289
        %1598 = vmatmul.bf16.gmra.mxu0 %v1036
        %v1599 = vpop.f32.mrf.mxu0
        %v1600 = vadd.f32 0.0, %v1599
        %v1601 = vpop.f32.mrf.mxu0
        %v1602 = vadd.f32 0.0, %v1601
        %1603 = vmatmul.bf16.gmra.mxu0 %v1041
        %v1604 = vpop.f32.mrf.mxu0
        %v1605 = vadd.f32 0.0, %v1604
        %v1606 = vpop.f32.mrf.mxu0
        %v1607 = vadd.f32 0.0, %v1606
        %1608 = vmatmul.bf16.gmra.mxu0 %v1046
        %v1609 = vpop.f32.mrf.mxu0
        %v1610 = vadd.f32 0.0, %v1609
        %v1611 = vpop.f32.mrf.mxu0
        %v1612 = vadd.f32 0.0, %v1611
        %1613 = vmatmul.bf16.gmra.mxu0 %v1051
        %v1614 = vpop.f32.mrf.mxu0
        %v1615 = vadd.f32 0.0, %v1614
        %v1616 = vpop.f32.mrf.mxu0
        %v1617 = vadd.f32 0.0, %v1616
        %1618 = vdwg.mxu0
        %1619 = vmatpush.bf16.msra.mxu0 %v1319
        %1620 = vmatpush.bf16.msra.mxu0 %v1317
        %1621 = vmatpush.bf16.msra.mxu0 %v1315
        %1622 = vmatpush.bf16.msra.mxu0 %v1313
        %1623 = vmatpush.bf16.msra.mxu0 %v1311
        %1624 = vmatpush.bf16.msra.mxu0 %v1309
        %1625 = vmatpush.bf16.msra.mxu0 %v1307
        %1626 = vmatpush.bf16.msra.mxu0 %v1305
        %1627 = vmatmul.bf16.gmra.mxu0 %v1037
        %v1628 = vpop.f32.mrf.mxu0
        %v1629 = vadd.f32 %v1600, %v1628
        %v1630 = vpop.f32.mrf.mxu0
        %v1631 = vadd.f32 %v1602, %v1630
        %1632 = vmatmul.bf16.gmra.mxu0 %v1042
        %v1633 = vpop.f32.mrf.mxu0
        %v1634 = vadd.f32 %v1605, %v1633
        %v1635 = vpop.f32.mrf.mxu0
        %v1636 = vadd.f32 %v1607, %v1635
        %1637 = vmatmul.bf16.gmra.mxu0 %v1047
        %v1638 = vpop.f32.mrf.mxu0
        %v1639 = vadd.f32 %v1610, %v1638
        %v1640 = vpop.f32.mrf.mxu0
        %v1641 = vadd.f32 %v1612, %v1640
        %1642 = vmatmul.bf16.gmra.mxu0 %v1052
        %v1643 = vpop.f32.mrf.mxu0
        %v1644 = vadd.f32 %v1615, %v1643
        %v1645 = vpop.f32.mrf.mxu0
        %v1646 = vadd.f32 %v1617, %v1645
        %1647 = vdwg.mxu0
        %1648 = vmatpush.bf16.msra.mxu0 %v1335
        %1649 = vmatpush.bf16.msra.mxu0 %v1333
        %1650 = vmatpush.bf16.msra.mxu0 %v1331
        %1651 = vmatpush.bf16.msra.mxu0 %v1329
        %1652 = vmatpush.bf16.msra.mxu0 %v1327
        %1653 = vmatpush.bf16.msra.mxu0 %v1325
        %1654 = vmatpush.bf16.msra.mxu0 %v1323
        %1655 = vmatpush.bf16.msra.mxu0 %v1321
        %1656 = vmatmul.bf16.gmra.mxu0 %v1038
        %v1657 = vpop.f32.mrf.mxu0
        %v1658 = vadd.f32 %v1629, %v1657
        %v1659 = vpop.f32.mrf.mxu0
        %v1660 = vadd.f32 %v1631, %v1659
        %1661 = vmatmul.bf16.gmra.mxu0 %v1043
        %v1662 = vpop.f32.mrf.mxu0
        %v1663 = vadd.f32 %v1634, %v1662
        %v1664 = vpop.f32.mrf.mxu0
        %v1665 = vadd.f32 %v1636, %v1664
        %1666 = vmatmul.bf16.gmra.mxu0 %v1048
        %v1667 = vpop.f32.mrf.mxu0
        %v1668 = vadd.f32 %v1639, %v1667
        %v1669 = vpop.f32.mrf.mxu0
        %v1670 = vadd.f32 %v1641, %v1669
        %1671 = vmatmul.bf16.gmra.mxu0 %v1053
        %v1672 = vpop.f32.mrf.mxu0
        %v1673 = vadd.f32 %v1644, %v1672
        %v1674 = vpop.f32.mrf.mxu0
        %v1675 = vadd.f32 %v1646, %v1674
        %1676 = vdwg.mxu0
        %1677 = vmatpush.bf16.msra.mxu0 %v1351
        %1678 = vmatpush.bf16.msra.mxu0 %v1349
        %1679 = vmatpush.bf16.msra.mxu0 %v1347
        %1680 = vmatpush.bf16.msra.mxu0 %v1345
        %1681 = vmatpush.bf16.msra.mxu0 %v1343
        %1682 = vmatpush.bf16.msra.mxu0 %v1341
        %1683 = vmatpush.bf16.msra.mxu0 %v1339
        %1684 = vmatpush.bf16.msra.mxu0 %v1337
        %1685 = vmatmul.bf16.gmra.mxu0 %v1039
        %v1686 = vpop.f32.mrf.mxu0
        %v1687 = vadd.f32 %v1658, %v1686
        %v1688 = vpop.f32.mrf.mxu0
        %v1689 = vadd.f32 %v1660, %v1688
        %1690 = vmatmul.bf16.gmra.mxu0 %v1044
        %v1691 = vpop.f32.mrf.mxu0
        %v1692 = vadd.f32 %v1663, %v1691
        %v1693 = vpop.f32.mrf.mxu0
        %v1694 = vadd.f32 %v1665, %v1693
        %1695 = vmatmul.bf16.gmra.mxu0 %v1049
        %v1696 = vpop.f32.mrf.mxu0
        %v1697 = vadd.f32 %v1668, %v1696
        %v1698 = vpop.f32.mrf.mxu0
        %v1699 = vadd.f32 %v1670, %v1698
        %1700 = vmatmul.bf16.gmra.mxu0 %v1054
        %v1701 = vpop.f32.mrf.mxu0
        %v1702 = vadd.f32 %v1673, %v1701
        %v1703 = vpop.f32.mrf.mxu0
        %v1704 = vadd.f32 %v1675, %v1703
        %1705 = vdwg.mxu0
        %1706 = vmatpush.bf16.msra.mxu0 0
        %1707 = vmatpush.bf16.msra.mxu0 0
        %1708 = vmatpush.bf16.msra.mxu0 0
        %1709 = vmatpush.bf16.msra.mxu0 0
        %1710 = vmatpush.bf16.msra.mxu0 %v1359
        %1711 = vmatpush.bf16.msra.mxu0 %v1357
        %1712 = vmatpush.bf16.msra.mxu0 %v1355
        %1713 = vmatpush.bf16.msra.mxu0 %v1353
        %1714 = vmatmul.bf16.gmra.mxu0 %v1434
        %v1715 = vpop.f32.mrf.mxu0
        %v1716 = vadd.f32 %v1687, %v1715
        %v1717 = vpop.f32.mrf.mxu0
        %v1718 = vadd.f32 %v1689, %v1717
        %1719 = vmatmul.bf16.gmra.mxu0 %v1437
        %v1720 = vpop.f32.mrf.mxu0
        %v1721 = vadd.f32 %v1692, %v1720
        %v1722 = vpop.f32.mrf.mxu0
        %v1723 = vadd.f32 %v1694, %v1722
        %1724 = vmatmul.bf16.gmra.mxu0 %v1440
        %v1725 = vpop.f32.mrf.mxu0
        %v1726 = vadd.f32 %v1697, %v1725
        %v1727 = vpop.f32.mrf.mxu0
        %v1728 = vadd.f32 %v1699, %v1727
        %1729 = vmatmul.bf16.gmra.mxu0 %v1443
        %v1730 = vpop.f32.mrf.mxu0
        %v1731 = vadd.f32 %v1702, %v1730
        %v1732 = vpop.f32.mrf.mxu0
        %v1733 = vadd.f32 %v1704, %v1732
        %1734 = vdwg.mxu0
        %1736 = vset.pattern.permute.xlu0 0
        %1737 = vperm.xlu0 %1736, %v344
        %v1738 = vpop.permute.xlu0 %1737
        %1741 = vset.pattern.permute.xlu0 0
        %1742 = vperm.xlu0 %1741, %v345
        %v1743 = vpop.permute.xlu0 %1742
        %1746 = vset.pattern.permute.xlu0 0
        %1747 = vperm.xlu0 %1746, %v346
        %v1748 = vpop.permute.xlu0 %1747
        %1751 = vset.pattern.permute.xlu0 0
        %1752 = vperm.xlu0 %1751, %v347
        %v1753 = vpop.permute.xlu0 %1752
        %1756 = vset.pattern.permute.xlu0 0
        %1757 = vperm.xlu0 %1756, %v348
        %v1758 = vpop.permute.xlu0 %1757
        %1761 = vset.pattern.permute.xlu0 0
        %1762 = vperm.xlu0 %1761, %v349
        %v1763 = vpop.permute.xlu0 %1762
        %1766 = vset.pattern.permute.xlu0 0
        %1767 = vperm.xlu0 %1766, %v350
        %v1768 = vpop.permute.xlu0 %1767
        %1771 = vset.pattern.permute.xlu0 0
        %1772 = vperm.xlu0 %1771, %v351
        %v1773 = vpop.permute.xlu0 %1772
        %v1775 = vmul.f32 %v1571, %v1738
        %v1776 = vmul.f32 %v1716, %v1738
        %v1777 = vmul.f32 %v1573, %v1743
        %v1778 = vmul.f32 %v1718, %v1743
        %v1779 = vmul.f32 %v1576, %v1748
        %v1780 = vmul.f32 %v1721, %v1748
        %v1781 = vmul.f32 %v1578, %v1753
        %v1782 = vmul.f32 %v1723, %v1753
        %v1783 = vmul.f32 %v1581, %v1758
        %v1784 = vmul.f32 %v1726, %v1758
        %v1785 = vmul.f32 %v1583, %v1763
        %v1786 = vmul.f32 %v1728, %v1763
        %v1787 = vmul.f32 %v1586, %v1768
        %v1788 = vmul.f32 %v1731, %v1768
        %v1789 = vmul.f32 %v1588, %v1773
        %v1790 = vmul.f32 %v1733, %v1773
        %1792 = vset.pattern.permute.xlu0 0
        %1793 = vperm.xlu0 %1792, %v353
        %v1794 = vpop.permute.xlu0 %1793
        %1797 = vset.pattern.permute.xlu0 0
        %1798 = vperm.xlu0 %1797, %v354
        %v1799 = vpop.permute.xlu0 %1798
        %1802 = vset.pattern.permute.xlu0 0
        %1803 = vperm.xlu0 %1802, %v355
        %v1804 = vpop.permute.xlu0 %1803
        %1807 = vset.pattern.permute.xlu0 0
        %1808 = vperm.xlu0 %1807, %v356
        %v1809 = vpop.permute.xlu0 %1808
        %1812 = vset.pattern.permute.xlu0 0
        %1813 = vperm.xlu0 %1812, %v357
        %v1814 = vpop.permute.xlu0 %1813
        %1817 = vset.pattern.permute.xlu0 0
        %1818 = vperm.xlu0 %1817, %v358
        %v1819 = vpop.permute.xlu0 %1818
        %1822 = vset.pattern.permute.xlu0 0
        %1823 = vperm.xlu0 %1822, %v359
        %v1824 = vpop.permute.xlu0 %1823
        %1827 = vset.pattern.permute.xlu0 0
        %1828 = vperm.xlu0 %1827, %v360
        %v1829 = vpop.permute.xlu0 %1828
        %v1831 = vadd.f32 %v1775, %v1794
        %v1832 = vadd.f32 %v1776, %v1794
        %v1833 = vadd.f32 %v1777, %v1799
        %v1834 = vadd.f32 %v1778, %v1799
        %v1835 = vadd.f32 %v1779, %v1804
        %v1836 = vadd.f32 %v1780, %v1804
        %v1837 = vadd.f32 %v1781, %v1809
        %v1838 = vadd.f32 %v1782, %v1809
        %v1839 = vadd.f32 %v1783, %v1814
        %v1840 = vadd.f32 %v1784, %v1814
        %v1841 = vadd.f32 %v1785, %v1819
        %v1842 = vadd.f32 %v1786, %v1819
        %v1843 = vadd.f32 %v1787, %v1824
        %v1844 = vadd.f32 %v1788, %v1824
        %v1845 = vadd.f32 %v1789, %v1829
        %v1846 = vadd.f32 %v1790, %v1829
        %v1847 = vmax.f32 %v1831, 0.0
        %v1848 = vmax.f32 %v1832, 0.0
        %v1849 = vmax.f32 %v1833, 0.0
        %v1850 = vmax.f32 %v1834, 0.0
        %v1851 = vmax.f32 %v1835, 0.0
        %v1852 = vmax.f32 %v1836, 0.0
        %v1853 = vmax.f32 %v1837, 0.0
        %v1854 = vmax.f32 %v1838, 0.0
        %v1855 = vmax.f32 %v1839, 0.0
        %v1856 = vmax.f32 %v1840, 0.0
        %v1857 = vmax.f32 %v1841, 0.0
        %v1858 = vmax.f32 %v1842, 0.0
        %v1859 = vmax.f32 %v1843, 0.0
        %v1860 = vmax.f32 %v1844, 0.0
        %v1861 = vmax.f32 %v1845, 0.0
        %v1862 = vmax.f32 %v1846, 0.0
        %v1864 = vperm.slane %v307, 0
        %v1865 = vperm.slane %v307, 1
        %v1868 = vmul.f32 %v1847, %v1864
        %v1869 = vmul.f32 %v1848, %v1865
        %v1870 = vmul.f32 %v1849, %v1864
        %v1871 = vmul.f32 %v1850, %v1865
        %v1872 = vmul.f32 %v1851, %v1864
        %v1873 = vmul.f32 %v1852, %v1865
        %v1874 = vmul.f32 %v1853, %v1864
        %v1875 = vmul.f32 %v1854, %v1865
        %v1876 = vmul.f32 %v1855, %v1864
        %v1877 = vmul.f32 %v1856, %v1865
        %v1878 = vmul.f32 %v1857, %v1864
        %v1879 = vmul.f32 %v1858, %v1865
        %v1880 = vmul.f32 %v1859, %v1864
        %v1881 = vmul.f32 %v1860, %v1865
        %v1882 = vmul.f32 %v1861, %v1864
        %v1883 = vmul.f32 %v1862, %v1865
        %v1884 = vpack.c.bf16 %v1869, %v1868
        %v1885 = vpack.c.bf16 %v1871, %v1870
        %v1886 = vpack.c.bf16 %v1873, %v1872
        %v1887 = vpack.c.bf16 %v1875, %v1874
        %v1888 = vpack.c.bf16 %v1877, %v1876
        %v1889 = vpack.c.bf16 %v1879, %v1878
        %v1890 = vpack.c.bf16 %v1881, %v1880
        %v1891 = vpack.c.bf16 %v1883, %v1882
        %1900 = vrot.lane.b32.xlu0 %v1884, 19
        %v1901 = vpop.permute.xlu0 %1900
        %1902 = vrot.lane.b32.xlu0 %v1885, 19
        %v1903 = vpop.permute.xlu0 %1902
        %1904 = vrot.lane.b32.xlu0 %v1886, 19
        %v1905 = vpop.permute.xlu0 %1904
        %1906 = vrot.lane.b32.xlu0 %v1887, 19
        %v1907 = vpop.permute.xlu0 %1906
        %1908 = vrot.lane.b32.xlu0 %v1888, 19
        %v1909 = vpop.permute.xlu0 %1908
        %1910 = vrot.lane.b32.xlu0 %v1889, 19
        %v1911 = vpop.permute.xlu0 %1910
        %1912 = vrot.lane.b32.xlu0 %v1890, 19
        %v1913 = vpop.permute.xlu0 %1912
        %1914 = vrot.lane.b32.xlu0 %v1891, 19
        %v1915 = vpop.permute.xlu0 %1914
        %v1916 = vrot.slane %v1901, 4
        %v1917 = vrot.slane %v1903, 4
        %v1918 = vrot.slane %v1905, 4
        %v1919 = vrot.slane %v1907, 4
        %v1920 = vrot.slane %v1909, 4
        %v1921 = vrot.slane %v1911, 4
        %v1922 = vrot.slane %v1913, 4
        %v1923 = vrot.slane %v1915, 4
        %vm1924 = vcmask 154624
        %v1925 = vsel %vm1924, %v1916, %v1901
        %v1926 = vsel %vm1924, %v1917, %v1903
        %v1927 = vsel %vm1924, %v1918, %v1905
        %v1928 = vsel %vm1924, %v1919, %v1907
        %v1929 = vsel %vm1924, %v1920, %v1909
        %v1930 = vsel %vm1924, %v1921, %v1911
        %v1931 = vsel %vm1924, %v1922, %v1913
        %v1932 = vsel %vm1924, %v1923, %v1915
        %vm1941 = vcmask 1043608
        %vm1942 = vcmask 285700
        %vm1943 = vmor %vm1942, %vm1941
        %1944 = vst.msk [vmem:[#allocation3] sm:$0xff] %vm1943, %v1925
        %1945 = vst.msk [vmem:[#allocation3 + $0xc] sm:$0xff] %vm1943, %v1926
        %1946 = vst.msk [vmem:[#allocation3 + $0x18] sm:$0xff] %vm1943, %v1927
        %1947 = vst.msk [vmem:[#allocation3 + $0x24] sm:$0xff] %vm1943, %v1928
        %1948 = vst.msk [vmem:[#allocation3 + $0x30] sm:$0xff] %vm1943, %v1929
        %1949 = vst.msk [vmem:[#allocation3 + $0x3c] sm:$0xff] %vm1943, %v1930
        %1950 = vst.msk [vmem:[#allocation3 + $0x48] sm:$0xff] %vm1943, %v1931
        %1951 = vst.msk [vmem:[#allocation3 + $0x54] sm:$0xff] %vm1943, %v1932
        %v1952 = vld [vmem:[#allocation2 + $0x4] sm:$0xff]
        %v1953 = vld [vmem:[#allocation2 + $0x10] sm:$0xff]
        %v1954 = vld [vmem:[#allocation2 + $0x1c] sm:$0xff]
        %v1955 = vld [vmem:[#allocation2 + $0x28] sm:$0xff]
        %v1956 = vld [vmem:[#allocation2 + $0x34] sm:$0xff]
        %v1957 = vld [vmem:[#allocation2 + $0x40] sm:$0xff]
        %v1958 = vld [vmem:[#allocation2 + $0x4c] sm:$0xff]
        %v1959 = vld [vmem:[#allocation2 + $0x58] sm:$0xff]
        %1968 = vrot.lane.b32.xlu0 %v1952, 112
        %v1969 = vpop.permute.xlu0 %1968
        %1970 = vrot.lane.b32.xlu0 %v1953, 112
        %v1971 = vpop.permute.xlu0 %1970
        %1972 = vrot.lane.b32.xlu0 %v1954, 112
        %v1973 = vpop.permute.xlu0 %1972
        %1974 = vrot.lane.b32.xlu0 %v1955, 112
        %v1975 = vpop.permute.xlu0 %1974
        %1976 = vrot.lane.b32.xlu0 %v1956, 112
        %v1977 = vpop.permute.xlu0 %1976
        %1978 = vrot.lane.b32.xlu0 %v1957, 112
        %v1979 = vpop.permute.xlu0 %1978
        %1980 = vrot.lane.b32.xlu0 %v1958, 112
        %v1981 = vpop.permute.xlu0 %1980
        %1982 = vrot.lane.b32.xlu0 %v1959, 112
        %v1983 = vpop.permute.xlu0 %1982
        %v1984 = vrot.slane %v1969, 4
        %v1985 = vrot.slane %v1971, 4
        %v1986 = vrot.slane %v1973, 4
        %v1987 = vrot.slane %v1975, 4
        %v1988 = vrot.slane %v1977, 4
        %v1989 = vrot.slane %v1979, 4
        %v1990 = vrot.slane %v1981, 4
        %v1991 = vrot.slane %v1983, 4
        %vm1992 = vcmask 916480
        %v1993 = vsel %vm1992, %v1969, %v1984
        %v1994 = vsel %vm1992, %v1971, %v1985
        %v1995 = vsel %vm1992, %v1973, %v1986
        %v1996 = vsel %vm1992, %v1975, %v1987
        %v1997 = vsel %vm1992, %v1977, %v1988
        %v1998 = vsel %vm1992, %v1979, %v1989
        %v1999 = vsel %vm1992, %v1981, %v1990
        %v2000 = vsel %vm1992, %v1983, %v1991
        %2009 = vst.msk [vmem:[#allocation5] sm:$0xff] %vm371, %v1993
        %2010 = vst.msk [vmem:[#allocation5 + $0x8] sm:$0xff] %vm371, %v1994
        %2011 = vst.msk [vmem:[#allocation5 + $0x10] sm:$0xff] %vm371, %v1995
        %2012 = vst.msk [vmem:[#allocation5 + $0x18] sm:$0xff] %vm371, %v1996
        %2013 = vst.msk [vmem:[#allocation5 + $0x20] sm:$0xff] %vm371, %v1997
        %2014 = vst.msk [vmem:[#allocation5 + $0x28] sm:$0xff] %vm371, %v1998
        %2015 = vst.msk [vmem:[#allocation5 + $0x30] sm:$0xff] %vm371, %v1999
        %2016 = vst.msk [vmem:[#allocation5 + $0x38] sm:$0xff] %vm371, %v2000
        %v2017 = vld [vmem:[#allocation2 + $0x4] sm:$0xff]
        %v2018 = vld [vmem:[#allocation2 + $0x10] sm:$0xff]
        %v2019 = vld [vmem:[#allocation2 + $0x1c] sm:$0xff]
        %v2020 = vld [vmem:[#allocation2 + $0x28] sm:$0xff]
        %v2021 = vld [vmem:[#allocation2 + $0x34] sm:$0xff]
        %v2022 = vld [vmem:[#allocation2 + $0x40] sm:$0xff]
        %v2023 = vld [vmem:[#allocation2 + $0x4c] sm:$0xff]
        %v2024 = vld [vmem:[#allocation2 + $0x58] sm:$0xff]
        %2033 = vrot.lane.b32.xlu0 %v2017, 111
        %v2034 = vpop.permute.xlu0 %2033
        %2035 = vrot.lane.b32.xlu0 %v2018, 111
        %v2036 = vpop.permute.xlu0 %2035
        %2037 = vrot.lane.b32.xlu0 %v2019, 111
        %v2038 = vpop.permute.xlu0 %2037
        %2039 = vrot.lane.b32.xlu0 %v2020, 111
        %v2040 = vpop.permute.xlu0 %2039
        %2041 = vrot.lane.b32.xlu0 %v2021, 111
        %v2042 = vpop.permute.xlu0 %2041
        %2043 = vrot.lane.b32.xlu0 %v2022, 111
        %v2044 = vpop.permute.xlu0 %2043
        %2045 = vrot.lane.b32.xlu0 %v2023, 111
        %v2046 = vpop.permute.xlu0 %2045
        %2047 = vrot.lane.b32.xlu0 %v2024, 111
        %v2048 = vpop.permute.xlu0 %2047
        %v2049 = vrot.slane %v2034, 4
        %v2050 = vrot.slane %v2036, 4
        %v2051 = vrot.slane %v2038, 4
        %v2052 = vrot.slane %v2040, 4
        %v2053 = vrot.slane %v2042, 4
        %v2054 = vrot.slane %v2044, 4
        %v2055 = vrot.slane %v2046, 4
        %v2056 = vrot.slane %v2048, 4
        %vm2057 = vcmask 908288
        %v2058 = vsel %vm2057, %v2034, %v2049
        %v2059 = vsel %vm2057, %v2036, %v2050
        %v2060 = vsel %vm2057, %v2038, %v2051
        %v2061 = vsel %vm2057, %v2040, %v2052
        %v2062 = vsel %vm2057, %v2042, %v2053
        %v2063 = vsel %vm2057, %v2044, %v2054
        %v2064 = vsel %vm2057, %v2046, %v2055
        %v2065 = vsel %vm2057, %v2048, %v2056
        %2074 = vst.msk [vmem:[#allocation5 + $0x40] sm:$0xff] %vm371, %v2058
        %2075 = vst.msk [vmem:[#allocation5 + $0x48] sm:$0xff] %vm371, %v2059
        %2076 = vst.msk [vmem:[#allocation5 + $0x50] sm:$0xff] %vm371, %v2060
        %2077 = vst.msk [vmem:[#allocation5 + $0x58] sm:$0xff] %vm371, %v2061
        %2078 = vst.msk [vmem:[#allocation5 + $0x60] sm:$0xff] %vm371, %v2062
        %2079 = vst.msk [vmem:[#allocation5 + $0x68] sm:$0xff] %vm371, %v2063
        %2080 = vst.msk [vmem:[#allocation5 + $0x70] sm:$0xff] %vm371, %v2064
        %2081 = vst.msk [vmem:[#allocation5 + $0x78] sm:$0xff] %vm371, %v2065
        %v2082 = vld [vmem:[#allocation2 + $0x4] sm:$0xff]
        %v2083 = vld [vmem:[#allocation2 + $0x10] sm:$0xff]
        %v2084 = vld [vmem:[#allocation2 + $0x1c] sm:$0xff]
        %v2085 = vld [vmem:[#allocation2 + $0x28] sm:$0xff]
        %v2086 = vld [vmem:[#allocation2 + $0x34] sm:$0xff]
        %v2087 = vld [vmem:[#allocation2 + $0x40] sm:$0xff]
        %v2088 = vld [vmem:[#allocation2 + $0x4c] sm:$0xff]
        %v2089 = vld [vmem:[#allocation2 + $0x58] sm:$0xff]
        %2098 = vrot.lane.b32.xlu0 %v2082, 110
        %v2099 = vpop.permute.xlu0 %2098
        %2100 = vrot.lane.b32.xlu0 %v2083, 110
        %v2101 = vpop.permute.xlu0 %2100
        %2102 = vrot.lane.b32.xlu0 %v2084, 110
        %v2103 = vpop.permute.xlu0 %2102
        %2104 = vrot.lane.b32.xlu0 %v2085, 110
        %v2105 = vpop.permute.xlu0 %2104
        %2106 = vrot.lane.b32.xlu0 %v2086, 110
        %v2107 = vpop.permute.xlu0 %2106
        %2108 = vrot.lane.b32.xlu0 %v2087, 110
        %v2109 = vpop.permute.xlu0 %2108
        %2110 = vrot.lane.b32.xlu0 %v2088, 110
        %v2111 = vpop.permute.xlu0 %2110
        %2112 = vrot.lane.b32.xlu0 %v2089, 110
        %v2113 = vpop.permute.xlu0 %2112
        %v2114 = vrot.slane %v2099, 4
        %v2115 = vrot.slane %v2101, 4
        %v2116 = vrot.slane %v2103, 4
        %v2117 = vrot.slane %v2105, 4
        %v2118 = vrot.slane %v2107, 4
        %v2119 = vrot.slane %v2109, 4
        %v2120 = vrot.slane %v2111, 4
        %v2121 = vrot.slane %v2113, 4
        %v2122 = vsel %vm550, %v2099, %v2114
        %v2123 = vsel %vm550, %v2101, %v2115
        %v2124 = vsel %vm550, %v2103, %v2116
        %v2125 = vsel %vm550, %v2105, %v2117
        %v2126 = vsel %vm550, %v2107, %v2118
        %v2127 = vsel %vm550, %v2109, %v2119
        %v2128 = vsel %vm550, %v2111, %v2120
        %v2129 = vsel %vm550, %v2113, %v2121
        %2138 = vst.msk [vmem:[#allocation5 + $0x80] sm:$0xff] %vm371, %v2122
        %2139 = vst.msk [vmem:[#allocation5 + $0x88] sm:$0xff] %vm371, %v2123
        %2140 = vst.msk [vmem:[#allocation5 + $0x90] sm:$0xff] %vm371, %v2124
        %2141 = vst.msk [vmem:[#allocation5 + $0x98] sm:$0xff] %vm371, %v2125
        %2142 = vst.msk [vmem:[#allocation5 + $0xa0] sm:$0xff] %vm371, %v2126
        %2143 = vst.msk [vmem:[#allocation5 + $0xa8] sm:$0xff] %vm371, %v2127
        %2144 = vst.msk [vmem:[#allocation5 + $0xb0] sm:$0xff] %vm371, %v2128
        %2145 = vst.msk [vmem:[#allocation5 + $0xb8] sm:$0xff] %vm371, %v2129
        %v2146 = vld [vmem:[#allocation2 + $0x4] sm:$0xff]
        %v2147 = vld [vmem:[#allocation2 + $0x10] sm:$0xff]
        %v2148 = vld [vmem:[#allocation2 + $0x1c] sm:$0xff]
        %v2149 = vld [vmem:[#allocation2 + $0x28] sm:$0xff]
        %v2150 = vld [vmem:[#allocation2 + $0x34] sm:$0xff]
        %v2151 = vld [vmem:[#allocation2 + $0x40] sm:$0xff]
        %v2152 = vld [vmem:[#allocation2 + $0x4c] sm:$0xff]
        %v2153 = vld [vmem:[#allocation2 + $0x58] sm:$0xff]
        %2162 = vrot.lane.b32.xlu0 %v2146, 94
        %v2163 = vpop.permute.xlu0 %2162
        %2164 = vrot.lane.b32.xlu0 %v2147, 94
        %v2165 = vpop.permute.xlu0 %2164
        %2166 = vrot.lane.b32.xlu0 %v2148, 94
        %v2167 = vpop.permute.xlu0 %2166
        %2168 = vrot.lane.b32.xlu0 %v2149, 94
        %v2169 = vpop.permute.xlu0 %2168
        %2170 = vrot.lane.b32.xlu0 %v2150, 94
        %v2171 = vpop.permute.xlu0 %2170
        %2172 = vrot.lane.b32.xlu0 %v2151, 94
        %v2173 = vpop.permute.xlu0 %2172
        %2174 = vrot.lane.b32.xlu0 %v2152, 94
        %v2175 = vpop.permute.xlu0 %2174
        %2176 = vrot.lane.b32.xlu0 %v2153, 94
        %v2177 = vpop.permute.xlu0 %2176
        %v2178 = vrot.slane %v2163, 4
        %v2179 = vrot.slane %v2165, 4
        %v2180 = vrot.slane %v2167, 4
        %v2181 = vrot.slane %v2169, 4
        %v2182 = vrot.slane %v2171, 4
        %v2183 = vrot.slane %v2173, 4
        %v2184 = vrot.slane %v2175, 4
        %v2185 = vrot.slane %v2177, 4
        %vm2186 = vcmask 769024
        %v2187 = vsel %vm2186, %v2163, %v2178
        %v2188 = vsel %vm2186, %v2165, %v2179
        %v2189 = vsel %vm2186, %v2167, %v2180
        %v2190 = vsel %vm2186, %v2169, %v2181
        %v2191 = vsel %vm2186, %v2171, %v2182
        %v2192 = vsel %vm2186, %v2173, %v2183
        %v2193 = vsel %vm2186, %v2175, %v2184
        %v2194 = vsel %vm2186, %v2177, %v2185
        %2203 = vst.msk [vmem:[#allocation5 + $0xc0] sm:$0xff] %vm371, %v2187
        %2204 = vst.msk [vmem:[#allocation5 + $0xc8] sm:$0xff] %vm371, %v2188
        %2205 = vst.msk [vmem:[#allocation5 + $0xd0] sm:$0xff] %vm371, %v2189
        %2206 = vst.msk [vmem:[#allocation5 + $0xd8] sm:$0xff] %vm371, %v2190
        %2207 = vst.msk [vmem:[#allocation5 + $0xe0] sm:$0xff] %vm371, %v2191
        %2208 = vst.msk [vmem:[#allocation5 + $0xe8] sm:$0xff] %vm371, %v2192
        %2209 = vst.msk [vmem:[#allocation5 + $0xf0] sm:$0xff] %vm371, %v2193
        %2210 = vst.msk [vmem:[#allocation5 + $0xf8] sm:$0xff] %vm371, %v2194
        %v2211 = vld [vmem:[#allocation2 + $0x4] sm:$0xff]
        %v2212 = vld [vmem:[#allocation2 + $0x10] sm:$0xff]
        %v2213 = vld [vmem:[#allocation2 + $0x1c] sm:$0xff]
        %v2214 = vld [vmem:[#allocation2 + $0x28] sm:$0xff]
        %v2215 = vld [vmem:[#allocation2 + $0x34] sm:$0xff]
        %v2216 = vld [vmem:[#allocation2 + $0x40] sm:$0xff]
        %v2217 = vld [vmem:[#allocation2 + $0x4c] sm:$0xff]
        %v2218 = vld [vmem:[#allocation2 + $0x58] sm:$0xff]
        %2227 = vrot.lane.b32.xlu0 %v2211, 93
        %v2228 = vpop.permute.xlu0 %2227
        %2229 = vrot.lane.b32.xlu0 %v2212, 93
        %v2230 = vpop.permute.xlu0 %2229
        %2231 = vrot.lane.b32.xlu0 %v2213, 93
        %v2232 = vpop.permute.xlu0 %2231
        %2233 = vrot.lane.b32.xlu0 %v2214, 93
        %v2234 = vpop.permute.xlu0 %2233
        %2235 = vrot.lane.b32.xlu0 %v2215, 93
        %v2236 = vpop.permute.xlu0 %2235
        %2237 = vrot.lane.b32.xlu0 %v2216, 93
        %v2238 = vpop.permute.xlu0 %2237
        %2239 = vrot.lane.b32.xlu0 %v2217, 93
        %v2240 = vpop.permute.xlu0 %2239
        %2241 = vrot.lane.b32.xlu0 %v2218, 93
        %v2242 = vpop.permute.xlu0 %2241
        %v2243 = vrot.slane %v2228, 4
        %v2244 = vrot.slane %v2230, 4
        %v2245 = vrot.slane %v2232, 4
        %v2246 = vrot.slane %v2234, 4
        %v2247 = vrot.slane %v2236, 4
        %v2248 = vrot.slane %v2238, 4
        %v2249 = vrot.slane %v2240, 4
        %v2250 = vrot.slane %v2242, 4
        %vm2251 = vcmask 760832
        %v2252 = vsel %vm2251, %v2228, %v2243
        %v2253 = vsel %vm2251, %v2230, %v2244
        %v2254 = vsel %vm2251, %v2232, %v2245
        %v2255 = vsel %vm2251, %v2234, %v2246
        %v2256 = vsel %vm2251, %v2236, %v2247
        %v2257 = vsel %vm2251, %v2238, %v2248
        %v2258 = vsel %vm2251, %v2240, %v2249
        %v2259 = vsel %vm2251, %v2242, %v2250
        %2268 = vst.msk [vmem:[#allocation5 + $0x100] sm:$0xff] %vm371, %v2252
        %2269 = vst.msk [vmem:[#allocation5 + $0x108] sm:$0xff] %vm371, %v2253
        %2270 = vst.msk [vmem:[#allocation5 + $0x110] sm:$0xff] %vm371, %v2254
        %2271 = vst.msk [vmem:[#allocation5 + $0x118] sm:$0xff] %vm371, %v2255
        %2272 = vst.msk [vmem:[#allocation5 + $0x120] sm:$0xff] %vm371, %v2256
        %2273 = vst.msk [vmem:[#allocation5 + $0x128] sm:$0xff] %vm371, %v2257
        %2274 = vst.msk [vmem:[#allocation5 + $0x130] sm:$0xff] %vm371, %v2258
        %2275 = vst.msk [vmem:[#allocation5 + $0x138] sm:$0xff] %vm371, %v2259
        %v2276 = vld [vmem:[#allocation2 + $0x4] sm:$0xff]
        %v2277 = vld [vmem:[#allocation2 + $0x10] sm:$0xff]
        %v2278 = vld [vmem:[#allocation2 + $0x1c] sm:$0xff]
        %v2279 = vld [vmem:[#allocation2 + $0x28] sm:$0xff]
        %v2280 = vld [vmem:[#allocation2 + $0x34] sm:$0xff]
        %v2281 = vld [vmem:[#allocation2 + $0x40] sm:$0xff]
        %v2282 = vld [vmem:[#allocation2 + $0x4c] sm:$0xff]
        %v2283 = vld [vmem:[#allocation2 + $0x58] sm:$0xff]
        %2292 = vrot.lane.b32.xlu0 %v2276, 92
        %v2293 = vpop.permute.xlu0 %2292
        %2294 = vrot.lane.b32.xlu0 %v2277, 92
        %v2295 = vpop.permute.xlu0 %2294
        %2296 = vrot.lane.b32.xlu0 %v2278, 92
        %v2297 = vpop.permute.xlu0 %2296
        %2298 = vrot.lane.b32.xlu0 %v2279, 92
        %v2299 = vpop.permute.xlu0 %2298
        %2300 = vrot.lane.b32.xlu0 %v2280, 92
        %v2301 = vpop.permute.xlu0 %2300
        %2302 = vrot.lane.b32.xlu0 %v2281, 92
        %v2303 = vpop.permute.xlu0 %2302
        %2304 = vrot.lane.b32.xlu0 %v2282, 92
        %v2305 = vpop.permute.xlu0 %2304
        %2306 = vrot.lane.b32.xlu0 %v2283, 92
        %v2307 = vpop.permute.xlu0 %2306
        %v2308 = vrot.slane %v2293, 4
        %v2309 = vrot.slane %v2295, 4
        %v2310 = vrot.slane %v2297, 4
        %v2311 = vrot.slane %v2299, 4
        %v2312 = vrot.slane %v2301, 4
        %v2313 = vrot.slane %v2303, 4
        %v2314 = vrot.slane %v2305, 4
        %v2315 = vrot.slane %v2307, 4
        %v2316 = vsel %vm745, %v2293, %v2308
        %v2317 = vsel %vm745, %v2295, %v2309
        %v2318 = vsel %vm745, %v2297, %v2310
        %v2319 = vsel %vm745, %v2299, %v2311
        %v2320 = vsel %vm745, %v2301, %v2312
        %v2321 = vsel %vm745, %v2303, %v2313
        %v2322 = vsel %vm745, %v2305, %v2314
        %v2323 = vsel %vm745, %v2307, %v2315
        %2332 = vst.msk [vmem:[#allocation5 + $0x140] sm:$0xff] %vm371, %v2316
        %2333 = vst.msk [vmem:[#allocation5 + $0x148] sm:$0xff] %vm371, %v2317
        %2334 = vst.msk [vmem:[#allocation5 + $0x150] sm:$0xff] %vm371, %v2318
        %2335 = vst.msk [vmem:[#allocation5 + $0x158] sm:$0xff] %vm371, %v2319
        %2336 = vst.msk [vmem:[#allocation5 + $0x160] sm:$0xff] %vm371, %v2320
        %2337 = vst.msk [vmem:[#allocation5 + $0x168] sm:$0xff] %vm371, %v2321
        %2338 = vst.msk [vmem:[#allocation5 + $0x170] sm:$0xff] %vm371, %v2322
        %2339 = vst.msk [vmem:[#allocation5 + $0x178] sm:$0xff] %vm371, %v2323
        %v2340 = vld [vmem:[#allocation2 + $0x4] sm:$0xff]
        %v2341 = vld [vmem:[#allocation2 + $0x10] sm:$0xff]
        %v2342 = vld [vmem:[#allocation2 + $0x1c] sm:$0xff]
        %v2343 = vld [vmem:[#allocation2 + $0x28] sm:$0xff]
        %v2344 = vld [vmem:[#allocation2 + $0x34] sm:$0xff]
        %v2345 = vld [vmem:[#allocation2 + $0x40] sm:$0xff]
        %v2346 = vld [vmem:[#allocation2 + $0x4c] sm:$0xff]
        %v2347 = vld [vmem:[#allocation2 + $0x58] sm:$0xff]
        %2356 = vrot.lane.b32.xlu0 %v2340, 76
        %v2357 = vpop.permute.xlu0 %2356
        %2358 = vrot.lane.b32.xlu0 %v2341, 76
        %v2359 = vpop.permute.xlu0 %2358
        %2360 = vrot.lane.b32.xlu0 %v2342, 76
        %v2361 = vpop.permute.xlu0 %2360
        %2362 = vrot.lane.b32.xlu0 %v2343, 76
        %v2363 = vpop.permute.xlu0 %2362
        %2364 = vrot.lane.b32.xlu0 %v2344, 76
        %v2365 = vpop.permute.xlu0 %2364
        %2366 = vrot.lane.b32.xlu0 %v2345, 76
        %v2367 = vpop.permute.xlu0 %2366
        %2368 = vrot.lane.b32.xlu0 %v2346, 76
        %v2369 = vpop.permute.xlu0 %2368
        %2370 = vrot.lane.b32.xlu0 %v2347, 76
        %v2371 = vpop.permute.xlu0 %2370
        %v2372 = vrot.slane %v2357, 4
        %v2373 = vrot.slane %v2359, 4
        %v2374 = vrot.slane %v2361, 4
        %v2375 = vrot.slane %v2363, 4
        %v2376 = vrot.slane %v2365, 4
        %v2377 = vrot.slane %v2367, 4
        %v2378 = vrot.slane %v2369, 4
        %v2379 = vrot.slane %v2371, 4
        %vm2380 = vcmask 621568
        %v2381 = vsel %vm2380, %v2357, %v2372
        %v2382 = vsel %vm2380, %v2359, %v2373
        %v2383 = vsel %vm2380, %v2361, %v2374
        %v2384 = vsel %vm2380, %v2363, %v2375
        %v2385 = vsel %vm2380, %v2365, %v2376
        %v2386 = vsel %vm2380, %v2367, %v2377
        %v2387 = vsel %vm2380, %v2369, %v2378
        %v2388 = vsel %vm2380, %v2371, %v2379
        %2397 = vst.msk [vmem:[#allocation5 + $0x180] sm:$0xff] %vm371, %v2381
        %2398 = vst.msk [vmem:[#allocation5 + $0x188] sm:$0xff] %vm371, %v2382
        %2399 = vst.msk [vmem:[#allocation5 + $0x190] sm:$0xff] %vm371, %v2383
        %2400 = vst.msk [vmem:[#allocation5 + $0x198] sm:$0xff] %vm371, %v2384
        %2401 = vst.msk [vmem:[#allocation5 + $0x1a0] sm:$0xff] %vm371, %v2385
        %2402 = vst.msk [vmem:[#allocation5 + $0x1a8] sm:$0xff] %vm371, %v2386
        %2403 = vst.msk [vmem:[#allocation5 + $0x1b0] sm:$0xff] %vm371, %v2387
        %2404 = vst.msk [vmem:[#allocation5 + $0x1b8] sm:$0xff] %vm371, %v2388
        %v2405 = vld [vmem:[#allocation2 + $0x4] sm:$0xff]
        %v2406 = vld [vmem:[#allocation2 + $0x10] sm:$0xff]
        %v2407 = vld [vmem:[#allocation2 + $0x1c] sm:$0xff]
        %v2408 = vld [vmem:[#allocation2 + $0x28] sm:$0xff]
        %v2409 = vld [vmem:[#allocation2 + $0x34] sm:$0xff]
        %v2410 = vld [vmem:[#allocation2 + $0x40] sm:$0xff]
        %v2411 = vld [vmem:[#allocation2 + $0x4c] sm:$0xff]
        %v2412 = vld [vmem:[#allocation2 + $0x58] sm:$0xff]
        %2421 = vrot.lane.b32.xlu0 %v2405, 75
        %v2422 = vpop.permute.xlu0 %2421
        %2423 = vrot.lane.b32.xlu0 %v2406, 75
        %v2424 = vpop.permute.xlu0 %2423
        %2425 = vrot.lane.b32.xlu0 %v2407, 75
        %v2426 = vpop.permute.xlu0 %2425
        %2427 = vrot.lane.b32.xlu0 %v2408, 75
        %v2428 = vpop.permute.xlu0 %2427
        %2429 = vrot.lane.b32.xlu0 %v2409, 75
        %v2430 = vpop.permute.xlu0 %2429
        %2431 = vrot.lane.b32.xlu0 %v2410, 75
        %v2432 = vpop.permute.xlu0 %2431
        %2433 = vrot.lane.b32.xlu0 %v2411, 75
        %v2434 = vpop.permute.xlu0 %2433
        %2435 = vrot.lane.b32.xlu0 %v2412, 75
        %v2436 = vpop.permute.xlu0 %2435
        %v2437 = vrot.slane %v2422, 4
        %v2438 = vrot.slane %v2424, 4
        %v2439 = vrot.slane %v2426, 4
        %v2440 = vrot.slane %v2428, 4
        %v2441 = vrot.slane %v2430, 4
        %v2442 = vrot.slane %v2432, 4
        %v2443 = vrot.slane %v2434, 4
        %v2444 = vrot.slane %v2436, 4
        %vm2445 = vcmask 613376
        %v2446 = vsel %vm2445, %v2422, %v2437
        %v2447 = vsel %vm2445, %v2424, %v2438
        %v2448 = vsel %vm2445, %v2426, %v2439
        %v2449 = vsel %vm2445, %v2428, %v2440
        %v2450 = vsel %vm2445, %v2430, %v2441
        %v2451 = vsel %vm2445, %v2432, %v2442
        %v2452 = vsel %vm2445, %v2434, %v2443
        %v2453 = vsel %vm2445, %v2436, %v2444
        %2462 = vst.msk [vmem:[#allocation5 + $0x1c0] sm:$0xff] %vm371, %v2446
        %2463 = vst.msk [vmem:[#allocation5 + $0x1c8] sm:$0xff] %vm371, %v2447
        %2464 = vst.msk [vmem:[#allocation5 + $0x1d0] sm:$0xff] %vm371, %v2448
        %2465 = vst.msk [vmem:[#allocation5 + $0x1d8] sm:$0xff] %vm371, %v2449
        %2466 = vst.msk [vmem:[#allocation5 + $0x1e0] sm:$0xff] %vm371, %v2450
        %2467 = vst.msk [vmem:[#allocation5 + $0x1e8] sm:$0xff] %vm371, %v2451
        %2468 = vst.msk [vmem:[#allocation5 + $0x1f0] sm:$0xff] %vm371, %v2452
        %2469 = vst.msk [vmem:[#allocation5 + $0x1f8] sm:$0xff] %vm371, %v2453
        %v2470 = vld [vmem:[#allocation2 + $0x4] sm:$0xff]
        %v2471 = vld [vmem:[#allocation2 + $0x10] sm:$0xff]
        %v2472 = vld [vmem:[#allocation2 + $0x1c] sm:$0xff]
        %v2473 = vld [vmem:[#allocation2 + $0x28] sm:$0xff]
        %v2474 = vld [vmem:[#allocation2 + $0x34] sm:$0xff]
        %v2475 = vld [vmem:[#allocation2 + $0x40] sm:$0xff]
        %v2476 = vld [vmem:[#allocation2 + $0x4c] sm:$0xff]
        %v2477 = vld [vmem:[#allocation2 + $0x58] sm:$0xff]
        %2486 = vrot.lane.b32.xlu0 %v2470, 74
        %v2487 = vpop.permute.xlu0 %2486
        %2488 = vrot.lane.b32.xlu0 %v2471, 74
        %v2489 = vpop.permute.xlu0 %2488
        %2490 = vrot.lane.b32.xlu0 %v2472, 74
        %v2491 = vpop.permute.xlu0 %2490
        %2492 = vrot.lane.b32.xlu0 %v2473, 74
        %v2493 = vpop.permute.xlu0 %2492
        %2494 = vrot.lane.b32.xlu0 %v2474, 74
        %v2495 = vpop.permute.xlu0 %2494
        %2496 = vrot.lane.b32.xlu0 %v2475, 74
        %v2497 = vpop.permute.xlu0 %2496
        %2498 = vrot.lane.b32.xlu0 %v2476, 74
        %v2499 = vpop.permute.xlu0 %2498
        %2500 = vrot.lane.b32.xlu0 %v2477, 74
        %v2501 = vpop.permute.xlu0 %2500
        %v2502 = vrot.slane %v2487, 4
        %v2503 = vrot.slane %v2489, 4
        %v2504 = vrot.slane %v2491, 4
        %v2505 = vrot.slane %v2493, 4
        %v2506 = vrot.slane %v2495, 4
        %v2507 = vrot.slane %v2497, 4
        %v2508 = vrot.slane %v2499, 4
        %v2509 = vrot.slane %v2501, 4
        %vm2510 = vcmask 605184
        %v2511 = vsel %vm2510, %v2487, %v2502
        %v2512 = vsel %vm2510, %v2489, %v2503
        %v2513 = vsel %vm2510, %v2491, %v2504
        %v2514 = vsel %vm2510, %v2493, %v2505
        %v2515 = vsel %vm2510, %v2495, %v2506
        %v2516 = vsel %vm2510, %v2497, %v2507
        %v2517 = vsel %vm2510, %v2499, %v2508
        %v2518 = vsel %vm2510, %v2501, %v2509
        %2527 = vst.msk [vmem:[#allocation5 + $0x200] sm:$0xff] %vm371, %v2511
        %2528 = vst.msk [vmem:[#allocation5 + $0x208] sm:$0xff] %vm371, %v2512
        %2529 = vst.msk [vmem:[#allocation5 + $0x210] sm:$0xff] %vm371, %v2513
        %2530 = vst.msk [vmem:[#allocation5 + $0x218] sm:$0xff] %vm371, %v2514
        %2531 = vst.msk [vmem:[#allocation5 + $0x220] sm:$0xff] %vm371, %v2515
        %2532 = vst.msk [vmem:[#allocation5 + $0x228] sm:$0xff] %vm371, %v2516
        %2533 = vst.msk [vmem:[#allocation5 + $0x230] sm:$0xff] %vm371, %v2517
        %2534 = vst.msk [vmem:[#allocation5 + $0x238] sm:$0xff] %vm371, %v2518
        %v2535 = vld [vmem:[#allocation5] sm:$0xff]
        %v2536 = vld [vmem:[#allocation5 + $0x8] sm:$0xff]
        %v2537 = vld [vmem:[#allocation5 + $0x10] sm:$0xff]
        %v2538 = vld [vmem:[#allocation5 + $0x18] sm:$0xff]
        %v2539 = vld [vmem:[#allocation5 + $0x20] sm:$0xff]
        %v2540 = vld [vmem:[#allocation5 + $0x28] sm:$0xff]
        %v2541 = vld [vmem:[#allocation5 + $0x30] sm:$0xff]
        %v2542 = vld [vmem:[#allocation5 + $0x38] sm:$0xff]
        %v2543 = vld [vmem:[#allocation5 + $0x40] sm:$0xff]
        %v2544 = vld [vmem:[#allocation5 + $0x48] sm:$0xff]
        %v2545 = vld [vmem:[#allocation5 + $0x50] sm:$0xff]
        %v2546 = vld [vmem:[#allocation5 + $0x58] sm:$0xff]
        %v2547 = vld [vmem:[#allocation5 + $0x60] sm:$0xff]
        %v2548 = vld [vmem:[#allocation5 + $0x68] sm:$0xff]
        %v2549 = vld [vmem:[#allocation5 + $0x70] sm:$0xff]
        %v2550 = vld [vmem:[#allocation5 + $0x78] sm:$0xff]
        %v2551 = vld [vmem:[#allocation5 + $0x80] sm:$0xff]
        %v2552 = vld [vmem:[#allocation5 + $0x88] sm:$0xff]
        %v2553 = vld [vmem:[#allocation5 + $0x90] sm:$0xff]
        %v2554 = vld [vmem:[#allocation5 + $0x98] sm:$0xff]
        %v2555 = vld [vmem:[#allocation5 + $0xa0] sm:$0xff]
        %v2556 = vld [vmem:[#allocation5 + $0xa8] sm:$0xff]
        %v2557 = vld [vmem:[#allocation5 + $0xb0] sm:$0xff]
        %v2558 = vld [vmem:[#allocation5 + $0xb8] sm:$0xff]
        %v2559 = vld [vmem:[#allocation5 + $0xc0] sm:$0xff]
        %v2560 = vld [vmem:[#allocation5 + $0xc8] sm:$0xff]
        %v2561 = vld [vmem:[#allocation5 + $0xd0] sm:$0xff]
        %v2562 = vld [vmem:[#allocation5 + $0xd8] sm:$0xff]
        %v2563 = vld [vmem:[#allocation5 + $0xe0] sm:$0xff]
        %v2564 = vld [vmem:[#allocation5 + $0xe8] sm:$0xff]
        %v2565 = vld [vmem:[#allocation5 + $0xf0] sm:$0xff]
        %v2566 = vld [vmem:[#allocation5 + $0xf8] sm:$0xff]
        %v2567 = vld [vmem:[#allocation5 + $0x100] sm:$0xff]
        %v2568 = vld [vmem:[#allocation5 + $0x108] sm:$0xff]
        %v2569 = vld [vmem:[#allocation5 + $0x110] sm:$0xff]
        %v2570 = vld [vmem:[#allocation5 + $0x118] sm:$0xff]
        %v2571 = vld [vmem:[#allocation5 + $0x120] sm:$0xff]
        %v2572 = vld [vmem:[#allocation5 + $0x128] sm:$0xff]
        %v2573 = vld [vmem:[#allocation5 + $0x130] sm:$0xff]
        %v2574 = vld [vmem:[#allocation5 + $0x138] sm:$0xff]
        %v2575 = vld [vmem:[#allocation5 + $0x140] sm:$0xff]
        %v2576 = vld [vmem:[#allocation5 + $0x148] sm:$0xff]
        %v2577 = vld [vmem:[#allocation5 + $0x150] sm:$0xff]
        %v2578 = vld [vmem:[#allocation5 + $0x158] sm:$0xff]
        %v2579 = vld [vmem:[#allocation5 + $0x160] sm:$0xff]
        %v2580 = vld [vmem:[#allocation5 + $0x168] sm:$0xff]
        %v2581 = vld [vmem:[#allocation5 + $0x170] sm:$0xff]
        %v2582 = vld [vmem:[#allocation5 + $0x178] sm:$0xff]
        %v2583 = vld [vmem:[#allocation5 + $0x180] sm:$0xff]
        %v2584 = vld [vmem:[#allocation5 + $0x188] sm:$0xff]
        %v2585 = vld [vmem:[#allocation5 + $0x190] sm:$0xff]
        %v2586 = vld [vmem:[#allocation5 + $0x198] sm:$0xff]
        %v2587 = vld [vmem:[#allocation5 + $0x1a0] sm:$0xff]
        %v2588 = vld [vmem:[#allocation5 + $0x1a8] sm:$0xff]
        %v2589 = vld [vmem:[#allocation5 + $0x1b0] sm:$0xff]
        %v2590 = vld [vmem:[#allocation5 + $0x1b8] sm:$0xff]
        %v2591 = vld [vmem:[#allocation5 + $0x1c0] sm:$0xff]
        %v2592 = vld [vmem:[#allocation5 + $0x1c8] sm:$0xff]
        %v2593 = vld [vmem:[#allocation5 + $0x1d0] sm:$0xff]
        %v2594 = vld [vmem:[#allocation5 + $0x1d8] sm:$0xff]
        %v2595 = vld [vmem:[#allocation5 + $0x1e0] sm:$0xff]
        %v2596 = vld [vmem:[#allocation5 + $0x1e8] sm:$0xff]
        %v2597 = vld [vmem:[#allocation5 + $0x1f0] sm:$0xff]
        %v2598 = vld [vmem:[#allocation5 + $0x1f8] sm:$0xff]
        %v2599 = vld [vmem:[#allocation5 + $0x200] sm:$0xff]
        %v2600 = vld [vmem:[#allocation5 + $0x208] sm:$0xff]
        %v2601 = vld [vmem:[#allocation5 + $0x210] sm:$0xff]
        %v2602 = vld [vmem:[#allocation5 + $0x218] sm:$0xff]
        %v2603 = vld [vmem:[#allocation5 + $0x220] sm:$0xff]
        %v2604 = vld [vmem:[#allocation5 + $0x228] sm:$0xff]
        %v2605 = vld [vmem:[#allocation5 + $0x230] sm:$0xff]
        %v2606 = vld [vmem:[#allocation5 + $0x238] sm:$0xff]
        %v2679 = vunpack.c.l.b16 %v2535
        %v2680 = vunpack.c.h.b16 %v2535
        %v2681 = vunpack.c.l.b16 %v2536
        %v2682 = vunpack.c.h.b16 %v2536
        %v2683 = vunpack.c.l.b16 %v2537
        %v2684 = vunpack.c.h.b16 %v2537
        %v2685 = vunpack.c.l.b16 %v2538
        %v2686 = vunpack.c.h.b16 %v2538
        %v2687 = vunpack.c.l.b16 %v2539
        %v2688 = vunpack.c.h.b16 %v2539
        %v2689 = vunpack.c.l.b16 %v2540
        %v2690 = vunpack.c.h.b16 %v2540
        %v2691 = vunpack.c.l.b16 %v2541
        %v2692 = vunpack.c.h.b16 %v2541
        %v2693 = vunpack.c.l.b16 %v2542
        %v2694 = vunpack.c.h.b16 %v2542
        %v2695 = vunpack.c.l.b16 %v2543
        %v2696 = vunpack.c.h.b16 %v2543
        %v2697 = vunpack.c.l.b16 %v2544
        %v2698 = vunpack.c.h.b16 %v2544
        %v2699 = vunpack.c.l.b16 %v2545
        %v2700 = vunpack.c.h.b16 %v2545
        %v2701 = vunpack.c.l.b16 %v2546
        %v2702 = vunpack.c.h.b16 %v2546
        %v2703 = vunpack.c.l.b16 %v2547
        %v2704 = vunpack.c.h.b16 %v2547
        %v2705 = vunpack.c.l.b16 %v2548
        %v2706 = vunpack.c.h.b16 %v2548
        %v2707 = vunpack.c.l.b16 %v2549
        %v2708 = vunpack.c.h.b16 %v2549
        %v2709 = vunpack.c.l.b16 %v2550
        %v2710 = vunpack.c.h.b16 %v2550
        %v2711 = vunpack.c.l.b16 %v2551
        %v2712 = vunpack.c.h.b16 %v2551
        %v2713 = vunpack.c.l.b16 %v2552
        %v2714 = vunpack.c.h.b16 %v2552
        %v2715 = vunpack.c.l.b16 %v2553
        %v2716 = vunpack.c.h.b16 %v2553
        %v2717 = vunpack.c.l.b16 %v2554
        %v2718 = vunpack.c.h.b16 %v2554
        %v2719 = vunpack.c.l.b16 %v2555
        %v2720 = vunpack.c.h.b16 %v2555
        %v2721 = vunpack.c.l.b16 %v2556
        %v2722 = vunpack.c.h.b16 %v2556
        %v2723 = vunpack.c.l.b16 %v2557
        %v2724 = vunpack.c.h.b16 %v2557
        %v2725 = vunpack.c.l.b16 %v2558
        %v2726 = vunpack.c.h.b16 %v2558
        %v2727 = vunpack.c.l.b16 %v2559
        %v2728 = vunpack.c.h.b16 %v2559
        %v2729 = vunpack.c.l.b16 %v2560
        %v2730 = vunpack.c.h.b16 %v2560
        %v2731 = vunpack.c.l.b16 %v2561
        %v2732 = vunpack.c.h.b16 %v2561
        %v2733 = vunpack.c.l.b16 %v2562
        %v2734 = vunpack.c.h.b16 %v2562
        %v2735 = vunpack.c.l.b16 %v2563
        %v2736 = vunpack.c.h.b16 %v2563
        %v2737 = vunpack.c.l.b16 %v2564
        %v2738 = vunpack.c.h.b16 %v2564
        %v2739 = vunpack.c.l.b16 %v2565
        %v2740 = vunpack.c.h.b16 %v2565
        %v2741 = vunpack.c.l.b16 %v2566
        %v2742 = vunpack.c.h.b16 %v2566
        %v2743 = vunpack.c.l.b16 %v2567
        %v2744 = vunpack.c.h.b16 %v2567
        %v2745 = vunpack.c.l.b16 %v2568
        %v2746 = vunpack.c.h.b16 %v2568
        %v2747 = vunpack.c.l.b16 %v2569
        %v2748 = vunpack.c.h.b16 %v2569
        %v2749 = vunpack.c.l.b16 %v2570
        %v2750 = vunpack.c.h.b16 %v2570
        %v2751 = vunpack.c.l.b16 %v2571
        %v2752 = vunpack.c.h.b16 %v2571
        %v2753 = vunpack.c.l.b16 %v2572
        %v2754 = vunpack.c.h.b16 %v2572
        %v2755 = vunpack.c.l.b16 %v2573
        %v2756 = vunpack.c.h.b16 %v2573
        %v2757 = vunpack.c.l.b16 %v2574
        %v2758 = vunpack.c.h.b16 %v2574
        %v2759 = vunpack.c.l.b16 %v2575
        %v2760 = vunpack.c.h.b16 %v2575
        %v2761 = vunpack.c.l.b16 %v2576
        %v2762 = vunpack.c.h.b16 %v2576
        %v2763 = vunpack.c.l.b16 %v2577
        %v2764 = vunpack.c.h.b16 %v2577
        %v2765 = vunpack.c.l.b16 %v2578
        %v2766 = vunpack.c.h.b16 %v2578
        %v2767 = vunpack.c.l.b16 %v2579
        %v2768 = vunpack.c.h.b16 %v2579
        %v2769 = vunpack.c.l.b16 %v2580
        %v2770 = vunpack.c.h.b16 %v2580
        %v2771 = vunpack.c.l.b16 %v2581
        %v2772 = vunpack.c.h.b16 %v2581
        %v2773 = vunpack.c.l.b16 %v2582
        %v2774 = vunpack.c.h.b16 %v2582
        %v2775 = vunpack.c.l.b16 %v2583
        %v2776 = vunpack.c.h.b16 %v2583
        %v2777 = vunpack.c.l.b16 %v2584
        %v2778 = vunpack.c.h.b16 %v2584
        %v2779 = vunpack.c.l.b16 %v2585
        %v2780 = vunpack.c.h.b16 %v2585
        %v2781 = vunpack.c.l.b16 %v2586
        %v2782 = vunpack.c.h.b16 %v2586
        %v2783 = vunpack.c.l.b16 %v2587
        %v2784 = vunpack.c.h.b16 %v2587
        %v2785 = vunpack.c.l.b16 %v2588
        %v2786 = vunpack.c.h.b16 %v2588
        %v2787 = vunpack.c.l.b16 %v2589
        %v2788 = vunpack.c.h.b16 %v2589
        %v2789 = vunpack.c.l.b16 %v2590
        %v2790 = vunpack.c.h.b16 %v2590
        %v2791 = vunpack.c.l.b16 %v2591
        %v2792 = vunpack.c.h.b16 %v2591
        %v2793 = vunpack.c.l.b16 %v2592
        %v2794 = vunpack.c.h.b16 %v2592
        %v2795 = vunpack.c.l.b16 %v2593
        %v2796 = vunpack.c.h.b16 %v2593
        %v2797 = vunpack.c.l.b16 %v2594
        %v2798 = vunpack.c.h.b16 %v2594
        %v2799 = vunpack.c.l.b16 %v2595
        %v2800 = vunpack.c.h.b16 %v2595
        %v2801 = vunpack.c.l.b16 %v2596
        %v2802 = vunpack.c.h.b16 %v2596
        %v2803 = vunpack.c.l.b16 %v2597
        %v2804 = vunpack.c.h.b16 %v2597
        %v2805 = vunpack.c.l.b16 %v2598
        %v2806 = vunpack.c.h.b16 %v2598
        %v2807 = vunpack.c.l.b16 %v2599
        %v2808 = vunpack.c.h.b16 %v2599
        %v2809 = vunpack.c.l.b16 %v2600
        %v2810 = vunpack.c.h.b16 %v2600
        %v2811 = vunpack.c.l.b16 %v2601
        %v2812 = vunpack.c.h.b16 %v2601
        %v2813 = vunpack.c.l.b16 %v2602
        %v2814 = vunpack.c.h.b16 %v2602
        %v2815 = vunpack.c.l.b16 %v2603
        %v2816 = vunpack.c.h.b16 %v2603
        %v2817 = vunpack.c.l.b16 %v2604
        %v2818 = vunpack.c.h.b16 %v2604
        %v2819 = vunpack.c.l.b16 %v2605
        %v2820 = vunpack.c.h.b16 %v2605
        %v2821 = vunpack.c.l.b16 %v2606
        %v2822 = vunpack.c.h.b16 %v2606
        %v2823 = vpack.c.b16 %v2681, %v2679
        %v2824 = vpack.c.b16 %v2682, %v2680
        %v2825 = vpack.c.b16 %v2685, %v2683
        %v2826 = vpack.c.b16 %v2686, %v2684
        %v2827 = vpack.c.b16 %v2689, %v2687
        %v2828 = vpack.c.b16 %v2690, %v2688
        %v2829 = vpack.c.b16 %v2693, %v2691
        %v2830 = vpack.c.b16 %v2694, %v2692
        %v2831 = vpack.c.b16 %v2697, %v2695
        %v2832 = vpack.c.b16 %v2698, %v2696
        %v2833 = vpack.c.b16 %v2701, %v2699
        %v2834 = vpack.c.b16 %v2702, %v2700
        %v2835 = vpack.c.b16 %v2705, %v2703
        %v2836 = vpack.c.b16 %v2706, %v2704
        %v2837 = vpack.c.b16 %v2709, %v2707
        %v2838 = vpack.c.b16 %v2710, %v2708
        %v2839 = vpack.c.b16 %v2713, %v2711
        %v2840 = vpack.c.b16 %v2714, %v2712
        %v2841 = vpack.c.b16 %v2717, %v2715
        %v2842 = vpack.c.b16 %v2718, %v2716
        %v2843 = vpack.c.b16 %v2721, %v2719
        %v2844 = vpack.c.b16 %v2722, %v2720
        %v2845 = vpack.c.b16 %v2725, %v2723
        %v2846 = vpack.c.b16 %v2726, %v2724
        %v2847 = vpack.c.b16 %v2729, %v2727
        %v2848 = vpack.c.b16 %v2730, %v2728
        %v2849 = vpack.c.b16 %v2733, %v2731
        %v2850 = vpack.c.b16 %v2734, %v2732
        %v2851 = vpack.c.b16 %v2737, %v2735
        %v2852 = vpack.c.b16 %v2738, %v2736
        %v2853 = vpack.c.b16 %v2741, %v2739
        %v2854 = vpack.c.b16 %v2742, %v2740
        %v2855 = vpack.c.b16 %v2745, %v2743
        %v2856 = vpack.c.b16 %v2746, %v2744
        %v2857 = vpack.c.b16 %v2749, %v2747
        %v2858 = vpack.c.b16 %v2750, %v2748
        %v2859 = vpack.c.b16 %v2753, %v2751
        %v2860 = vpack.c.b16 %v2754, %v2752
        %v2861 = vpack.c.b16 %v2757, %v2755
        %v2862 = vpack.c.b16 %v2758, %v2756
        %v2863 = vpack.c.b16 %v2761, %v2759
        %v2864 = vpack.c.b16 %v2762, %v2760
        %v2865 = vpack.c.b16 %v2765, %v2763
        %v2866 = vpack.c.b16 %v2766, %v2764
        %v2867 = vpack.c.b16 %v2769, %v2767
        %v2868 = vpack.c.b16 %v2770, %v2768
        %v2869 = vpack.c.b16 %v2773, %v2771
        %v2870 = vpack.c.b16 %v2774, %v2772
        %v2871 = vpack.c.b16 %v2777, %v2775
        %v2872 = vpack.c.b16 %v2778, %v2776
        %v2873 = vpack.c.b16 %v2781, %v2779
        %v2874 = vpack.c.b16 %v2782, %v2780
        %v2875 = vpack.c.b16 %v2785, %v2783
        %v2876 = vpack.c.b16 %v2786, %v2784
        %v2877 = vpack.c.b16 %v2789, %v2787
        %v2878 = vpack.c.b16 %v2790, %v2788
        %v2879 = vpack.c.b16 %v2793, %v2791
        %v2880 = vpack.c.b16 %v2794, %v2792
        %v2881 = vpack.c.b16 %v2797, %v2795
        %v2882 = vpack.c.b16 %v2798, %v2796
        %v2883 = vpack.c.b16 %v2801, %v2799
        %v2884 = vpack.c.b16 %v2802, %v2800
        %v2885 = vpack.c.b16 %v2805, %v2803
        %v2886 = vpack.c.b16 %v2806, %v2804
        %v2887 = vpack.c.b16 %v2809, %v2807
        %v2888 = vpack.c.b16 %v2810, %v2808
        %v2889 = vpack.c.b16 %v2813, %v2811
        %v2890 = vpack.c.b16 %v2814, %v2812
        %v2891 = vpack.c.b16 %v2817, %v2815
        %v2892 = vpack.c.b16 %v2818, %v2816
        %v2893 = vpack.c.b16 %v2821, %v2819
        %v2894 = vpack.c.b16 %v2822, %v2820
        %2967 = vmatpush.bf16.msra.mxu0 %v2837
        %2968 = vmatpush.bf16.msra.mxu0 %v2835
        %2969 = vmatpush.bf16.msra.mxu0 %v2833
        %2970 = vmatpush.bf16.msra.mxu0 %v2831
        %2971 = vmatpush.bf16.msra.mxu0 %v2829
        %2972 = vmatpush.bf16.msra.mxu0 %v2827
        %2973 = vmatpush.bf16.msra.mxu0 %v2825
        %2974 = vmatpush.bf16.msra.mxu0 %v2823
        %2975 = vmatmul.bf16.gmra.mxu0 %v1036
        %v2976 = vpop.f32.mrf.mxu0
        %v2977 = vadd.f32 0.0, %v2976
        %v2978 = vpop.f32.mrf.mxu0
        %v2979 = vadd.f32 0.0, %v2978
        %2980 = vmatmul.bf16.gmra.mxu0 %v1041
        %v2981 = vpop.f32.mrf.mxu0
        %v2982 = vadd.f32 0.0, %v2981
        %v2983 = vpop.f32.mrf.mxu0
        %v2984 = vadd.f32 0.0, %v2983
        %2985 = vmatmul.bf16.gmra.mxu0 %v1046
        %v2986 = vpop.f32.mrf.mxu0
        %v2987 = vadd.f32 0.0, %v2986
        %v2988 = vpop.f32.mrf.mxu0
        %v2989 = vadd.f32 0.0, %v2988
        %2990 = vmatmul.bf16.gmra.mxu0 %v1051
        %v2991 = vpop.f32.mrf.mxu0
        %v2992 = vadd.f32 0.0, %v2991
        %v2993 = vpop.f32.mrf.mxu0
        %v2994 = vadd.f32 0.0, %v2993
        %2995 = vdwg.mxu0
        %2996 = vmatpush.bf16.msra.mxu0 %v2853
        %2997 = vmatpush.bf16.msra.mxu0 %v2851
        %2998 = vmatpush.bf16.msra.mxu0 %v2849
        %2999 = vmatpush.bf16.msra.mxu0 %v2847
        %3000 = vmatpush.bf16.msra.mxu0 %v2845
        %3001 = vmatpush.bf16.msra.mxu0 %v2843
        %3002 = vmatpush.bf16.msra.mxu0 %v2841
        %3003 = vmatpush.bf16.msra.mxu0 %v2839
        %3004 = vmatmul.bf16.gmra.mxu0 %v1037
        %v3005 = vpop.f32.mrf.mxu0
        %v3006 = vadd.f32 %v2977, %v3005
        %v3007 = vpop.f32.mrf.mxu0
        %v3008 = vadd.f32 %v2979, %v3007
        %3009 = vmatmul.bf16.gmra.mxu0 %v1042
        %v3010 = vpop.f32.mrf.mxu0
        %v3011 = vadd.f32 %v2982, %v3010
        %v3012 = vpop.f32.mrf.mxu0
        %v3013 = vadd.f32 %v2984, %v3012
        %3014 = vmatmul.bf16.gmra.mxu0 %v1047
        %v3015 = vpop.f32.mrf.mxu0
        %v3016 = vadd.f32 %v2987, %v3015
        %v3017 = vpop.f32.mrf.mxu0
        %v3018 = vadd.f32 %v2989, %v3017
        %3019 = vmatmul.bf16.gmra.mxu0 %v1052
        %v3020 = vpop.f32.mrf.mxu0
        %v3021 = vadd.f32 %v2992, %v3020
        %v3022 = vpop.f32.mrf.mxu0
        %v3023 = vadd.f32 %v2994, %v3022
        %3024 = vdwg.mxu0
        %3025 = vmatpush.bf16.msra.mxu0 %v2869
        %3026 = vmatpush.bf16.msra.mxu0 %v2867
        %3027 = vmatpush.bf16.msra.mxu0 %v2865
        %3028 = vmatpush.bf16.msra.mxu0 %v2863
        %3029 = vmatpush.bf16.msra.mxu0 %v2861
        %3030 = vmatpush.bf16.msra.mxu0 %v2859
        %3031 = vmatpush.bf16.msra.mxu0 %v2857
        %3032 = vmatpush.bf16.msra.mxu0 %v2855
        %3033 = vmatmul.bf16.gmra.mxu0 %v1038
        %v3034 = vpop.f32.mrf.mxu0
        %v3035 = vadd.f32 %v3006, %v3034
        %v3036 = vpop.f32.mrf.mxu0
        %v3037 = vadd.f32 %v3008, %v3036
        %3038 = vmatmul.bf16.gmra.mxu0 %v1043
        %v3039 = vpop.f32.mrf.mxu0
        %v3040 = vadd.f32 %v3011, %v3039
        %v3041 = vpop.f32.mrf.mxu0
        %v3042 = vadd.f32 %v3013, %v3041
        %3043 = vmatmul.bf16.gmra.mxu0 %v1048
        %v3044 = vpop.f32.mrf.mxu0
        %v3045 = vadd.f32 %v3016, %v3044
        %v3046 = vpop.f32.mrf.mxu0
        %v3047 = vadd.f32 %v3018, %v3046
        %3048 = vmatmul.bf16.gmra.mxu0 %v1053
        %v3049 = vpop.f32.mrf.mxu0
        %v3050 = vadd.f32 %v3021, %v3049
        %v3051 = vpop.f32.mrf.mxu0
        %v3052 = vadd.f32 %v3023, %v3051
        %3053 = vdwg.mxu0
        %3054 = vmatpush.bf16.msra.mxu0 %v2885
        %3055 = vmatpush.bf16.msra.mxu0 %v2883
        %3056 = vmatpush.bf16.msra.mxu0 %v2881
        %3057 = vmatpush.bf16.msra.mxu0 %v2879
        %3058 = vmatpush.bf16.msra.mxu0 %v2877
        %3059 = vmatpush.bf16.msra.mxu0 %v2875
        %3060 = vmatpush.bf16.msra.mxu0 %v2873
        %3061 = vmatpush.bf16.msra.mxu0 %v2871
        %3062 = vmatmul.bf16.gmra.mxu0 %v1039
        %v3063 = vpop.f32.mrf.mxu0
        %v3064 = vadd.f32 %v3035, %v3063
        %v3065 = vpop.f32.mrf.mxu0
        %v3066 = vadd.f32 %v3037, %v3065
        %3067 = vmatmul.bf16.gmra.mxu0 %v1044
        %v3068 = vpop.f32.mrf.mxu0
        %v3069 = vadd.f32 %v3040, %v3068
        %v3070 = vpop.f32.mrf.mxu0
        %v3071 = vadd.f32 %v3042, %v3070
        %3072 = vmatmul.bf16.gmra.mxu0 %v1049
        %v3073 = vpop.f32.mrf.mxu0
        %v3074 = vadd.f32 %v3045, %v3073
        %v3075 = vpop.f32.mrf.mxu0
        %v3076 = vadd.f32 %v3047, %v3075
        %3077 = vmatmul.bf16.gmra.mxu0 %v1054
        %v3078 = vpop.f32.mrf.mxu0
        %v3079 = vadd.f32 %v3050, %v3078
        %v3080 = vpop.f32.mrf.mxu0
        %v3081 = vadd.f32 %v3052, %v3080
        %3082 = vdwg.mxu0
        %3083 = vmatpush.bf16.msra.mxu0 0
        %3084 = vmatpush.bf16.msra.mxu0 0
        %3085 = vmatpush.bf16.msra.mxu0 0
        %3086 = vmatpush.bf16.msra.mxu0 0
        %3087 = vmatpush.bf16.msra.mxu0 %v2893
        %3088 = vmatpush.bf16.msra.mxu0 %v2891
        %3089 = vmatpush.bf16.msra.mxu0 %v2889
        %3090 = vmatpush.bf16.msra.mxu0 %v2887
        %3091 = vmatmul.bf16.gmra.mxu0 %v1434
        %v3092 = vpop.f32.mrf.mxu0
        %v3093 = vadd.f32 %v3064, %v3092
        %v3094 = vpop.f32.mrf.mxu0
        %v3095 = vadd.f32 %v3066, %v3094
        %3096 = vmatmul.bf16.gmra.mxu0 %v1437
        %v3097 = vpop.f32.mrf.mxu0
        %v3098 = vadd.f32 %v3069, %v3097
        %v3099 = vpop.f32.mrf.mxu0
        %v3100 = vadd.f32 %v3071, %v3099
        %3101 = vmatmul.bf16.gmra.mxu0 %v1440
        %v3102 = vpop.f32.mrf.mxu0
        %v3103 = vadd.f32 %v3074, %v3102
        %v3104 = vpop.f32.mrf.mxu0
        %v3105 = vadd.f32 %v3076, %v3104
        %3106 = vmatmul.bf16.gmra.mxu0 %v1443
        %v3107 = vpop.f32.mrf.mxu0
        %v3108 = vadd.f32 %v3079, %v3107
        %v3109 = vpop.f32.mrf.mxu0
        %v3110 = vadd.f32 %v3081, %v3109
        %3111 = vdwg.mxu0
        %3112 = vmatpush.bf16.msra.mxu0 %v2838
        %3113 = vmatpush.bf16.msra.mxu0 %v2836
        %3114 = vmatpush.bf16.msra.mxu0 %v2834
        %3115 = vmatpush.bf16.msra.mxu0 %v2832
        %3116 = vmatpush.bf16.msra.mxu0 %v2830
        %3117 = vmatpush.bf16.msra.mxu0 %v2828
        %3118 = vmatpush.bf16.msra.mxu0 %v2826
        %3119 = vmatpush.bf16.msra.mxu0 %v2824
        %3120 = vmatmul.bf16.gmra.mxu0 %v1036
        %v3121 = vpop.f32.mrf.mxu0
        %v3122 = vadd.f32 0.0, %v3121
        %v3123 = vpop.f32.mrf.mxu0
        %v3124 = vadd.f32 0.0, %v3123
        %3125 = vmatmul.bf16.gmra.mxu0 %v1041
        %v3126 = vpop.f32.mrf.mxu0
        %v3127 = vadd.f32 0.0, %v3126
        %v3128 = vpop.f32.mrf.mxu0
        %v3129 = vadd.f32 0.0, %v3128
        %3130 = vmatmul.bf16.gmra.mxu0 %v1046
        %v3131 = vpop.f32.mrf.mxu0
        %v3132 = vadd.f32 0.0, %v3131
        %v3133 = vpop.f32.mrf.mxu0
        %v3134 = vadd.f32 0.0, %v3133
        %3135 = vmatmul.bf16.gmra.mxu0 %v1051
        %v3136 = vpop.f32.mrf.mxu0
        %v3137 = vadd.f32 0.0, %v3136
        %v3138 = vpop.f32.mrf.mxu0
        %v3139 = vadd.f32 0.0, %v3138
        %3140 = vdwg.mxu0
        %3141 = vmatpush.bf16.msra.mxu0 %v2854
        %3142 = vmatpush.bf16.msra.mxu0 %v2852
        %3143 = vmatpush.bf16.msra.mxu0 %v2850
        %3144 = vmatpush.bf16.msra.mxu0 %v2848
        %3145 = vmatpush.bf16.msra.mxu0 %v2846
        %3146 = vmatpush.bf16.msra.mxu0 %v2844
        %3147 = vmatpush.bf16.msra.mxu0 %v2842
        %3148 = vmatpush.bf16.msra.mxu0 %v2840
        %3149 = vmatmul.bf16.gmra.mxu0 %v1037
        %v3150 = vpop.f32.mrf.mxu0
        %v3151 = vadd.f32 %v3122, %v3150
        %v3152 = vpop.f32.mrf.mxu0
        %v3153 = vadd.f32 %v3124, %v3152
        %3154 = vmatmul.bf16.gmra.mxu0 %v1042
        %v3155 = vpop.f32.mrf.mxu0
        %v3156 = vadd.f32 %v3127, %v3155
        %v3157 = vpop.f32.mrf.mxu0
        %v3158 = vadd.f32 %v3129, %v3157
        %3159 = vmatmul.bf16.gmra.mxu0 %v1047
        %v3160 = vpop.f32.mrf.mxu0
        %v3161 = vadd.f32 %v3132, %v3160
        %v3162 = vpop.f32.mrf.mxu0
        %v3163 = vadd.f32 %v3134, %v3162
        %3164 = vmatmul.bf16.gmra.mxu0 %v1052
        %v3165 = vpop.f32.mrf.mxu0
        %v3166 = vadd.f32 %v3137, %v3165
        %v3167 = vpop.f32.mrf.mxu0
        %v3168 = vadd.f32 %v3139, %v3167
        %3169 = vdwg.mxu0
        %3170 = vmatpush.bf16.msra.mxu0 %v2870
        %3171 = vmatpush.bf16.msra.mxu0 %v2868
        %3172 = vmatpush.bf16.msra.mxu0 %v2866
        %3173 = vmatpush.bf16.msra.mxu0 %v2864
        %3174 = vmatpush.bf16.msra.mxu0 %v2862
        %3175 = vmatpush.bf16.msra.mxu0 %v2860
        %3176 = vmatpush.bf16.msra.mxu0 %v2858
        %3177 = vmatpush.bf16.msra.mxu0 %v2856
        %3178 = vmatmul.bf16.gmra.mxu0 %v1038
        %v3179 = vpop.f32.mrf.mxu0
        %v3180 = vadd.f32 %v3151, %v3179
        %v3181 = vpop.f32.mrf.mxu0
        %v3182 = vadd.f32 %v3153, %v3181
        %3183 = vmatmul.bf16.gmra.mxu0 %v1043
        %v3184 = vpop.f32.mrf.mxu0
        %v3185 = vadd.f32 %v3156, %v3184
        %v3186 = vpop.f32.mrf.mxu0
        %v3187 = vadd.f32 %v3158, %v3186
        %3188 = vmatmul.bf16.gmra.mxu0 %v1048
        %v3189 = vpop.f32.mrf.mxu0
        %v3190 = vadd.f32 %v3161, %v3189
        %v3191 = vpop.f32.mrf.mxu0
        %v3192 = vadd.f32 %v3163, %v3191
        %3193 = vmatmul.bf16.gmra.mxu0 %v1053
        %v3194 = vpop.f32.mrf.mxu0
        %v3195 = vadd.f32 %v3166, %v3194
        %v3196 = vpop.f32.mrf.mxu0
        %v3197 = vadd.f32 %v3168, %v3196
        %3198 = vdwg.mxu0
        %3199 = vmatpush.bf16.msra.mxu0 %v2886
        %3200 = vmatpush.bf16.msra.mxu0 %v2884
        %3201 = vmatpush.bf16.msra.mxu0 %v2882
        %3202 = vmatpush.bf16.msra.mxu0 %v2880
        %3203 = vmatpush.bf16.msra.mxu0 %v2878
        %3204 = vmatpush.bf16.msra.mxu0 %v2876
        %3205 = vmatpush.bf16.msra.mxu0 %v2874
        %3206 = vmatpush.bf16.msra.mxu0 %v2872
        %3207 = vmatmul.bf16.gmra.mxu0 %v1039
        %v3208 = vpop.f32.mrf.mxu0
        %v3209 = vadd.f32 %v3180, %v3208
        %v3210 = vpop.f32.mrf.mxu0
        %v3211 = vadd.f32 %v3182, %v3210
        %3212 = vmatmul.bf16.gmra.mxu0 %v1044
        %v3213 = vpop.f32.mrf.mxu0
        %v3214 = vadd.f32 %v3185, %v3213
        %v3215 = vpop.f32.mrf.mxu0
        %v3216 = vadd.f32 %v3187, %v3215
        %3217 = vmatmul.bf16.gmra.mxu0 %v1049
        %v3218 = vpop.f32.mrf.mxu0
        %v3219 = vadd.f32 %v3190, %v3218
        %v3220 = vpop.f32.mrf.mxu0
        %v3221 = vadd.f32 %v3192, %v3220
        %3222 = vmatmul.bf16.gmra.mxu0 %v1054
        %v3223 = vpop.f32.mrf.mxu0
        %v3224 = vadd.f32 %v3195, %v3223
        %v3225 = vpop.f32.mrf.mxu0
        %v3226 = vadd.f32 %v3197, %v3225
        %3227 = vdwg.mxu0
        %3228 = vmatpush.bf16.msra.mxu0 0
        %3229 = vmatpush.bf16.msra.mxu0 0
        %3230 = vmatpush.bf16.msra.mxu0 0
        %3231 = vmatpush.bf16.msra.mxu0 0
        %3232 = vmatpush.bf16.msra.mxu0 %v2894
        %3233 = vmatpush.bf16.msra.mxu0 %v2892
        %3234 = vmatpush.bf16.msra.mxu0 %v2890
        %3235 = vmatpush.bf16.msra.mxu0 %v2888
        %3236 = vmatmul.bf16.gmra.mxu0 %v1434
        %v3237 = vpop.f32.mrf.mxu0
        %v3238 = vadd.f32 %v3209, %v3237
        %v3239 = vpop.f32.mrf.mxu0
        %v3240 = vadd.f32 %v3211, %v3239
        %3241 = vmatmul.bf16.gmra.mxu0 %v1437
        %v3242 = vpop.f32.mrf.mxu0
        %v3243 = vadd.f32 %v3214, %v3242
        %v3244 = vpop.f32.mrf.mxu0
        %v3245 = vadd.f32 %v3216, %v3244
        %3246 = vmatmul.bf16.gmra.mxu0 %v1440
        %v3247 = vpop.f32.mrf.mxu0
        %v3248 = vadd.f32 %v3219, %v3247
        %v3249 = vpop.f32.mrf.mxu0
        %v3250 = vadd.f32 %v3221, %v3249
        %3251 = vmatmul.bf16.gmra.mxu0 %v1443
        %v3252 = vpop.f32.mrf.mxu0
        %v3253 = vadd.f32 %v3224, %v3252
        %v3254 = vpop.f32.mrf.mxu0
        %v3255 = vadd.f32 %v3226, %v3254
        %3256 = vdwg.mxu0
        %v3257 = vmul.f32 %v3093, %v1738
        %v3258 = vmul.f32 %v3238, %v1738
        %v3259 = vmul.f32 %v3095, %v1743
        %v3260 = vmul.f32 %v3240, %v1743
        %v3261 = vmul.f32 %v3098, %v1748
        %v3262 = vmul.f32 %v3243, %v1748
        %v3263 = vmul.f32 %v3100, %v1753
        %v3264 = vmul.f32 %v3245, %v1753
        %v3265 = vmul.f32 %v3103, %v1758
        %v3266 = vmul.f32 %v3248, %v1758
        %v3267 = vmul.f32 %v3105, %v1763
        %v3268 = vmul.f32 %v3250, %v1763
        %v3269 = vmul.f32 %v3108, %v1768
        %v3270 = vmul.f32 %v3253, %v1768
        %v3271 = vmul.f32 %v3110, %v1773
        %v3272 = vmul.f32 %v3255, %v1773
        %v3273 = vadd.f32 %v3257, %v1794
        %v3274 = vadd.f32 %v3258, %v1794
        %v3275 = vadd.f32 %v3259, %v1799
        %v3276 = vadd.f32 %v3260, %v1799
        %v3277 = vadd.f32 %v3261, %v1804
        %v3278 = vadd.f32 %v3262, %v1804
        %v3279 = vadd.f32 %v3263, %v1809
        %v3280 = vadd.f32 %v3264, %v1809
        %v3281 = vadd.f32 %v3265, %v1814
        %v3282 = vadd.f32 %v3266, %v1814
        %v3283 = vadd.f32 %v3267, %v1819
        %v3284 = vadd.f32 %v3268, %v1819
        %v3285 = vadd.f32 %v3269, %v1824
        %v3286 = vadd.f32 %v3270, %v1824
        %v3287 = vadd.f32 %v3271, %v1829
        %v3288 = vadd.f32 %v3272, %v1829
        %v3289 = vmax.f32 %v3273, 0.0
        %v3290 = vmax.f32 %v3274, 0.0
        %v3291 = vmax.f32 %v3275, 0.0
        %v3292 = vmax.f32 %v3276, 0.0
        %v3293 = vmax.f32 %v3277, 0.0
        %v3294 = vmax.f32 %v3278, 0.0
        %v3295 = vmax.f32 %v3279, 0.0
        %v3296 = vmax.f32 %v3280, 0.0
        %v3297 = vmax.f32 %v3281, 0.0
        %v3298 = vmax.f32 %v3282, 0.0
        %v3299 = vmax.f32 %v3283, 0.0
        %v3300 = vmax.f32 %v3284, 0.0
        %v3301 = vmax.f32 %v3285, 0.0
        %v3302 = vmax.f32 %v3286, 0.0
        %v3303 = vmax.f32 %v3287, 0.0
        %v3304 = vmax.f32 %v3288, 0.0
        %v3305 = vmul.f32 %v3289, %v1864
        %v3306 = vmul.f32 %v3290, %v1865
        %v3307 = vmul.f32 %v3291, %v1864
        %v3308 = vmul.f32 %v3292, %v1865
        %v3309 = vmul.f32 %v3293, %v1864
        %v3310 = vmul.f32 %v3294, %v1865
        %v3311 = vmul.f32 %v3295, %v1864
        %v3312 = vmul.f32 %v3296, %v1865
        %v3313 = vmul.f32 %v3297, %v1864
        %v3314 = vmul.f32 %v3298, %v1865
        %v3315 = vmul.f32 %v3299, %v1864
        %v3316 = vmul.f32 %v3300, %v1865
        %v3317 = vmul.f32 %v3301, %v1864
        %v3318 = vmul.f32 %v3302, %v1865
        %v3319 = vmul.f32 %v3303, %v1864
        %v3320 = vmul.f32 %v3304, %v1865
        %v3321 = vpack.c.bf16 %v3306, %v3305
        %v3322 = vpack.c.bf16 %v3308, %v3307
        %v3323 = vpack.c.bf16 %v3310, %v3309
        %v3324 = vpack.c.bf16 %v3312, %v3311
        %v3325 = vpack.c.bf16 %v3314, %v3313
        %v3326 = vpack.c.bf16 %v3316, %v3315
        %v3327 = vpack.c.bf16 %v3318, %v3317
        %v3328 = vpack.c.bf16 %v3320, %v3319
        %3337 = vrot.lane.b32.xlu0 %v3321, 35
        %v3338 = vpop.permute.xlu0 %3337
        %3339 = vrot.lane.b32.xlu0 %v3322, 35
        %v3340 = vpop.permute.xlu0 %3339
        %3341 = vrot.lane.b32.xlu0 %v3323, 35
        %v3342 = vpop.permute.xlu0 %3341
        %3343 = vrot.lane.b32.xlu0 %v3324, 35
        %v3344 = vpop.permute.xlu0 %3343
        %3345 = vrot.lane.b32.xlu0 %v3325, 35
        %v3346 = vpop.permute.xlu0 %3345
        %3347 = vrot.lane.b32.xlu0 %v3326, 35
        %v3348 = vpop.permute.xlu0 %3347
        %3349 = vrot.lane.b32.xlu0 %v3327, 35
        %v3350 = vpop.permute.xlu0 %3349
        %3351 = vrot.lane.b32.xlu0 %v3328, 35
        %v3352 = vpop.permute.xlu0 %3351
        %v3353 = vrot.slane %v3338, 4
        %v3354 = vrot.slane %v3340, 4
        %v3355 = vrot.slane %v3342, 4
        %v3356 = vrot.slane %v3344, 4
        %v3357 = vrot.slane %v3346, 4
        %v3358 = vrot.slane %v3348, 4
        %v3359 = vrot.slane %v3350, 4
        %v3360 = vrot.slane %v3352, 4
        %vm3361 = vcmask 285696
        %v3362 = vsel %vm3361, %v3353, %v3338
        %v3363 = vsel %vm3361, %v3354, %v3340
        %v3364 = vsel %vm3361, %v3355, %v3342
        %v3365 = vsel %vm3361, %v3356, %v3344
        %v3366 = vsel %vm3361, %v3357, %v3346
        %v3367 = vsel %vm3361, %v3358, %v3348
        %v3368 = vsel %vm3361, %v3359, %v3350
        %v3369 = vsel %vm3361, %v3360, %v3352
        %vm3378 = vcmask 1043736
        %vm3379 = vcmask 416772
        %vm3380 = vmor %vm3379, %vm3378
        %3381 = vst.msk [vmem:[#allocation3 + $0x4] sm:$0xff] %vm3380, %v3362
        %3382 = vst.msk [vmem:[#allocation3 + $0x10] sm:$0xff] %vm3380, %v3363
        %3383 = vst.msk [vmem:[#allocation3 + $0x1c] sm:$0xff] %vm3380, %v3364
        %3384 = vst.msk [vmem:[#allocation3 + $0x28] sm:$0xff] %vm3380, %v3365
        %3385 = vst.msk [vmem:[#allocation3 + $0x34] sm:$0xff] %vm3380, %v3366
        %3386 = vst.msk [vmem:[#allocation3 + $0x40] sm:$0xff] %vm3380, %v3367
        %3387 = vst.msk [vmem:[#allocation3 + $0x4c] sm:$0xff] %vm3380, %v3368
        %3388 = vst.msk [vmem:[#allocation3 + $0x58] sm:$0xff] %vm3380, %v3369
        %s3389 = sadd.s32 %s314, 1
        %s3390 = smul.u32 %s3389, 40
        %s3391 = smul.addr %s3390, 4
        %s3392 = scalar_lea.vmem %s1, %s3391
        %v3393 = vld [vmem:[%s3392] sm:$0xff]
        %v3394 = vld [vmem:[%s3392 + $0x8] sm:$0xff]
        %v3395 = vld [vmem:[%s3392 + $0x10] sm:$0xf]
        %v3396 = vld [vmem:[%s3392 + $0x14] sm:$0xff]
        %v3397 = vld [vmem:[%s3392 + $0x1c] sm:$0xff]
        %v3398 = vld [vmem:[%s3392 + $0x24] sm:$0xf]
        %v3399 = vld [vmem:[%s3392 + $0x28] sm:$0xff]
        %v3400 = vld [vmem:[%s3392 + $0x30] sm:$0xff]
        %v3401 = vld [vmem:[%s3392 + $0x38] sm:$0xf]
        %v3402 = vld [vmem:[%s3392 + $0x3c] sm:$0xff]
        %v3403 = vld [vmem:[%s3392 + $0x44] sm:$0xff]
        %v3404 = vld [vmem:[%s3392 + $0x4c] sm:$0xf]
        %v3405 = vld [vmem:[%s3392 + $0x50] sm:$0xff]
        %v3406 = vld [vmem:[%s3392 + $0x58] sm:$0xff]
        %v3407 = vld [vmem:[%s3392 + $0x60] sm:$0xf]
        %v3408 = vld [vmem:[%s3392 + $0x64] sm:$0xff]
        %v3409 = vld [vmem:[%s3392 + $0x6c] sm:$0xff]
        %v3410 = vld [vmem:[%s3392 + $0x74] sm:$0xf]
        %v3411 = vld [vmem:[%s3392 + $0x78] sm:$0xff]
        %v3412 = vld [vmem:[%s3392 + $0x80] sm:$0xff]
        %v3413 = vld [vmem:[%s3392 + $0x88] sm:$0xf]
        %v3414 = vld [vmem:[%s3392 + $0x8c] sm:$0xff]
        %v3415 = vld [vmem:[%s3392 + $0x94] sm:$0xff]
        %v3416 = vld [vmem:[%s3392 + $0x9c] sm:$0xf]
        %s3417 = smul.u32 %s3389, 64
        %s3418 = scalar_lea.vmem %s2, %s3417
        %v3419 = vld [vmem:[%s3418] sm:$0xff]
        %v3420 = vld [vmem:[%s3418 + $0x8] sm:$0xff]
        %v3421 = vld [vmem:[%s3418 + $0x10] sm:$0xff]
        %v3422 = vld [vmem:[%s3418 + $0x18] sm:$0xff]
        %v3423 = vld [vmem:[%s3418 + $0x20] sm:$0xff]
        %v3424 = vld [vmem:[%s3418 + $0x28] sm:$0xff]
        %v3425 = vld [vmem:[%s3418 + $0x30] sm:$0xff]
        %v3426 = vld [vmem:[%s3418 + $0x38] sm:$0xff]
        %s3427 = scalar_lea.vmem %s3, %s3417
        %v3428 = vld [vmem:[%s3427] sm:$0xff]
        %v3429 = vld [vmem:[%s3427 + $0x8] sm:$0xff]
        %v3430 = vld [vmem:[%s3427 + $0x10] sm:$0xff]
        %v3431 = vld [vmem:[%s3427 + $0x18] sm:$0xff]
        %v3432 = vld [vmem:[%s3427 + $0x20] sm:$0xff]
        %v3433 = vld [vmem:[%s3427 + $0x28] sm:$0xff]
        %v3434 = vld [vmem:[%s3427 + $0x30] sm:$0xff]
        %v3435 = vld [vmem:[%s3427 + $0x38] sm:$0xff]
        %v3436 = vld [vmem:[#allocation3] sm:$0xff]
        %v3437 = vld [vmem:[#allocation3 + $0xc] sm:$0xff]
        %v3438 = vld [vmem:[#allocation3 + $0x18] sm:$0xff]
        %v3439 = vld [vmem:[#allocation3 + $0x24] sm:$0xff]
        %v3440 = vld [vmem:[#allocation3 + $0x30] sm:$0xff]
        %v3441 = vld [vmem:[#allocation3 + $0x3c] sm:$0xff]
        %v3442 = vld [vmem:[#allocation3 + $0x48] sm:$0xff]
        %v3443 = vld [vmem:[#allocation3 + $0x54] sm:$0xff]
        %3444 = vst.msk [vmem:[#allocation4] sm:$0xff] %vm371, %v3436
        %3445 = vst.msk [vmem:[#allocation4 + $0x8] sm:$0xff] %vm371, %v3437
        %3446 = vst.msk [vmem:[#allocation4 + $0x10] sm:$0xff] %vm371, %v3438
        %3447 = vst.msk [vmem:[#allocation4 + $0x18] sm:$0xff] %vm371, %v3439
        %3448 = vst.msk [vmem:[#allocation4 + $0x20] sm:$0xff] %vm371, %v3440
        %3449 = vst.msk [vmem:[#allocation4 + $0x28] sm:$0xff] %vm371, %v3441
        %3450 = vst.msk [vmem:[#allocation4 + $0x30] sm:$0xff] %vm371, %v3442
        %3451 = vst.msk [vmem:[#allocation4 + $0x38] sm:$0xff] %vm371, %v3443
        %v3452 = vld [vmem:[#allocation3] sm:$0xff]
        %v3453 = vld [vmem:[#allocation3 + $0xc] sm:$0xff]
        %v3454 = vld [vmem:[#allocation3 + $0x18] sm:$0xff]
        %v3455 = vld [vmem:[#allocation3 + $0x24] sm:$0xff]
        %v3456 = vld [vmem:[#allocation3 + $0x30] sm:$0xff]
        %v3457 = vld [vmem:[#allocation3 + $0x3c] sm:$0xff]
        %v3458 = vld [vmem:[#allocation3 + $0x48] sm:$0xff]
        %v3459 = vld [vmem:[#allocation3 + $0x54] sm:$0xff]
        %3468 = vrot.lane.b32.xlu0 %v3452, 127
        %v3469 = vpop.permute.xlu0 %3468
        %3470 = vrot.lane.b32.xlu0 %v3453, 127
        %v3471 = vpop.permute.xlu0 %3470
        %3472 = vrot.lane.b32.xlu0 %v3454, 127
        %v3473 = vpop.permute.xlu0 %3472
        %3474 = vrot.lane.b32.xlu0 %v3455, 127
        %v3475 = vpop.permute.xlu0 %3474
        %3476 = vrot.lane.b32.xlu0 %v3456, 127
        %v3477 = vpop.permute.xlu0 %3476
        %3478 = vrot.lane.b32.xlu0 %v3457, 127
        %v3479 = vpop.permute.xlu0 %3478
        %3480 = vrot.lane.b32.xlu0 %v3458, 127
        %v3481 = vpop.permute.xlu0 %3480
        %3482 = vrot.lane.b32.xlu0 %v3459, 127
        %v3483 = vpop.permute.xlu0 %3482
        %v3484 = vrot.slane %v3469, 4
        %v3485 = vrot.slane %v3471, 4
        %v3486 = vrot.slane %v3473, 4
        %v3487 = vrot.slane %v3475, 4
        %v3488 = vrot.slane %v3477, 4
        %v3489 = vrot.slane %v3479, 4
        %v3490 = vrot.slane %v3481, 4
        %v3491 = vrot.slane %v3483, 4
        %v3492 = vsel %vm420, %v3469, %v3484
        %v3493 = vsel %vm420, %v3471, %v3485
        %v3494 = vsel %vm420, %v3473, %v3486
        %v3495 = vsel %vm420, %v3475, %v3487
        %v3496 = vsel %vm420, %v3477, %v3488
        %v3497 = vsel %vm420, %v3479, %v3489
        %v3498 = vsel %vm420, %v3481, %v3490
        %v3499 = vsel %vm420, %v3483, %v3491
        %3508 = vst.msk [vmem:[#allocation4 + $0x40] sm:$0xff] %vm371, %v3492
        %3509 = vst.msk [vmem:[#allocation4 + $0x48] sm:$0xff] %vm371, %v3493
        %3510 = vst.msk [vmem:[#allocation4 + $0x50] sm:$0xff] %vm371, %v3494
        %3511 = vst.msk [vmem:[#allocation4 + $0x58] sm:$0xff] %vm371, %v3495
        %3512 = vst.msk [vmem:[#allocation4 + $0x60] sm:$0xff] %vm371, %v3496
        %3513 = vst.msk [vmem:[#allocation4 + $0x68] sm:$0xff] %vm371, %v3497
        %3514 = vst.msk [vmem:[#allocation4 + $0x70] sm:$0xff] %vm371, %v3498
        %3515 = vst.msk [vmem:[#allocation4 + $0x78] sm:$0xff] %vm371, %v3499
        %v3516 = vld [vmem:[#allocation3] sm:$0xff]
        %v3517 = vld [vmem:[#allocation3 + $0xc] sm:$0xff]
        %v3518 = vld [vmem:[#allocation3 + $0x18] sm:$0xff]
        %v3519 = vld [vmem:[#allocation3 + $0x24] sm:$0xff]
        %v3520 = vld [vmem:[#allocation3 + $0x30] sm:$0xff]
        %v3521 = vld [vmem:[#allocation3 + $0x3c] sm:$0xff]
        %v3522 = vld [vmem:[#allocation3 + $0x48] sm:$0xff]
        %v3523 = vld [vmem:[#allocation3 + $0x54] sm:$0xff]
        %3532 = vrot.lane.b32.xlu0 %v3516, 126
        %v3533 = vpop.permute.xlu0 %3532
        %3534 = vrot.lane.b32.xlu0 %v3517, 126
        %v3535 = vpop.permute.xlu0 %3534
        %3536 = vrot.lane.b32.xlu0 %v3518, 126
        %v3537 = vpop.permute.xlu0 %3536
        %3538 = vrot.lane.b32.xlu0 %v3519, 126
        %v3539 = vpop.permute.xlu0 %3538
        %3540 = vrot.lane.b32.xlu0 %v3520, 126
        %v3541 = vpop.permute.xlu0 %3540
        %3542 = vrot.lane.b32.xlu0 %v3521, 126
        %v3543 = vpop.permute.xlu0 %3542
        %3544 = vrot.lane.b32.xlu0 %v3522, 126
        %v3545 = vpop.permute.xlu0 %3544
        %3546 = vrot.lane.b32.xlu0 %v3523, 126
        %v3547 = vpop.permute.xlu0 %3546
        %v3548 = vrot.slane %v3533, 4
        %v3549 = vrot.slane %v3535, 4
        %v3550 = vrot.slane %v3537, 4
        %v3551 = vrot.slane %v3539, 4
        %v3552 = vrot.slane %v3541, 4
        %v3553 = vrot.slane %v3543, 4
        %v3554 = vrot.slane %v3545, 4
        %v3555 = vrot.slane %v3547, 4
        %v3556 = vsel %vm485, %v3533, %v3548
        %v3557 = vsel %vm485, %v3535, %v3549
        %v3558 = vsel %vm485, %v3537, %v3550
        %v3559 = vsel %vm485, %v3539, %v3551
        %v3560 = vsel %vm485, %v3541, %v3552
        %v3561 = vsel %vm485, %v3543, %v3553
        %v3562 = vsel %vm485, %v3545, %v3554
        %v3563 = vsel %vm485, %v3547, %v3555
        %3572 = vst.msk [vmem:[#allocation4 + $0x80] sm:$0xff] %vm371, %v3556
        %3573 = vst.msk [vmem:[#allocation4 + $0x88] sm:$0xff] %vm371, %v3557
        %3574 = vst.msk [vmem:[#allocation4 + $0x90] sm:$0xff] %vm371, %v3558
        %3575 = vst.msk [vmem:[#allocation4 + $0x98] sm:$0xff] %vm371, %v3559
        %3576 = vst.msk [vmem:[#allocation4 + $0xa0] sm:$0xff] %vm371, %v3560
        %3577 = vst.msk [vmem:[#allocation4 + $0xa8] sm:$0xff] %vm371, %v3561
        %3578 = vst.msk [vmem:[#allocation4 + $0xb0] sm:$0xff] %vm371, %v3562
        %3579 = vst.msk [vmem:[#allocation4 + $0xb8] sm:$0xff] %vm371, %v3563
        %v3580 = vld [vmem:[#allocation3] sm:$0xff]
        %v3581 = vld [vmem:[#allocation3 + $0xc] sm:$0xff]
        %v3582 = vld [vmem:[#allocation3 + $0x18] sm:$0xff]
        %v3583 = vld [vmem:[#allocation3 + $0x24] sm:$0xff]
        %v3584 = vld [vmem:[#allocation3 + $0x30] sm:$0xff]
        %v3585 = vld [vmem:[#allocation3 + $0x3c] sm:$0xff]
        %v3586 = vld [vmem:[#allocation3 + $0x48] sm:$0xff]
        %v3587 = vld [vmem:[#allocation3 + $0x54] sm:$0xff]
        %3596 = vrot.lane.b32.xlu0 %v3580, 110
        %v3597 = vpop.permute.xlu0 %3596
        %3598 = vrot.lane.b32.xlu0 %v3581, 110
        %v3599 = vpop.permute.xlu0 %3598
        %3600 = vrot.lane.b32.xlu0 %v3582, 110
        %v3601 = vpop.permute.xlu0 %3600
        %3602 = vrot.lane.b32.xlu0 %v3583, 110
        %v3603 = vpop.permute.xlu0 %3602
        %3604 = vrot.lane.b32.xlu0 %v3584, 110
        %v3605 = vpop.permute.xlu0 %3604
        %3606 = vrot.lane.b32.xlu0 %v3585, 110
        %v3607 = vpop.permute.xlu0 %3606
        %3608 = vrot.lane.b32.xlu0 %v3586, 110
        %v3609 = vpop.permute.xlu0 %3608
        %3610 = vrot.lane.b32.xlu0 %v3587, 110
        %v3611 = vpop.permute.xlu0 %3610
        %v3612 = vrot.slane %v3597, 4
        %v3613 = vrot.slane %v3599, 4
        %v3614 = vrot.slane %v3601, 4
        %v3615 = vrot.slane %v3603, 4
        %v3616 = vrot.slane %v3605, 4
        %v3617 = vrot.slane %v3607, 4
        %v3618 = vrot.slane %v3609, 4
        %v3619 = vrot.slane %v3611, 4
        %v3620 = vsel %vm550, %v3597, %v3612
        %v3621 = vsel %vm550, %v3599, %v3613
        %v3622 = vsel %vm550, %v3601, %v3614
        %v3623 = vsel %vm550, %v3603, %v3615
        %v3624 = vsel %vm550, %v3605, %v3616
        %v3625 = vsel %vm550, %v3607, %v3617
        %v3626 = vsel %vm550, %v3609, %v3618
        %v3627 = vsel %vm550, %v3611, %v3619
        %3636 = vst.msk [vmem:[#allocation4 + $0xc0] sm:$0xff] %vm371, %v3620
        %3637 = vst.msk [vmem:[#allocation4 + $0xc8] sm:$0xff] %vm371, %v3621
        %3638 = vst.msk [vmem:[#allocation4 + $0xd0] sm:$0xff] %vm371, %v3622
        %3639 = vst.msk [vmem:[#allocation4 + $0xd8] sm:$0xff] %vm371, %v3623
        %3640 = vst.msk [vmem:[#allocation4 + $0xe0] sm:$0xff] %vm371, %v3624
        %3641 = vst.msk [vmem:[#allocation4 + $0xe8] sm:$0xff] %vm371, %v3625
        %3642 = vst.msk [vmem:[#allocation4 + $0xf0] sm:$0xff] %vm371, %v3626
        %3643 = vst.msk [vmem:[#allocation4 + $0xf8] sm:$0xff] %vm371, %v3627
        %v3644 = vld [vmem:[#allocation3] sm:$0xff]
        %v3645 = vld [vmem:[#allocation3 + $0xc] sm:$0xff]
        %v3646 = vld [vmem:[#allocation3 + $0x18] sm:$0xff]
        %v3647 = vld [vmem:[#allocation3 + $0x24] sm:$0xff]
        %v3648 = vld [vmem:[#allocation3 + $0x30] sm:$0xff]
        %v3649 = vld [vmem:[#allocation3 + $0x3c] sm:$0xff]
        %v3650 = vld [vmem:[#allocation3 + $0x48] sm:$0xff]
        %v3651 = vld [vmem:[#allocation3 + $0x54] sm:$0xff]
        %3660 = vrot.lane.b32.xlu0 %v3644, 109
        %v3661 = vpop.permute.xlu0 %3660
        %3662 = vrot.lane.b32.xlu0 %v3645, 109
        %v3663 = vpop.permute.xlu0 %3662
        %3664 = vrot.lane.b32.xlu0 %v3646, 109
        %v3665 = vpop.permute.xlu0 %3664
        %3666 = vrot.lane.b32.xlu0 %v3647, 109
        %v3667 = vpop.permute.xlu0 %3666
        %3668 = vrot.lane.b32.xlu0 %v3648, 109
        %v3669 = vpop.permute.xlu0 %3668
        %3670 = vrot.lane.b32.xlu0 %v3649, 109
        %v3671 = vpop.permute.xlu0 %3670
        %3672 = vrot.lane.b32.xlu0 %v3650, 109
        %v3673 = vpop.permute.xlu0 %3672
        %3674 = vrot.lane.b32.xlu0 %v3651, 109
        %v3675 = vpop.permute.xlu0 %3674
        %v3676 = vrot.slane %v3661, 4
        %v3677 = vrot.slane %v3663, 4
        %v3678 = vrot.slane %v3665, 4
        %v3679 = vrot.slane %v3667, 4
        %v3680 = vrot.slane %v3669, 4
        %v3681 = vrot.slane %v3671, 4
        %v3682 = vrot.slane %v3673, 4
        %v3683 = vrot.slane %v3675, 4
        %v3684 = vsel %vm615, %v3661, %v3676
        %v3685 = vsel %vm615, %v3663, %v3677
        %v3686 = vsel %vm615, %v3665, %v3678
        %v3687 = vsel %vm615, %v3667, %v3679
        %v3688 = vsel %vm615, %v3669, %v3680
        %v3689 = vsel %vm615, %v3671, %v3681
        %v3690 = vsel %vm615, %v3673, %v3682
        %v3691 = vsel %vm615, %v3675, %v3683
        %3700 = vst.msk [vmem:[#allocation4 + $0x100] sm:$0xff] %vm371, %v3684
        %3701 = vst.msk [vmem:[#allocation4 + $0x108] sm:$0xff] %vm371, %v3685
        %3702 = vst.msk [vmem:[#allocation4 + $0x110] sm:$0xff] %vm371, %v3686
        %3703 = vst.msk [vmem:[#allocation4 + $0x118] sm:$0xff] %vm371, %v3687
        %3704 = vst.msk [vmem:[#allocation4 + $0x120] sm:$0xff] %vm371, %v3688
        %3705 = vst.msk [vmem:[#allocation4 + $0x128] sm:$0xff] %vm371, %v3689
        %3706 = vst.msk [vmem:[#allocation4 + $0x130] sm:$0xff] %vm371, %v3690
        %3707 = vst.msk [vmem:[#allocation4 + $0x138] sm:$0xff] %vm371, %v3691
        %v3708 = vld [vmem:[#allocation3] sm:$0xff]
        %v3709 = vld [vmem:[#allocation3 + $0xc] sm:$0xff]
        %v3710 = vld [vmem:[#allocation3 + $0x18] sm:$0xff]
        %v3711 = vld [vmem:[#allocation3 + $0x24] sm:$0xff]
        %v3712 = vld [vmem:[#allocation3 + $0x30] sm:$0xff]
        %v3713 = vld [vmem:[#allocation3 + $0x3c] sm:$0xff]
        %v3714 = vld [vmem:[#allocation3 + $0x48] sm:$0xff]
        %v3715 = vld [vmem:[#allocation3 + $0x54] sm:$0xff]
        %3724 = vrot.lane.b32.xlu0 %v3708, 108
        %v3725 = vpop.permute.xlu0 %3724
        %3726 = vrot.lane.b32.xlu0 %v3709, 108
        %v3727 = vpop.permute.xlu0 %3726
        %3728 = vrot.lane.b32.xlu0 %v3710, 108
        %v3729 = vpop.permute.xlu0 %3728
        %3730 = vrot.lane.b32.xlu0 %v3711, 108
        %v3731 = vpop.permute.xlu0 %3730
        %3732 = vrot.lane.b32.xlu0 %v3712, 108
        %v3733 = vpop.permute.xlu0 %3732
        %3734 = vrot.lane.b32.xlu0 %v3713, 108
        %v3735 = vpop.permute.xlu0 %3734
        %3736 = vrot.lane.b32.xlu0 %v3714, 108
        %v3737 = vpop.permute.xlu0 %3736
        %3738 = vrot.lane.b32.xlu0 %v3715, 108
        %v3739 = vpop.permute.xlu0 %3738
        %v3740 = vrot.slane %v3725, 4
        %v3741 = vrot.slane %v3727, 4
        %v3742 = vrot.slane %v3729, 4
        %v3743 = vrot.slane %v3731, 4
        %v3744 = vrot.slane %v3733, 4
        %v3745 = vrot.slane %v3735, 4
        %v3746 = vrot.slane %v3737, 4
        %v3747 = vrot.slane %v3739, 4
        %v3748 = vsel %vm680, %v3725, %v3740
        %v3749 = vsel %vm680, %v3727, %v3741
        %v3750 = vsel %vm680, %v3729, %v3742
        %v3751 = vsel %vm680, %v3731, %v3743
        %v3752 = vsel %vm680, %v3733, %v3744
        %v3753 = vsel %vm680, %v3735, %v3745
        %v3754 = vsel %vm680, %v3737, %v3746
        %v3755 = vsel %vm680, %v3739, %v3747
        %3764 = vst.msk [vmem:[#allocation4 + $0x140] sm:$0xff] %vm371, %v3748
        %3765 = vst.msk [vmem:[#allocation4 + $0x148] sm:$0xff] %vm371, %v3749
        %3766 = vst.msk [vmem:[#allocation4 + $0x150] sm:$0xff] %vm371, %v3750
        %3767 = vst.msk [vmem:[#allocation4 + $0x158] sm:$0xff] %vm371, %v3751
        %3768 = vst.msk [vmem:[#allocation4 + $0x160] sm:$0xff] %vm371, %v3752
        %3769 = vst.msk [vmem:[#allocation4 + $0x168] sm:$0xff] %vm371, %v3753
        %3770 = vst.msk [vmem:[#allocation4 + $0x170] sm:$0xff] %vm371, %v3754
        %3771 = vst.msk [vmem:[#allocation4 + $0x178] sm:$0xff] %vm371, %v3755
        %v3772 = vld [vmem:[#allocation3] sm:$0xff]
        %v3773 = vld [vmem:[#allocation3 + $0xc] sm:$0xff]
        %v3774 = vld [vmem:[#allocation3 + $0x18] sm:$0xff]
        %v3775 = vld [vmem:[#allocation3 + $0x24] sm:$0xff]
        %v3776 = vld [vmem:[#allocation3 + $0x30] sm:$0xff]
        %v3777 = vld [vmem:[#allocation3 + $0x3c] sm:$0xff]
        %v3778 = vld [vmem:[#allocation3 + $0x48] sm:$0xff]
        %v3779 = vld [vmem:[#allocation3 + $0x54] sm:$0xff]
        %3788 = vrot.lane.b32.xlu0 %v3772, 92
        %v3789 = vpop.permute.xlu0 %3788
        %3790 = vrot.lane.b32.xlu0 %v3773, 92
        %v3791 = vpop.permute.xlu0 %3790
        %3792 = vrot.lane.b32.xlu0 %v3774, 92
        %v3793 = vpop.permute.xlu0 %3792
        %3794 = vrot.lane.b32.xlu0 %v3775, 92
        %v3795 = vpop.permute.xlu0 %3794
        %3796 = vrot.lane.b32.xlu0 %v3776, 92
        %v3797 = vpop.permute.xlu0 %3796
        %3798 = vrot.lane.b32.xlu0 %v3777, 92
        %v3799 = vpop.permute.xlu0 %3798
        %3800 = vrot.lane.b32.xlu0 %v3778, 92
        %v3801 = vpop.permute.xlu0 %3800
        %3802 = vrot.lane.b32.xlu0 %v3779, 92
        %v3803 = vpop.permute.xlu0 %3802
        %v3804 = vrot.slane %v3789, 4
        %v3805 = vrot.slane %v3791, 4
        %v3806 = vrot.slane %v3793, 4
        %v3807 = vrot.slane %v3795, 4
        %v3808 = vrot.slane %v3797, 4
        %v3809 = vrot.slane %v3799, 4
        %v3810 = vrot.slane %v3801, 4
        %v3811 = vrot.slane %v3803, 4
        %v3812 = vsel %vm745, %v3789, %v3804
        %v3813 = vsel %vm745, %v3791, %v3805
        %v3814 = vsel %vm745, %v3793, %v3806
        %v3815 = vsel %vm745, %v3795, %v3807
        %v3816 = vsel %vm745, %v3797, %v3808
        %v3817 = vsel %vm745, %v3799, %v3809
        %v3818 = vsel %vm745, %v3801, %v3810
        %v3819 = vsel %vm745, %v3803, %v3811
        %3828 = vst.msk [vmem:[#allocation4 + $0x180] sm:$0xff] %vm371, %v3812
        %3829 = vst.msk [vmem:[#allocation4 + $0x188] sm:$0xff] %vm371, %v3813
        %3830 = vst.msk [vmem:[#allocation4 + $0x190] sm:$0xff] %vm371, %v3814
        %3831 = vst.msk [vmem:[#allocation4 + $0x198] sm:$0xff] %vm371, %v3815
        %3832 = vst.msk [vmem:[#allocation4 + $0x1a0] sm:$0xff] %vm371, %v3816
        %3833 = vst.msk [vmem:[#allocation4 + $0x1a8] sm:$0xff] %vm371, %v3817
        %3834 = vst.msk [vmem:[#allocation4 + $0x1b0] sm:$0xff] %vm371, %v3818
        %3835 = vst.msk [vmem:[#allocation4 + $0x1b8] sm:$0xff] %vm371, %v3819
        %v3836 = vld [vmem:[#allocation3] sm:$0xff]
        %v3837 = vld [vmem:[#allocation3 + $0xc] sm:$0xff]
        %v3838 = vld [vmem:[#allocation3 + $0x18] sm:$0xff]
        %v3839 = vld [vmem:[#allocation3 + $0x24] sm:$0xff]
        %v3840 = vld [vmem:[#allocation3 + $0x30] sm:$0xff]
        %v3841 = vld [vmem:[#allocation3 + $0x3c] sm:$0xff]
        %v3842 = vld [vmem:[#allocation3 + $0x48] sm:$0xff]
        %v3843 = vld [vmem:[#allocation3 + $0x54] sm:$0xff]
        %3852 = vrot.lane.b32.xlu0 %v3836, 91
        %v3853 = vpop.permute.xlu0 %3852
        %3854 = vrot.lane.b32.xlu0 %v3837, 91
        %v3855 = vpop.permute.xlu0 %3854
        %3856 = vrot.lane.b32.xlu0 %v3838, 91
        %v3857 = vpop.permute.xlu0 %3856
        %3858 = vrot.lane.b32.xlu0 %v3839, 91
        %v3859 = vpop.permute.xlu0 %3858
        %3860 = vrot.lane.b32.xlu0 %v3840, 91
        %v3861 = vpop.permute.xlu0 %3860
        %3862 = vrot.lane.b32.xlu0 %v3841, 91
        %v3863 = vpop.permute.xlu0 %3862
        %3864 = vrot.lane.b32.xlu0 %v3842, 91
        %v3865 = vpop.permute.xlu0 %3864
        %3866 = vrot.lane.b32.xlu0 %v3843, 91
        %v3867 = vpop.permute.xlu0 %3866
        %v3868 = vrot.slane %v3853, 4
        %v3869 = vrot.slane %v3855, 4
        %v3870 = vrot.slane %v3857, 4
        %v3871 = vrot.slane %v3859, 4
        %v3872 = vrot.slane %v3861, 4
        %v3873 = vrot.slane %v3863, 4
        %v3874 = vrot.slane %v3865, 4
        %v3875 = vrot.slane %v3867, 4
        %v3876 = vsel %vm810, %v3853, %v3868
        %v3877 = vsel %vm810, %v3855, %v3869
        %v3878 = vsel %vm810, %v3857, %v3870
        %v3879 = vsel %vm810, %v3859, %v3871
        %v3880 = vsel %vm810, %v3861, %v3872
        %v3881 = vsel %vm810, %v3863, %v3873
        %v3882 = vsel %vm810, %v3865, %v3874
        %v3883 = vsel %vm810, %v3867, %v3875
        %3892 = vst.msk [vmem:[#allocation4 + $0x1c0] sm:$0xff] %vm371, %v3876
        %3893 = vst.msk [vmem:[#allocation4 + $0x1c8] sm:$0xff] %vm371, %v3877
        %3894 = vst.msk [vmem:[#allocation4 + $0x1d0] sm:$0xff] %vm371, %v3878
        %3895 = vst.msk [vmem:[#allocation4 + $0x1d8] sm:$0xff] %vm371, %v3879
        %3896 = vst.msk [vmem:[#allocation4 + $0x1e0] sm:$0xff] %vm371, %v3880
        %3897 = vst.msk [vmem:[#allocation4 + $0x1e8] sm:$0xff] %vm371, %v3881
        %3898 = vst.msk [vmem:[#allocation4 + $0x1f0] sm:$0xff] %vm371, %v3882
        %3899 = vst.msk [vmem:[#allocation4 + $0x1f8] sm:$0xff] %vm371, %v3883
        %v3900 = vld [vmem:[#allocation3] sm:$0xff]
        %v3901 = vld [vmem:[#allocation3 + $0xc] sm:$0xff]
        %v3902 = vld [vmem:[#allocation3 + $0x18] sm:$0xff]
        %v3903 = vld [vmem:[#allocation3 + $0x24] sm:$0xff]
        %v3904 = vld [vmem:[#allocation3 + $0x30] sm:$0xff]
        %v3905 = vld [vmem:[#allocation3 + $0x3c] sm:$0xff]
        %v3906 = vld [vmem:[#allocation3 + $0x48] sm:$0xff]
        %v3907 = vld [vmem:[#allocation3 + $0x54] sm:$0xff]
        %3916 = vrot.lane.b32.xlu0 %v3900, 90
        %v3917 = vpop.permute.xlu0 %3916
        %3918 = vrot.lane.b32.xlu0 %v3901, 90
        %v3919 = vpop.permute.xlu0 %3918
        %3920 = vrot.lane.b32.xlu0 %v3902, 90
        %v3921 = vpop.permute.xlu0 %3920
        %3922 = vrot.lane.b32.xlu0 %v3903, 90
        %v3923 = vpop.permute.xlu0 %3922
        %3924 = vrot.lane.b32.xlu0 %v3904, 90
        %v3925 = vpop.permute.xlu0 %3924
        %3926 = vrot.lane.b32.xlu0 %v3905, 90
        %v3927 = vpop.permute.xlu0 %3926
        %3928 = vrot.lane.b32.xlu0 %v3906, 90
        %v3929 = vpop.permute.xlu0 %3928
        %3930 = vrot.lane.b32.xlu0 %v3907, 90
        %v3931 = vpop.permute.xlu0 %3930
        %v3932 = vrot.slane %v3917, 4
        %v3933 = vrot.slane %v3919, 4
        %v3934 = vrot.slane %v3921, 4
        %v3935 = vrot.slane %v3923, 4
        %v3936 = vrot.slane %v3925, 4
        %v3937 = vrot.slane %v3927, 4
        %v3938 = vrot.slane %v3929, 4
        %v3939 = vrot.slane %v3931, 4
        %v3940 = vsel %vm875, %v3917, %v3932
        %v3941 = vsel %vm875, %v3919, %v3933
        %v3942 = vsel %vm875, %v3921, %v3934
        %v3943 = vsel %vm875, %v3923, %v3935
        %v3944 = vsel %vm875, %v3925, %v3936
        %v3945 = vsel %vm875, %v3927, %v3937
        %v3946 = vsel %vm875, %v3929, %v3938
        %v3947 = vsel %vm875, %v3931, %v3939
        %3956 = vst.msk [vmem:[#allocation4 + $0x200] sm:$0xff] %vm371, %v3940
        %3957 = vst.msk [vmem:[#allocation4 + $0x208] sm:$0xff] %vm371, %v3941
        %3958 = vst.msk [vmem:[#allocation4 + $0x210] sm:$0xff] %vm371, %v3942
        %3959 = vst.msk [vmem:[#allocation4 + $0x218] sm:$0xff] %vm371, %v3943
        %3960 = vst.msk [vmem:[#allocation4 + $0x220] sm:$0xff] %vm371, %v3944
        %3961 = vst.msk [vmem:[#allocation4 + $0x228] sm:$0xff] %vm371, %v3945
        %3962 = vst.msk [vmem:[#allocation4 + $0x230] sm:$0xff] %vm371, %v3946
        %3963 = vst.msk [vmem:[#allocation4 + $0x238] sm:$0xff] %vm371, %v3947
        %v3964 = vld [vmem:[#allocation4] sm:$0xff]
        %v3965 = vld [vmem:[#allocation4 + $0x8] sm:$0xff]
        %v3966 = vld [vmem:[#allocation4 + $0x10] sm:$0xff]
        %v3967 = vld [vmem:[#allocation4 + $0x18] sm:$0xff]
        %v3968 = vld [vmem:[#allocation4 + $0x20] sm:$0xff]
        %v3969 = vld [vmem:[#allocation4 + $0x28] sm:$0xff]
        %v3970 = vld [vmem:[#allocation4 + $0x30] sm:$0xff]
        %v3971 = vld [vmem:[#allocation4 + $0x38] sm:$0xff]
        %v3972 = vld [vmem:[#allocation4 + $0x40] sm:$0xff]
        %v3973 = vld [vmem:[#allocation4 + $0x48] sm:$0xff]
        %v3974 = vld [vmem:[#allocation4 + $0x50] sm:$0xff]
        %v3975 = vld [vmem:[#allocation4 + $0x58] sm:$0xff]
        %v3976 = vld [vmem:[#allocation4 + $0x60] sm:$0xff]
        %v3977 = vld [vmem:[#allocation4 + $0x68] sm:$0xff]
        %v3978 = vld [vmem:[#allocation4 + $0x70] sm:$0xff]
        %v3979 = vld [vmem:[#allocation4 + $0x78] sm:$0xff]
        %v3980 = vld [vmem:[#allocation4 + $0x80] sm:$0xff]
        %v3981 = vld [vmem:[#allocation4 + $0x88] sm:$0xff]
        %v3982 = vld [vmem:[#allocation4 + $0x90] sm:$0xff]
        %v3983 = vld [vmem:[#allocation4 + $0x98] sm:$0xff]
        %v3984 = vld [vmem:[#allocation4 + $0xa0] sm:$0xff]
        %v3985 = vld [vmem:[#allocation4 + $0xa8] sm:$0xff]
        %v3986 = vld [vmem:[#allocation4 + $0xb0] sm:$0xff]
        %v3987 = vld [vmem:[#allocation4 + $0xb8] sm:$0xff]
        %v3988 = vld [vmem:[#allocation4 + $0xc0] sm:$0xff]
        %v3989 = vld [vmem:[#allocation4 + $0xc8] sm:$0xff]
        %v3990 = vld [vmem:[#allocation4 + $0xd0] sm:$0xff]
        %v3991 = vld [vmem:[#allocation4 + $0xd8] sm:$0xff]
        %v3992 = vld [vmem:[#allocation4 + $0xe0] sm:$0xff]
        %v3993 = vld [vmem:[#allocation4 + $0xe8] sm:$0xff]
        %v3994 = vld [vmem:[#allocation4 + $0xf0] sm:$0xff]
        %v3995 = vld [vmem:[#allocation4 + $0xf8] sm:$0xff]
        %v3996 = vld [vmem:[#allocation4 + $0x100] sm:$0xff]
        %v3997 = vld [vmem:[#allocation4 + $0x108] sm:$0xff]
        %v3998 = vld [vmem:[#allocation4 + $0x110] sm:$0xff]
        %v3999 = vld [vmem:[#allocation4 + $0x118] sm:$0xff]
        %v4000 = vld [vmem:[#allocation4 + $0x120] sm:$0xff]
        %v4001 = vld [vmem:[#allocation4 + $0x128] sm:$0xff]
        %v4002 = vld [vmem:[#allocation4 + $0x130] sm:$0xff]
        %v4003 = vld [vmem:[#allocation4 + $0x138] sm:$0xff]
        %v4004 = vld [vmem:[#allocation4 + $0x140] sm:$0xff]
        %v4005 = vld [vmem:[#allocation4 + $0x148] sm:$0xff]
        %v4006 = vld [vmem:[#allocation4 + $0x150] sm:$0xff]
        %v4007 = vld [vmem:[#allocation4 + $0x158] sm:$0xff]
        %v4008 = vld [vmem:[#allocation4 + $0x160] sm:$0xff]
        %v4009 = vld [vmem:[#allocation4 + $0x168] sm:$0xff]
        %v4010 = vld [vmem:[#allocation4 + $0x170] sm:$0xff]
        %v4011 = vld [vmem:[#allocation4 + $0x178] sm:$0xff]
        %v4012 = vld [vmem:[#allocation4 + $0x180] sm:$0xff]
        %v4013 = vld [vmem:[#allocation4 + $0x188] sm:$0xff]
        %v4014 = vld [vmem:[#allocation4 + $0x190] sm:$0xff]
        %v4015 = vld [vmem:[#allocation4 + $0x198] sm:$0xff]
        %v4016 = vld [vmem:[#allocation4 + $0x1a0] sm:$0xff]
        %v4017 = vld [vmem:[#allocation4 + $0x1a8] sm:$0xff]
        %v4018 = vld [vmem:[#allocation4 + $0x1b0] sm:$0xff]
        %v4019 = vld [vmem:[#allocation4 + $0x1b8] sm:$0xff]
        %v4020 = vld [vmem:[#allocation4 + $0x1c0] sm:$0xff]
        %v4021 = vld [vmem:[#allocation4 + $0x1c8] sm:$0xff]
        %v4022 = vld [vmem:[#allocation4 + $0x1d0] sm:$0xff]
        %v4023 = vld [vmem:[#allocation4 + $0x1d8] sm:$0xff]
        %v4024 = vld [vmem:[#allocation4 + $0x1e0] sm:$0xff]
        %v4025 = vld [vmem:[#allocation4 + $0x1e8] sm:$0xff]
        %v4026 = vld [vmem:[#allocation4 + $0x1f0] sm:$0xff]
        %v4027 = vld [vmem:[#allocation4 + $0x1f8] sm:$0xff]
        %v4028 = vld [vmem:[#allocation4 + $0x200] sm:$0xff]
        %v4029 = vld [vmem:[#allocation4 + $0x208] sm:$0xff]
        %v4030 = vld [vmem:[#allocation4 + $0x210] sm:$0xff]
        %v4031 = vld [vmem:[#allocation4 + $0x218] sm:$0xff]
        %v4032 = vld [vmem:[#allocation4 + $0x220] sm:$0xff]
        %v4033 = vld [vmem:[#allocation4 + $0x228] sm:$0xff]
        %v4034 = vld [vmem:[#allocation4 + $0x230] sm:$0xff]
        %v4035 = vld [vmem:[#allocation4 + $0x238] sm:$0xff]
        %v4060 = vunpack.c.l.b16 %v3393
        %v4061 = vunpack.c.h.b16 %v3393
        %v4062 = vunpack.c.l.b16 %v3394
        %v4063 = vunpack.c.h.b16 %v3394
        %v4064 = vunpack.c.l.b16 %v3395
        %v4065 = vunpack.c.l.b16 %v3396
        %v4066 = vunpack.c.h.b16 %v3396
        %v4067 = vunpack.c.l.b16 %v3397
        %v4068 = vunpack.c.h.b16 %v3397
        %v4069 = vunpack.c.l.b16 %v3398
        %v4070 = vunpack.c.l.b16 %v3399
        %v4071 = vunpack.c.h.b16 %v3399
        %v4072 = vunpack.c.l.b16 %v3400
        %v4073 = vunpack.c.h.b16 %v3400
        %v4074 = vunpack.c.l.b16 %v3401
        %v4075 = vunpack.c.l.b16 %v3402
        %v4076 = vunpack.c.h.b16 %v3402
        %v4077 = vunpack.c.l.b16 %v3403
        %v4078 = vunpack.c.h.b16 %v3403
        %v4079 = vunpack.c.l.b16 %v3404
        %v4080 = vunpack.c.l.b16 %v3405
        %v4081 = vunpack.c.h.b16 %v3405
        %v4082 = vunpack.c.l.b16 %v3406
        %v4083 = vunpack.c.h.b16 %v3406
        %v4084 = vunpack.c.l.b16 %v3407
        %v4085 = vunpack.c.l.b16 %v3408
        %v4086 = vunpack.c.h.b16 %v3408
        %v4087 = vunpack.c.l.b16 %v3409
        %v4088 = vunpack.c.h.b16 %v3409
        %v4089 = vunpack.c.l.b16 %v3410
        %v4090 = vunpack.c.l.b16 %v3411
        %v4091 = vunpack.c.h.b16 %v3411
        %v4092 = vunpack.c.l.b16 %v3412
        %v4093 = vunpack.c.h.b16 %v3412
        %v4094 = vunpack.c.l.b16 %v3413
        %v4095 = vunpack.c.l.b16 %v3414
        %v4096 = vunpack.c.h.b16 %v3414
        %v4097 = vunpack.c.l.b16 %v3415
        %v4098 = vunpack.c.h.b16 %v3415
        %v4099 = vunpack.c.l.b16 %v3416
        %v4100 = vpack.c.b16 %v4065, %v4060
        %v4101 = vpack.c.b16 %v4066, %v4061
        %v4102 = vpack.c.b16 %v4067, %v4062
        %v4103 = vpack.c.b16 %v4068, %v4063
        %v4104 = vpack.c.b16 %v4069, %v4064
        %v4105 = vpack.c.b16 %v4075, %v4070
        %v4106 = vpack.c.b16 %v4076, %v4071
        %v4107 = vpack.c.b16 %v4077, %v4072
        %v4108 = vpack.c.b16 %v4078, %v4073
        %v4109 = vpack.c.b16 %v4079, %v4074
        %v4110 = vpack.c.b16 %v4085, %v4080
        %v4111 = vpack.c.b16 %v4086, %v4081
        %v4112 = vpack.c.b16 %v4087, %v4082
        %v4113 = vpack.c.b16 %v4088, %v4083
        %v4114 = vpack.c.b16 %v4089, %v4084
        %v4115 = vpack.c.b16 %v4095, %v4090
        %v4116 = vpack.c.b16 %v4096, %v4091
        %v4117 = vpack.c.b16 %v4097, %v4092
        %v4118 = vpack.c.b16 %v4098, %v4093
        %v4119 = vpack.c.b16 %v4099, %v4094
        %v4208 = vunpack.c.l.b16 %v3964
        %v4209 = vunpack.c.h.b16 %v3964
        %v4210 = vunpack.c.l.b16 %v3965
        %v4211 = vunpack.c.h.b16 %v3965
        %v4212 = vunpack.c.l.b16 %v3966
        %v4213 = vunpack.c.h.b16 %v3966
        %v4214 = vunpack.c.l.b16 %v3967
        %v4215 = vunpack.c.h.b16 %v3967
        %v4216 = vunpack.c.l.b16 %v3968
        %v4217 = vunpack.c.h.b16 %v3968
        %v4218 = vunpack.c.l.b16 %v3969
        %v4219 = vunpack.c.h.b16 %v3969
        %v4220 = vunpack.c.l.b16 %v3970
        %v4221 = vunpack.c.h.b16 %v3970
        %v4222 = vunpack.c.l.b16 %v3971
        %v4223 = vunpack.c.h.b16 %v3971
        %v4224 = vunpack.c.l.b16 %v3972
        %v4225 = vunpack.c.h.b16 %v3972
        %v4226 = vunpack.c.l.b16 %v3973
        %v4227 = vunpack.c.h.b16 %v3973
        %v4228 = vunpack.c.l.b16 %v3974
        %v4229 = vunpack.c.h.b16 %v3974
        %v4230 = vunpack.c.l.b16 %v3975
        %v4231 = vunpack.c.h.b16 %v3975
        %v4232 = vunpack.c.l.b16 %v3976
        %v4233 = vunpack.c.h.b16 %v3976
        %v4234 = vunpack.c.l.b16 %v3977
        %v4235 = vunpack.c.h.b16 %v3977
        %v4236 = vunpack.c.l.b16 %v3978
        %v4237 = vunpack.c.h.b16 %v3978
        %v4238 = vunpack.c.l.b16 %v3979
        %v4239 = vunpack.c.h.b16 %v3979
        %v4240 = vunpack.c.l.b16 %v3980
        %v4241 = vunpack.c.h.b16 %v3980
        %v4242 = vunpack.c.l.b16 %v3981
        %v4243 = vunpack.c.h.b16 %v3981
        %v4244 = vunpack.c.l.b16 %v3982
        %v4245 = vunpack.c.h.b16 %v3982
        %v4246 = vunpack.c.l.b16 %v3983
        %v4247 = vunpack.c.h.b16 %v3983
        %v4248 = vunpack.c.l.b16 %v3984
        %v4249 = vunpack.c.h.b16 %v3984
        %v4250 = vunpack.c.l.b16 %v3985
        %v4251 = vunpack.c.h.b16 %v3985
        %v4252 = vunpack.c.l.b16 %v3986
        %v4253 = vunpack.c.h.b16 %v3986
        %v4254 = vunpack.c.l.b16 %v3987
        %v4255 = vunpack.c.h.b16 %v3987
        %v4256 = vunpack.c.l.b16 %v3988
        %v4257 = vunpack.c.h.b16 %v3988
        %v4258 = vunpack.c.l.b16 %v3989
        %v4259 = vunpack.c.h.b16 %v3989
        %v4260 = vunpack.c.l.b16 %v3990
        %v4261 = vunpack.c.h.b16 %v3990
        %v4262 = vunpack.c.l.b16 %v3991
        %v4263 = vunpack.c.h.b16 %v3991
        %v4264 = vunpack.c.l.b16 %v3992
        %v4265 = vunpack.c.h.b16 %v3992
        %v4266 = vunpack.c.l.b16 %v3993
        %v4267 = vunpack.c.h.b16 %v3993
        %v4268 = vunpack.c.l.b16 %v3994
        %v4269 = vunpack.c.h.b16 %v3994
        %v4270 = vunpack.c.l.b16 %v3995
        %v4271 = vunpack.c.h.b16 %v3995
        %v4272 = vunpack.c.l.b16 %v3996
        %v4273 = vunpack.c.h.b16 %v3996
        %v4274 = vunpack.c.l.b16 %v3997
        %v4275 = vunpack.c.h.b16 %v3997
        %v4276 = vunpack.c.l.b16 %v3998
        %v4277 = vunpack.c.h.b16 %v3998
        %v4278 = vunpack.c.l.b16 %v3999
        %v4279 = vunpack.c.h.b16 %v3999
        %v4280 = vunpack.c.l.b16 %v4000
        %v4281 = vunpack.c.h.b16 %v4000
        %v4282 = vunpack.c.l.b16 %v4001
        %v4283 = vunpack.c.h.b16 %v4001
        %v4284 = vunpack.c.l.b16 %v4002
        %v4285 = vunpack.c.h.b16 %v4002
        %v4286 = vunpack.c.l.b16 %v4003
        %v4287 = vunpack.c.h.b16 %v4003
        %v4288 = vunpack.c.l.b16 %v4004
        %v4289 = vunpack.c.h.b16 %v4004
        %v4290 = vunpack.c.l.b16 %v4005
        %v4291 = vunpack.c.h.b16 %v4005
        %v4292 = vunpack.c.l.b16 %v4006
        %v4293 = vunpack.c.h.b16 %v4006
        %v4294 = vunpack.c.l.b16 %v4007
        %v4295 = vunpack.c.h.b16 %v4007
        %v4296 = vunpack.c.l.b16 %v4008
        %v4297 = vunpack.c.h.b16 %v4008
        %v4298 = vunpack.c.l.b16 %v4009
        %v4299 = vunpack.c.h.b16 %v4009
        %v4300 = vunpack.c.l.b16 %v4010
        %v4301 = vunpack.c.h.b16 %v4010
        %v4302 = vunpack.c.l.b16 %v4011
        %v4303 = vunpack.c.h.b16 %v4011
        %v4304 = vunpack.c.l.b16 %v4012
        %v4305 = vunpack.c.h.b16 %v4012
        %v4306 = vunpack.c.l.b16 %v4013
        %v4307 = vunpack.c.h.b16 %v4013
        %v4308 = vunpack.c.l.b16 %v4014
        %v4309 = vunpack.c.h.b16 %v4014
        %v4310 = vunpack.c.l.b16 %v4015
        %v4311 = vunpack.c.h.b16 %v4015
        %v4312 = vunpack.c.l.b16 %v4016
        %v4313 = vunpack.c.h.b16 %v4016
        %v4314 = vunpack.c.l.b16 %v4017
        %v4315 = vunpack.c.h.b16 %v4017
        %v4316 = vunpack.c.l.b16 %v4018
        %v4317 = vunpack.c.h.b16 %v4018
        %v4318 = vunpack.c.l.b16 %v4019
        %v4319 = vunpack.c.h.b16 %v4019
        %v4320 = vunpack.c.l.b16 %v4020
        %v4321 = vunpack.c.h.b16 %v4020
        %v4322 = vunpack.c.l.b16 %v4021
        %v4323 = vunpack.c.h.b16 %v4021
        %v4324 = vunpack.c.l.b16 %v4022
        %v4325 = vunpack.c.h.b16 %v4022
        %v4326 = vunpack.c.l.b16 %v4023
        %v4327 = vunpack.c.h.b16 %v4023
        %v4328 = vunpack.c.l.b16 %v4024
        %v4329 = vunpack.c.h.b16 %v4024
        %v4330 = vunpack.c.l.b16 %v4025
        %v4331 = vunpack.c.h.b16 %v4025
        %v4332 = vunpack.c.l.b16 %v4026
        %v4333 = vunpack.c.h.b16 %v4026
        %v4334 = vunpack.c.l.b16 %v4027
        %v4335 = vunpack.c.h.b16 %v4027
        %v4336 = vunpack.c.l.b16 %v4028
        %v4337 = vunpack.c.h.b16 %v4028
        %v4338 = vunpack.c.l.b16 %v4029
        %v4339 = vunpack.c.h.b16 %v4029
        %v4340 = vunpack.c.l.b16 %v4030
        %v4341 = vunpack.c.h.b16 %v4030
        %v4342 = vunpack.c.l.b16 %v4031
        %v4343 = vunpack.c.h.b16 %v4031
        %v4344 = vunpack.c.l.b16 %v4032
        %v4345 = vunpack.c.h.b16 %v4032
        %v4346 = vunpack.c.l.b16 %v4033
        %v4347 = vunpack.c.h.b16 %v4033
        %v4348 = vunpack.c.l.b16 %v4034
        %v4349 = vunpack.c.h.b16 %v4034
        %v4350 = vunpack.c.l.b16 %v4035
        %v4351 = vunpack.c.h.b16 %v4035
        %v4352 = vpack.c.b16 %v4210, %v4208
        %v4353 = vpack.c.b16 %v4211, %v4209
        %v4354 = vpack.c.b16 %v4214, %v4212
        %v4355 = vpack.c.b16 %v4215, %v4213
        %v4356 = vpack.c.b16 %v4218, %v4216
        %v4357 = vpack.c.b16 %v4219, %v4217
        %v4358 = vpack.c.b16 %v4222, %v4220
        %v4359 = vpack.c.b16 %v4223, %v4221
        %v4360 = vpack.c.b16 %v4226, %v4224
        %v4361 = vpack.c.b16 %v4227, %v4225
        %v4362 = vpack.c.b16 %v4230, %v4228
        %v4363 = vpack.c.b16 %v4231, %v4229
        %v4364 = vpack.c.b16 %v4234, %v4232
        %v4365 = vpack.c.b16 %v4235, %v4233
        %v4366 = vpack.c.b16 %v4238, %v4236
        %v4367 = vpack.c.b16 %v4239, %v4237
        %v4368 = vpack.c.b16 %v4242, %v4240
        %v4369 = vpack.c.b16 %v4243, %v4241
        %v4370 = vpack.c.b16 %v4246, %v4244
        %v4371 = vpack.c.b16 %v4247, %v4245
        %v4372 = vpack.c.b16 %v4250, %v4248
        %v4373 = vpack.c.b16 %v4251, %v4249
        %v4374 = vpack.c.b16 %v4254, %v4252
        %v4375 = vpack.c.b16 %v4255, %v4253
        %v4376 = vpack.c.b16 %v4258, %v4256
        %v4377 = vpack.c.b16 %v4259, %v4257
        %v4378 = vpack.c.b16 %v4262, %v4260
        %v4379 = vpack.c.b16 %v4263, %v4261
        %v4380 = vpack.c.b16 %v4266, %v4264
        %v4381 = vpack.c.b16 %v4267, %v4265
        %v4382 = vpack.c.b16 %v4270, %v4268
        %v4383 = vpack.c.b16 %v4271, %v4269
        %v4384 = vpack.c.b16 %v4274, %v4272
        %v4385 = vpack.c.b16 %v4275, %v4273
        %v4386 = vpack.c.b16 %v4278, %v4276
        %v4387 = vpack.c.b16 %v4279, %v4277
        %v4388 = vpack.c.b16 %v4282, %v4280
        %v4389 = vpack.c.b16 %v4283, %v4281
        %v4390 = vpack.c.b16 %v4286, %v4284
        %v4391 = vpack.c.b16 %v4287, %v4285
        %v4392 = vpack.c.b16 %v4290, %v4288
        %v4393 = vpack.c.b16 %v4291, %v4289
        %v4394 = vpack.c.b16 %v4294, %v4292
        %v4395 = vpack.c.b16 %v4295, %v4293
        %v4396 = vpack.c.b16 %v4298, %v4296
        %v4397 = vpack.c.b16 %v4299, %v4297
        %v4398 = vpack.c.b16 %v4302, %v4300
        %v4399 = vpack.c.b16 %v4303, %v4301
        %v4400 = vpack.c.b16 %v4306, %v4304
        %v4401 = vpack.c.b16 %v4307, %v4305
        %v4402 = vpack.c.b16 %v4310, %v4308
        %v4403 = vpack.c.b16 %v4311, %v4309
        %v4404 = vpack.c.b16 %v4314, %v4312
        %v4405 = vpack.c.b16 %v4315, %v4313
        %v4406 = vpack.c.b16 %v4318, %v4316
        %v4407 = vpack.c.b16 %v4319, %v4317
        %v4408 = vpack.c.b16 %v4322, %v4320
        %v4409 = vpack.c.b16 %v4323, %v4321
        %v4410 = vpack.c.b16 %v4326, %v4324
        %v4411 = vpack.c.b16 %v4327, %v4325
        %v4412 = vpack.c.b16 %v4330, %v4328
        %v4413 = vpack.c.b16 %v4331, %v4329
        %v4414 = vpack.c.b16 %v4334, %v4332
        %v4415 = vpack.c.b16 %v4335, %v4333
        %v4416 = vpack.c.b16 %v4338, %v4336
        %v4417 = vpack.c.b16 %v4339, %v4337
        %v4418 = vpack.c.b16 %v4342, %v4340
        %v4419 = vpack.c.b16 %v4343, %v4341
        %v4420 = vpack.c.b16 %v4346, %v4344
        %v4421 = vpack.c.b16 %v4347, %v4345
        %v4422 = vpack.c.b16 %v4350, %v4348
        %v4423 = vpack.c.b16 %v4351, %v4349
        %v4497 = vsel %vm1432, %v4104, 0
        %v4500 = vsel %vm1432, %v4109, 0
        %v4503 = vsel %vm1432, %v4114, 0
        %v4506 = vsel %vm1432, %v4119, 0
        %4508 = vmatpush.bf16.msra.mxu0 %v4366
        %4509 = vmatpush.bf16.msra.mxu0 %v4364
        %4510 = vmatpush.bf16.msra.mxu0 %v4362
        %4511 = vmatpush.bf16.msra.mxu0 %v4360
        %4512 = vmatpush.bf16.msra.mxu0 %v4358
        %4513 = vmatpush.bf16.msra.mxu0 %v4356
        %4514 = vmatpush.bf16.msra.mxu0 %v4354
        %4515 = vmatpush.bf16.msra.mxu0 %v4352
        %4516 = vmatmul.bf16.gmra.mxu0 %v4100
        %v4517 = vpop.f32.mrf.mxu0
        %v4518 = vadd.f32 0.0, %v4517
        %v4519 = vpop.f32.mrf.mxu0
        %v4520 = vadd.f32 0.0, %v4519
        %4521 = vmatmul.bf16.gmra.mxu0 %v4105
        %v4522 = vpop.f32.mrf.mxu0
        %v4523 = vadd.f32 0.0, %v4522
        %v4524 = vpop.f32.mrf.mxu0
        %v4525 = vadd.f32 0.0, %v4524
        %4526 = vmatmul.bf16.gmra.mxu0 %v4110
        %v4527 = vpop.f32.mrf.mxu0
        %v4528 = vadd.f32 0.0, %v4527
        %v4529 = vpop.f32.mrf.mxu0
        %v4530 = vadd.f32 0.0, %v4529
        %4531 = vmatmul.bf16.gmra.mxu0 %v4115
        %v4532 = vpop.f32.mrf.mxu0
        %v4533 = vadd.f32 0.0, %v4532
        %v4534 = vpop.f32.mrf.mxu0
        %v4535 = vadd.f32 0.0, %v4534
        %4536 = vdwg.mxu0
        %4537 = vmatpush.bf16.msra.mxu0 %v4382
        %4538 = vmatpush.bf16.msra.mxu0 %v4380
        %4539 = vmatpush.bf16.msra.mxu0 %v4378
        %4540 = vmatpush.bf16.msra.mxu0 %v4376
        %4541 = vmatpush.bf16.msra.mxu0 %v4374
        %4542 = vmatpush.bf16.msra.mxu0 %v4372
        %4543 = vmatpush.bf16.msra.mxu0 %v4370
        %4544 = vmatpush.bf16.msra.mxu0 %v4368
        %4545 = vmatmul.bf16.gmra.mxu0 %v4101
        %v4546 = vpop.f32.mrf.mxu0
        %v4547 = vadd.f32 %v4518, %v4546
        %v4548 = vpop.f32.mrf.mxu0
        %v4549 = vadd.f32 %v4520, %v4548
        %4550 = vmatmul.bf16.gmra.mxu0 %v4106
        %v4551 = vpop.f32.mrf.mxu0
        %v4552 = vadd.f32 %v4523, %v4551
        %v4553 = vpop.f32.mrf.mxu0
        %v4554 = vadd.f32 %v4525, %v4553
        %4555 = vmatmul.bf16.gmra.mxu0 %v4111
        %v4556 = vpop.f32.mrf.mxu0
        %v4557 = vadd.f32 %v4528, %v4556
        %v4558 = vpop.f32.mrf.mxu0
        %v4559 = vadd.f32 %v4530, %v4558
        %4560 = vmatmul.bf16.gmra.mxu0 %v4116
        %v4561 = vpop.f32.mrf.mxu0
        %v4562 = vadd.f32 %v4533, %v4561
        %v4563 = vpop.f32.mrf.mxu0
        %v4564 = vadd.f32 %v4535, %v4563
        %4565 = vdwg.mxu0
        %4566 = vmatpush.bf16.msra.mxu0 %v4398
        %4567 = vmatpush.bf16.msra.mxu0 %v4396
        %4568 = vmatpush.bf16.msra.mxu0 %v4394
        %4569 = vmatpush.bf16.msra.mxu0 %v4392
        %4570 = vmatpush.bf16.msra.mxu0 %v4390
        %4571 = vmatpush.bf16.msra.mxu0 %v4388
        %4572 = vmatpush.bf16.msra.mxu0 %v4386
        %4573 = vmatpush.bf16.msra.mxu0 %v4384
        %4574 = vmatmul.bf16.gmra.mxu0 %v4102
        %v4575 = vpop.f32.mrf.mxu0
        %v4576 = vadd.f32 %v4547, %v4575
        %v4577 = vpop.f32.mrf.mxu0
        %v4578 = vadd.f32 %v4549, %v4577
        %4579 = vmatmul.bf16.gmra.mxu0 %v4107
        %v4580 = vpop.f32.mrf.mxu0
        %v4581 = vadd.f32 %v4552, %v4580
        %v4582 = vpop.f32.mrf.mxu0
        %v4583 = vadd.f32 %v4554, %v4582
        %4584 = vmatmul.bf16.gmra.mxu0 %v4112
        %v4585 = vpop.f32.mrf.mxu0
        %v4586 = vadd.f32 %v4557, %v4585
        %v4587 = vpop.f32.mrf.mxu0
        %v4588 = vadd.f32 %v4559, %v4587
        %4589 = vmatmul.bf16.gmra.mxu0 %v4117
        %v4590 = vpop.f32.mrf.mxu0
        %v4591 = vadd.f32 %v4562, %v4590
        %v4592 = vpop.f32.mrf.mxu0
        %v4593 = vadd.f32 %v4564, %v4592
        %4594 = vdwg.mxu0
        %4595 = vmatpush.bf16.msra.mxu0 %v4414
        %4596 = vmatpush.bf16.msra.mxu0 %v4412
        %4597 = vmatpush.bf16.msra.mxu0 %v4410
        %4598 = vmatpush.bf16.msra.mxu0 %v4408
        %4599 = vmatpush.bf16.msra.mxu0 %v4406
        %4600 = vmatpush.bf16.msra.mxu0 %v4404
        %4601 = vmatpush.bf16.msra.mxu0 %v4402
        %4602 = vmatpush.bf16.msra.mxu0 %v4400
        %4603 = vmatmul.bf16.gmra.mxu0 %v4103
        %v4604 = vpop.f32.mrf.mxu0
        %v4605 = vadd.f32 %v4576, %v4604
        %v4606 = vpop.f32.mrf.mxu0
        %v4607 = vadd.f32 %v4578, %v4606
        %4608 = vmatmul.bf16.gmra.mxu0 %v4108
        %v4609 = vpop.f32.mrf.mxu0
        %v4610 = vadd.f32 %v4581, %v4609
        %v4611 = vpop.f32.mrf.mxu0
        %v4612 = vadd.f32 %v4583, %v4611
        %4613 = vmatmul.bf16.gmra.mxu0 %v4113
        %v4614 = vpop.f32.mrf.mxu0
        %v4615 = vadd.f32 %v4586, %v4614
        %v4616 = vpop.f32.mrf.mxu0
        %v4617 = vadd.f32 %v4588, %v4616
        %4618 = vmatmul.bf16.gmra.mxu0 %v4118
        %v4619 = vpop.f32.mrf.mxu0
        %v4620 = vadd.f32 %v4591, %v4619
        %v4621 = vpop.f32.mrf.mxu0
        %v4622 = vadd.f32 %v4593, %v4621
        %4623 = vdwg.mxu0
        %4624 = vmatpush.bf16.msra.mxu0 0
        %4625 = vmatpush.bf16.msra.mxu0 0
        %4626 = vmatpush.bf16.msra.mxu0 0
        %4627 = vmatpush.bf16.msra.mxu0 0
        %4628 = vmatpush.bf16.msra.mxu0 %v4422
        %4629 = vmatpush.bf16.msra.mxu0 %v4420
        %4630 = vmatpush.bf16.msra.mxu0 %v4418
        %4631 = vmatpush.bf16.msra.mxu0 %v4416
        %4632 = vmatmul.bf16.gmra.mxu0 %v4497
        %v4633 = vpop.f32.mrf.mxu0
        %v4634 = vadd.f32 %v4605, %v4633
        %v4635 = vpop.f32.mrf.mxu0
        %v4636 = vadd.f32 %v4607, %v4635
        %4637 = vmatmul.bf16.gmra.mxu0 %v4500
        %v4638 = vpop.f32.mrf.mxu0
        %v4639 = vadd.f32 %v4610, %v4638
        %v4640 = vpop.f32.mrf.mxu0
        %v4641 = vadd.f32 %v4612, %v4640
        %4642 = vmatmul.bf16.gmra.mxu0 %v4503
        %v4643 = vpop.f32.mrf.mxu0
        %v4644 = vadd.f32 %v4615, %v4643
        %v4645 = vpop.f32.mrf.mxu0
        %v4646 = vadd.f32 %v4617, %v4645
        %4647 = vmatmul.bf16.gmra.mxu0 %v4506
        %v4648 = vpop.f32.mrf.mxu0
        %v4649 = vadd.f32 %v4620, %v4648
        %v4650 = vpop.f32.mrf.mxu0
        %v4651 = vadd.f32 %v4622, %v4650
        %4652 = vdwg.mxu0
        %4653 = vmatpush.bf16.msra.mxu0 %v4367
        %4654 = vmatpush.bf16.msra.mxu0 %v4365
        %4655 = vmatpush.bf16.msra.mxu0 %v4363
        %4656 = vmatpush.bf16.msra.mxu0 %v4361
        %4657 = vmatpush.bf16.msra.mxu0 %v4359
        %4658 = vmatpush.bf16.msra.mxu0 %v4357
        %4659 = vmatpush.bf16.msra.mxu0 %v4355
        %4660 = vmatpush.bf16.msra.mxu0 %v4353
        %4661 = vmatmul.bf16.gmra.mxu0 %v4100
        %v4662 = vpop.f32.mrf.mxu0
        %v4663 = vadd.f32 0.0, %v4662
        %v4664 = vpop.f32.mrf.mxu0
        %v4665 = vadd.f32 0.0, %v4664
        %4666 = vmatmul.bf16.gmra.mxu0 %v4105
        %v4667 = vpop.f32.mrf.mxu0
        %v4668 = vadd.f32 0.0, %v4667
        %v4669 = vpop.f32.mrf.mxu0
        %v4670 = vadd.f32 0.0, %v4669
        %4671 = vmatmul.bf16.gmra.mxu0 %v4110
        %v4672 = vpop.f32.mrf.mxu0
        %v4673 = vadd.f32 0.0, %v4672
        %v4674 = vpop.f32.mrf.mxu0
        %v4675 = vadd.f32 0.0, %v4674
        %4676 = vmatmul.bf16.gmra.mxu0 %v4115
        %v4677 = vpop.f32.mrf.mxu0
        %v4678 = vadd.f32 0.0, %v4677
        %v4679 = vpop.f32.mrf.mxu0
        %v4680 = vadd.f32 0.0, %v4679
        %4681 = vdwg.mxu0
        %4682 = vmatpush.bf16.msra.mxu0 %v4383
        %4683 = vmatpush.bf16.msra.mxu0 %v4381
        %4684 = vmatpush.bf16.msra.mxu0 %v4379
        %4685 = vmatpush.bf16.msra.mxu0 %v4377
        %4686 = vmatpush.bf16.msra.mxu0 %v4375
        %4687 = vmatpush.bf16.msra.mxu0 %v4373
        %4688 = vmatpush.bf16.msra.mxu0 %v4371
        %4689 = vmatpush.bf16.msra.mxu0 %v4369
        %4690 = vmatmul.bf16.gmra.mxu0 %v4101
        %v4691 = vpop.f32.mrf.mxu0
        %v4692 = vadd.f32 %v4663, %v4691
        %v4693 = vpop.f32.mrf.mxu0
        %v4694 = vadd.f32 %v4665, %v4693
        %4695 = vmatmul.bf16.gmra.mxu0 %v4106
        %v4696 = vpop.f32.mrf.mxu0
        %v4697 = vadd.f32 %v4668, %v4696
        %v4698 = vpop.f32.mrf.mxu0
        %v4699 = vadd.f32 %v4670, %v4698
        %4700 = vmatmul.bf16.gmra.mxu0 %v4111
        %v4701 = vpop.f32.mrf.mxu0
        %v4702 = vadd.f32 %v4673, %v4701
        %v4703 = vpop.f32.mrf.mxu0
        %v4704 = vadd.f32 %v4675, %v4703
        %4705 = vmatmul.bf16.gmra.mxu0 %v4116
        %v4706 = vpop.f32.mrf.mxu0
        %v4707 = vadd.f32 %v4678, %v4706
        %v4708 = vpop.f32.mrf.mxu0
        %v4709 = vadd.f32 %v4680, %v4708
        %4710 = vdwg.mxu0
        %4711 = vmatpush.bf16.msra.mxu0 %v4399
        %4712 = vmatpush.bf16.msra.mxu0 %v4397
        %4713 = vmatpush.bf16.msra.mxu0 %v4395
        %4714 = vmatpush.bf16.msra.mxu0 %v4393
        %4715 = vmatpush.bf16.msra.mxu0 %v4391
        %4716 = vmatpush.bf16.msra.mxu0 %v4389
        %4717 = vmatpush.bf16.msra.mxu0 %v4387
        %4718 = vmatpush.bf16.msra.mxu0 %v4385
        %4719 = vmatmul.bf16.gmra.mxu0 %v4102
        %v4720 = vpop.f32.mrf.mxu0
        %v4721 = vadd.f32 %v4692, %v4720
        %v4722 = vpop.f32.mrf.mxu0
        %v4723 = vadd.f32 %v4694, %v4722
        %4724 = vmatmul.bf16.gmra.mxu0 %v4107
        %v4725 = vpop.f32.mrf.mxu0
        %v4726 = vadd.f32 %v4697, %v4725
        %v4727 = vpop.f32.mrf.mxu0
        %v4728 = vadd.f32 %v4699, %v4727
        %4729 = vmatmul.bf16.gmra.mxu0 %v4112
        %v4730 = vpop.f32.mrf.mxu0
        %v4731 = vadd.f32 %v4702, %v4730
        %v4732 = vpop.f32.mrf.mxu0
        %v4733 = vadd.f32 %v4704, %v4732
        %4734 = vmatmul.bf16.gmra.mxu0 %v4117
        %v4735 = vpop.f32.mrf.mxu0
        %v4736 = vadd.f32 %v4707, %v4735
        %v4737 = vpop.f32.mrf.mxu0
        %v4738 = vadd.f32 %v4709, %v4737
        %4739 = vdwg.mxu0
        %4740 = vmatpush.bf16.msra.mxu0 %v4415
        %4741 = vmatpush.bf16.msra.mxu0 %v4413
        %4742 = vmatpush.bf16.msra.mxu0 %v4411
        %4743 = vmatpush.bf16.msra.mxu0 %v4409
        %4744 = vmatpush.bf16.msra.mxu0 %v4407
        %4745 = vmatpush.bf16.msra.mxu0 %v4405
        %4746 = vmatpush.bf16.msra.mxu0 %v4403
        %4747 = vmatpush.bf16.msra.mxu0 %v4401
        %4748 = vmatmul.bf16.gmra.mxu0 %v4103
        %v4749 = vpop.f32.mrf.mxu0
        %v4750 = vadd.f32 %v4721, %v4749
        %v4751 = vpop.f32.mrf.mxu0
        %v4752 = vadd.f32 %v4723, %v4751
        %4753 = vmatmul.bf16.gmra.mxu0 %v4108
        %v4754 = vpop.f32.mrf.mxu0
        %v4755 = vadd.f32 %v4726, %v4754
        %v4756 = vpop.f32.mrf.mxu0
        %v4757 = vadd.f32 %v4728, %v4756
        %4758 = vmatmul.bf16.gmra.mxu0 %v4113
        %v4759 = vpop.f32.mrf.mxu0
        %v4760 = vadd.f32 %v4731, %v4759
        %v4761 = vpop.f32.mrf.mxu0
        %v4762 = vadd.f32 %v4733, %v4761
        %4763 = vmatmul.bf16.gmra.mxu0 %v4118
        %v4764 = vpop.f32.mrf.mxu0
        %v4765 = vadd.f32 %v4736, %v4764
        %v4766 = vpop.f32.mrf.mxu0
        %v4767 = vadd.f32 %v4738, %v4766
        %4768 = vdwg.mxu0
        %4769 = vmatpush.bf16.msra.mxu0 0
        %4770 = vmatpush.bf16.msra.mxu0 0
        %4771 = vmatpush.bf16.msra.mxu0 0
        %4772 = vmatpush.bf16.msra.mxu0 0
        %4773 = vmatpush.bf16.msra.mxu0 %v4423
        %4774 = vmatpush.bf16.msra.mxu0 %v4421
        %4775 = vmatpush.bf16.msra.mxu0 %v4419
        %4776 = vmatpush.bf16.msra.mxu0 %v4417
        %4777 = vmatmul.bf16.gmra.mxu0 %v4497
        %v4778 = vpop.f32.mrf.mxu0
        %v4779 = vadd.f32 %v4750, %v4778
        %v4780 = vpop.f32.mrf.mxu0
        %v4781 = vadd.f32 %v4752, %v4780
        %4782 = vmatmul.bf16.gmra.mxu0 %v4500
        %v4783 = vpop.f32.mrf.mxu0
        %v4784 = vadd.f32 %v4755, %v4783
        %v4785 = vpop.f32.mrf.mxu0
        %v4786 = vadd.f32 %v4757, %v4785
        %4787 = vmatmul.bf16.gmra.mxu0 %v4503
        %v4788 = vpop.f32.mrf.mxu0
        %v4789 = vadd.f32 %v4760, %v4788
        %v4790 = vpop.f32.mrf.mxu0
        %v4791 = vadd.f32 %v4762, %v4790
        %4792 = vmatmul.bf16.gmra.mxu0 %v4506
        %v4793 = vpop.f32.mrf.mxu0
        %v4794 = vadd.f32 %v4765, %v4793
        %v4795 = vpop.f32.mrf.mxu0
        %v4796 = vadd.f32 %v4767, %v4795
        %4797 = vdwg.mxu0
        %4799 = vset.pattern.permute.xlu0 0
        %4800 = vperm.xlu0 %4799, %v3419
        %v4801 = vpop.permute.xlu0 %4800
        %4804 = vset.pattern.permute.xlu0 0
        %4805 = vperm.xlu0 %4804, %v3420
        %v4806 = vpop.permute.xlu0 %4805
        %4809 = vset.pattern.permute.xlu0 0
        %4810 = vperm.xlu0 %4809, %v3421
        %v4811 = vpop.permute.xlu0 %4810
        %4814 = vset.pattern.permute.xlu0 0
        %4815 = vperm.xlu0 %4814, %v3422
        %v4816 = vpop.permute.xlu0 %4815
        %4819 = vset.pattern.permute.xlu0 0
        %4820 = vperm.xlu0 %4819, %v3423
        %v4821 = vpop.permute.xlu0 %4820
        %4824 = vset.pattern.permute.xlu0 0
        %4825 = vperm.xlu0 %4824, %v3424
        %v4826 = vpop.permute.xlu0 %4825
        %4829 = vset.pattern.permute.xlu0 0
        %4830 = vperm.xlu0 %4829, %v3425
        %v4831 = vpop.permute.xlu0 %4830
        %4834 = vset.pattern.permute.xlu0 0
        %4835 = vperm.xlu0 %4834, %v3426
        %v4836 = vpop.permute.xlu0 %4835
        %v4838 = vmul.f32 %v4634, %v4801
        %v4839 = vmul.f32 %v4779, %v4801
        %v4840 = vmul.f32 %v4636, %v4806
        %v4841 = vmul.f32 %v4781, %v4806
        %v4842 = vmul.f32 %v4639, %v4811
        %v4843 = vmul.f32 %v4784, %v4811
        %v4844 = vmul.f32 %v4641, %v4816
        %v4845 = vmul.f32 %v4786, %v4816
        %v4846 = vmul.f32 %v4644, %v4821
        %v4847 = vmul.f32 %v4789, %v4821
        %v4848 = vmul.f32 %v4646, %v4826
        %v4849 = vmul.f32 %v4791, %v4826
        %v4850 = vmul.f32 %v4649, %v4831
        %v4851 = vmul.f32 %v4794, %v4831
        %v4852 = vmul.f32 %v4651, %v4836
        %v4853 = vmul.f32 %v4796, %v4836
        %4855 = vset.pattern.permute.xlu0 0
        %4856 = vperm.xlu0 %4855, %v3428
        %v4857 = vpop.permute.xlu0 %4856
        %4860 = vset.pattern.permute.xlu0 0
        %4861 = vperm.xlu0 %4860, %v3429
        %v4862 = vpop.permute.xlu0 %4861
        %4865 = vset.pattern.permute.xlu0 0
        %4866 = vperm.xlu0 %4865, %v3430
        %v4867 = vpop.permute.xlu0 %4866
        %4870 = vset.pattern.permute.xlu0 0
        %4871 = vperm.xlu0 %4870, %v3431
        %v4872 = vpop.permute.xlu0 %4871
        %4875 = vset.pattern.permute.xlu0 0
        %4876 = vperm.xlu0 %4875, %v3432
        %v4877 = vpop.permute.xlu0 %4876
        %4880 = vset.pattern.permute.xlu0 0
        %4881 = vperm.xlu0 %4880, %v3433
        %v4882 = vpop.permute.xlu0 %4881
        %4885 = vset.pattern.permute.xlu0 0
        %4886 = vperm.xlu0 %4885, %v3434
        %v4887 = vpop.permute.xlu0 %4886
        %4890 = vset.pattern.permute.xlu0 0
        %4891 = vperm.xlu0 %4890, %v3435
        %v4892 = vpop.permute.xlu0 %4891
        %v4894 = vadd.f32 %v4838, %v4857
        %v4895 = vadd.f32 %v4839, %v4857
        %v4896 = vadd.f32 %v4840, %v4862
        %v4897 = vadd.f32 %v4841, %v4862
        %v4898 = vadd.f32 %v4842, %v4867
        %v4899 = vadd.f32 %v4843, %v4867
        %v4900 = vadd.f32 %v4844, %v4872
        %v4901 = vadd.f32 %v4845, %v4872
        %v4902 = vadd.f32 %v4846, %v4877
        %v4903 = vadd.f32 %v4847, %v4877
        %v4904 = vadd.f32 %v4848, %v4882
        %v4905 = vadd.f32 %v4849, %v4882
        %v4906 = vadd.f32 %v4850, %v4887
        %v4907 = vadd.f32 %v4851, %v4887
        %v4908 = vadd.f32 %v4852, %v4892
        %v4909 = vadd.f32 %v4853, %v4892
        %v4910 = vmax.f32 %v4894, 0.0
        %v4911 = vmax.f32 %v4895, 0.0
        %v4912 = vmax.f32 %v4896, 0.0
        %v4913 = vmax.f32 %v4897, 0.0
        %v4914 = vmax.f32 %v4898, 0.0
        %v4915 = vmax.f32 %v4899, 0.0
        %v4916 = vmax.f32 %v4900, 0.0
        %v4917 = vmax.f32 %v4901, 0.0
        %v4918 = vmax.f32 %v4902, 0.0
        %v4919 = vmax.f32 %v4903, 0.0
        %v4920 = vmax.f32 %v4904, 0.0
        %v4921 = vmax.f32 %v4905, 0.0
        %v4922 = vmax.f32 %v4906, 0.0
        %v4923 = vmax.f32 %v4907, 0.0
        %v4924 = vmax.f32 %v4908, 0.0
        %v4925 = vmax.f32 %v4909, 0.0
        %v4926 = vmul.f32 %v4910, %v1864
        %v4927 = vmul.f32 %v4911, %v1865
        %v4928 = vmul.f32 %v4912, %v1864
        %v4929 = vmul.f32 %v4913, %v1865
        %v4930 = vmul.f32 %v4914, %v1864
        %v4931 = vmul.f32 %v4915, %v1865
        %v4932 = vmul.f32 %v4916, %v1864
        %v4933 = vmul.f32 %v4917, %v1865
        %v4934 = vmul.f32 %v4918, %v1864
        %v4935 = vmul.f32 %v4919, %v1865
        %v4936 = vmul.f32 %v4920, %v1864
        %v4937 = vmul.f32 %v4921, %v1865
        %v4938 = vmul.f32 %v4922, %v1864
        %v4939 = vmul.f32 %v4923, %v1865
        %v4940 = vmul.f32 %v4924, %v1864
        %v4941 = vmul.f32 %v4925, %v1865
        %v4942 = vpack.c.bf16 %v4927, %v4926
        %v4943 = vpack.c.bf16 %v4929, %v4928
        %v4944 = vpack.c.bf16 %v4931, %v4930
        %v4945 = vpack.c.bf16 %v4933, %v4932
        %v4946 = vpack.c.bf16 %v4935, %v4934
        %v4947 = vpack.c.bf16 %v4937, %v4936
        %v4948 = vpack.c.bf16 %v4939, %v4938
        %v4949 = vpack.c.bf16 %v4941, %v4940
        %4958 = vrot.lane.b32.xlu0 %v4942, 19
        %v4959 = vpop.permute.xlu0 %4958
        %4960 = vrot.lane.b32.xlu0 %v4943, 19
        %v4961 = vpop.permute.xlu0 %4960
        %4962 = vrot.lane.b32.xlu0 %v4944, 19
        %v4963 = vpop.permute.xlu0 %4962
        %4964 = vrot.lane.b32.xlu0 %v4945, 19
        %v4965 = vpop.permute.xlu0 %4964
        %4966 = vrot.lane.b32.xlu0 %v4946, 19
        %v4967 = vpop.permute.xlu0 %4966
        %4968 = vrot.lane.b32.xlu0 %v4947, 19
        %v4969 = vpop.permute.xlu0 %4968
        %4970 = vrot.lane.b32.xlu0 %v4948, 19
        %v4971 = vpop.permute.xlu0 %4970
        %4972 = vrot.lane.b32.xlu0 %v4949, 19
        %v4973 = vpop.permute.xlu0 %4972
        %v4974 = vrot.slane %v4959, 4
        %v4975 = vrot.slane %v4961, 4
        %v4976 = vrot.slane %v4963, 4
        %v4977 = vrot.slane %v4965, 4
        %v4978 = vrot.slane %v4967, 4
        %v4979 = vrot.slane %v4969, 4
        %v4980 = vrot.slane %v4971, 4
        %v4981 = vrot.slane %v4973, 4
        %v4982 = vsel %vm1924, %v4974, %v4959
        %v4983 = vsel %vm1924, %v4975, %v4961
        %v4984 = vsel %vm1924, %v4976, %v4963
        %v4985 = vsel %vm1924, %v4977, %v4965
        %v4986 = vsel %vm1924, %v4978, %v4967
        %v4987 = vsel %vm1924, %v4979, %v4969
        %v4988 = vsel %vm1924, %v4980, %v4971
        %v4989 = vsel %vm1924, %v4981, %v4973
        %4998 = vst.msk [vmem:[#allocation2] sm:$0xff] %vm1943, %v4982
        %4999 = vst.msk [vmem:[#allocation2 + $0xc] sm:$0xff] %vm1943, %v4983
        %5000 = vst.msk [vmem:[#allocation2 + $0x18] sm:$0xff] %vm1943, %v4984
        %5001 = vst.msk [vmem:[#allocation2 + $0x24] sm:$0xff] %vm1943, %v4985
        %5002 = vst.msk [vmem:[#allocation2 + $0x30] sm:$0xff] %vm1943, %v4986
        %5003 = vst.msk [vmem:[#allocation2 + $0x3c] sm:$0xff] %vm1943, %v4987
        %5004 = vst.msk [vmem:[#allocation2 + $0x48] sm:$0xff] %vm1943, %v4988
        %5005 = vst.msk [vmem:[#allocation2 + $0x54] sm:$0xff] %vm1943, %v4989
        %v5006 = vld [vmem:[#allocation3 + $0x4] sm:$0xff]
        %v5007 = vld [vmem:[#allocation3 + $0x10] sm:$0xff]
        %v5008 = vld [vmem:[#allocation3 + $0x1c] sm:$0xff]
        %v5009 = vld [vmem:[#allocation3 + $0x28] sm:$0xff]
        %v5010 = vld [vmem:[#allocation3 + $0x34] sm:$0xff]
        %v5011 = vld [vmem:[#allocation3 + $0x40] sm:$0xff]
        %v5012 = vld [vmem:[#allocation3 + $0x4c] sm:$0xff]
        %v5013 = vld [vmem:[#allocation3 + $0x58] sm:$0xff]
        %5022 = vrot.lane.b32.xlu0 %v5006, 112
        %v5023 = vpop.permute.xlu0 %5022
        %5024 = vrot.lane.b32.xlu0 %v5007, 112
        %v5025 = vpop.permute.xlu0 %5024
        %5026 = vrot.lane.b32.xlu0 %v5008, 112
        %v5027 = vpop.permute.xlu0 %5026
        %5028 = vrot.lane.b32.xlu0 %v5009, 112
        %v5029 = vpop.permute.xlu0 %5028
        %5030 = vrot.lane.b32.xlu0 %v5010, 112
        %v5031 = vpop.permute.xlu0 %5030
        %5032 = vrot.lane.b32.xlu0 %v5011, 112
        %v5033 = vpop.permute.xlu0 %5032
        %5034 = vrot.lane.b32.xlu0 %v5012, 112
        %v5035 = vpop.permute.xlu0 %5034
        %5036 = vrot.lane.b32.xlu0 %v5013, 112
        %v5037 = vpop.permute.xlu0 %5036
        %v5038 = vrot.slane %v5023, 4
        %v5039 = vrot.slane %v5025, 4
        %v5040 = vrot.slane %v5027, 4
        %v5041 = vrot.slane %v5029, 4
        %v5042 = vrot.slane %v5031, 4
        %v5043 = vrot.slane %v5033, 4
        %v5044 = vrot.slane %v5035, 4
        %v5045 = vrot.slane %v5037, 4
        %v5046 = vsel %vm1992, %v5023, %v5038
        %v5047 = vsel %vm1992, %v5025, %v5039
        %v5048 = vsel %vm1992, %v5027, %v5040
        %v5049 = vsel %vm1992, %v5029, %v5041
        %v5050 = vsel %vm1992, %v5031, %v5042
        %v5051 = vsel %vm1992, %v5033, %v5043
        %v5052 = vsel %vm1992, %v5035, %v5044
        %v5053 = vsel %vm1992, %v5037, %v5045
        %5062 = vst.msk [vmem:[#allocation5] sm:$0xff] %vm371, %v5046
        %5063 = vst.msk [vmem:[#allocation5 + $0x8] sm:$0xff] %vm371, %v5047
        %5064 = vst.msk [vmem:[#allocation5 + $0x10] sm:$0xff] %vm371, %v5048
        %5065 = vst.msk [vmem:[#allocation5 + $0x18] sm:$0xff] %vm371, %v5049
        %5066 = vst.msk [vmem:[#allocation5 + $0x20] sm:$0xff] %vm371, %v5050
        %5067 = vst.msk [vmem:[#allocation5 + $0x28] sm:$0xff] %vm371, %v5051
        %5068 = vst.msk [vmem:[#allocation5 + $0x30] sm:$0xff] %vm371, %v5052
        %5069 = vst.msk [vmem:[#allocation5 + $0x38] sm:$0xff] %vm371, %v5053
        %v5070 = vld [vmem:[#allocation3 + $0x4] sm:$0xff]
        %v5071 = vld [vmem:[#allocation3 + $0x10] sm:$0xff]
        %v5072 = vld [vmem:[#allocation3 + $0x1c] sm:$0xff]
        %v5073 = vld [vmem:[#allocation3 + $0x28] sm:$0xff]
        %v5074 = vld [vmem:[#allocation3 + $0x34] sm:$0xff]
        %v5075 = vld [vmem:[#allocation3 + $0x40] sm:$0xff]
        %v5076 = vld [vmem:[#allocation3 + $0x4c] sm:$0xff]
        %v5077 = vld [vmem:[#allocation3 + $0x58] sm:$0xff]
        %5086 = vrot.lane.b32.xlu0 %v5070, 111
        %v5087 = vpop.permute.xlu0 %5086
        %5088 = vrot.lane.b32.xlu0 %v5071, 111
        %v5089 = vpop.permute.xlu0 %5088
        %5090 = vrot.lane.b32.xlu0 %v5072, 111
        %v5091 = vpop.permute.xlu0 %5090
        %5092 = vrot.lane.b32.xlu0 %v5073, 111
        %v5093 = vpop.permute.xlu0 %5092
        %5094 = vrot.lane.b32.xlu0 %v5074, 111
        %v5095 = vpop.permute.xlu0 %5094
        %5096 = vrot.lane.b32.xlu0 %v5075, 111
        %v5097 = vpop.permute.xlu0 %5096
        %5098 = vrot.lane.b32.xlu0 %v5076, 111
        %v5099 = vpop.permute.xlu0 %5098
        %5100 = vrot.lane.b32.xlu0 %v5077, 111
        %v5101 = vpop.permute.xlu0 %5100
        %v5102 = vrot.slane %v5087, 4
        %v5103 = vrot.slane %v5089, 4
        %v5104 = vrot.slane %v5091, 4
        %v5105 = vrot.slane %v5093, 4
        %v5106 = vrot.slane %v5095, 4
        %v5107 = vrot.slane %v5097, 4
        %v5108 = vrot.slane %v5099, 4
        %v5109 = vrot.slane %v5101, 4
        %v5110 = vsel %vm2057, %v5087, %v5102
        %v5111 = vsel %vm2057, %v5089, %v5103
        %v5112 = vsel %vm2057, %v5091, %v5104
        %v5113 = vsel %vm2057, %v5093, %v5105
        %v5114 = vsel %vm2057, %v5095, %v5106
        %v5115 = vsel %vm2057, %v5097, %v5107
        %v5116 = vsel %vm2057, %v5099, %v5108
        %v5117 = vsel %vm2057, %v5101, %v5109
        %5126 = vst.msk [vmem:[#allocation5 + $0x40] sm:$0xff] %vm371, %v5110
        %5127 = vst.msk [vmem:[#allocation5 + $0x48] sm:$0xff] %vm371, %v5111
        %5128 = vst.msk [vmem:[#allocation5 + $0x50] sm:$0xff] %vm371, %v5112
        %5129 = vst.msk [vmem:[#allocation5 + $0x58] sm:$0xff] %vm371, %v5113
        %5130 = vst.msk [vmem:[#allocation5 + $0x60] sm:$0xff] %vm371, %v5114
        %5131 = vst.msk [vmem:[#allocation5 + $0x68] sm:$0xff] %vm371, %v5115
        %5132 = vst.msk [vmem:[#allocation5 + $0x70] sm:$0xff] %vm371, %v5116
        %5133 = vst.msk [vmem:[#allocation5 + $0x78] sm:$0xff] %vm371, %v5117
        %v5134 = vld [vmem:[#allocation3 + $0x4] sm:$0xff]
        %v5135 = vld [vmem:[#allocation3 + $0x10] sm:$0xff]
        %v5136 = vld [vmem:[#allocation3 + $0x1c] sm:$0xff]
        %v5137 = vld [vmem:[#allocation3 + $0x28] sm:$0xff]
        %v5138 = vld [vmem:[#allocation3 + $0x34] sm:$0xff]
        %v5139 = vld [vmem:[#allocation3 + $0x40] sm:$0xff]
        %v5140 = vld [vmem:[#allocation3 + $0x4c] sm:$0xff]
        %v5141 = vld [vmem:[#allocation3 + $0x58] sm:$0xff]
        %5150 = vrot.lane.b32.xlu0 %v5134, 110
        %v5151 = vpop.permute.xlu0 %5150
        %5152 = vrot.lane.b32.xlu0 %v5135, 110
        %v5153 = vpop.permute.xlu0 %5152
        %5154 = vrot.lane.b32.xlu0 %v5136, 110
        %v5155 = vpop.permute.xlu0 %5154
        %5156 = vrot.lane.b32.xlu0 %v5137, 110
        %v5157 = vpop.permute.xlu0 %5156
        %5158 = vrot.lane.b32.xlu0 %v5138, 110
        %v5159 = vpop.permute.xlu0 %5158
        %5160 = vrot.lane.b32.xlu0 %v5139, 110
        %v5161 = vpop.permute.xlu0 %5160
        %5162 = vrot.lane.b32.xlu0 %v5140, 110
        %v5163 = vpop.permute.xlu0 %5162
        %5164 = vrot.lane.b32.xlu0 %v5141, 110
        %v5165 = vpop.permute.xlu0 %5164
        %v5166 = vrot.slane %v5151, 4
        %v5167 = vrot.slane %v5153, 4
        %v5168 = vrot.slane %v5155, 4
        %v5169 = vrot.slane %v5157, 4
        %v5170 = vrot.slane %v5159, 4
        %v5171 = vrot.slane %v5161, 4
        %v5172 = vrot.slane %v5163, 4
        %v5173 = vrot.slane %v5165, 4
        %v5174 = vsel %vm550, %v5151, %v5166
        %v5175 = vsel %vm550, %v5153, %v5167
        %v5176 = vsel %vm550, %v5155, %v5168
        %v5177 = vsel %vm550, %v5157, %v5169
        %v5178 = vsel %vm550, %v5159, %v5170
        %v5179 = vsel %vm550, %v5161, %v5171
        %v5180 = vsel %vm550, %v5163, %v5172
        %v5181 = vsel %vm550, %v5165, %v5173
        %5190 = vst.msk [vmem:[#allocation5 + $0x80] sm:$0xff] %vm371, %v5174
        %5191 = vst.msk [vmem:[#allocation5 + $0x88] sm:$0xff] %vm371, %v5175
        %5192 = vst.msk [vmem:[#allocation5 + $0x90] sm:$0xff] %vm371, %v5176
        %5193 = vst.msk [vmem:[#allocation5 + $0x98] sm:$0xff] %vm371, %v5177
        %5194 = vst.msk [vmem:[#allocation5 + $0xa0] sm:$0xff] %vm371, %v5178
        %5195 = vst.msk [vmem:[#allocation5 + $0xa8] sm:$0xff] %vm371, %v5179
        %5196 = vst.msk [vmem:[#allocation5 + $0xb0] sm:$0xff] %vm371, %v5180
        %5197 = vst.msk [vmem:[#allocation5 + $0xb8] sm:$0xff] %vm371, %v5181
        %v5198 = vld [vmem:[#allocation3 + $0x4] sm:$0xff]
        %v5199 = vld [vmem:[#allocation3 + $0x10] sm:$0xff]
        %v5200 = vld [vmem:[#allocation3 + $0x1c] sm:$0xff]
        %v5201 = vld [vmem:[#allocation3 + $0x28] sm:$0xff]
        %v5202 = vld [vmem:[#allocation3 + $0x34] sm:$0xff]
        %v5203 = vld [vmem:[#allocation3 + $0x40] sm:$0xff]
        %v5204 = vld [vmem:[#allocation3 + $0x4c] sm:$0xff]
        %v5205 = vld [vmem:[#allocation3 + $0x58] sm:$0xff]
        %5214 = vrot.lane.b32.xlu0 %v5198, 94
        %v5215 = vpop.permute.xlu0 %5214
        %5216 = vrot.lane.b32.xlu0 %v5199, 94
        %v5217 = vpop.permute.xlu0 %5216
        %5218 = vrot.lane.b32.xlu0 %v5200, 94
        %v5219 = vpop.permute.xlu0 %5218
        %5220 = vrot.lane.b32.xlu0 %v5201, 94
        %v5221 = vpop.permute.xlu0 %5220
        %5222 = vrot.lane.b32.xlu0 %v5202, 94
        %v5223 = vpop.permute.xlu0 %5222
        %5224 = vrot.lane.b32.xlu0 %v5203, 94
        %v5225 = vpop.permute.xlu0 %5224
        %5226 = vrot.lane.b32.xlu0 %v5204, 94
        %v5227 = vpop.permute.xlu0 %5226
        %5228 = vrot.lane.b32.xlu0 %v5205, 94
        %v5229 = vpop.permute.xlu0 %5228
        %v5230 = vrot.slane %v5215, 4
        %v5231 = vrot.slane %v5217, 4
        %v5232 = vrot.slane %v5219, 4
        %v5233 = vrot.slane %v5221, 4
        %v5234 = vrot.slane %v5223, 4
        %v5235 = vrot.slane %v5225, 4
        %v5236 = vrot.slane %v5227, 4
        %v5237 = vrot.slane %v5229, 4
        %v5238 = vsel %vm2186, %v5215, %v5230
        %v5239 = vsel %vm2186, %v5217, %v5231
        %v5240 = vsel %vm2186, %v5219, %v5232
        %v5241 = vsel %vm2186, %v5221, %v5233
        %v5242 = vsel %vm2186, %v5223, %v5234
        %v5243 = vsel %vm2186, %v5225, %v5235
        %v5244 = vsel %vm2186, %v5227, %v5236
        %v5245 = vsel %vm2186, %v5229, %v5237
        %5254 = vst.msk [vmem:[#allocation5 + $0xc0] sm:$0xff] %vm371, %v5238
        %5255 = vst.msk [vmem:[#allocation5 + $0xc8] sm:$0xff] %vm371, %v5239
        %5256 = vst.msk [vmem:[#allocation5 + $0xd0] sm:$0xff] %vm371, %v5240
        %5257 = vst.msk [vmem:[#allocation5 + $0xd8] sm:$0xff] %vm371, %v5241
        %5258 = vst.msk [vmem:[#allocation5 + $0xe0] sm:$0xff] %vm371, %v5242
        %5259 = vst.msk [vmem:[#allocation5 + $0xe8] sm:$0xff] %vm371, %v5243
        %5260 = vst.msk [vmem:[#allocation5 + $0xf0] sm:$0xff] %vm371, %v5244
        %5261 = vst.msk [vmem:[#allocation5 + $0xf8] sm:$0xff] %vm371, %v5245
        %v5262 = vld [vmem:[#allocation3 + $0x4] sm:$0xff]
        %v5263 = vld [vmem:[#allocation3 + $0x10] sm:$0xff]
        %v5264 = vld [vmem:[#allocation3 + $0x1c] sm:$0xff]
        %v5265 = vld [vmem:[#allocation3 + $0x28] sm:$0xff]
        %v5266 = vld [vmem:[#allocation3 + $0x34] sm:$0xff]
        %v5267 = vld [vmem:[#allocation3 + $0x40] sm:$0xff]
        %v5268 = vld [vmem:[#allocation3 + $0x4c] sm:$0xff]
        %v5269 = vld [vmem:[#allocation3 + $0x58] sm:$0xff]
        %5278 = vrot.lane.b32.xlu0 %v5262, 93
        %v5279 = vpop.permute.xlu0 %5278
        %5280 = vrot.lane.b32.xlu0 %v5263, 93
        %v5281 = vpop.permute.xlu0 %5280
        %5282 = vrot.lane.b32.xlu0 %v5264, 93
        %v5283 = vpop.permute.xlu0 %5282
        %5284 = vrot.lane.b32.xlu0 %v5265, 93
        %v5285 = vpop.permute.xlu0 %5284
        %5286 = vrot.lane.b32.xlu0 %v5266, 93
        %v5287 = vpop.permute.xlu0 %5286
        %5288 = vrot.lane.b32.xlu0 %v5267, 93
        %v5289 = vpop.permute.xlu0 %5288
        %5290 = vrot.lane.b32.xlu0 %v5268, 93
        %v5291 = vpop.permute.xlu0 %5290
        %5292 = vrot.lane.b32.xlu0 %v5269, 93
        %v5293 = vpop.permute.xlu0 %5292
        %v5294 = vrot.slane %v5279, 4
        %v5295 = vrot.slane %v5281, 4
        %v5296 = vrot.slane %v5283, 4
        %v5297 = vrot.slane %v5285, 4
        %v5298 = vrot.slane %v5287, 4
        %v5299 = vrot.slane %v5289, 4
        %v5300 = vrot.slane %v5291, 4
        %v5301 = vrot.slane %v5293, 4
        %v5302 = vsel %vm2251, %v5279, %v5294
        %v5303 = vsel %vm2251, %v5281, %v5295
        %v5304 = vsel %vm2251, %v5283, %v5296
        %v5305 = vsel %vm2251, %v5285, %v5297
        %v5306 = vsel %vm2251, %v5287, %v5298
        %v5307 = vsel %vm2251, %v5289, %v5299
        %v5308 = vsel %vm2251, %v5291, %v5300
        %v5309 = vsel %vm2251, %v5293, %v5301
        %5318 = vst.msk [vmem:[#allocation5 + $0x100] sm:$0xff] %vm371, %v5302
        %5319 = vst.msk [vmem:[#allocation5 + $0x108] sm:$0xff] %vm371, %v5303
        %5320 = vst.msk [vmem:[#allocation5 + $0x110] sm:$0xff] %vm371, %v5304
        %5321 = vst.msk [vmem:[#allocation5 + $0x118] sm:$0xff] %vm371, %v5305
        %5322 = vst.msk [vmem:[#allocation5 + $0x120] sm:$0xff] %vm371, %v5306
        %5323 = vst.msk [vmem:[#allocation5 + $0x128] sm:$0xff] %vm371, %v5307
        %5324 = vst.msk [vmem:[#allocation5 + $0x130] sm:$0xff] %vm371, %v5308
        %5325 = vst.msk [vmem:[#allocation5 + $0x138] sm:$0xff] %vm371, %v5309
        %v5326 = vld [vmem:[#allocation3 + $0x4] sm:$0xff]
        %v5327 = vld [vmem:[#allocation3 + $0x10] sm:$0xff]
        %v5328 = vld [vmem:[#allocation3 + $0x1c] sm:$0xff]
        %v5329 = vld [vmem:[#allocation3 + $0x28] sm:$0xff]
        %v5330 = vld [vmem:[#allocation3 + $0x34] sm:$0xff]
        %v5331 = vld [vmem:[#allocation3 + $0x40] sm:$0xff]
        %v5332 = vld [vmem:[#allocation3 + $0x4c] sm:$0xff]
        %v5333 = vld [vmem:[#allocation3 + $0x58] sm:$0xff]
        %5342 = vrot.lane.b32.xlu0 %v5326, 92
        %v5343 = vpop.permute.xlu0 %5342
        %5344 = vrot.lane.b32.xlu0 %v5327, 92
        %v5345 = vpop.permute.xlu0 %5344
        %5346 = vrot.lane.b32.xlu0 %v5328, 92
        %v5347 = vpop.permute.xlu0 %5346
        %5348 = vrot.lane.b32.xlu0 %v5329, 92
        %v5349 = vpop.permute.xlu0 %5348
        %5350 = vrot.lane.b32.xlu0 %v5330, 92
        %v5351 = vpop.permute.xlu0 %5350
        %5352 = vrot.lane.b32.xlu0 %v5331, 92
        %v5353 = vpop.permute.xlu0 %5352
        %5354 = vrot.lane.b32.xlu0 %v5332, 92
        %v5355 = vpop.permute.xlu0 %5354
        %5356 = vrot.lane.b32.xlu0 %v5333, 92
        %v5357 = vpop.permute.xlu0 %5356
        %v5358 = vrot.slane %v5343, 4
        %v5359 = vrot.slane %v5345, 4
        %v5360 = vrot.slane %v5347, 4
        %v5361 = vrot.slane %v5349, 4
        %v5362 = vrot.slane %v5351, 4
        %v5363 = vrot.slane %v5353, 4
        %v5364 = vrot.slane %v5355, 4
        %v5365 = vrot.slane %v5357, 4
        %v5366 = vsel %vm745, %v5343, %v5358
        %v5367 = vsel %vm745, %v5345, %v5359
        %v5368 = vsel %vm745, %v5347, %v5360
        %v5369 = vsel %vm745, %v5349, %v5361
        %v5370 = vsel %vm745, %v5351, %v5362
        %v5371 = vsel %vm745, %v5353, %v5363
        %v5372 = vsel %vm745, %v5355, %v5364
        %v5373 = vsel %vm745, %v5357, %v5365
        %5382 = vst.msk [vmem:[#allocation5 + $0x140] sm:$0xff] %vm371, %v5366
        %5383 = vst.msk [vmem:[#allocation5 + $0x148] sm:$0xff] %vm371, %v5367
        %5384 = vst.msk [vmem:[#allocation5 + $0x150] sm:$0xff] %vm371, %v5368
        %5385 = vst.msk [vmem:[#allocation5 + $0x158] sm:$0xff] %vm371, %v5369
        %5386 = vst.msk [vmem:[#allocation5 + $0x160] sm:$0xff] %vm371, %v5370
        %5387 = vst.msk [vmem:[#allocation5 + $0x168] sm:$0xff] %vm371, %v5371
        %5388 = vst.msk [vmem:[#allocation5 + $0x170] sm:$0xff] %vm371, %v5372
        %5389 = vst.msk [vmem:[#allocation5 + $0x178] sm:$0xff] %vm371, %v5373
        %v5390 = vld [vmem:[#allocation3 + $0x4] sm:$0xff]
        %v5391 = vld [vmem:[#allocation3 + $0x10] sm:$0xff]
        %v5392 = vld [vmem:[#allocation3 + $0x1c] sm:$0xff]
        %v5393 = vld [vmem:[#allocation3 + $0x28] sm:$0xff]
        %v5394 = vld [vmem:[#allocation3 + $0x34] sm:$0xff]
        %v5395 = vld [vmem:[#allocation3 + $0x40] sm:$0xff]
        %v5396 = vld [vmem:[#allocation3 + $0x4c] sm:$0xff]
        %v5397 = vld [vmem:[#allocation3 + $0x58] sm:$0xff]
        %5406 = vrot.lane.b32.xlu0 %v5390, 76
        %v5407 = vpop.permute.xlu0 %5406
        %5408 = vrot.lane.b32.xlu0 %v5391, 76
        %v5409 = vpop.permute.xlu0 %5408
        %5410 = vrot.lane.b32.xlu0 %v5392, 76
        %v5411 = vpop.permute.xlu0 %5410
        %5412 = vrot.lane.b32.xlu0 %v5393, 76
        %v5413 = vpop.permute.xlu0 %5412
        %5414 = vrot.lane.b32.xlu0 %v5394, 76
        %v5415 = vpop.permute.xlu0 %5414
        %5416 = vrot.lane.b32.xlu0 %v5395, 76
        %v5417 = vpop.permute.xlu0 %5416
        %5418 = vrot.lane.b32.xlu0 %v5396, 76
        %v5419 = vpop.permute.xlu0 %5418
        %5420 = vrot.lane.b32.xlu0 %v5397, 76
        %v5421 = vpop.permute.xlu0 %5420
        %v5422 = vrot.slane %v5407, 4
        %v5423 = vrot.slane %v5409, 4
        %v5424 = vrot.slane %v5411, 4
        %v5425 = vrot.slane %v5413, 4
        %v5426 = vrot.slane %v5415, 4
        %v5427 = vrot.slane %v5417, 4
        %v5428 = vrot.slane %v5419, 4
        %v5429 = vrot.slane %v5421, 4
        %v5430 = vsel %vm2380, %v5407, %v5422
        %v5431 = vsel %vm2380, %v5409, %v5423
        %v5432 = vsel %vm2380, %v5411, %v5424
        %v5433 = vsel %vm2380, %v5413, %v5425
        %v5434 = vsel %vm2380, %v5415, %v5426
        %v5435 = vsel %vm2380, %v5417, %v5427
        %v5436 = vsel %vm2380, %v5419, %v5428
        %v5437 = vsel %vm2380, %v5421, %v5429
        %5446 = vst.msk [vmem:[#allocation5 + $0x180] sm:$0xff] %vm371, %v5430
        %5447 = vst.msk [vmem:[#allocation5 + $0x188] sm:$0xff] %vm371, %v5431
        %5448 = vst.msk [vmem:[#allocation5 + $0x190] sm:$0xff] %vm371, %v5432
        %5449 = vst.msk [vmem:[#allocation5 + $0x198] sm:$0xff] %vm371, %v5433
        %5450 = vst.msk [vmem:[#allocation5 + $0x1a0] sm:$0xff] %vm371, %v5434
        %5451 = vst.msk [vmem:[#allocation5 + $0x1a8] sm:$0xff] %vm371, %v5435
        %5452 = vst.msk [vmem:[#allocation5 + $0x1b0] sm:$0xff] %vm371, %v5436
        %5453 = vst.msk [vmem:[#allocation5 + $0x1b8] sm:$0xff] %vm371, %v5437
        %v5454 = vld [vmem:[#allocation3 + $0x4] sm:$0xff]
        %v5455 = vld [vmem:[#allocation3 + $0x10] sm:$0xff]
        %v5456 = vld [vmem:[#allocation3 + $0x1c] sm:$0xff]
        %v5457 = vld [vmem:[#allocation3 + $0x28] sm:$0xff]
        %v5458 = vld [vmem:[#allocation3 + $0x34] sm:$0xff]
        %v5459 = vld [vmem:[#allocation3 + $0x40] sm:$0xff]
        %v5460 = vld [vmem:[#allocation3 + $0x4c] sm:$0xff]
        %v5461 = vld [vmem:[#allocation3 + $0x58] sm:$0xff]
        %5470 = vrot.lane.b32.xlu0 %v5454, 75
        %v5471 = vpop.permute.xlu0 %5470
        %5472 = vrot.lane.b32.xlu0 %v5455, 75
        %v5473 = vpop.permute.xlu0 %5472
        %5474 = vrot.lane.b32.xlu0 %v5456, 75
        %v5475 = vpop.permute.xlu0 %5474
        %5476 = vrot.lane.b32.xlu0 %v5457, 75
        %v5477 = vpop.permute.xlu0 %5476
        %5478 = vrot.lane.b32.xlu0 %v5458, 75
        %v5479 = vpop.permute.xlu0 %5478
        %5480 = vrot.lane.b32.xlu0 %v5459, 75
        %v5481 = vpop.permute.xlu0 %5480
        %5482 = vrot.lane.b32.xlu0 %v5460, 75
        %v5483 = vpop.permute.xlu0 %5482
        %5484 = vrot.lane.b32.xlu0 %v5461, 75
        %v5485 = vpop.permute.xlu0 %5484
        %v5486 = vrot.slane %v5471, 4
        %v5487 = vrot.slane %v5473, 4
        %v5488 = vrot.slane %v5475, 4
        %v5489 = vrot.slane %v5477, 4
        %v5490 = vrot.slane %v5479, 4
        %v5491 = vrot.slane %v5481, 4
        %v5492 = vrot.slane %v5483, 4
        %v5493 = vrot.slane %v5485, 4
        %v5494 = vsel %vm2445, %v5471, %v5486
        %v5495 = vsel %vm2445, %v5473, %v5487
        %v5496 = vsel %vm2445, %v5475, %v5488
        %v5497 = vsel %vm2445, %v5477, %v5489
        %v5498 = vsel %vm2445, %v5479, %v5490
        %v5499 = vsel %vm2445, %v5481, %v5491
        %v5500 = vsel %vm2445, %v5483, %v5492
        %v5501 = vsel %vm2445, %v5485, %v5493
        %5510 = vst.msk [vmem:[#allocation5 + $0x1c0] sm:$0xff] %vm371, %v5494
        %5511 = vst.msk [vmem:[#allocation5 + $0x1c8] sm:$0xff] %vm371, %v5495
        %5512 = vst.msk [vmem:[#allocation5 + $0x1d0] sm:$0xff] %vm371, %v5496
        %5513 = vst.msk [vmem:[#allocation5 + $0x1d8] sm:$0xff] %vm371, %v5497
        %5514 = vst.msk [vmem:[#allocation5 + $0x1e0] sm:$0xff] %vm371, %v5498
        %5515 = vst.msk [vmem:[#allocation5 + $0x1e8] sm:$0xff] %vm371, %v5499
        %5516 = vst.msk [vmem:[#allocation5 + $0x1f0] sm:$0xff] %vm371, %v5500
        %5517 = vst.msk [vmem:[#allocation5 + $0x1f8] sm:$0xff] %vm371, %v5501
        %v5518 = vld [vmem:[#allocation3 + $0x4] sm:$0xff]
        %v5519 = vld [vmem:[#allocation3 + $0x10] sm:$0xff]
        %v5520 = vld [vmem:[#allocation3 + $0x1c] sm:$0xff]
        %v5521 = vld [vmem:[#allocation3 + $0x28] sm:$0xff]
        %v5522 = vld [vmem:[#allocation3 + $0x34] sm:$0xff]
        %v5523 = vld [vmem:[#allocation3 + $0x40] sm:$0xff]
        %v5524 = vld [vmem:[#allocation3 + $0x4c] sm:$0xff]
        %v5525 = vld [vmem:[#allocation3 + $0x58] sm:$0xff]
        %5534 = vrot.lane.b32.xlu0 %v5518, 74
        %v5535 = vpop.permute.xlu0 %5534
        %5536 = vrot.lane.b32.xlu0 %v5519, 74
        %v5537 = vpop.permute.xlu0 %5536
        %5538 = vrot.lane.b32.xlu0 %v5520, 74
        %v5539 = vpop.permute.xlu0 %5538
        %5540 = vrot.lane.b32.xlu0 %v5521, 74
        %v5541 = vpop.permute.xlu0 %5540
        %5542 = vrot.lane.b32.xlu0 %v5522, 74
        %v5543 = vpop.permute.xlu0 %5542
        %5544 = vrot.lane.b32.xlu0 %v5523, 74
        %v5545 = vpop.permute.xlu0 %5544
        %5546 = vrot.lane.b32.xlu0 %v5524, 74
        %v5547 = vpop.permute.xlu0 %5546
        %5548 = vrot.lane.b32.xlu0 %v5525, 74
        %v5549 = vpop.permute.xlu0 %5548
        %v5550 = vrot.slane %v5535, 4
        %v5551 = vrot.slane %v5537, 4
        %v5552 = vrot.slane %v5539, 4
        %v5553 = vrot.slane %v5541, 4
        %v5554 = vrot.slane %v5543, 4
        %v5555 = vrot.slane %v5545, 4
        %v5556 = vrot.slane %v5547, 4
        %v5557 = vrot.slane %v5549, 4
        %v5558 = vsel %vm2510, %v5535, %v5550
        %v5559 = vsel %vm2510, %v5537, %v5551
        %v5560 = vsel %vm2510, %v5539, %v5552
        %v5561 = vsel %vm2510, %v5541, %v5553
        %v5562 = vsel %vm2510, %v5543, %v5554
        %v5563 = vsel %vm2510, %v5545, %v5555
        %v5564 = vsel %vm2510, %v5547, %v5556
        %v5565 = vsel %vm2510, %v5549, %v5557
        %5574 = vst.msk [vmem:[#allocation5 + $0x200] sm:$0xff] %vm371, %v5558
        %5575 = vst.msk [vmem:[#allocation5 + $0x208] sm:$0xff] %vm371, %v5559
        %5576 = vst.msk [vmem:[#allocation5 + $0x210] sm:$0xff] %vm371, %v5560
        %5577 = vst.msk [vmem:[#allocation5 + $0x218] sm:$0xff] %vm371, %v5561
        %5578 = vst.msk [vmem:[#allocation5 + $0x220] sm:$0xff] %vm371, %v5562
        %5579 = vst.msk [vmem:[#allocation5 + $0x228] sm:$0xff] %vm371, %v5563
        %5580 = vst.msk [vmem:[#allocation5 + $0x230] sm:$0xff] %vm371, %v5564
        %5581 = vst.msk [vmem:[#allocation5 + $0x238] sm:$0xff] %vm371, %v5565
        %v5582 = vld [vmem:[#allocation5] sm:$0xff]
        %v5583 = vld [vmem:[#allocation5 + $0x8] sm:$0xff]
        %v5584 = vld [vmem:[#allocation5 + $0x10] sm:$0xff]
        %v5585 = vld [vmem:[#allocation5 + $0x18] sm:$0xff]
        %v5586 = vld [vmem:[#allocation5 + $0x20] sm:$0xff]
        %v5587 = vld [vmem:[#allocation5 + $0x28] sm:$0xff]
        %v5588 = vld [vmem:[#allocation5 + $0x30] sm:$0xff]
        %v5589 = vld [vmem:[#allocation5 + $0x38] sm:$0xff]
        %v5590 = vld [vmem:[#allocation5 + $0x40] sm:$0xff]
        %v5591 = vld [vmem:[#allocation5 + $0x48] sm:$0xff]
        %v5592 = vld [vmem:[#allocation5 + $0x50] sm:$0xff]
        %v5593 = vld [vmem:[#allocation5 + $0x58] sm:$0xff]
        %v5594 = vld [vmem:[#allocation5 + $0x60] sm:$0xff]
        %v5595 = vld [vmem:[#allocation5 + $0x68] sm:$0xff]
        %v5596 = vld [vmem:[#allocation5 + $0x70] sm:$0xff]
        %v5597 = vld [vmem:[#allocation5 + $0x78] sm:$0xff]
        %v5598 = vld [vmem:[#allocation5 + $0x80] sm:$0xff]
        %v5599 = vld [vmem:[#allocation5 + $0x88] sm:$0xff]
        %v5600 = vld [vmem:[#allocation5 + $0x90] sm:$0xff]
        %v5601 = vld [vmem:[#allocation5 + $0x98] sm:$0xff]
        %v5602 = vld [vmem:[#allocation5 + $0xa0] sm:$0xff]
        %v5603 = vld [vmem:[#allocation5 + $0xa8] sm:$0xff]
        %v5604 = vld [vmem:[#allocation5 + $0xb0] sm:$0xff]
        %v5605 = vld [vmem:[#allocation5 + $0xb8] sm:$0xff]
        %v5606 = vld [vmem:[#allocation5 + $0xc0] sm:$0xff]
        %v5607 = vld [vmem:[#allocation5 + $0xc8] sm:$0xff]
        %v5608 = vld [vmem:[#allocation5 + $0xd0] sm:$0xff]
        %v5609 = vld [vmem:[#allocation5 + $0xd8] sm:$0xff]
        %v5610 = vld [vmem:[#allocation5 + $0xe0] sm:$0xff]
        %v5611 = vld [vmem:[#allocation5 + $0xe8] sm:$0xff]
        %v5612 = vld [vmem:[#allocation5 + $0xf0] sm:$0xff]
        %v5613 = vld [vmem:[#allocation5 + $0xf8] sm:$0xff]
        %v5614 = vld [vmem:[#allocation5 + $0x100] sm:$0xff]
        %v5615 = vld [vmem:[#allocation5 + $0x108] sm:$0xff]
        %v5616 = vld [vmem:[#allocation5 + $0x110] sm:$0xff]
        %v5617 = vld [vmem:[#allocation5 + $0x118] sm:$0xff]
        %v5618 = vld [vmem:[#allocation5 + $0x120] sm:$0xff]
        %v5619 = vld [vmem:[#allocation5 + $0x128] sm:$0xff]
        %v5620 = vld [vmem:[#allocation5 + $0x130] sm:$0xff]
        %v5621 = vld [vmem:[#allocation5 + $0x138] sm:$0xff]
        %v5622 = vld [vmem:[#allocation5 + $0x140] sm:$0xff]
        %v5623 = vld [vmem:[#allocation5 + $0x148] sm:$0xff]
        %v5624 = vld [vmem:[#allocation5 + $0x150] sm:$0xff]
        %v5625 = vld [vmem:[#allocation5 + $0x158] sm:$0xff]
        %v5626 = vld [vmem:[#allocation5 + $0x160] sm:$0xff]
        %v5627 = vld [vmem:[#allocation5 + $0x168] sm:$0xff]
        %v5628 = vld [vmem:[#allocation5 + $0x170] sm:$0xff]
        %v5629 = vld [vmem:[#allocation5 + $0x178] sm:$0xff]
        %v5630 = vld [vmem:[#allocation5 + $0x180] sm:$0xff]
        %v5631 = vld [vmem:[#allocation5 + $0x188] sm:$0xff]
        %v5632 = vld [vmem:[#allocation5 + $0x190] sm:$0xff]
        %v5633 = vld [vmem:[#allocation5 + $0x198] sm:$0xff]
        %v5634 = vld [vmem:[#allocation5 + $0x1a0] sm:$0xff]
        %v5635 = vld [vmem:[#allocation5 + $0x1a8] sm:$0xff]
        %v5636 = vld [vmem:[#allocation5 + $0x1b0] sm:$0xff]
        %v5637 = vld [vmem:[#allocation5 + $0x1b8] sm:$0xff]
        %v5638 = vld [vmem:[#allocation5 + $0x1c0] sm:$0xff]
        %v5639 = vld [vmem:[#allocation5 + $0x1c8] sm:$0xff]
        %v5640 = vld [vmem:[#allocation5 + $0x1d0] sm:$0xff]
        %v5641 = vld [vmem:[#allocation5 + $0x1d8] sm:$0xff]
        %v5642 = vld [vmem:[#allocation5 + $0x1e0] sm:$0xff]
        %v5643 = vld [vmem:[#allocation5 + $0x1e8] sm:$0xff]
        %v5644 = vld [vmem:[#allocation5 + $0x1f0] sm:$0xff]
        %v5645 = vld [vmem:[#allocation5 + $0x1f8] sm:$0xff]
        %v5646 = vld [vmem:[#allocation5 + $0x200] sm:$0xff]
        %v5647 = vld [vmem:[#allocation5 + $0x208] sm:$0xff]
        %v5648 = vld [vmem:[#allocation5 + $0x210] sm:$0xff]
        %v5649 = vld [vmem:[#allocation5 + $0x218] sm:$0xff]
        %v5650 = vld [vmem:[#allocation5 + $0x220] sm:$0xff]
        %v5651 = vld [vmem:[#allocation5 + $0x228] sm:$0xff]
        %v5652 = vld [vmem:[#allocation5 + $0x230] sm:$0xff]
        %v5653 = vld [vmem:[#allocation5 + $0x238] sm:$0xff]
        %v5726 = vunpack.c.l.b16 %v5582
        %v5727 = vunpack.c.h.b16 %v5582
        %v5728 = vunpack.c.l.b16 %v5583
        %v5729 = vunpack.c.h.b16 %v5583
        %v5730 = vunpack.c.l.b16 %v5584
        %v5731 = vunpack.c.h.b16 %v5584
        %v5732 = vunpack.c.l.b16 %v5585
        %v5733 = vunpack.c.h.b16 %v5585
        %v5734 = vunpack.c.l.b16 %v5586
        %v5735 = vunpack.c.h.b16 %v5586
        %v5736 = vunpack.c.l.b16 %v5587
        %v5737 = vunpack.c.h.b16 %v5587
        %v5738 = vunpack.c.l.b16 %v5588
        %v5739 = vunpack.c.h.b16 %v5588
        %v5740 = vunpack.c.l.b16 %v5589
        %v5741 = vunpack.c.h.b16 %v5589
        %v5742 = vunpack.c.l.b16 %v5590
        %v5743 = vunpack.c.h.b16 %v5590
        %v5744 = vunpack.c.l.b16 %v5591
        %v5745 = vunpack.c.h.b16 %v5591
        %v5746 = vunpack.c.l.b16 %v5592
        %v5747 = vunpack.c.h.b16 %v5592
        %v5748 = vunpack.c.l.b16 %v5593
        %v5749 = vunpack.c.h.b16 %v5593
        %v5750 = vunpack.c.l.b16 %v5594
        %v5751 = vunpack.c.h.b16 %v5594
        %v5752 = vunpack.c.l.b16 %v5595
        %v5753 = vunpack.c.h.b16 %v5595
        %v5754 = vunpack.c.l.b16 %v5596
        %v5755 = vunpack.c.h.b16 %v5596
        %v5756 = vunpack.c.l.b16 %v5597
        %v5757 = vunpack.c.h.b16 %v5597
        %v5758 = vunpack.c.l.b16 %v5598
        %v5759 = vunpack.c.h.b16 %v5598
        %v5760 = vunpack.c.l.b16 %v5599
        %v5761 = vunpack.c.h.b16 %v5599
        %v5762 = vunpack.c.l.b16 %v5600
        %v5763 = vunpack.c.h.b16 %v5600
        %v5764 = vunpack.c.l.b16 %v5601
        %v5765 = vunpack.c.h.b16 %v5601
        %v5766 = vunpack.c.l.b16 %v5602
        %v5767 = vunpack.c.h.b16 %v5602
        %v5768 = vunpack.c.l.b16 %v5603
        %v5769 = vunpack.c.h.b16 %v5603
        %v5770 = vunpack.c.l.b16 %v5604
        %v5771 = vunpack.c.h.b16 %v5604
        %v5772 = vunpack.c.l.b16 %v5605
        %v5773 = vunpack.c.h.b16 %v5605
        %v5774 = vunpack.c.l.b16 %v5606
        %v5775 = vunpack.c.h.b16 %v5606
        %v5776 = vunpack.c.l.b16 %v5607
        %v5777 = vunpack.c.h.b16 %v5607
        %v5778 = vunpack.c.l.b16 %v5608
        %v5779 = vunpack.c.h.b16 %v5608
        %v5780 = vunpack.c.l.b16 %v5609
        %v5781 = vunpack.c.h.b16 %v5609
        %v5782 = vunpack.c.l.b16 %v5610
        %v5783 = vunpack.c.h.b16 %v5610
        %v5784 = vunpack.c.l.b16 %v5611
        %v5785 = vunpack.c.h.b16 %v5611
        %v5786 = vunpack.c.l.b16 %v5612
        %v5787 = vunpack.c.h.b16 %v5612
        %v5788 = vunpack.c.l.b16 %v5613
        %v5789 = vunpack.c.h.b16 %v5613
        %v5790 = vunpack.c.l.b16 %v5614
        %v5791 = vunpack.c.h.b16 %v5614
        %v5792 = vunpack.c.l.b16 %v5615
        %v5793 = vunpack.c.h.b16 %v5615
        %v5794 = vunpack.c.l.b16 %v5616
        %v5795 = vunpack.c.h.b16 %v5616
        %v5796 = vunpack.c.l.b16 %v5617
        %v5797 = vunpack.c.h.b16 %v5617
        %v5798 = vunpack.c.l.b16 %v5618
        %v5799 = vunpack.c.h.b16 %v5618
        %v5800 = vunpack.c.l.b16 %v5619
        %v5801 = vunpack.c.h.b16 %v5619
        %v5802 = vunpack.c.l.b16 %v5620
        %v5803 = vunpack.c.h.b16 %v5620
        %v5804 = vunpack.c.l.b16 %v5621
        %v5805 = vunpack.c.h.b16 %v5621
        %v5806 = vunpack.c.l.b16 %v5622
        %v5807 = vunpack.c.h.b16 %v5622
        %v5808 = vunpack.c.l.b16 %v5623
        %v5809 = vunpack.c.h.b16 %v5623
        %v5810 = vunpack.c.l.b16 %v5624
        %v5811 = vunpack.c.h.b16 %v5624
        %v5812 = vunpack.c.l.b16 %v5625
        %v5813 = vunpack.c.h.b16 %v5625
        %v5814 = vunpack.c.l.b16 %v5626
        %v5815 = vunpack.c.h.b16 %v5626
        %v5816 = vunpack.c.l.b16 %v5627
        %v5817 = vunpack.c.h.b16 %v5627
        %v5818 = vunpack.c.l.b16 %v5628
        %v5819 = vunpack.c.h.b16 %v5628
        %v5820 = vunpack.c.l.b16 %v5629
        %v5821 = vunpack.c.h.b16 %v5629
        %v5822 = vunpack.c.l.b16 %v5630
        %v5823 = vunpack.c.h.b16 %v5630
        %v5824 = vunpack.c.l.b16 %v5631
        %v5825 = vunpack.c.h.b16 %v5631
        %v5826 = vunpack.c.l.b16 %v5632
        %v5827 = vunpack.c.h.b16 %v5632
        %v5828 = vunpack.c.l.b16 %v5633
        %v5829 = vunpack.c.h.b16 %v5633
        %v5830 = vunpack.c.l.b16 %v5634
        %v5831 = vunpack.c.h.b16 %v5634
        %v5832 = vunpack.c.l.b16 %v5635
        %v5833 = vunpack.c.h.b16 %v5635
        %v5834 = vunpack.c.l.b16 %v5636
        %v5835 = vunpack.c.h.b16 %v5636
        %v5836 = vunpack.c.l.b16 %v5637
        %v5837 = vunpack.c.h.b16 %v5637
        %v5838 = vunpack.c.l.b16 %v5638
        %v5839 = vunpack.c.h.b16 %v5638
        %v5840 = vunpack.c.l.b16 %v5639
        %v5841 = vunpack.c.h.b16 %v5639
        %v5842 = vunpack.c.l.b16 %v5640
        %v5843 = vunpack.c.h.b16 %v5640
        %v5844 = vunpack.c.l.b16 %v5641
        %v5845 = vunpack.c.h.b16 %v5641
        %v5846 = vunpack.c.l.b16 %v5642
        %v5847 = vunpack.c.h.b16 %v5642
        %v5848 = vunpack.c.l.b16 %v5643
        %v5849 = vunpack.c.h.b16 %v5643
        %v5850 = vunpack.c.l.b16 %v5644
        %v5851 = vunpack.c.h.b16 %v5644
        %v5852 = vunpack.c.l.b16 %v5645
        %v5853 = vunpack.c.h.b16 %v5645
        %v5854 = vunpack.c.l.b16 %v5646
        %v5855 = vunpack.c.h.b16 %v5646
        %v5856 = vunpack.c.l.b16 %v5647
        %v5857 = vunpack.c.h.b16 %v5647
        %v5858 = vunpack.c.l.b16 %v5648
        %v5859 = vunpack.c.h.b16 %v5648
        %v5860 = vunpack.c.l.b16 %v5649
        %v5861 = vunpack.c.h.b16 %v5649
        %v5862 = vunpack.c.l.b16 %v5650
        %v5863 = vunpack.c.h.b16 %v5650
        %v5864 = vunpack.c.l.b16 %v5651
        %v5865 = vunpack.c.h.b16 %v5651
        %v5866 = vunpack.c.l.b16 %v5652
        %v5867 = vunpack.c.h.b16 %v5652
        %v5868 = vunpack.c.l.b16 %v5653
        %v5869 = vunpack.c.h.b16 %v5653
        %v5870 = vpack.c.b16 %v5728, %v5726
        %v5871 = vpack.c.b16 %v5729, %v5727
        %v5872 = vpack.c.b16 %v5732, %v5730
        %v5873 = vpack.c.b16 %v5733, %v5731
        %v5874 = vpack.c.b16 %v5736, %v5734
        %v5875 = vpack.c.b16 %v5737, %v5735
        %v5876 = vpack.c.b16 %v5740, %v5738
        %v5877 = vpack.c.b16 %v5741, %v5739
        %v5878 = vpack.c.b16 %v5744, %v5742
        %v5879 = vpack.c.b16 %v5745, %v5743
        %v5880 = vpack.c.b16 %v5748, %v5746
        %v5881 = vpack.c.b16 %v5749, %v5747
        %v5882 = vpack.c.b16 %v5752, %v5750
        %v5883 = vpack.c.b16 %v5753, %v5751
        %v5884 = vpack.c.b16 %v5756, %v5754
        %v5885 = vpack.c.b16 %v5757, %v5755
        %v5886 = vpack.c.b16 %v5760, %v5758
        %v5887 = vpack.c.b16 %v5761, %v5759
        %v5888 = vpack.c.b16 %v5764, %v5762
        %v5889 = vpack.c.b16 %v5765, %v5763
        %v5890 = vpack.c.b16 %v5768, %v5766
        %v5891 = vpack.c.b16 %v5769, %v5767
        %v5892 = vpack.c.b16 %v5772, %v5770
        %v5893 = vpack.c.b16 %v5773, %v5771
        %v5894 = vpack.c.b16 %v5776, %v5774
        %v5895 = vpack.c.b16 %v5777, %v5775
        %v5896 = vpack.c.b16 %v5780, %v5778
        %v5897 = vpack.c.b16 %v5781, %v5779
        %v5898 = vpack.c.b16 %v5784, %v5782
        %v5899 = vpack.c.b16 %v5785, %v5783
        %v5900 = vpack.c.b16 %v5788, %v5786
        %v5901 = vpack.c.b16 %v5789, %v5787
        %v5902 = vpack.c.b16 %v5792, %v5790
        %v5903 = vpack.c.b16 %v5793, %v5791
        %v5904 = vpack.c.b16 %v5796, %v5794
        %v5905 = vpack.c.b16 %v5797, %v5795
        %v5906 = vpack.c.b16 %v5800, %v5798
        %v5907 = vpack.c.b16 %v5801, %v5799
        %v5908 = vpack.c.b16 %v5804, %v5802
        %v5909 = vpack.c.b16 %v5805, %v5803
        %v5910 = vpack.c.b16 %v5808, %v5806
        %v5911 = vpack.c.b16 %v5809, %v5807
        %v5912 = vpack.c.b16 %v5812, %v5810
        %v5913 = vpack.c.b16 %v5813, %v5811
        %v5914 = vpack.c.b16 %v5816, %v5814
        %v5915 = vpack.c.b16 %v5817, %v5815
        %v5916 = vpack.c.b16 %v5820, %v5818
        %v5917 = vpack.c.b16 %v5821, %v5819
        %v5918 = vpack.c.b16 %v5824, %v5822
        %v5919 = vpack.c.b16 %v5825, %v5823
        %v5920 = vpack.c.b16 %v5828, %v5826
        %v5921 = vpack.c.b16 %v5829, %v5827
        %v5922 = vpack.c.b16 %v5832, %v5830
        %v5923 = vpack.c.b16 %v5833, %v5831
        %v5924 = vpack.c.b16 %v5836, %v5834
        %v5925 = vpack.c.b16 %v5837, %v5835
        %v5926 = vpack.c.b16 %v5840, %v5838
        %v5927 = vpack.c.b16 %v5841, %v5839
        %v5928 = vpack.c.b16 %v5844, %v5842
        %v5929 = vpack.c.b16 %v5845, %v5843
        %v5930 = vpack.c.b16 %v5848, %v5846
        %v5931 = vpack.c.b16 %v5849, %v5847
        %v5932 = vpack.c.b16 %v5852, %v5850
        %v5933 = vpack.c.b16 %v5853, %v5851
        %v5934 = vpack.c.b16 %v5856, %v5854
        %v5935 = vpack.c.b16 %v5857, %v5855
        %v5936 = vpack.c.b16 %v5860, %v5858
        %v5937 = vpack.c.b16 %v5861, %v5859
        %v5938 = vpack.c.b16 %v5864, %v5862
        %v5939 = vpack.c.b16 %v5865, %v5863
        %v5940 = vpack.c.b16 %v5868, %v5866
        %v5941 = vpack.c.b16 %v5869, %v5867
        %6014 = vmatpush.bf16.msra.mxu0 %v5884
        %6015 = vmatpush.bf16.msra.mxu0 %v5882
        %6016 = vmatpush.bf16.msra.mxu0 %v5880
        %6017 = vmatpush.bf16.msra.mxu0 %v5878
        %6018 = vmatpush.bf16.msra.mxu0 %v5876
        %6019 = vmatpush.bf16.msra.mxu0 %v5874
        %6020 = vmatpush.bf16.msra.mxu0 %v5872
        %6021 = vmatpush.bf16.msra.mxu0 %v5870
        %6022 = vmatmul.bf16.gmra.mxu0 %v4100
        %v6023 = vpop.f32.mrf.mxu0
        %v6024 = vadd.f32 0.0, %v6023
        %v6025 = vpop.f32.mrf.mxu0
        %v6026 = vadd.f32 0.0, %v6025
        %6027 = vmatmul.bf16.gmra.mxu0 %v4105
        %v6028 = vpop.f32.mrf.mxu0
        %v6029 = vadd.f32 0.0, %v6028
        %v6030 = vpop.f32.mrf.mxu0
        %v6031 = vadd.f32 0.0, %v6030
        %6032 = vmatmul.bf16.gmra.mxu0 %v4110
        %v6033 = vpop.f32.mrf.mxu0
        %v6034 = vadd.f32 0.0, %v6033
        %v6035 = vpop.f32.mrf.mxu0
        %v6036 = vadd.f32 0.0, %v6035
        %6037 = vmatmul.bf16.gmra.mxu0 %v4115
        %v6038 = vpop.f32.mrf.mxu0
        %v6039 = vadd.f32 0.0, %v6038
        %v6040 = vpop.f32.mrf.mxu0
        %v6041 = vadd.f32 0.0, %v6040
        %6042 = vdwg.mxu0
        %6043 = vmatpush.bf16.msra.mxu0 %v5900
        %6044 = vmatpush.bf16.msra.mxu0 %v5898
        %6045 = vmatpush.bf16.msra.mxu0 %v5896
        %6046 = vmatpush.bf16.msra.mxu0 %v5894
        %6047 = vmatpush.bf16.msra.mxu0 %v5892
        %6048 = vmatpush.bf16.msra.mxu0 %v5890
        %6049 = vmatpush.bf16.msra.mxu0 %v5888
        %6050 = vmatpush.bf16.msra.mxu0 %v5886
        %6051 = vmatmul.bf16.gmra.mxu0 %v4101
        %v6052 = vpop.f32.mrf.mxu0
        %v6053 = vadd.f32 %v6024, %v6052
        %v6054 = vpop.f32.mrf.mxu0
        %v6055 = vadd.f32 %v6026, %v6054
        %6056 = vmatmul.bf16.gmra.mxu0 %v4106
        %v6057 = vpop.f32.mrf.mxu0
        %v6058 = vadd.f32 %v6029, %v6057
        %v6059 = vpop.f32.mrf.mxu0
        %v6060 = vadd.f32 %v6031, %v6059
        %6061 = vmatmul.bf16.gmra.mxu0 %v4111
        %v6062 = vpop.f32.mrf.mxu0
        %v6063 = vadd.f32 %v6034, %v6062
        %v6064 = vpop.f32.mrf.mxu0
        %v6065 = vadd.f32 %v6036, %v6064
        %6066 = vmatmul.bf16.gmra.mxu0 %v4116
        %v6067 = vpop.f32.mrf.mxu0
        %v6068 = vadd.f32 %v6039, %v6067
        %v6069 = vpop.f32.mrf.mxu0
        %v6070 = vadd.f32 %v6041, %v6069
        %6071 = vdwg.mxu0
        %6072 = vmatpush.bf16.msra.mxu0 %v5916
        %6073 = vmatpush.bf16.msra.mxu0 %v5914
        %6074 = vmatpush.bf16.msra.mxu0 %v5912
        %6075 = vmatpush.bf16.msra.mxu0 %v5910
        %6076 = vmatpush.bf16.msra.mxu0 %v5908
        %6077 = vmatpush.bf16.msra.mxu0 %v5906
        %6078 = vmatpush.bf16.msra.mxu0 %v5904
        %6079 = vmatpush.bf16.msra.mxu0 %v5902
        %6080 = vmatmul.bf16.gmra.mxu0 %v4102
        %v6081 = vpop.f32.mrf.mxu0
        %v6082 = vadd.f32 %v6053, %v6081
        %v6083 = vpop.f32.mrf.mxu0
        %v6084 = vadd.f32 %v6055, %v6083
        %6085 = vmatmul.bf16.gmra.mxu0 %v4107
        %v6086 = vpop.f32.mrf.mxu0
        %v6087 = vadd.f32 %v6058, %v6086
        %v6088 = vpop.f32.mrf.mxu0
        %v6089 = vadd.f32 %v6060, %v6088
        %6090 = vmatmul.bf16.gmra.mxu0 %v4112
        %v6091 = vpop.f32.mrf.mxu0
        %v6092 = vadd.f32 %v6063, %v6091
        %v6093 = vpop.f32.mrf.mxu0
        %v6094 = vadd.f32 %v6065, %v6093
        %6095 = vmatmul.bf16.gmra.mxu0 %v4117
        %v6096 = vpop.f32.mrf.mxu0
        %v6097 = vadd.f32 %v6068, %v6096
        %v6098 = vpop.f32.mrf.mxu0
        %v6099 = vadd.f32 %v6070, %v6098
        %6100 = vdwg.mxu0
        %6101 = vmatpush.bf16.msra.mxu0 %v5932
        %6102 = vmatpush.bf16.msra.mxu0 %v5930
        %6103 = vmatpush.bf16.msra.mxu0 %v5928
        %6104 = vmatpush.bf16.msra.mxu0 %v5926
        %6105 = vmatpush.bf16.msra.mxu0 %v5924
        %6106 = vmatpush.bf16.msra.mxu0 %v5922
        %6107 = vmatpush.bf16.msra.mxu0 %v5920
        %6108 = vmatpush.bf16.msra.mxu0 %v5918
        %6109 = vmatmul.bf16.gmra.mxu0 %v4103
        %v6110 = vpop.f32.mrf.mxu0
        %v6111 = vadd.f32 %v6082, %v6110
        %v6112 = vpop.f32.mrf.mxu0
        %v6113 = vadd.f32 %v6084, %v6112
        %6114 = vmatmul.bf16.gmra.mxu0 %v4108
        %v6115 = vpop.f32.mrf.mxu0
        %v6116 = vadd.f32 %v6087, %v6115
        %v6117 = vpop.f32.mrf.mxu0
        %v6118 = vadd.f32 %v6089, %v6117
        %6119 = vmatmul.bf16.gmra.mxu0 %v4113
        %v6120 = vpop.f32.mrf.mxu0
        %v6121 = vadd.f32 %v6092, %v6120
        %v6122 = vpop.f32.mrf.mxu0
        %v6123 = vadd.f32 %v6094, %v6122
        %6124 = vmatmul.bf16.gmra.mxu0 %v4118
        %v6125 = vpop.f32.mrf.mxu0
        %v6126 = vadd.f32 %v6097, %v6125
        %v6127 = vpop.f32.mrf.mxu0
        %v6128 = vadd.f32 %v6099, %v6127
        %6129 = vdwg.mxu0
        %6130 = vmatpush.bf16.msra.mxu0 0
        %6131 = vmatpush.bf16.msra.mxu0 0
        %6132 = vmatpush.bf16.msra.mxu0 0
        %6133 = vmatpush.bf16.msra.mxu0 0
        %6134 = vmatpush.bf16.msra.mxu0 %v5940
        %6135 = vmatpush.bf16.msra.mxu0 %v5938
        %6136 = vmatpush.bf16.msra.mxu0 %v5936
        %6137 = vmatpush.bf16.msra.mxu0 %v5934
        %6138 = vmatmul.bf16.gmra.mxu0 %v4497
        %v6139 = vpop.f32.mrf.mxu0
        %v6140 = vadd.f32 %v6111, %v6139
        %v6141 = vpop.f32.mrf.mxu0
        %v6142 = vadd.f32 %v6113, %v6141
        %6143 = vmatmul.bf16.gmra.mxu0 %v4500
        %v6144 = vpop.f32.mrf.mxu0
        %v6145 = vadd.f32 %v6116, %v6144
        %v6146 = vpop.f32.mrf.mxu0
        %v6147 = vadd.f32 %v6118, %v6146
        %6148 = vmatmul.bf16.gmra.mxu0 %v4503
        %v6149 = vpop.f32.mrf.mxu0
        %v6150 = vadd.f32 %v6121, %v6149
        %v6151 = vpop.f32.mrf.mxu0
        %v6152 = vadd.f32 %v6123, %v6151
        %6153 = vmatmul.bf16.gmra.mxu0 %v4506
        %v6154 = vpop.f32.mrf.mxu0
        %v6155 = vadd.f32 %v6126, %v6154
        %v6156 = vpop.f32.mrf.mxu0
        %v6157 = vadd.f32 %v6128, %v6156
        %6158 = vdwg.mxu0
        %6159 = vmatpush.bf16.msra.mxu0 %v5885
        %6160 = vmatpush.bf16.msra.mxu0 %v5883
        %6161 = vmatpush.bf16.msra.mxu0 %v5881
        %6162 = vmatpush.bf16.msra.mxu0 %v5879
        %6163 = vmatpush.bf16.msra.mxu0 %v5877
        %6164 = vmatpush.bf16.msra.mxu0 %v5875
        %6165 = vmatpush.bf16.msra.mxu0 %v5873
        %6166 = vmatpush.bf16.msra.mxu0 %v5871
        %6167 = vmatmul.bf16.gmra.mxu0 %v4100
        %v6168 = vpop.f32.mrf.mxu0
        %v6169 = vadd.f32 0.0, %v6168
        %v6170 = vpop.f32.mrf.mxu0
        %v6171 = vadd.f32 0.0, %v6170
        %6172 = vmatmul.bf16.gmra.mxu0 %v4105
        %v6173 = vpop.f32.mrf.mxu0
        %v6174 = vadd.f32 0.0, %v6173
        %v6175 = vpop.f32.mrf.mxu0
        %v6176 = vadd.f32 0.0, %v6175
        %6177 = vmatmul.bf16.gmra.mxu0 %v4110
        %v6178 = vpop.f32.mrf.mxu0
        %v6179 = vadd.f32 0.0, %v6178
        %v6180 = vpop.f32.mrf.mxu0
        %v6181 = vadd.f32 0.0, %v6180
        %6182 = vmatmul.bf16.gmra.mxu0 %v4115
        %v6183 = vpop.f32.mrf.mxu0
        %v6184 = vadd.f32 0.0, %v6183
        %v6185 = vpop.f32.mrf.mxu0
        %v6186 = vadd.f32 0.0, %v6185
        %6187 = vdwg.mxu0
        %6188 = vmatpush.bf16.msra.mxu0 %v5901
        %6189 = vmatpush.bf16.msra.mxu0 %v5899
        %6190 = vmatpush.bf16.msra.mxu0 %v5897
        %6191 = vmatpush.bf16.msra.mxu0 %v5895
        %6192 = vmatpush.bf16.msra.mxu0 %v5893
        %6193 = vmatpush.bf16.msra.mxu0 %v5891
        %6194 = vmatpush.bf16.msra.mxu0 %v5889
        %6195 = vmatpush.bf16.msra.mxu0 %v5887
        %6196 = vmatmul.bf16.gmra.mxu0 %v4101
        %v6197 = vpop.f32.mrf.mxu0
        %v6198 = vadd.f32 %v6169, %v6197
        %v6199 = vpop.f32.mrf.mxu0
        %v6200 = vadd.f32 %v6171, %v6199
        %6201 = vmatmul.bf16.gmra.mxu0 %v4106
        %v6202 = vpop.f32.mrf.mxu0
        %v6203 = vadd.f32 %v6174, %v6202
        %v6204 = vpop.f32.mrf.mxu0
        %v6205 = vadd.f32 %v6176, %v6204
        %6206 = vmatmul.bf16.gmra.mxu0 %v4111
        %v6207 = vpop.f32.mrf.mxu0
        %v6208 = vadd.f32 %v6179, %v6207
        %v6209 = vpop.f32.mrf.mxu0
        %v6210 = vadd.f32 %v6181, %v6209
        %6211 = vmatmul.bf16.gmra.mxu0 %v4116
        %v6212 = vpop.f32.mrf.mxu0
        %v6213 = vadd.f32 %v6184, %v6212
        %v6214 = vpop.f32.mrf.mxu0
        %v6215 = vadd.f32 %v6186, %v6214
        %6216 = vdwg.mxu0
        %6217 = vmatpush.bf16.msra.mxu0 %v5917
        %6218 = vmatpush.bf16.msra.mxu0 %v5915
        %6219 = vmatpush.bf16.msra.mxu0 %v5913
        %6220 = vmatpush.bf16.msra.mxu0 %v5911
        %6221 = vmatpush.bf16.msra.mxu0 %v5909
        %6222 = vmatpush.bf16.msra.mxu0 %v5907
        %6223 = vmatpush.bf16.msra.mxu0 %v5905
        %6224 = vmatpush.bf16.msra.mxu0 %v5903
        %6225 = vmatmul.bf16.gmra.mxu0 %v4102
        %v6226 = vpop.f32.mrf.mxu0
        %v6227 = vadd.f32 %v6198, %v6226
        %v6228 = vpop.f32.mrf.mxu0
        %v6229 = vadd.f32 %v6200, %v6228
        %6230 = vmatmul.bf16.gmra.mxu0 %v4107
        %v6231 = vpop.f32.mrf.mxu0
        %v6232 = vadd.f32 %v6203, %v6231
        %v6233 = vpop.f32.mrf.mxu0
        %v6234 = vadd.f32 %v6205, %v6233
        %6235 = vmatmul.bf16.gmra.mxu0 %v4112
        %v6236 = vpop.f32.mrf.mxu0
        %v6237 = vadd.f32 %v6208, %v6236
        %v6238 = vpop.f32.mrf.mxu0
        %v6239 = vadd.f32 %v6210, %v6238
        %6240 = vmatmul.bf16.gmra.mxu0 %v4117
        %v6241 = vpop.f32.mrf.mxu0
        %v6242 = vadd.f32 %v6213, %v6241
        %v6243 = vpop.f32.mrf.mxu0
        %v6244 = vadd.f32 %v6215, %v6243
        %6245 = vdwg.mxu0
        %6246 = vmatpush.bf16.msra.mxu0 %v5933
        %6247 = vmatpush.bf16.msra.mxu0 %v5931
        %6248 = vmatpush.bf16.msra.mxu0 %v5929
        %6249 = vmatpush.bf16.msra.mxu0 %v5927
        %6250 = vmatpush.bf16.msra.mxu0 %v5925
        %6251 = vmatpush.bf16.msra.mxu0 %v5923
        %6252 = vmatpush.bf16.msra.mxu0 %v5921
        %6253 = vmatpush.bf16.msra.mxu0 %v5919
        %6254 = vmatmul.bf16.gmra.mxu0 %v4103
        %v6255 = vpop.f32.mrf.mxu0
        %v6256 = vadd.f32 %v6227, %v6255
        %v6257 = vpop.f32.mrf.mxu0
        %v6258 = vadd.f32 %v6229, %v6257
        %6259 = vmatmul.bf16.gmra.mxu0 %v4108
        %v6260 = vpop.f32.mrf.mxu0
        %v6261 = vadd.f32 %v6232, %v6260
        %v6262 = vpop.f32.mrf.mxu0
        %v6263 = vadd.f32 %v6234, %v6262
        %6264 = vmatmul.bf16.gmra.mxu0 %v4113
        %v6265 = vpop.f32.mrf.mxu0
        %v6266 = vadd.f32 %v6237, %v6265
        %v6267 = vpop.f32.mrf.mxu0
        %v6268 = vadd.f32 %v6239, %v6267
        %6269 = vmatmul.bf16.gmra.mxu0 %v4118
        %v6270 = vpop.f32.mrf.mxu0
        %v6271 = vadd.f32 %v6242, %v6270
        %v6272 = vpop.f32.mrf.mxu0
        %v6273 = vadd.f32 %v6244, %v6272
        %6274 = vdwg.mxu0
        %6275 = vmatpush.bf16.msra.mxu0 0
        %6276 = vmatpush.bf16.msra.mxu0 0
        %6277 = vmatpush.bf16.msra.mxu0 0
        %6278 = vmatpush.bf16.msra.mxu0 0
        %6279 = vmatpush.bf16.msra.mxu0 %v5941
        %6280 = vmatpush.bf16.msra.mxu0 %v5939
        %6281 = vmatpush.bf16.msra.mxu0 %v5937
        %6282 = vmatpush.bf16.msra.mxu0 %v5935
        %6283 = vmatmul.bf16.gmra.mxu0 %v4497
        %v6284 = vpop.f32.mrf.mxu0
        %v6285 = vadd.f32 %v6256, %v6284
        %v6286 = vpop.f32.mrf.mxu0
        %v6287 = vadd.f32 %v6258, %v6286
        %6288 = vmatmul.bf16.gmra.mxu0 %v4500
        %v6289 = vpop.f32.mrf.mxu0
        %v6290 = vadd.f32 %v6261, %v6289
        %v6291 = vpop.f32.mrf.mxu0
        %v6292 = vadd.f32 %v6263, %v6291
        %6293 = vmatmul.bf16.gmra.mxu0 %v4503
        %v6294 = vpop.f32.mrf.mxu0
        %v6295 = vadd.f32 %v6266, %v6294
        %v6296 = vpop.f32.mrf.mxu0
        %v6297 = vadd.f32 %v6268, %v6296
        %6298 = vmatmul.bf16.gmra.mxu0 %v4506
        %v6299 = vpop.f32.mrf.mxu0
        %v6300 = vadd.f32 %v6271, %v6299
        %v6301 = vpop.f32.mrf.mxu0
        %v6302 = vadd.f32 %v6273, %v6301
        %6303 = vdwg.mxu0
        %v6304 = vmul.f32 %v6140, %v4801
        %v6305 = vmul.f32 %v6285, %v4801
        %v6306 = vmul.f32 %v6142, %v4806
        %v6307 = vmul.f32 %v6287, %v4806
        %v6308 = vmul.f32 %v6145, %v4811
        %v6309 = vmul.f32 %v6290, %v4811
        %v6310 = vmul.f32 %v6147, %v4816
        %v6311 = vmul.f32 %v6292, %v4816
        %v6312 = vmul.f32 %v6150, %v4821
        %v6313 = vmul.f32 %v6295, %v4821
        %v6314 = vmul.f32 %v6152, %v4826
        %v6315 = vmul.f32 %v6297, %v4826
        %v6316 = vmul.f32 %v6155, %v4831
        %v6317 = vmul.f32 %v6300, %v4831
        %v6318 = vmul.f32 %v6157, %v4836
        %v6319 = vmul.f32 %v6302, %v4836
        %v6320 = vadd.f32 %v6304, %v4857
        %v6321 = vadd.f32 %v6305, %v4857
        %v6322 = vadd.f32 %v6306, %v4862
        %v6323 = vadd.f32 %v6307, %v4862
        %v6324 = vadd.f32 %v6308, %v4867
        %v6325 = vadd.f32 %v6309, %v4867
        %v6326 = vadd.f32 %v6310, %v4872
        %v6327 = vadd.f32 %v6311, %v4872
        %v6328 = vadd.f32 %v6312, %v4877
        %v6329 = vadd.f32 %v6313, %v4877
        %v6330 = vadd.f32 %v6314, %v4882
        %v6331 = vadd.f32 %v6315, %v4882
        %v6332 = vadd.f32 %v6316, %v4887
        %v6333 = vadd.f32 %v6317, %v4887
        %v6334 = vadd.f32 %v6318, %v4892
        %v6335 = vadd.f32 %v6319, %v4892
        %v6336 = vmax.f32 %v6320, 0.0
        %v6337 = vmax.f32 %v6321, 0.0
        %v6338 = vmax.f32 %v6322, 0.0
        %v6339 = vmax.f32 %v6323, 0.0
        %v6340 = vmax.f32 %v6324, 0.0
        %v6341 = vmax.f32 %v6325, 0.0
        %v6342 = vmax.f32 %v6326, 0.0
        %v6343 = vmax.f32 %v6327, 0.0
        %v6344 = vmax.f32 %v6328, 0.0
        %v6345 = vmax.f32 %v6329, 0.0
        %v6346 = vmax.f32 %v6330, 0.0
        %v6347 = vmax.f32 %v6331, 0.0
        %v6348 = vmax.f32 %v6332, 0.0
        %v6349 = vmax.f32 %v6333, 0.0
        %v6350 = vmax.f32 %v6334, 0.0
        %v6351 = vmax.f32 %v6335, 0.0
        %v6352 = vmul.f32 %v6336, %v1864
        %v6353 = vmul.f32 %v6337, %v1865
        %v6354 = vmul.f32 %v6338, %v1864
        %v6355 = vmul.f32 %v6339, %v1865
        %v6356 = vmul.f32 %v6340, %v1864
        %v6357 = vmul.f32 %v6341, %v1865
        %v6358 = vmul.f32 %v6342, %v1864
        %v6359 = vmul.f32 %v6343, %v1865
        %v6360 = vmul.f32 %v6344, %v1864
        %v6361 = vmul.f32 %v6345, %v1865
        %v6362 = vmul.f32 %v6346, %v1864
        %v6363 = vmul.f32 %v6347, %v1865
        %v6364 = vmul.f32 %v6348, %v1864
        %v6365 = vmul.f32 %v6349, %v1865
        %v6366 = vmul.f32 %v6350, %v1864
        %v6367 = vmul.f32 %v6351, %v1865
        %v6368 = vpack.c.bf16 %v6353, %v6352
        %v6369 = vpack.c.bf16 %v6355, %v6354
        %v6370 = vpack.c.bf16 %v6357, %v6356
        %v6371 = vpack.c.bf16 %v6359, %v6358
        %v6372 = vpack.c.bf16 %v6361, %v6360
        %v6373 = vpack.c.bf16 %v6363, %v6362
        %v6374 = vpack.c.bf16 %v6365, %v6364
        %v6375 = vpack.c.bf16 %v6367, %v6366
        %6384 = vrot.lane.b32.xlu0 %v6368, 35
        %v6385 = vpop.permute.xlu0 %6384
        %6386 = vrot.lane.b32.xlu0 %v6369, 35
        %v6387 = vpop.permute.xlu0 %6386
        %6388 = vrot.lane.b32.xlu0 %v6370, 35
        %v6389 = vpop.permute.xlu0 %6388
        %6390 = vrot.lane.b32.xlu0 %v6371, 35
        %v6391 = vpop.permute.xlu0 %6390
        %6392 = vrot.lane.b32.xlu0 %v6372, 35
        %v6393 = vpop.permute.xlu0 %6392
        %6394 = vrot.lane.b32.xlu0 %v6373, 35
        %v6395 = vpop.permute.xlu0 %6394
        %6396 = vrot.lane.b32.xlu0 %v6374, 35
        %v6397 = vpop.permute.xlu0 %6396
        %6398 = vrot.lane.b32.xlu0 %v6375, 35
        %v6399 = vpop.permute.xlu0 %6398
        %v6400 = vrot.slane %v6385, 4
        %v6401 = vrot.slane %v6387, 4
        %v6402 = vrot.slane %v6389, 4
        %v6403 = vrot.slane %v6391, 4
        %v6404 = vrot.slane %v6393, 4
        %v6405 = vrot.slane %v6395, 4
        %v6406 = vrot.slane %v6397, 4
        %v6407 = vrot.slane %v6399, 4
        %v6408 = vsel %vm3361, %v6400, %v6385
        %v6409 = vsel %vm3361, %v6401, %v6387
        %v6410 = vsel %vm3361, %v6402, %v6389
        %v6411 = vsel %vm3361, %v6403, %v6391
        %v6412 = vsel %vm3361, %v6404, %v6393
        %v6413 = vsel %vm3361, %v6405, %v6395
        %v6414 = vsel %vm3361, %v6406, %v6397
        %v6415 = vsel %vm3361, %v6407, %v6399
        %6424 = vst.msk [vmem:[#allocation2 + $0x4] sm:$0xff] %vm3380, %v6408
        %6425 = vst.msk [vmem:[#allocation2 + $0x10] sm:$0xff] %vm3380, %v6409
        %6426 = vst.msk [vmem:[#allocation2 + $0x1c] sm:$0xff] %vm3380, %v6410
        %6427 = vst.msk [vmem:[#allocation2 + $0x28] sm:$0xff] %vm3380, %v6411
        %6428 = vst.msk [vmem:[#allocation2 + $0x34] sm:$0xff] %vm3380, %v6412
        %6429 = vst.msk [vmem:[#allocation2 + $0x40] sm:$0xff] %vm3380, %v6413
        %6430 = vst.msk [vmem:[#allocation2 + $0x4c] sm:$0xff] %vm3380, %v6414
        %6431 = vst.msk [vmem:[#allocation2 + $0x58] sm:$0xff] %vm3380, %v6415
      $region49: #{dncnn_forward.1} parent=43 // loop_footer
        %s313 = sadd.s32 1, %s309
      $region50: #{dncnn_forward.1} parent=43 // loop_footer_branch
        %308 = sbr.rel target = $region46
      $region51: #{dncnn_forward.1} parent=43 // loop_exit
        _
      %v6432 = vld [vmem:[%s4] sm:$0xff]
      %v6433 = vld [vmem:[%s4 + $0x8] sm:$0x3]
      %v6434 = vld [vmem:[#allocation2] sm:$0xff]
      %v6435 = vld [vmem:[#allocation2 + $0xc] sm:$0xff]
      %v6436 = vld [vmem:[#allocation2 + $0x18] sm:$0xff]
      %v6437 = vld [vmem:[#allocation2 + $0x24] sm:$0xff]
      %v6438 = vld [vmem:[#allocation2 + $0x30] sm:$0xff]
      %v6439 = vld [vmem:[#allocation2 + $0x3c] sm:$0xff]
      %v6440 = vld [vmem:[#allocation2 + $0x48] sm:$0xff]
      %v6441 = vld [vmem:[#allocation2 + $0x54] sm:$0xff]
      %vm6442 = vcmask 1043456
      %vm6443 = vcmask 130052
      %vm6444 = vmor %vm6443, %vm6442
      %6445 = vst.msk [vmem:[#allocation4] sm:$0xff] %vm6444, %v6434
      %6446 = vst.msk [vmem:[#allocation4 + $0x8] sm:$0xff] %vm6444, %v6435
      %6447 = vst.msk [vmem:[#allocation4 + $0x10] sm:$0xff] %vm6444, %v6436
      %6448 = vst.msk [vmem:[#allocation4 + $0x18] sm:$0xff] %vm6444, %v6437
      %6449 = vst.msk [vmem:[#allocation4 + $0x20] sm:$0xff] %vm6444, %v6438
      %6450 = vst.msk [vmem:[#allocation4 + $0x28] sm:$0xff] %vm6444, %v6439
      %6451 = vst.msk [vmem:[#allocation4 + $0x30] sm:$0xff] %vm6444, %v6440
      %6452 = vst.msk [vmem:[#allocation4 + $0x38] sm:$0xff] %vm6444, %v6441
      %v6453 = vld [vmem:[#allocation2] sm:$0xff]
      %v6454 = vld [vmem:[#allocation2 + $0xc] sm:$0xff]
      %v6455 = vld [vmem:[#allocation2 + $0x18] sm:$0xff]
      %v6456 = vld [vmem:[#allocation2 + $0x24] sm:$0xff]
      %v6457 = vld [vmem:[#allocation2 + $0x30] sm:$0xff]
      %v6458 = vld [vmem:[#allocation2 + $0x3c] sm:$0xff]
      %v6459 = vld [vmem:[#allocation2 + $0x48] sm:$0xff]
      %v6460 = vld [vmem:[#allocation2 + $0x54] sm:$0xff]
      %6469 = vrot.lane.b32.xlu0 %v6453, 127
      %v6470 = vpop.permute.xlu0 %6469
      %6471 = vrot.lane.b32.xlu0 %v6454, 127
      %v6472 = vpop.permute.xlu0 %6471
      %6473 = vrot.lane.b32.xlu0 %v6455, 127
      %v6474 = vpop.permute.xlu0 %6473
      %6475 = vrot.lane.b32.xlu0 %v6456, 127
      %v6476 = vpop.permute.xlu0 %6475
      %6477 = vrot.lane.b32.xlu0 %v6457, 127
      %v6478 = vpop.permute.xlu0 %6477
      %6479 = vrot.lane.b32.xlu0 %v6458, 127
      %v6480 = vpop.permute.xlu0 %6479
      %6481 = vrot.lane.b32.xlu0 %v6459, 127
      %v6482 = vpop.permute.xlu0 %6481
      %6483 = vrot.lane.b32.xlu0 %v6460, 127
      %v6484 = vpop.permute.xlu0 %6483
      %v6485 = vrot.slane %v6470, 4
      %v6486 = vrot.slane %v6472, 4
      %v6487 = vrot.slane %v6474, 4
      %v6488 = vrot.slane %v6476, 4
      %v6489 = vrot.slane %v6478, 4
      %v6490 = vrot.slane %v6480, 4
      %v6491 = vrot.slane %v6482, 4
      %v6492 = vrot.slane %v6484, 4
      %vm6493 = vcmask 1039360
      %v6494 = vsel %vm6493, %v6470, %v6485
      %v6495 = vsel %vm6493, %v6472, %v6486
      %v6496 = vsel %vm6493, %v6474, %v6487
      %v6497 = vsel %vm6493, %v6476, %v6488
      %v6498 = vsel %vm6493, %v6478, %v6489
      %v6499 = vsel %vm6493, %v6480, %v6490
      %v6500 = vsel %vm6493, %v6482, %v6491
      %v6501 = vsel %vm6493, %v6484, %v6492
      %6510 = vst.msk [vmem:[#allocation4 + $0x40] sm:$0xff] %vm6444, %v6494
      %6511 = vst.msk [vmem:[#allocation4 + $0x48] sm:$0xff] %vm6444, %v6495
      %6512 = vst.msk [vmem:[#allocation4 + $0x50] sm:$0xff] %vm6444, %v6496
      %6513 = vst.msk [vmem:[#allocation4 + $0x58] sm:$0xff] %vm6444, %v6497
      %6514 = vst.msk [vmem:[#allocation4 + $0x60] sm:$0xff] %vm6444, %v6498
      %6515 = vst.msk [vmem:[#allocation4 + $0x68] sm:$0xff] %vm6444, %v6499
      %6516 = vst.msk [vmem:[#allocation4 + $0x70] sm:$0xff] %vm6444, %v6500
      %6517 = vst.msk [vmem:[#allocation4 + $0x78] sm:$0xff] %vm6444, %v6501
      %v6518 = vld [vmem:[#allocation2] sm:$0xff]
      %v6519 = vld [vmem:[#allocation2 + $0xc] sm:$0xff]
      %v6520 = vld [vmem:[#allocation2 + $0x18] sm:$0xff]
      %v6521 = vld [vmem:[#allocation2 + $0x24] sm:$0xff]
      %v6522 = vld [vmem:[#allocation2 + $0x30] sm:$0xff]
      %v6523 = vld [vmem:[#allocation2 + $0x3c] sm:$0xff]
      %v6524 = vld [vmem:[#allocation2 + $0x48] sm:$0xff]
      %v6525 = vld [vmem:[#allocation2 + $0x54] sm:$0xff]
      %6534 = vrot.lane.b32.xlu0 %v6518, 126
      %v6535 = vpop.permute.xlu0 %6534
      %6536 = vrot.lane.b32.xlu0 %v6519, 126
      %v6537 = vpop.permute.xlu0 %6536
      %6538 = vrot.lane.b32.xlu0 %v6520, 126
      %v6539 = vpop.permute.xlu0 %6538
      %6540 = vrot.lane.b32.xlu0 %v6521, 126
      %v6541 = vpop.permute.xlu0 %6540
      %6542 = vrot.lane.b32.xlu0 %v6522, 126
      %v6543 = vpop.permute.xlu0 %6542
      %6544 = vrot.lane.b32.xlu0 %v6523, 126
      %v6545 = vpop.permute.xlu0 %6544
      %6546 = vrot.lane.b32.xlu0 %v6524, 126
      %v6547 = vpop.permute.xlu0 %6546
      %6548 = vrot.lane.b32.xlu0 %v6525, 126
      %v6549 = vpop.permute.xlu0 %6548
      %v6550 = vrot.slane %v6535, 4
      %v6551 = vrot.slane %v6537, 4
      %v6552 = vrot.slane %v6539, 4
      %v6553 = vrot.slane %v6541, 4
      %v6554 = vrot.slane %v6543, 4
      %v6555 = vrot.slane %v6545, 4
      %v6556 = vrot.slane %v6547, 4
      %v6557 = vrot.slane %v6549, 4
      %vm6558 = vcmask 1031168
      %v6559 = vsel %vm6558, %v6535, %v6550
      %v6560 = vsel %vm6558, %v6537, %v6551
      %v6561 = vsel %vm6558, %v6539, %v6552
      %v6562 = vsel %vm6558, %v6541, %v6553
      %v6563 = vsel %vm6558, %v6543, %v6554
      %v6564 = vsel %vm6558, %v6545, %v6555
      %v6565 = vsel %vm6558, %v6547, %v6556
      %v6566 = vsel %vm6558, %v6549, %v6557
      %6575 = vst.msk [vmem:[#allocation4 + $0x80] sm:$0xff] %vm6444, %v6559
      %6576 = vst.msk [vmem:[#allocation4 + $0x88] sm:$0xff] %vm6444, %v6560
      %6577 = vst.msk [vmem:[#allocation4 + $0x90] sm:$0xff] %vm6444, %v6561
      %6578 = vst.msk [vmem:[#allocation4 + $0x98] sm:$0xff] %vm6444, %v6562
      %6579 = vst.msk [vmem:[#allocation4 + $0xa0] sm:$0xff] %vm6444, %v6563
      %6580 = vst.msk [vmem:[#allocation4 + $0xa8] sm:$0xff] %vm6444, %v6564
      %6581 = vst.msk [vmem:[#allocation4 + $0xb0] sm:$0xff] %vm6444, %v6565
      %6582 = vst.msk [vmem:[#allocation4 + $0xb8] sm:$0xff] %vm6444, %v6566
      %v6583 = vld [vmem:[#allocation2] sm:$0xff]
      %v6584 = vld [vmem:[#allocation2 + $0xc] sm:$0xff]
      %v6585 = vld [vmem:[#allocation2 + $0x18] sm:$0xff]
      %v6586 = vld [vmem:[#allocation2 + $0x24] sm:$0xff]
      %v6587 = vld [vmem:[#allocation2 + $0x30] sm:$0xff]
      %v6588 = vld [vmem:[#allocation2 + $0x3c] sm:$0xff]
      %v6589 = vld [vmem:[#allocation2 + $0x48] sm:$0xff]
      %v6590 = vld [vmem:[#allocation2 + $0x54] sm:$0xff]
      %6599 = vrot.lane.b32.xlu0 %v6583, 110
      %v6600 = vpop.permute.xlu0 %6599
      %6601 = vrot.lane.b32.xlu0 %v6584, 110
      %v6602 = vpop.permute.xlu0 %6601
      %6603 = vrot.lane.b32.xlu0 %v6585, 110
      %v6604 = vpop.permute.xlu0 %6603
      %6605 = vrot.lane.b32.xlu0 %v6586, 110
      %v6606 = vpop.permute.xlu0 %6605
      %6607 = vrot.lane.b32.xlu0 %v6587, 110
      %v6608 = vpop.permute.xlu0 %6607
      %6609 = vrot.lane.b32.xlu0 %v6588, 110
      %v6610 = vpop.permute.xlu0 %6609
      %6611 = vrot.lane.b32.xlu0 %v6589, 110
      %v6612 = vpop.permute.xlu0 %6611
      %6613 = vrot.lane.b32.xlu0 %v6590, 110
      %v6614 = vpop.permute.xlu0 %6613
      %v6615 = vrot.slane %v6600, 4
      %v6616 = vrot.slane %v6602, 4
      %v6617 = vrot.slane %v6604, 4
      %v6618 = vrot.slane %v6606, 4
      %v6619 = vrot.slane %v6608, 4
      %v6620 = vrot.slane %v6610, 4
      %v6621 = vrot.slane %v6612, 4
      %v6622 = vrot.slane %v6614, 4
      %vm6623 = vcmask 900096
      %v6624 = vsel %vm6623, %v6600, %v6615
      %v6625 = vsel %vm6623, %v6602, %v6616
      %v6626 = vsel %vm6623, %v6604, %v6617
      %v6627 = vsel %vm6623, %v6606, %v6618
      %v6628 = vsel %vm6623, %v6608, %v6619
      %v6629 = vsel %vm6623, %v6610, %v6620
      %v6630 = vsel %vm6623, %v6612, %v6621
      %v6631 = vsel %vm6623, %v6614, %v6622
      %6640 = vst.msk [vmem:[#allocation4 + $0xc0] sm:$0xff] %vm6444, %v6624
      %6641 = vst.msk [vmem:[#allocation4 + $0xc8] sm:$0xff] %vm6444, %v6625
      %6642 = vst.msk [vmem:[#allocation4 + $0xd0] sm:$0xff] %vm6444, %v6626
      %6643 = vst.msk [vmem:[#allocation4 + $0xd8] sm:$0xff] %vm6444, %v6627
      %6644 = vst.msk [vmem:[#allocation4 + $0xe0] sm:$0xff] %vm6444, %v6628
      %6645 = vst.msk [vmem:[#allocation4 + $0xe8] sm:$0xff] %vm6444, %v6629
      %6646 = vst.msk [vmem:[#allocation4 + $0xf0] sm:$0xff] %vm6444, %v6630
      %6647 = vst.msk [vmem:[#allocation4 + $0xf8] sm:$0xff] %vm6444, %v6631
      %v6648 = vld [vmem:[#allocation2] sm:$0xff]
      %v6649 = vld [vmem:[#allocation2 + $0xc] sm:$0xff]
      %v6650 = vld [vmem:[#allocation2 + $0x18] sm:$0xff]
      %v6651 = vld [vmem:[#allocation2 + $0x24] sm:$0xff]
      %v6652 = vld [vmem:[#allocation2 + $0x30] sm:$0xff]
      %v6653 = vld [vmem:[#allocation2 + $0x3c] sm:$0xff]
      %v6654 = vld [vmem:[#allocation2 + $0x48] sm:$0xff]
      %v6655 = vld [vmem:[#allocation2 + $0x54] sm:$0xff]
      %6664 = vrot.lane.b32.xlu0 %v6648, 109
      %v6665 = vpop.permute.xlu0 %6664
      %6666 = vrot.lane.b32.xlu0 %v6649, 109
      %v6667 = vpop.permute.xlu0 %6666
      %6668 = vrot.lane.b32.xlu0 %v6650, 109
      %v6669 = vpop.permute.xlu0 %6668
      %6670 = vrot.lane.b32.xlu0 %v6651, 109
      %v6671 = vpop.permute.xlu0 %6670
      %6672 = vrot.lane.b32.xlu0 %v6652, 109
      %v6673 = vpop.permute.xlu0 %6672
      %6674 = vrot.lane.b32.xlu0 %v6653, 109
      %v6675 = vpop.permute.xlu0 %6674
      %6676 = vrot.lane.b32.xlu0 %v6654, 109
      %v6677 = vpop.permute.xlu0 %6676
      %6678 = vrot.lane.b32.xlu0 %v6655, 109
      %v6679 = vpop.permute.xlu0 %6678
      %v6680 = vrot.slane %v6665, 4
      %v6681 = vrot.slane %v6667, 4
      %v6682 = vrot.slane %v6669, 4
      %v6683 = vrot.slane %v6671, 4
      %v6684 = vrot.slane %v6673, 4
      %v6685 = vrot.slane %v6675, 4
      %v6686 = vrot.slane %v6677, 4
      %v6687 = vrot.slane %v6679, 4
      %vm6688 = vcmask 891904
      %v6689 = vsel %vm6688, %v6665, %v6680
      %v6690 = vsel %vm6688, %v6667, %v6681
      %v6691 = vsel %vm6688, %v6669, %v6682
      %v6692 = vsel %vm6688, %v6671, %v6683
      %v6693 = vsel %vm6688, %v6673, %v6684
      %v6694 = vsel %vm6688, %v6675, %v6685
      %v6695 = vsel %vm6688, %v6677, %v6686
      %v6696 = vsel %vm6688, %v6679, %v6687
      %6705 = vst.msk [vmem:[#allocation4 + $0x100] sm:$0xff] %vm6444, %v6689
      %6706 = vst.msk [vmem:[#allocation4 + $0x108] sm:$0xff] %vm6444, %v6690
      %6707 = vst.msk [vmem:[#allocation4 + $0x110] sm:$0xff] %vm6444, %v6691
      %6708 = vst.msk [vmem:[#allocation4 + $0x118] sm:$0xff] %vm6444, %v6692
      %6709 = vst.msk [vmem:[#allocation4 + $0x120] sm:$0xff] %vm6444, %v6693
      %6710 = vst.msk [vmem:[#allocation4 + $0x128] sm:$0xff] %vm6444, %v6694
      %6711 = vst.msk [vmem:[#allocation4 + $0x130] sm:$0xff] %vm6444, %v6695
      %6712 = vst.msk [vmem:[#allocation4 + $0x138] sm:$0xff] %vm6444, %v6696
      %v6713 = vld [vmem:[#allocation2] sm:$0xff]
      %v6714 = vld [vmem:[#allocation2 + $0xc] sm:$0xff]
      %v6715 = vld [vmem:[#allocation2 + $0x18] sm:$0xff]
      %v6716 = vld [vmem:[#allocation2 + $0x24] sm:$0xff]
      %v6717 = vld [vmem:[#allocation2 + $0x30] sm:$0xff]
      %v6718 = vld [vmem:[#allocation2 + $0x3c] sm:$0xff]
      %v6719 = vld [vmem:[#allocation2 + $0x48] sm:$0xff]
      %v6720 = vld [vmem:[#allocation2 + $0x54] sm:$0xff]
      %6729 = vrot.lane.b32.xlu0 %v6713, 108
      %v6730 = vpop.permute.xlu0 %6729
      %6731 = vrot.lane.b32.xlu0 %v6714, 108
      %v6732 = vpop.permute.xlu0 %6731
      %6733 = vrot.lane.b32.xlu0 %v6715, 108
      %v6734 = vpop.permute.xlu0 %6733
      %6735 = vrot.lane.b32.xlu0 %v6716, 108
      %v6736 = vpop.permute.xlu0 %6735
      %6737 = vrot.lane.b32.xlu0 %v6717, 108
      %v6738 = vpop.permute.xlu0 %6737
      %6739 = vrot.lane.b32.xlu0 %v6718, 108
      %v6740 = vpop.permute.xlu0 %6739
      %6741 = vrot.lane.b32.xlu0 %v6719, 108
      %v6742 = vpop.permute.xlu0 %6741
      %6743 = vrot.lane.b32.xlu0 %v6720, 108
      %v6744 = vpop.permute.xlu0 %6743
      %v6745 = vrot.slane %v6730, 4
      %v6746 = vrot.slane %v6732, 4
      %v6747 = vrot.slane %v6734, 4
      %v6748 = vrot.slane %v6736, 4
      %v6749 = vrot.slane %v6738, 4
      %v6750 = vrot.slane %v6740, 4
      %v6751 = vrot.slane %v6742, 4
      %v6752 = vrot.slane %v6744, 4
      %vm6753 = vcmask 883712
      %v6754 = vsel %vm6753, %v6730, %v6745
      %v6755 = vsel %vm6753, %v6732, %v6746
      %v6756 = vsel %vm6753, %v6734, %v6747
      %v6757 = vsel %vm6753, %v6736, %v6748
      %v6758 = vsel %vm6753, %v6738, %v6749
      %v6759 = vsel %vm6753, %v6740, %v6750
      %v6760 = vsel %vm6753, %v6742, %v6751
      %v6761 = vsel %vm6753, %v6744, %v6752
      %6770 = vst.msk [vmem:[#allocation4 + $0x140] sm:$0xff] %vm6444, %v6754
      %6771 = vst.msk [vmem:[#allocation4 + $0x148] sm:$0xff] %vm6444, %v6755
      %6772 = vst.msk [vmem:[#allocation4 + $0x150] sm:$0xff] %vm6444, %v6756
      %6773 = vst.msk [vmem:[#allocation4 + $0x158] sm:$0xff] %vm6444, %v6757
      %6774 = vst.msk [vmem:[#allocation4 + $0x160] sm:$0xff] %vm6444, %v6758
      %6775 = vst.msk [vmem:[#allocation4 + $0x168] sm:$0xff] %vm6444, %v6759
      %6776 = vst.msk [vmem:[#allocation4 + $0x170] sm:$0xff] %vm6444, %v6760
      %6777 = vst.msk [vmem:[#allocation4 + $0x178] sm:$0xff] %vm6444, %v6761
      %v6778 = vld [vmem:[#allocation2] sm:$0xff]
      %v6779 = vld [vmem:[#allocation2 + $0xc] sm:$0xff]
      %v6780 = vld [vmem:[#allocation2 + $0x18] sm:$0xff]
      %v6781 = vld [vmem:[#allocation2 + $0x24] sm:$0xff]
      %v6782 = vld [vmem:[#allocation2 + $0x30] sm:$0xff]
      %v6783 = vld [vmem:[#allocation2 + $0x3c] sm:$0xff]
      %v6784 = vld [vmem:[#allocation2 + $0x48] sm:$0xff]
      %v6785 = vld [vmem:[#allocation2 + $0x54] sm:$0xff]
      %6794 = vrot.lane.b32.xlu0 %v6778, 92
      %v6795 = vpop.permute.xlu0 %6794
      %6796 = vrot.lane.b32.xlu0 %v6779, 92
      %v6797 = vpop.permute.xlu0 %6796
      %6798 = vrot.lane.b32.xlu0 %v6780, 92
      %v6799 = vpop.permute.xlu0 %6798
      %6800 = vrot.lane.b32.xlu0 %v6781, 92
      %v6801 = vpop.permute.xlu0 %6800
      %6802 = vrot.lane.b32.xlu0 %v6782, 92
      %v6803 = vpop.permute.xlu0 %6802
      %6804 = vrot.lane.b32.xlu0 %v6783, 92
      %v6805 = vpop.permute.xlu0 %6804
      %6806 = vrot.lane.b32.xlu0 %v6784, 92
      %v6807 = vpop.permute.xlu0 %6806
      %6808 = vrot.lane.b32.xlu0 %v6785, 92
      %v6809 = vpop.permute.xlu0 %6808
      %v6810 = vrot.slane %v6795, 4
      %v6811 = vrot.slane %v6797, 4
      %v6812 = vrot.slane %v6799, 4
      %v6813 = vrot.slane %v6801, 4
      %v6814 = vrot.slane %v6803, 4
      %v6815 = vrot.slane %v6805, 4
      %v6816 = vrot.slane %v6807, 4
      %v6817 = vrot.slane %v6809, 4
      %vm6818 = vcmask 752640
      %v6819 = vsel %vm6818, %v6795, %v6810
      %v6820 = vsel %vm6818, %v6797, %v6811
      %v6821 = vsel %vm6818, %v6799, %v6812
      %v6822 = vsel %vm6818, %v6801, %v6813
      %v6823 = vsel %vm6818, %v6803, %v6814
      %v6824 = vsel %vm6818, %v6805, %v6815
      %v6825 = vsel %vm6818, %v6807, %v6816
      %v6826 = vsel %vm6818, %v6809, %v6817
      %6835 = vst.msk [vmem:[#allocation4 + $0x180] sm:$0xff] %vm6444, %v6819
      %6836 = vst.msk [vmem:[#allocation4 + $0x188] sm:$0xff] %vm6444, %v6820
      %6837 = vst.msk [vmem:[#allocation4 + $0x190] sm:$0xff] %vm6444, %v6821
      %6838 = vst.msk [vmem:[#allocation4 + $0x198] sm:$0xff] %vm6444, %v6822
      %6839 = vst.msk [vmem:[#allocation4 + $0x1a0] sm:$0xff] %vm6444, %v6823
      %6840 = vst.msk [vmem:[#allocation4 + $0x1a8] sm:$0xff] %vm6444, %v6824
      %6841 = vst.msk [vmem:[#allocation4 + $0x1b0] sm:$0xff] %vm6444, %v6825
      %6842 = vst.msk [vmem:[#allocation4 + $0x1b8] sm:$0xff] %vm6444, %v6826
      %v6843 = vld [vmem:[#allocation2] sm:$0xff]
      %v6844 = vld [vmem:[#allocation2 + $0xc] sm:$0xff]
      %v6845 = vld [vmem:[#allocation2 + $0x18] sm:$0xff]
      %v6846 = vld [vmem:[#allocation2 + $0x24] sm:$0xff]
      %v6847 = vld [vmem:[#allocation2 + $0x30] sm:$0xff]
      %v6848 = vld [vmem:[#allocation2 + $0x3c] sm:$0xff]
      %v6849 = vld [vmem:[#allocation2 + $0x48] sm:$0xff]
      %v6850 = vld [vmem:[#allocation2 + $0x54] sm:$0xff]
      %6859 = vrot.lane.b32.xlu0 %v6843, 91
      %v6860 = vpop.permute.xlu0 %6859
      %6861 = vrot.lane.b32.xlu0 %v6844, 91
      %v6862 = vpop.permute.xlu0 %6861
      %6863 = vrot.lane.b32.xlu0 %v6845, 91
      %v6864 = vpop.permute.xlu0 %6863
      %6865 = vrot.lane.b32.xlu0 %v6846, 91
      %v6866 = vpop.permute.xlu0 %6865
      %6867 = vrot.lane.b32.xlu0 %v6847, 91
      %v6868 = vpop.permute.xlu0 %6867
      %6869 = vrot.lane.b32.xlu0 %v6848, 91
      %v6870 = vpop.permute.xlu0 %6869
      %6871 = vrot.lane.b32.xlu0 %v6849, 91
      %v6872 = vpop.permute.xlu0 %6871
      %6873 = vrot.lane.b32.xlu0 %v6850, 91
      %v6874 = vpop.permute.xlu0 %6873
      %v6875 = vrot.slane %v6860, 4
      %v6876 = vrot.slane %v6862, 4
      %v6877 = vrot.slane %v6864, 4
      %v6878 = vrot.slane %v6866, 4
      %v6879 = vrot.slane %v6868, 4
      %v6880 = vrot.slane %v6870, 4
      %v6881 = vrot.slane %v6872, 4
      %v6882 = vrot.slane %v6874, 4
      %vm6883 = vcmask 744448
      %v6884 = vsel %vm6883, %v6860, %v6875
      %v6885 = vsel %vm6883, %v6862, %v6876
      %v6886 = vsel %vm6883, %v6864, %v6877
      %v6887 = vsel %vm6883, %v6866, %v6878
      %v6888 = vsel %vm6883, %v6868, %v6879
      %v6889 = vsel %vm6883, %v6870, %v6880
      %v6890 = vsel %vm6883, %v6872, %v6881
      %v6891 = vsel %vm6883, %v6874, %v6882
      %6900 = vst.msk [vmem:[#allocation4 + $0x1c0] sm:$0xff] %vm6444, %v6884
      %6901 = vst.msk [vmem:[#allocation4 + $0x1c8] sm:$0xff] %vm6444, %v6885
      %6902 = vst.msk [vmem:[#allocation4 + $0x1d0] sm:$0xff] %vm6444, %v6886
      %6903 = vst.msk [vmem:[#allocation4 + $0x1d8] sm:$0xff] %vm6444, %v6887
      %6904 = vst.msk [vmem:[#allocation4 + $0x1e0] sm:$0xff] %vm6444, %v6888
      %6905 = vst.msk [vmem:[#allocation4 + $0x1e8] sm:$0xff] %vm6444, %v6889
      %6906 = vst.msk [vmem:[#allocation4 + $0x1f0] sm:$0xff] %vm6444, %v6890
      %6907 = vst.msk [vmem:[#allocation4 + $0x1f8] sm:$0xff] %vm6444, %v6891
      %v6908 = vld [vmem:[#allocation2] sm:$0xff]
      %v6909 = vld [vmem:[#allocation2 + $0xc] sm:$0xff]
      %v6910 = vld [vmem:[#allocation2 + $0x18] sm:$0xff]
      %v6911 = vld [vmem:[#allocation2 + $0x24] sm:$0xff]
      %v6912 = vld [vmem:[#allocation2 + $0x30] sm:$0xff]
      %v6913 = vld [vmem:[#allocation2 + $0x3c] sm:$0xff]
      %v6914 = vld [vmem:[#allocation2 + $0x48] sm:$0xff]
      %v6915 = vld [vmem:[#allocation2 + $0x54] sm:$0xff]
      %6924 = vrot.lane.b32.xlu0 %v6908, 90
      %v6925 = vpop.permute.xlu0 %6924
      %6926 = vrot.lane.b32.xlu0 %v6909, 90
      %v6927 = vpop.permute.xlu0 %6926
      %6928 = vrot.lane.b32.xlu0 %v6910, 90
      %v6929 = vpop.permute.xlu0 %6928
      %6930 = vrot.lane.b32.xlu0 %v6911, 90
      %v6931 = vpop.permute.xlu0 %6930
      %6932 = vrot.lane.b32.xlu0 %v6912, 90
      %v6933 = vpop.permute.xlu0 %6932
      %6934 = vrot.lane.b32.xlu0 %v6913, 90
      %v6935 = vpop.permute.xlu0 %6934
      %6936 = vrot.lane.b32.xlu0 %v6914, 90
      %v6937 = vpop.permute.xlu0 %6936
      %6938 = vrot.lane.b32.xlu0 %v6915, 90
      %v6939 = vpop.permute.xlu0 %6938
      %v6940 = vrot.slane %v6925, 4
      %v6941 = vrot.slane %v6927, 4
      %v6942 = vrot.slane %v6929, 4
      %v6943 = vrot.slane %v6931, 4
      %v6944 = vrot.slane %v6933, 4
      %v6945 = vrot.slane %v6935, 4
      %v6946 = vrot.slane %v6937, 4
      %v6947 = vrot.slane %v6939, 4
      %vm6948 = vcmask 736256
      %v6949 = vsel %vm6948, %v6925, %v6940
      %v6950 = vsel %vm6948, %v6927, %v6941
      %v6951 = vsel %vm6948, %v6929, %v6942
      %v6952 = vsel %vm6948, %v6931, %v6943
      %v6953 = vsel %vm6948, %v6933, %v6944
      %v6954 = vsel %vm6948, %v6935, %v6945
      %v6955 = vsel %vm6948, %v6937, %v6946
      %v6956 = vsel %vm6948, %v6939, %v6947
      %6965 = vst.msk [vmem:[#allocation4 + $0x200] sm:$0xff] %vm6444, %v6949
      %6966 = vst.msk [vmem:[#allocation4 + $0x208] sm:$0xff] %vm6444, %v6950
      %6967 = vst.msk [vmem:[#allocation4 + $0x210] sm:$0xff] %vm6444, %v6951
      %6968 = vst.msk [vmem:[#allocation4 + $0x218] sm:$0xff] %vm6444, %v6952
      %6969 = vst.msk [vmem:[#allocation4 + $0x220] sm:$0xff] %vm6444, %v6953
      %6970 = vst.msk [vmem:[#allocation4 + $0x228] sm:$0xff] %vm6444, %v6954
      %6971 = vst.msk [vmem:[#allocation4 + $0x230] sm:$0xff] %vm6444, %v6955
      %6972 = vst.msk [vmem:[#allocation4 + $0x238] sm:$0xff] %vm6444, %v6956
      %v6973 = vld [vmem:[#allocation4] sm:$0xff]
      %v6974 = vld [vmem:[#allocation4 + $0x8] sm:$0xff]
      %v6975 = vld [vmem:[#allocation4 + $0x10] sm:$0xff]
      %v6976 = vld [vmem:[#allocation4 + $0x18] sm:$0xff]
      %v6977 = vld [vmem:[#allocation4 + $0x20] sm:$0xff]
      %v6978 = vld [vmem:[#allocation4 + $0x28] sm:$0xff]
      %v6979 = vld [vmem:[#allocation4 + $0x30] sm:$0xff]
      %v6980 = vld [vmem:[#allocation4 + $0x38] sm:$0xff]
      %v6981 = vld [vmem:[#allocation4 + $0x40] sm:$0xff]
      %v6982 = vld [vmem:[#allocation4 + $0x48] sm:$0xff]
      %v6983 = vld [vmem:[#allocation4 + $0x50] sm:$0xff]
      %v6984 = vld [vmem:[#allocation4 + $0x58] sm:$0xff]
      %v6985 = vld [vmem:[#allocation4 + $0x60] sm:$0xff]
      %v6986 = vld [vmem:[#allocation4 + $0x68] sm:$0xff]
      %v6987 = vld [vmem:[#allocation4 + $0x70] sm:$0xff]
      %v6988 = vld [vmem:[#allocation4 + $0x78] sm:$0xff]
      %v6989 = vld [vmem:[#allocation4 + $0x80] sm:$0xff]
      %v6990 = vld [vmem:[#allocation4 + $0x88] sm:$0xff]
      %v6991 = vld [vmem:[#allocation4 + $0x90] sm:$0xff]
      %v6992 = vld [vmem:[#allocation4 + $0x98] sm:$0xff]
      %v6993 = vld [vmem:[#allocation4 + $0xa0] sm:$0xff]
      %v6994 = vld [vmem:[#allocation4 + $0xa8] sm:$0xff]
      %v6995 = vld [vmem:[#allocation4 + $0xb0] sm:$0xff]
      %v6996 = vld [vmem:[#allocation4 + $0xb8] sm:$0xff]
      %v6997 = vld [vmem:[#allocation4 + $0xc0] sm:$0xff]
      %v6998 = vld [vmem:[#allocation4 + $0xc8] sm:$0xff]
      %v6999 = vld [vmem:[#allocation4 + $0xd0] sm:$0xff]
      %v7000 = vld [vmem:[#allocation4 + $0xd8] sm:$0xff]
      %v7001 = vld [vmem:[#allocation4 + $0xe0] sm:$0xff]
      %v7002 = vld [vmem:[#allocation4 + $0xe8] sm:$0xff]
      %v7003 = vld [vmem:[#allocation4 + $0xf0] sm:$0xff]
      %v7004 = vld [vmem:[#allocation4 + $0xf8] sm:$0xff]
      %v7005 = vld [vmem:[#allocation4 + $0x100] sm:$0xff]
      %v7006 = vld [vmem:[#allocation4 + $0x108] sm:$0xff]
      %v7007 = vld [vmem:[#allocation4 + $0x110] sm:$0xff]
      %v7008 = vld [vmem:[#allocation4 + $0x118] sm:$0xff]
      %v7009 = vld [vmem:[#allocation4 + $0x120] sm:$0xff]
      %v7010 = vld [vmem:[#allocation4 + $0x128] sm:$0xff]
      %v7011 = vld [vmem:[#allocation4 + $0x130] sm:$0xff]
      %v7012 = vld [vmem:[#allocation4 + $0x138] sm:$0xff]
      %v7013 = vld [vmem:[#allocation4 + $0x140] sm:$0xff]
      %v7014 = vld [vmem:[#allocation4 + $0x148] sm:$0xff]
      %v7015 = vld [vmem:[#allocation4 + $0x150] sm:$0xff]
      %v7016 = vld [vmem:[#allocation4 + $0x158] sm:$0xff]
      %v7017 = vld [vmem:[#allocation4 + $0x160] sm:$0xff]
      %v7018 = vld [vmem:[#allocation4 + $0x168] sm:$0xff]
      %v7019 = vld [vmem:[#allocation4 + $0x170] sm:$0xff]
      %v7020 = vld [vmem:[#allocation4 + $0x178] sm:$0xff]
      %v7021 = vld [vmem:[#allocation4 + $0x180] sm:$0xff]
      %v7022 = vld [vmem:[#allocation4 + $0x188] sm:$0xff]
      %v7023 = vld [vmem:[#allocation4 + $0x190] sm:$0xff]
      %v7024 = vld [vmem:[#allocation4 + $0x198] sm:$0xff]
      %v7025 = vld [vmem:[#allocation4 + $0x1a0] sm:$0xff]
      %v7026 = vld [vmem:[#allocation4 + $0x1a8] sm:$0xff]
      %v7027 = vld [vmem:[#allocation4 + $0x1b0] sm:$0xff]
      %v7028 = vld [vmem:[#allocation4 + $0x1b8] sm:$0xff]
      %v7029 = vld [vmem:[#allocation4 + $0x1c0] sm:$0xff]
      %v7030 = vld [vmem:[#allocation4 + $0x1c8] sm:$0xff]
      %v7031 = vld [vmem:[#allocation4 + $0x1d0] sm:$0xff]
      %v7032 = vld [vmem:[#allocation4 + $0x1d8] sm:$0xff]
      %v7033 = vld [vmem:[#allocation4 + $0x1e0] sm:$0xff]
      %v7034 = vld [vmem:[#allocation4 + $0x1e8] sm:$0xff]
      %v7035 = vld [vmem:[#allocation4 + $0x1f0] sm:$0xff]
      %v7036 = vld [vmem:[#allocation4 + $0x1f8] sm:$0xff]
      %v7037 = vld [vmem:[#allocation4 + $0x200] sm:$0xff]
      %v7038 = vld [vmem:[#allocation4 + $0x208] sm:$0xff]
      %v7039 = vld [vmem:[#allocation4 + $0x210] sm:$0xff]
      %v7040 = vld [vmem:[#allocation4 + $0x218] sm:$0xff]
      %v7041 = vld [vmem:[#allocation4 + $0x220] sm:$0xff]
      %v7042 = vld [vmem:[#allocation4 + $0x228] sm:$0xff]
      %v7043 = vld [vmem:[#allocation4 + $0x230] sm:$0xff]
      %v7044 = vld [vmem:[#allocation4 + $0x238] sm:$0xff]
      %7046 = vst [vmem:[#allocation1] ss:$4 sm:$0xff] %v6432
      %s7048 = scalar_lea.vmem [#allocation1], 32
      %7049 = vst [vmem:[%s7048] ss:$4 sm:$0xff] %v6433
      %v7050 = vld.sshfl [vmem:[#allocation1] sm:$0xff pattern:$0x73625140]
      %v7051 = vld.sshfl [vmem:[#allocation1 + $0x8] sm:$0xff pattern:$0x73625140]
      %v7052 = vld.sshfl [vmem:[#allocation1 + $0x10] sm:$0xff pattern:$0x73625140]
      %v7053 = vld.sshfl [vmem:[#allocation1 + $0x18] sm:$0xff pattern:$0x73625140]
      %v7054 = vld.sshfl [vmem:[#allocation1 + $0x20] sm:$0xff pattern:$0x73625140]
      %v7131 = vunpack.c.l.b16 %v6973
      %v7132 = vunpack.c.h.b16 %v6973
      %v7133 = vunpack.c.l.b16 %v6974
      %v7134 = vunpack.c.h.b16 %v6974
      %v7135 = vunpack.c.l.b16 %v6975
      %v7136 = vunpack.c.h.b16 %v6975
      %v7137 = vunpack.c.l.b16 %v6976
      %v7138 = vunpack.c.h.b16 %v6976
      %v7139 = vunpack.c.l.b16 %v6977
      %v7140 = vunpack.c.h.b16 %v6977
      %v7141 = vunpack.c.l.b16 %v6978
      %v7142 = vunpack.c.h.b16 %v6978
      %v7143 = vunpack.c.l.b16 %v6979
      %v7144 = vunpack.c.h.b16 %v6979
      %v7145 = vunpack.c.l.b16 %v6980
      %v7146 = vunpack.c.h.b16 %v6980
      %v7147 = vunpack.c.l.b16 %v6981
      %v7148 = vunpack.c.h.b16 %v6981
      %v7149 = vunpack.c.l.b16 %v6982
      %v7150 = vunpack.c.h.b16 %v6982
      %v7151 = vunpack.c.l.b16 %v6983
      %v7152 = vunpack.c.h.b16 %v6983
      %v7153 = vunpack.c.l.b16 %v6984
      %v7154 = vunpack.c.h.b16 %v6984
      %v7155 = vunpack.c.l.b16 %v6985
      %v7156 = vunpack.c.h.b16 %v6985
      %v7157 = vunpack.c.l.b16 %v6986
      %v7158 = vunpack.c.h.b16 %v6986
      %v7159 = vunpack.c.l.b16 %v6987
      %v7160 = vunpack.c.h.b16 %v6987
      %v7161 = vunpack.c.l.b16 %v6988
      %v7162 = vunpack.c.h.b16 %v6988
      %v7163 = vunpack.c.l.b16 %v6989
      %v7164 = vunpack.c.h.b16 %v6989
      %v7165 = vunpack.c.l.b16 %v6990
      %v7166 = vunpack.c.h.b16 %v6990
      %v7167 = vunpack.c.l.b16 %v6991
      %v7168 = vunpack.c.h.b16 %v6991
      %v7169 = vunpack.c.l.b16 %v6992
      %v7170 = vunpack.c.h.b16 %v6992
      %v7171 = vunpack.c.l.b16 %v6993
      %v7172 = vunpack.c.h.b16 %v6993
      %v7173 = vunpack.c.l.b16 %v6994
      %v7174 = vunpack.c.h.b16 %v6994
      %v7175 = vunpack.c.l.b16 %v6995
      %v7176 = vunpack.c.h.b16 %v6995
      %v7177 = vunpack.c.l.b16 %v6996
      %v7178 = vunpack.c.h.b16 %v6996
      %v7179 = vunpack.c.l.b16 %v6997
      %v7180 = vunpack.c.h.b16 %v6997
      %v7181 = vunpack.c.l.b16 %v6998
      %v7182 = vunpack.c.h.b16 %v6998
      %v7183 = vunpack.c.l.b16 %v6999
      %v7184 = vunpack.c.h.b16 %v6999
      %v7185 = vunpack.c.l.b16 %v7000
      %v7186 = vunpack.c.h.b16 %v7000
      %v7187 = vunpack.c.l.b16 %v7001
      %v7188 = vunpack.c.h.b16 %v7001
      %v7189 = vunpack.c.l.b16 %v7002
      %v7190 = vunpack.c.h.b16 %v7002
      %v7191 = vunpack.c.l.b16 %v7003
      %v7192 = vunpack.c.h.b16 %v7003
      %v7193 = vunpack.c.l.b16 %v7004
      %v7194 = vunpack.c.h.b16 %v7004
      %v7195 = vunpack.c.l.b16 %v7005
      %v7196 = vunpack.c.h.b16 %v7005
      %v7197 = vunpack.c.l.b16 %v7006
      %v7198 = vunpack.c.h.b16 %v7006
      %v7199 = vunpack.c.l.b16 %v7007
      %v7200 = vunpack.c.h.b16 %v7007
      %v7201 = vunpack.c.l.b16 %v7008
      %v7202 = vunpack.c.h.b16 %v7008
      %v7203 = vunpack.c.l.b16 %v7009
      %v7204 = vunpack.c.h.b16 %v7009
      %v7205 = vunpack.c.l.b16 %v7010
      %v7206 = vunpack.c.h.b16 %v7010
      %v7207 = vunpack.c.l.b16 %v7011
      %v7208 = vunpack.c.h.b16 %v7011
      %v7209 = vunpack.c.l.b16 %v7012
      %v7210 = vunpack.c.h.b16 %v7012
      %v7211 = vunpack.c.l.b16 %v7013
      %v7212 = vunpack.c.h.b16 %v7013
      %v7213 = vunpack.c.l.b16 %v7014
      %v7214 = vunpack.c.h.b16 %v7014
      %v7215 = vunpack.c.l.b16 %v7015
      %v7216 = vunpack.c.h.b16 %v7015
      %v7217 = vunpack.c.l.b16 %v7016
      %v7218 = vunpack.c.h.b16 %v7016
      %v7219 = vunpack.c.l.b16 %v7017
      %v7220 = vunpack.c.h.b16 %v7017
      %v7221 = vunpack.c.l.b16 %v7018
      %v7222 = vunpack.c.h.b16 %v7018
      %v7223 = vunpack.c.l.b16 %v7019
      %v7224 = vunpack.c.h.b16 %v7019
      %v7225 = vunpack.c.l.b16 %v7020
      %v7226 = vunpack.c.h.b16 %v7020
      %v7227 = vunpack.c.l.b16 %v7021
      %v7228 = vunpack.c.h.b16 %v7021
      %v7229 = vunpack.c.l.b16 %v7022
      %v7230 = vunpack.c.h.b16 %v7022
      %v7231 = vunpack.c.l.b16 %v7023
      %v7232 = vunpack.c.h.b16 %v7023
      %v7233 = vunpack.c.l.b16 %v7024
      %v7234 = vunpack.c.h.b16 %v7024
      %v7235 = vunpack.c.l.b16 %v7025
      %v7236 = vunpack.c.h.b16 %v7025
      %v7237 = vunpack.c.l.b16 %v7026
      %v7238 = vunpack.c.h.b16 %v7026
      %v7239 = vunpack.c.l.b16 %v7027
      %v7240 = vunpack.c.h.b16 %v7027
      %v7241 = vunpack.c.l.b16 %v7028
      %v7242 = vunpack.c.h.b16 %v7028
      %v7243 = vunpack.c.l.b16 %v7029
      %v7244 = vunpack.c.h.b16 %v7029
      %v7245 = vunpack.c.l.b16 %v7030
      %v7246 = vunpack.c.h.b16 %v7030
      %v7247 = vunpack.c.l.b16 %v7031
      %v7248 = vunpack.c.h.b16 %v7031
      %v7249 = vunpack.c.l.b16 %v7032
      %v7250 = vunpack.c.h.b16 %v7032
      %v7251 = vunpack.c.l.b16 %v7033
      %v7252 = vunpack.c.h.b16 %v7033
      %v7253 = vunpack.c.l.b16 %v7034
      %v7254 = vunpack.c.h.b16 %v7034
      %v7255 = vunpack.c.l.b16 %v7035
      %v7256 = vunpack.c.h.b16 %v7035
      %v7257 = vunpack.c.l.b16 %v7036
      %v7258 = vunpack.c.h.b16 %v7036
      %v7259 = vunpack.c.l.b16 %v7037
      %v7260 = vunpack.c.h.b16 %v7037
      %v7261 = vunpack.c.l.b16 %v7038
      %v7262 = vunpack.c.h.b16 %v7038
      %v7263 = vunpack.c.l.b16 %v7039
      %v7264 = vunpack.c.h.b16 %v7039
      %v7265 = vunpack.c.l.b16 %v7040
      %v7266 = vunpack.c.h.b16 %v7040
      %v7267 = vunpack.c.l.b16 %v7041
      %v7268 = vunpack.c.h.b16 %v7041
      %v7269 = vunpack.c.l.b16 %v7042
      %v7270 = vunpack.c.h.b16 %v7042
      %v7271 = vunpack.c.l.b16 %v7043
      %v7272 = vunpack.c.h.b16 %v7043
      %v7273 = vunpack.c.l.b16 %v7044
      %v7274 = vunpack.c.h.b16 %v7044
      %v7275 = vpack.c.b16 %v7133, %v7131
      %v7276 = vpack.c.b16 %v7134, %v7132
      %v7277 = vpack.c.b16 %v7137, %v7135
      %v7278 = vpack.c.b16 %v7138, %v7136
      %v7279 = vpack.c.b16 %v7141, %v7139
      %v7280 = vpack.c.b16 %v7142, %v7140
      %v7281 = vpack.c.b16 %v7145, %v7143
      %v7282 = vpack.c.b16 %v7146, %v7144
      %v7283 = vpack.c.b16 %v7149, %v7147
      %v7284 = vpack.c.b16 %v7150, %v7148
      %v7285 = vpack.c.b16 %v7153, %v7151
      %v7286 = vpack.c.b16 %v7154, %v7152
      %v7287 = vpack.c.b16 %v7157, %v7155
      %v7288 = vpack.c.b16 %v7158, %v7156
      %v7289 = vpack.c.b16 %v7161, %v7159
      %v7290 = vpack.c.b16 %v7162, %v7160
      %v7291 = vpack.c.b16 %v7165, %v7163
      %v7292 = vpack.c.b16 %v7166, %v7164
      %v7293 = vpack.c.b16 %v7169, %v7167
      %v7294 = vpack.c.b16 %v7170, %v7168
      %v7295 = vpack.c.b16 %v7173, %v7171
      %v7296 = vpack.c.b16 %v7174, %v7172
      %v7297 = vpack.c.b16 %v7177, %v7175
      %v7298 = vpack.c.b16 %v7178, %v7176
      %v7299 = vpack.c.b16 %v7181, %v7179
      %v7300 = vpack.c.b16 %v7182, %v7180
      %v7301 = vpack.c.b16 %v7185, %v7183
      %v7302 = vpack.c.b16 %v7186, %v7184
      %v7303 = vpack.c.b16 %v7189, %v7187
      %v7304 = vpack.c.b16 %v7190, %v7188
      %v7305 = vpack.c.b16 %v7193, %v7191
      %v7306 = vpack.c.b16 %v7194, %v7192
      %v7307 = vpack.c.b16 %v7197, %v7195
      %v7308 = vpack.c.b16 %v7198, %v7196
      %v7309 = vpack.c.b16 %v7201, %v7199
      %v7310 = vpack.c.b16 %v7202, %v7200
      %v7311 = vpack.c.b16 %v7205, %v7203
      %v7312 = vpack.c.b16 %v7206, %v7204
      %v7313 = vpack.c.b16 %v7209, %v7207
      %v7314 = vpack.c.b16 %v7210, %v7208
      %v7315 = vpack.c.b16 %v7213, %v7211
      %v7316 = vpack.c.b16 %v7214, %v7212
      %v7317 = vpack.c.b16 %v7217, %v7215
      %v7318 = vpack.c.b16 %v7218, %v7216
      %v7319 = vpack.c.b16 %v7221, %v7219
      %v7320 = vpack.c.b16 %v7222, %v7220
      %v7321 = vpack.c.b16 %v7225, %v7223
      %v7322 = vpack.c.b16 %v7226, %v7224
      %v7323 = vpack.c.b16 %v7229, %v7227
      %v7324 = vpack.c.b16 %v7230, %v7228
      %v7325 = vpack.c.b16 %v7233, %v7231
      %v7326 = vpack.c.b16 %v7234, %v7232
      %v7327 = vpack.c.b16 %v7237, %v7235
      %v7328 = vpack.c.b16 %v7238, %v7236
      %v7329 = vpack.c.b16 %v7241, %v7239
      %v7330 = vpack.c.b16 %v7242, %v7240
      %v7331 = vpack.c.b16 %v7245, %v7243
      %v7332 = vpack.c.b16 %v7246, %v7244
      %v7333 = vpack.c.b16 %v7249, %v7247
      %v7334 = vpack.c.b16 %v7250, %v7248
      %v7335 = vpack.c.b16 %v7253, %v7251
      %v7336 = vpack.c.b16 %v7254, %v7252
      %v7337 = vpack.c.b16 %v7257, %v7255
      %v7338 = vpack.c.b16 %v7258, %v7256
      %v7339 = vpack.c.b16 %v7261, %v7259
      %v7340 = vpack.c.b16 %v7262, %v7260
      %v7341 = vpack.c.b16 %v7265, %v7263
      %v7342 = vpack.c.b16 %v7266, %v7264
      %v7343 = vpack.c.b16 %v7269, %v7267
      %v7344 = vpack.c.b16 %v7270, %v7268
      %v7345 = vpack.c.b16 %v7273, %v7271
      %v7346 = vpack.c.b16 %v7274, %v7272
      %vm7419 = vcmask 523264
      %v7420 = vsel %vm7419, %v7054, 0
      %7422 = vmatpush.bf16.msra.mxu0 %v7289
      %7423 = vmatpush.bf16.msra.mxu0 %v7287
      %7424 = vmatpush.bf16.msra.mxu0 %v7285
      %7425 = vmatpush.bf16.msra.mxu0 %v7283
      %7426 = vmatpush.bf16.msra.mxu0 %v7281
      %7427 = vmatpush.bf16.msra.mxu0 %v7279
      %7428 = vmatpush.bf16.msra.mxu0 %v7277
      %7429 = vmatpush.bf16.msra.mxu0 %v7275
      %7430 = vmatmul.bf16.gmra.mxu0 %v7050
      %v7431 = vpop.f32.mrf.mxu0
      %v7432 = vadd.f32 0.0, %v7431
      %v7433 = vpop.f32.mrf.mxu0
      %7434 = vdwg.mxu0
      %7435 = vmatpush.bf16.msra.mxu0 %v7305
      %7436 = vmatpush.bf16.msra.mxu0 %v7303
      %7437 = vmatpush.bf16.msra.mxu0 %v7301
      %7438 = vmatpush.bf16.msra.mxu0 %v7299
      %7439 = vmatpush.bf16.msra.mxu0 %v7297
      %7440 = vmatpush.bf16.msra.mxu0 %v7295
      %7441 = vmatpush.bf16.msra.mxu0 %v7293
      %7442 = vmatpush.bf16.msra.mxu0 %v7291
      %7443 = vmatmul.bf16.gmra.mxu0 %v7051
      %v7444 = vpop.f32.mrf.mxu0
      %v7445 = vadd.f32 %v7432, %v7444
      %v7446 = vpop.f32.mrf.mxu0
      %7447 = vdwg.mxu0
      %7448 = vmatpush.bf16.msra.mxu0 %v7321
      %7449 = vmatpush.bf16.msra.mxu0 %v7319
      %7450 = vmatpush.bf16.msra.mxu0 %v7317
      %7451 = vmatpush.bf16.msra.mxu0 %v7315
      %7452 = vmatpush.bf16.msra.mxu0 %v7313
      %7453 = vmatpush.bf16.msra.mxu0 %v7311
      %7454 = vmatpush.bf16.msra.mxu0 %v7309
      %7455 = vmatpush.bf16.msra.mxu0 %v7307
      %7456 = vmatmul.bf16.gmra.mxu0 %v7052
      %v7457 = vpop.f32.mrf.mxu0
      %v7458 = vadd.f32 %v7445, %v7457
      %v7459 = vpop.f32.mrf.mxu0
      %7460 = vdwg.mxu0
      %7461 = vmatpush.bf16.msra.mxu0 %v7337
      %7462 = vmatpush.bf16.msra.mxu0 %v7335
      %7463 = vmatpush.bf16.msra.mxu0 %v7333
      %7464 = vmatpush.bf16.msra.mxu0 %v7331
      %7465 = vmatpush.bf16.msra.mxu0 %v7329
      %7466 = vmatpush.bf16.msra.mxu0 %v7327
      %7467 = vmatpush.bf16.msra.mxu0 %v7325
      %7468 = vmatpush.bf16.msra.mxu0 %v7323
      %7469 = vmatmul.bf16.gmra.mxu0 %v7053
      %v7470 = vpop.f32.mrf.mxu0
      %v7471 = vadd.f32 %v7458, %v7470
      %v7472 = vpop.f32.mrf.mxu0
      %7473 = vdwg.mxu0
      %7474 = vmatpush.bf16.msra.mxu0 0
      %7475 = vmatpush.bf16.msra.mxu0 0
      %7476 = vmatpush.bf16.msra.mxu0 0
      %7477 = vmatpush.bf16.msra.mxu0 0
      %7478 = vmatpush.bf16.msra.mxu0 %v7345
      %7479 = vmatpush.bf16.msra.mxu0 %v7343
      %7480 = vmatpush.bf16.msra.mxu0 %v7341
      %7481 = vmatpush.bf16.msra.mxu0 %v7339
      %7482 = vmatmul.bf16.gmra.mxu0 %v7420
      %v7483 = vpop.f32.mrf.mxu0
      %v7484 = vadd.f32 %v7471, %v7483
      %v7485 = vpop.f32.mrf.mxu0
      %7486 = vdwg.mxu0
      %7487 = vmatpush.bf16.msra.mxu0 %v7290
      %7488 = vmatpush.bf16.msra.mxu0 %v7288
      %7489 = vmatpush.bf16.msra.mxu0 %v7286
      %7490 = vmatpush.bf16.msra.mxu0 %v7284
      %7491 = vmatpush.bf16.msra.mxu0 %v7282
      %7492 = vmatpush.bf16.msra.mxu0 %v7280
      %7493 = vmatpush.bf16.msra.mxu0 %v7278
      %7494 = vmatpush.bf16.msra.mxu0 %v7276
      %7495 = vmatmul.bf16.gmra.mxu0 %v7050
      %v7496 = vpop.f32.mrf.mxu0
      %v7497 = vadd.f32 0.0, %v7496
      %v7498 = vpop.f32.mrf.mxu0
      %7499 = vdwg.mxu0
      %7500 = vmatpush.bf16.msra.mxu0 %v7306
      %7501 = vmatpush.bf16.msra.mxu0 %v7304
      %7502 = vmatpush.bf16.msra.mxu0 %v7302
      %7503 = vmatpush.bf16.msra.mxu0 %v7300
      %7504 = vmatpush.bf16.msra.mxu0 %v7298
      %7505 = vmatpush.bf16.msra.mxu0 %v7296
      %7506 = vmatpush.bf16.msra.mxu0 %v7294
      %7507 = vmatpush.bf16.msra.mxu0 %v7292
      %7508 = vmatmul.bf16.gmra.mxu0 %v7051
      %v7509 = vpop.f32.mrf.mxu0
      %v7510 = vadd.f32 %v7497, %v7509
      %v7511 = vpop.f32.mrf.mxu0
      %7512 = vdwg.mxu0
      %7513 = vmatpush.bf16.msra.mxu0 %v7322
      %7514 = vmatpush.bf16.msra.mxu0 %v7320
      %7515 = vmatpush.bf16.msra.mxu0 %v7318
      %7516 = vmatpush.bf16.msra.mxu0 %v7316
      %7517 = vmatpush.bf16.msra.mxu0 %v7314
      %7518 = vmatpush.bf16.msra.mxu0 %v7312
      %7519 = vmatpush.bf16.msra.mxu0 %v7310
      %7520 = vmatpush.bf16.msra.mxu0 %v7308
      %7521 = vmatmul.bf16.gmra.mxu0 %v7052
      %v7522 = vpop.f32.mrf.mxu0
      %v7523 = vadd.f32 %v7510, %v7522
      %v7524 = vpop.f32.mrf.mxu0
      %7525 = vdwg.mxu0
      %7526 = vmatpush.bf16.msra.mxu0 %v7338
      %7527 = vmatpush.bf16.msra.mxu0 %v7336
      %7528 = vmatpush.bf16.msra.mxu0 %v7334
      %7529 = vmatpush.bf16.msra.mxu0 %v7332
      %7530 = vmatpush.bf16.msra.mxu0 %v7330
      %7531 = vmatpush.bf16.msra.mxu0 %v7328
      %7532 = vmatpush.bf16.msra.mxu0 %v7326
      %7533 = vmatpush.bf16.msra.mxu0 %v7324
      %7534 = vmatmul.bf16.gmra.mxu0 %v7053
      %v7535 = vpop.f32.mrf.mxu0
      %v7536 = vadd.f32 %v7523, %v7535
      %v7537 = vpop.f32.mrf.mxu0
      %7538 = vdwg.mxu0
      %7539 = vmatpush.bf16.msra.mxu0 0
      %7540 = vmatpush.bf16.msra.mxu0 0
      %7541 = vmatpush.bf16.msra.mxu0 0
      %7542 = vmatpush.bf16.msra.mxu0 0
      %7543 = vmatpush.bf16.msra.mxu0 %v7346
      %7544 = vmatpush.bf16.msra.mxu0 %v7344
      %7545 = vmatpush.bf16.msra.mxu0 %v7342
      %7546 = vmatpush.bf16.msra.mxu0 %v7340
      %7547 = vmatmul.bf16.gmra.mxu0 %v7420
      %v7548 = vpop.f32.mrf.mxu0
      %v7549 = vadd.f32 %v7536, %v7548
      %v7550 = vpop.f32.mrf.mxu0
      %7551 = vdwg.mxu0
      %v7552 = vld [vmem:[%s246] sm:$0xff]
      %v7555 = vrot.slane %v7549, 4
      %v7556 = vsel %vm6442, %v7484, %v7555
      %7557 = vrot.lane.b32.xlu0 %v7556, 19
      %v7558 = vpop.permute.xlu0 %7557
      %v7559 = vrot.slane %v7558, 4
      %vm7560 = vcmask 154624
      %v7561 = vsel %vm7560, %v7559, %v7558
      %v7563 = vsub.f32 %v7552, %v7561
      %7565 = vrot.lane.b32.xlu0 %v7563, 109
      %v7566 = vpop.permute.xlu0 %7565
      %v7567 = vrot.slane %v7566, 4
      %vm7568 = vcmask 891904
      %v7569 = vsel %vm7568, %v7566, %v7567
      %7571 = vst.msk [vmem:[%s251] sm:$0xff] %vm6444, %v7569
      %v7572 = vld [vmem:[#allocation2 + $0x4] sm:$0xff]
      %v7573 = vld [vmem:[#allocation2 + $0x10] sm:$0xff]
      %v7574 = vld [vmem:[#allocation2 + $0x1c] sm:$0xff]
      %v7575 = vld [vmem:[#allocation2 + $0x28] sm:$0xff]
      %v7576 = vld [vmem:[#allocation2 + $0x34] sm:$0xff]
      %v7577 = vld [vmem:[#allocation2 + $0x40] sm:$0xff]
      %v7578 = vld [vmem:[#allocation2 + $0x4c] sm:$0xff]
      %v7579 = vld [vmem:[#allocation2 + $0x58] sm:$0xff]
      %7588 = vrot.lane.b32.xlu0 %v7572, 112
      %v7589 = vpop.permute.xlu0 %7588
      %7590 = vrot.lane.b32.xlu0 %v7573, 112
      %v7591 = vpop.permute.xlu0 %7590
      %7592 = vrot.lane.b32.xlu0 %v7574, 112
      %v7593 = vpop.permute.xlu0 %7592
      %7594 = vrot.lane.b32.xlu0 %v7575, 112
      %v7595 = vpop.permute.xlu0 %7594
      %7596 = vrot.lane.b32.xlu0 %v7576, 112
      %v7597 = vpop.permute.xlu0 %7596
      %7598 = vrot.lane.b32.xlu0 %v7577, 112
      %v7599 = vpop.permute.xlu0 %7598
      %7600 = vrot.lane.b32.xlu0 %v7578, 112
      %v7601 = vpop.permute.xlu0 %7600
      %7602 = vrot.lane.b32.xlu0 %v7579, 112
      %v7603 = vpop.permute.xlu0 %7602
      %v7604 = vrot.slane %v7589, 4
      %v7605 = vrot.slane %v7591, 4
      %v7606 = vrot.slane %v7593, 4
      %v7607 = vrot.slane %v7595, 4
      %v7608 = vrot.slane %v7597, 4
      %v7609 = vrot.slane %v7599, 4
      %v7610 = vrot.slane %v7601, 4
      %v7611 = vrot.slane %v7603, 4
      %vm7612 = vcmask 916480
      %v7613 = vsel %vm7612, %v7589, %v7604
      %v7614 = vsel %vm7612, %v7591, %v7605
      %v7615 = vsel %vm7612, %v7593, %v7606
      %v7616 = vsel %vm7612, %v7595, %v7607
      %v7617 = vsel %vm7612, %v7597, %v7608
      %v7618 = vsel %vm7612, %v7599, %v7609
      %v7619 = vsel %vm7612, %v7601, %v7610
      %v7620 = vsel %vm7612, %v7603, %v7611
      %7629 = vst.msk [vmem:[#allocation5] sm:$0xff] %vm6444, %v7613
      %7630 = vst.msk [vmem:[#allocation5 + $0x8] sm:$0xff] %vm6444, %v7614
      %7631 = vst.msk [vmem:[#allocation5 + $0x10] sm:$0xff] %vm6444, %v7615
      %7632 = vst.msk [vmem:[#allocation5 + $0x18] sm:$0xff] %vm6444, %v7616
      %7633 = vst.msk [vmem:[#allocation5 + $0x20] sm:$0xff] %vm6444, %v7617
      %7634 = vst.msk [vmem:[#allocation5 + $0x28] sm:$0xff] %vm6444, %v7618
      %7635 = vst.msk [vmem:[#allocation5 + $0x30] sm:$0xff] %vm6444, %v7619
      %7636 = vst.msk [vmem:[#allocation5 + $0x38] sm:$0xff] %vm6444, %v7620
      %v7637 = vld [vmem:[#allocation2 + $0x4] sm:$0xff]
      %v7638 = vld [vmem:[#allocation2 + $0x10] sm:$0xff]
      %v7639 = vld [vmem:[#allocation2 + $0x1c] sm:$0xff]
      %v7640 = vld [vmem:[#allocation2 + $0x28] sm:$0xff]
      %v7641 = vld [vmem:[#allocation2 + $0x34] sm:$0xff]
      %v7642 = vld [vmem:[#allocation2 + $0x40] sm:$0xff]
      %v7643 = vld [vmem:[#allocation2 + $0x4c] sm:$0xff]
      %v7644 = vld [vmem:[#allocation2 + $0x58] sm:$0xff]
      %7653 = vrot.lane.b32.xlu0 %v7637, 111
      %v7654 = vpop.permute.xlu0 %7653
      %7655 = vrot.lane.b32.xlu0 %v7638, 111
      %v7656 = vpop.permute.xlu0 %7655
      %7657 = vrot.lane.b32.xlu0 %v7639, 111
      %v7658 = vpop.permute.xlu0 %7657
      %7659 = vrot.lane.b32.xlu0 %v7640, 111
      %v7660 = vpop.permute.xlu0 %7659
      %7661 = vrot.lane.b32.xlu0 %v7641, 111
      %v7662 = vpop.permute.xlu0 %7661
      %7663 = vrot.lane.b32.xlu0 %v7642, 111
      %v7664 = vpop.permute.xlu0 %7663
      %7665 = vrot.lane.b32.xlu0 %v7643, 111
      %v7666 = vpop.permute.xlu0 %7665
      %7667 = vrot.lane.b32.xlu0 %v7644, 111
      %v7668 = vpop.permute.xlu0 %7667
      %v7669 = vrot.slane %v7654, 4
      %v7670 = vrot.slane %v7656, 4
      %v7671 = vrot.slane %v7658, 4
      %v7672 = vrot.slane %v7660, 4
      %v7673 = vrot.slane %v7662, 4
      %v7674 = vrot.slane %v7664, 4
      %v7675 = vrot.slane %v7666, 4
      %v7676 = vrot.slane %v7668, 4
      %vm7677 = vcmask 908288
      %v7678 = vsel %vm7677, %v7654, %v7669
      %v7679 = vsel %vm7677, %v7656, %v7670
      %v7680 = vsel %vm7677, %v7658, %v7671
      %v7681 = vsel %vm7677, %v7660, %v7672
      %v7682 = vsel %vm7677, %v7662, %v7673
      %v7683 = vsel %vm7677, %v7664, %v7674
      %v7684 = vsel %vm7677, %v7666, %v7675
      %v7685 = vsel %vm7677, %v7668, %v7676
      %7694 = vst.msk [vmem:[#allocation5 + $0x40] sm:$0xff] %vm6444, %v7678
      %7695 = vst.msk [vmem:[#allocation5 + $0x48] sm:$0xff] %vm6444, %v7679
      %7696 = vst.msk [vmem:[#allocation5 + $0x50] sm:$0xff] %vm6444, %v7680
      %7697 = vst.msk [vmem:[#allocation5 + $0x58] sm:$0xff] %vm6444, %v7681
      %7698 = vst.msk [vmem:[#allocation5 + $0x60] sm:$0xff] %vm6444, %v7682
      %7699 = vst.msk [vmem:[#allocation5 + $0x68] sm:$0xff] %vm6444, %v7683
      %7700 = vst.msk [vmem:[#allocation5 + $0x70] sm:$0xff] %vm6444, %v7684
      %7701 = vst.msk [vmem:[#allocation5 + $0x78] sm:$0xff] %vm6444, %v7685
      %v7702 = vld [vmem:[#allocation2 + $0x4] sm:$0xff]
      %v7703 = vld [vmem:[#allocation2 + $0x10] sm:$0xff]
      %v7704 = vld [vmem:[#allocation2 + $0x1c] sm:$0xff]
      %v7705 = vld [vmem:[#allocation2 + $0x28] sm:$0xff]
      %v7706 = vld [vmem:[#allocation2 + $0x34] sm:$0xff]
      %v7707 = vld [vmem:[#allocation2 + $0x40] sm:$0xff]
      %v7708 = vld [vmem:[#allocation2 + $0x4c] sm:$0xff]
      %v7709 = vld [vmem:[#allocation2 + $0x58] sm:$0xff]
      %7718 = vrot.lane.b32.xlu0 %v7702, 110
      %v7719 = vpop.permute.xlu0 %7718
      %7720 = vrot.lane.b32.xlu0 %v7703, 110
      %v7721 = vpop.permute.xlu0 %7720
      %7722 = vrot.lane.b32.xlu0 %v7704, 110
      %v7723 = vpop.permute.xlu0 %7722
      %7724 = vrot.lane.b32.xlu0 %v7705, 110
      %v7725 = vpop.permute.xlu0 %7724
      %7726 = vrot.lane.b32.xlu0 %v7706, 110
      %v7727 = vpop.permute.xlu0 %7726
      %7728 = vrot.lane.b32.xlu0 %v7707, 110
      %v7729 = vpop.permute.xlu0 %7728
      %7730 = vrot.lane.b32.xlu0 %v7708, 110
      %v7731 = vpop.permute.xlu0 %7730
      %7732 = vrot.lane.b32.xlu0 %v7709, 110
      %v7733 = vpop.permute.xlu0 %7732
      %v7734 = vrot.slane %v7719, 4
      %v7735 = vrot.slane %v7721, 4
      %v7736 = vrot.slane %v7723, 4
      %v7737 = vrot.slane %v7725, 4
      %v7738 = vrot.slane %v7727, 4
      %v7739 = vrot.slane %v7729, 4
      %v7740 = vrot.slane %v7731, 4
      %v7741 = vrot.slane %v7733, 4
      %v7742 = vsel %vm6623, %v7719, %v7734
      %v7743 = vsel %vm6623, %v7721, %v7735
      %v7744 = vsel %vm6623, %v7723, %v7736
      %v7745 = vsel %vm6623, %v7725, %v7737
      %v7746 = vsel %vm6623, %v7727, %v7738
      %v7747 = vsel %vm6623, %v7729, %v7739
      %v7748 = vsel %vm6623, %v7731, %v7740
      %v7749 = vsel %vm6623, %v7733, %v7741
      %7758 = vst.msk [vmem:[#allocation5 + $0x80] sm:$0xff] %vm6444, %v7742
      %7759 = vst.msk [vmem:[#allocation5 + $0x88] sm:$0xff] %vm6444, %v7743
      %7760 = vst.msk [vmem:[#allocation5 + $0x90] sm:$0xff] %vm6444, %v7744
      %7761 = vst.msk [vmem:[#allocation5 + $0x98] sm:$0xff] %vm6444, %v7745
      %7762 = vst.msk [vmem:[#allocation5 + $0xa0] sm:$0xff] %vm6444, %v7746
      %7763 = vst.msk [vmem:[#allocation5 + $0xa8] sm:$0xff] %vm6444, %v7747
      %7764 = vst.msk [vmem:[#allocation5 + $0xb0] sm:$0xff] %vm6444, %v7748
      %7765 = vst.msk [vmem:[#allocation5 + $0xb8] sm:$0xff] %vm6444, %v7749
      %v7766 = vld [vmem:[#allocation2 + $0x4] sm:$0xff]
      %v7767 = vld [vmem:[#allocation2 + $0x10] sm:$0xff]
      %v7768 = vld [vmem:[#allocation2 + $0x1c] sm:$0xff]
      %v7769 = vld [vmem:[#allocation2 + $0x28] sm:$0xff]
      %v7770 = vld [vmem:[#allocation2 + $0x34] sm:$0xff]
      %v7771 = vld [vmem:[#allocation2 + $0x40] sm:$0xff]
      %v7772 = vld [vmem:[#allocation2 + $0x4c] sm:$0xff]
      %v7773 = vld [vmem:[#allocation2 + $0x58] sm:$0xff]
      %7782 = vrot.lane.b32.xlu0 %v7766, 94
      %v7783 = vpop.permute.xlu0 %7782
      %7784 = vrot.lane.b32.xlu0 %v7767, 94
      %v7785 = vpop.permute.xlu0 %7784
      %7786 = vrot.lane.b32.xlu0 %v7768, 94
      %v7787 = vpop.permute.xlu0 %7786
      %7788 = vrot.lane.b32.xlu0 %v7769, 94
      %v7789 = vpop.permute.xlu0 %7788
      %7790 = vrot.lane.b32.xlu0 %v7770, 94
      %v7791 = vpop.permute.xlu0 %7790
      %7792 = vrot.lane.b32.xlu0 %v7771, 94
      %v7793 = vpop.permute.xlu0 %7792
      %7794 = vrot.lane.b32.xlu0 %v7772, 94
      %v7795 = vpop.permute.xlu0 %7794
      %7796 = vrot.lane.b32.xlu0 %v7773, 94
      %v7797 = vpop.permute.xlu0 %7796
      %v7798 = vrot.slane %v7783, 4
      %v7799 = vrot.slane %v7785, 4
      %v7800 = vrot.slane %v7787, 4
      %v7801 = vrot.slane %v7789, 4
      %v7802 = vrot.slane %v7791, 4
      %v7803 = vrot.slane %v7793, 4
      %v7804 = vrot.slane %v7795, 4
      %v7805 = vrot.slane %v7797, 4
      %vm7806 = vcmask 769024
      %v7807 = vsel %vm7806, %v7783, %v7798
      %v7808 = vsel %vm7806, %v7785, %v7799
      %v7809 = vsel %vm7806, %v7787, %v7800
      %v7810 = vsel %vm7806, %v7789, %v7801
      %v7811 = vsel %vm7806, %v7791, %v7802
      %v7812 = vsel %vm7806, %v7793, %v7803
      %v7813 = vsel %vm7806, %v7795, %v7804
      %v7814 = vsel %vm7806, %v7797, %v7805
      %7823 = vst.msk [vmem:[#allocation5 + $0xc0] sm:$0xff] %vm6444, %v7807
      %7824 = vst.msk [vmem:[#allocation5 + $0xc8] sm:$0xff] %vm6444, %v7808
      %7825 = vst.msk [vmem:[#allocation5 + $0xd0] sm:$0xff] %vm6444, %v7809
      %7826 = vst.msk [vmem:[#allocation5 + $0xd8] sm:$0xff] %vm6444, %v7810
      %7827 = vst.msk [vmem:[#allocation5 + $0xe0] sm:$0xff] %vm6444, %v7811
      %7828 = vst.msk [vmem:[#allocation5 + $0xe8] sm:$0xff] %vm6444, %v7812
      %7829 = vst.msk [vmem:[#allocation5 + $0xf0] sm:$0xff] %vm6444, %v7813
      %7830 = vst.msk [vmem:[#allocation5 + $0xf8] sm:$0xff] %vm6444, %v7814
      %v7831 = vld [vmem:[#allocation2 + $0x4] sm:$0xff]
      %v7832 = vld [vmem:[#allocation2 + $0x10] sm:$0xff]
      %v7833 = vld [vmem:[#allocation2 + $0x1c] sm:$0xff]
      %v7834 = vld [vmem:[#allocation2 + $0x28] sm:$0xff]
      %v7835 = vld [vmem:[#allocation2 + $0x34] sm:$0xff]
      %v7836 = vld [vmem:[#allocation2 + $0x40] sm:$0xff]
      %v7837 = vld [vmem:[#allocation2 + $0x4c] sm:$0xff]
      %v7838 = vld [vmem:[#allocation2 + $0x58] sm:$0xff]
      %7847 = vrot.lane.b32.xlu0 %v7831, 93
      %v7848 = vpop.permute.xlu0 %7847
      %7849 = vrot.lane.b32.xlu0 %v7832, 93
      %v7850 = vpop.permute.xlu0 %7849
      %7851 = vrot.lane.b32.xlu0 %v7833, 93
      %v7852 = vpop.permute.xlu0 %7851
      %7853 = vrot.lane.b32.xlu0 %v7834, 93
      %v7854 = vpop.permute.xlu0 %7853
      %7855 = vrot.lane.b32.xlu0 %v7835, 93
      %v7856 = vpop.permute.xlu0 %7855
      %7857 = vrot.lane.b32.xlu0 %v7836, 93
      %v7858 = vpop.permute.xlu0 %7857
      %7859 = vrot.lane.b32.xlu0 %v7837, 93
      %v7860 = vpop.permute.xlu0 %7859
      %7861 = vrot.lane.b32.xlu0 %v7838, 93
      %v7862 = vpop.permute.xlu0 %7861
      %v7863 = vrot.slane %v7848, 4
      %v7864 = vrot.slane %v7850, 4
      %v7865 = vrot.slane %v7852, 4
      %v7866 = vrot.slane %v7854, 4
      %v7867 = vrot.slane %v7856, 4
      %v7868 = vrot.slane %v7858, 4
      %v7869 = vrot.slane %v7860, 4
      %v7870 = vrot.slane %v7862, 4
      %vm7871 = vcmask 760832
      %v7872 = vsel %vm7871, %v7848, %v7863
      %v7873 = vsel %vm7871, %v7850, %v7864
      %v7874 = vsel %vm7871, %v7852, %v7865
      %v7875 = vsel %vm7871, %v7854, %v7866
      %v7876 = vsel %vm7871, %v7856, %v7867
      %v7877 = vsel %vm7871, %v7858, %v7868
      %v7878 = vsel %vm7871, %v7860, %v7869
      %v7879 = vsel %vm7871, %v7862, %v7870
      %7888 = vst.msk [vmem:[#allocation5 + $0x100] sm:$0xff] %vm6444, %v7872
      %7889 = vst.msk [vmem:[#allocation5 + $0x108] sm:$0xff] %vm6444, %v7873
      %7890 = vst.msk [vmem:[#allocation5 + $0x110] sm:$0xff] %vm6444, %v7874
      %7891 = vst.msk [vmem:[#allocation5 + $0x118] sm:$0xff] %vm6444, %v7875
      %7892 = vst.msk [vmem:[#allocation5 + $0x120] sm:$0xff] %vm6444, %v7876
      %7893 = vst.msk [vmem:[#allocation5 + $0x128] sm:$0xff] %vm6444, %v7877
      %7894 = vst.msk [vmem:[#allocation5 + $0x130] sm:$0xff] %vm6444, %v7878
      %7895 = vst.msk [vmem:[#allocation5 + $0x138] sm:$0xff] %vm6444, %v7879
      %v7896 = vld [vmem:[#allocation2 + $0x4] sm:$0xff]
      %v7897 = vld [vmem:[#allocation2 + $0x10] sm:$0xff]
      %v7898 = vld [vmem:[#allocation2 + $0x1c] sm:$0xff]
      %v7899 = vld [vmem:[#allocation2 + $0x28] sm:$0xff]
      %v7900 = vld [vmem:[#allocation2 + $0x34] sm:$0xff]
      %v7901 = vld [vmem:[#allocation2 + $0x40] sm:$0xff]
      %v7902 = vld [vmem:[#allocation2 + $0x4c] sm:$0xff]
      %v7903 = vld [vmem:[#allocation2 + $0x58] sm:$0xff]
      %7912 = vrot.lane.b32.xlu0 %v7896, 92
      %v7913 = vpop.permute.xlu0 %7912
      %7914 = vrot.lane.b32.xlu0 %v7897, 92
      %v7915 = vpop.permute.xlu0 %7914
      %7916 = vrot.lane.b32.xlu0 %v7898, 92
      %v7917 = vpop.permute.xlu0 %7916
      %7918 = vrot.lane.b32.xlu0 %v7899, 92
      %v7919 = vpop.permute.xlu0 %7918
      %7920 = vrot.lane.b32.xlu0 %v7900, 92
      %v7921 = vpop.permute.xlu0 %7920
      %7922 = vrot.lane.b32.xlu0 %v7901, 92
      %v7923 = vpop.permute.xlu0 %7922
      %7924 = vrot.lane.b32.xlu0 %v7902, 92
      %v7925 = vpop.permute.xlu0 %7924
      %7926 = vrot.lane.b32.xlu0 %v7903, 92
      %v7927 = vpop.permute.xlu0 %7926
      %v7928 = vrot.slane %v7913, 4
      %v7929 = vrot.slane %v7915, 4
      %v7930 = vrot.slane %v7917, 4
      %v7931 = vrot.slane %v7919, 4
      %v7932 = vrot.slane %v7921, 4
      %v7933 = vrot.slane %v7923, 4
      %v7934 = vrot.slane %v7925, 4
      %v7935 = vrot.slane %v7927, 4
      %v7936 = vsel %vm6818, %v7913, %v7928
      %v7937 = vsel %vm6818, %v7915, %v7929
      %v7938 = vsel %vm6818, %v7917, %v7930
      %v7939 = vsel %vm6818, %v7919, %v7931
      %v7940 = vsel %vm6818, %v7921, %v7932
      %v7941 = vsel %vm6818, %v7923, %v7933
      %v7942 = vsel %vm6818, %v7925, %v7934
      %v7943 = vsel %vm6818, %v7927, %v7935
      %7952 = vst.msk [vmem:[#allocation5 + $0x140] sm:$0xff] %vm6444, %v7936
      %7953 = vst.msk [vmem:[#allocation5 + $0x148] sm:$0xff] %vm6444, %v7937
      %7954 = vst.msk [vmem:[#allocation5 + $0x150] sm:$0xff] %vm6444, %v7938
      %7955 = vst.msk [vmem:[#allocation5 + $0x158] sm:$0xff] %vm6444, %v7939
      %7956 = vst.msk [vmem:[#allocation5 + $0x160] sm:$0xff] %vm6444, %v7940
      %7957 = vst.msk [vmem:[#allocation5 + $0x168] sm:$0xff] %vm6444, %v7941
      %7958 = vst.msk [vmem:[#allocation5 + $0x170] sm:$0xff] %vm6444, %v7942
      %7959 = vst.msk [vmem:[#allocation5 + $0x178] sm:$0xff] %vm6444, %v7943
      %v7960 = vld [vmem:[#allocation2 + $0x4] sm:$0xff]
      %v7961 = vld [vmem:[#allocation2 + $0x10] sm:$0xff]
      %v7962 = vld [vmem:[#allocation2 + $0x1c] sm:$0xff]
      %v7963 = vld [vmem:[#allocation2 + $0x28] sm:$0xff]
      %v7964 = vld [vmem:[#allocation2 + $0x34] sm:$0xff]
      %v7965 = vld [vmem:[#allocation2 + $0x40] sm:$0xff]
      %v7966 = vld [vmem:[#allocation2 + $0x4c] sm:$0xff]
      %v7967 = vld [vmem:[#allocation2 + $0x58] sm:$0xff]
      %7976 = vrot.lane.b32.xlu0 %v7960, 76
      %v7977 = vpop.permute.xlu0 %7976
      %7978 = vrot.lane.b32.xlu0 %v7961, 76
      %v7979 = vpop.permute.xlu0 %7978
      %7980 = vrot.lane.b32.xlu0 %v7962, 76
      %v7981 = vpop.permute.xlu0 %7980
      %7982 = vrot.lane.b32.xlu0 %v7963, 76
      %v7983 = vpop.permute.xlu0 %7982
      %7984 = vrot.lane.b32.xlu0 %v7964, 76
      %v7985 = vpop.permute.xlu0 %7984
      %7986 = vrot.lane.b32.xlu0 %v7965, 76
      %v7987 = vpop.permute.xlu0 %7986
      %7988 = vrot.lane.b32.xlu0 %v7966, 76
      %v7989 = vpop.permute.xlu0 %7988
      %7990 = vrot.lane.b32.xlu0 %v7967, 76
      %v7991 = vpop.permute.xlu0 %7990
      %v7992 = vrot.slane %v7977, 4
      %v7993 = vrot.slane %v7979, 4
      %v7994 = vrot.slane %v7981, 4
      %v7995 = vrot.slane %v7983, 4
      %v7996 = vrot.slane %v7985, 4
      %v7997 = vrot.slane %v7987, 4
      %v7998 = vrot.slane %v7989, 4
      %v7999 = vrot.slane %v7991, 4
      %vm8000 = vcmask 621568
      %v8001 = vsel %vm8000, %v7977, %v7992
      %v8002 = vsel %vm8000, %v7979, %v7993
      %v8003 = vsel %vm8000, %v7981, %v7994
      %v8004 = vsel %vm8000, %v7983, %v7995
      %v8005 = vsel %vm8000, %v7985, %v7996
      %v8006 = vsel %vm8000, %v7987, %v7997
      %v8007 = vsel %vm8000, %v7989, %v7998
      %v8008 = vsel %vm8000, %v7991, %v7999
      %8017 = vst.msk [vmem:[#allocation5 + $0x180] sm:$0xff] %vm6444, %v8001
      %8018 = vst.msk [vmem:[#allocation5 + $0x188] sm:$0xff] %vm6444, %v8002
      %8019 = vst.msk [vmem:[#allocation5 + $0x190] sm:$0xff] %vm6444, %v8003
      %8020 = vst.msk [vmem:[#allocation5 + $0x198] sm:$0xff] %vm6444, %v8004
      %8021 = vst.msk [vmem:[#allocation5 + $0x1a0] sm:$0xff] %vm6444, %v8005
      %8022 = vst.msk [vmem:[#allocation5 + $0x1a8] sm:$0xff] %vm6444, %v8006
      %8023 = vst.msk [vmem:[#allocation5 + $0x1b0] sm:$0xff] %vm6444, %v8007
      %8024 = vst.msk [vmem:[#allocation5 + $0x1b8] sm:$0xff] %vm6444, %v8008
      %v8025 = vld [vmem:[#allocation2 + $0x4] sm:$0xff]
      %v8026 = vld [vmem:[#allocation2 + $0x10] sm:$0xff]
      %v8027 = vld [vmem:[#allocation2 + $0x1c] sm:$0xff]
      %v8028 = vld [vmem:[#allocation2 + $0x28] sm:$0xff]
      %v8029 = vld [vmem:[#allocation2 + $0x34] sm:$0xff]
      %v8030 = vld [vmem:[#allocation2 + $0x40] sm:$0xff]
      %v8031 = vld [vmem:[#allocation2 + $0x4c] sm:$0xff]
      %v8032 = vld [vmem:[#allocation2 + $0x58] sm:$0xff]
      %8041 = vrot.lane.b32.xlu0 %v8025, 75
      %v8042 = vpop.permute.xlu0 %8041
      %8043 = vrot.lane.b32.xlu0 %v8026, 75
      %v8044 = vpop.permute.xlu0 %8043
      %8045 = vrot.lane.b32.xlu0 %v8027, 75
      %v8046 = vpop.permute.xlu0 %8045
      %8047 = vrot.lane.b32.xlu0 %v8028, 75
      %v8048 = vpop.permute.xlu0 %8047
      %8049 = vrot.lane.b32.xlu0 %v8029, 75
      %v8050 = vpop.permute.xlu0 %8049
      %8051 = vrot.lane.b32.xlu0 %v8030, 75
      %v8052 = vpop.permute.xlu0 %8051
      %8053 = vrot.lane.b32.xlu0 %v8031, 75
      %v8054 = vpop.permute.xlu0 %8053
      %8055 = vrot.lane.b32.xlu0 %v8032, 75
      %v8056 = vpop.permute.xlu0 %8055
      %v8057 = vrot.slane %v8042, 4
      %v8058 = vrot.slane %v8044, 4
      %v8059 = vrot.slane %v8046, 4
      %v8060 = vrot.slane %v8048, 4
      %v8061 = vrot.slane %v8050, 4
      %v8062 = vrot.slane %v8052, 4
      %v8063 = vrot.slane %v8054, 4
      %v8064 = vrot.slane %v8056, 4
      %vm8065 = vcmask 613376
      %v8066 = vsel %vm8065, %v8042, %v8057
      %v8067 = vsel %vm8065, %v8044, %v8058
      %v8068 = vsel %vm8065, %v8046, %v8059
      %v8069 = vsel %vm8065, %v8048, %v8060
      %v8070 = vsel %vm8065, %v8050, %v8061
      %v8071 = vsel %vm8065, %v8052, %v8062
      %v8072 = vsel %vm8065, %v8054, %v8063
      %v8073 = vsel %vm8065, %v8056, %v8064
      %8082 = vst.msk [vmem:[#allocation5 + $0x1c0] sm:$0xff] %vm6444, %v8066
      %8083 = vst.msk [vmem:[#allocation5 + $0x1c8] sm:$0xff] %vm6444, %v8067
      %8084 = vst.msk [vmem:[#allocation5 + $0x1d0] sm:$0xff] %vm6444, %v8068
      %8085 = vst.msk [vmem:[#allocation5 + $0x1d8] sm:$0xff] %vm6444, %v8069
      %8086 = vst.msk [vmem:[#allocation5 + $0x1e0] sm:$0xff] %vm6444, %v8070
      %8087 = vst.msk [vmem:[#allocation5 + $0x1e8] sm:$0xff] %vm6444, %v8071
      %8088 = vst.msk [vmem:[#allocation5 + $0x1f0] sm:$0xff] %vm6444, %v8072
      %8089 = vst.msk [vmem:[#allocation5 + $0x1f8] sm:$0xff] %vm6444, %v8073
      %v8090 = vld [vmem:[#allocation2 + $0x4] sm:$0xff]
      %v8091 = vld [vmem:[#allocation2 + $0x10] sm:$0xff]
      %v8092 = vld [vmem:[#allocation2 + $0x1c] sm:$0xff]
      %v8093 = vld [vmem:[#allocation2 + $0x28] sm:$0xff]
      %v8094 = vld [vmem:[#allocation2 + $0x34] sm:$0xff]
      %v8095 = vld [vmem:[#allocation2 + $0x40] sm:$0xff]
      %v8096 = vld [vmem:[#allocation2 + $0x4c] sm:$0xff]
      %v8097 = vld [vmem:[#allocation2 + $0x58] sm:$0xff]
      %8106 = vrot.lane.b32.xlu0 %v8090, 74
      %v8107 = vpop.permute.xlu0 %8106
      %8108 = vrot.lane.b32.xlu0 %v8091, 74
      %v8109 = vpop.permute.xlu0 %8108
      %8110 = vrot.lane.b32.xlu0 %v8092, 74
      %v8111 = vpop.permute.xlu0 %8110
      %8112 = vrot.lane.b32.xlu0 %v8093, 74
      %v8113 = vpop.permute.xlu0 %8112
      %8114 = vrot.lane.b32.xlu0 %v8094, 74
      %v8115 = vpop.permute.xlu0 %8114
      %8116 = vrot.lane.b32.xlu0 %v8095, 74
      %v8117 = vpop.permute.xlu0 %8116
      %8118 = vrot.lane.b32.xlu0 %v8096, 74
      %v8119 = vpop.permute.xlu0 %8118
      %8120 = vrot.lane.b32.xlu0 %v8097, 74
      %v8121 = vpop.permute.xlu0 %8120
      %v8122 = vrot.slane %v8107, 4
      %v8123 = vrot.slane %v8109, 4
      %v8124 = vrot.slane %v8111, 4
      %v8125 = vrot.slane %v8113, 4
      %v8126 = vrot.slane %v8115, 4
      %v8127 = vrot.slane %v8117, 4
      %v8128 = vrot.slane %v8119, 4
      %v8129 = vrot.slane %v8121, 4
      %vm8130 = vcmask 605184
      %v8131 = vsel %vm8130, %v8107, %v8122
      %v8132 = vsel %vm8130, %v8109, %v8123
      %v8133 = vsel %vm8130, %v8111, %v8124
      %v8134 = vsel %vm8130, %v8113, %v8125
      %v8135 = vsel %vm8130, %v8115, %v8126
      %v8136 = vsel %vm8130, %v8117, %v8127
      %v8137 = vsel %vm8130, %v8119, %v8128
      %v8138 = vsel %vm8130, %v8121, %v8129
      %8147 = vst.msk [vmem:[#allocation5 + $0x200] sm:$0xff] %vm6444, %v8131
      %8148 = vst.msk [vmem:[#allocation5 + $0x208] sm:$0xff] %vm6444, %v8132
      %8149 = vst.msk [vmem:[#allocation5 + $0x210] sm:$0xff] %vm6444, %v8133
      %8150 = vst.msk [vmem:[#allocation5 + $0x218] sm:$0xff] %vm6444, %v8134
      %8151 = vst.msk [vmem:[#allocation5 + $0x220] sm:$0xff] %vm6444, %v8135
      %8152 = vst.msk [vmem:[#allocation5 + $0x228] sm:$0xff] %vm6444, %v8136
      %8153 = vst.msk [vmem:[#allocation5 + $0x230] sm:$0xff] %vm6444, %v8137
      %8154 = vst.msk [vmem:[#allocation5 + $0x238] sm:$0xff] %vm6444, %v8138
      %v8155 = vld [vmem:[#allocation5] sm:$0xff]
      %v8156 = vld [vmem:[#allocation5 + $0x8] sm:$0xff]
      %v8157 = vld [vmem:[#allocation5 + $0x10] sm:$0xff]
      %v8158 = vld [vmem:[#allocation5 + $0x18] sm:$0xff]
      %v8159 = vld [vmem:[#allocation5 + $0x20] sm:$0xff]
      %v8160 = vld [vmem:[#allocation5 + $0x28] sm:$0xff]
      %v8161 = vld [vmem:[#allocation5 + $0x30] sm:$0xff]
      %v8162 = vld [vmem:[#allocation5 + $0x38] sm:$0xff]
      %v8163 = vld [vmem:[#allocation5 + $0x40] sm:$0xff]
      %v8164 = vld [vmem:[#allocation5 + $0x48] sm:$0xff]
      %v8165 = vld [vmem:[#allocation5 + $0x50] sm:$0xff]
      %v8166 = vld [vmem:[#allocation5 + $0x58] sm:$0xff]
      %v8167 = vld [vmem:[#allocation5 + $0x60] sm:$0xff]
      %v8168 = vld [vmem:[#allocation5 + $0x68] sm:$0xff]
      %v8169 = vld [vmem:[#allocation5 + $0x70] sm:$0xff]
      %v8170 = vld [vmem:[#allocation5 + $0x78] sm:$0xff]
      %v8171 = vld [vmem:[#allocation5 + $0x80] sm:$0xff]
      %v8172 = vld [vmem:[#allocation5 + $0x88] sm:$0xff]
      %v8173 = vld [vmem:[#allocation5 + $0x90] sm:$0xff]
      %v8174 = vld [vmem:[#allocation5 + $0x98] sm:$0xff]
      %v8175 = vld [vmem:[#allocation5 + $0xa0] sm:$0xff]
      %v8176 = vld [vmem:[#allocation5 + $0xa8] sm:$0xff]
      %v8177 = vld [vmem:[#allocation5 + $0xb0] sm:$0xff]
      %v8178 = vld [vmem:[#allocation5 + $0xb8] sm:$0xff]
      %v8179 = vld [vmem:[#allocation5 + $0xc0] sm:$0xff]
      %v8180 = vld [vmem:[#allocation5 + $0xc8] sm:$0xff]
      %v8181 = vld [vmem:[#allocation5 + $0xd0] sm:$0xff]
      %v8182 = vld [vmem:[#allocation5 + $0xd8] sm:$0xff]
      %v8183 = vld [vmem:[#allocation5 + $0xe0] sm:$0xff]
      %v8184 = vld [vmem:[#allocation5 + $0xe8] sm:$0xff]
      %v8185 = vld [vmem:[#allocation5 + $0xf0] sm:$0xff]
      %v8186 = vld [vmem:[#allocation5 + $0xf8] sm:$0xff]
      %v8187 = vld [vmem:[#allocation5 + $0x100] sm:$0xff]
      %v8188 = vld [vmem:[#allocation5 + $0x108] sm:$0xff]
      %v8189 = vld [vmem:[#allocation5 + $0x110] sm:$0xff]
      %v8190 = vld [vmem:[#allocation5 + $0x118] sm:$0xff]
      %v8191 = vld [vmem:[#allocation5 + $0x120] sm:$0xff]
      %v8192 = vld [vmem:[#allocation5 + $0x128] sm:$0xff]
      %v8193 = vld [vmem:[#allocation5 + $0x130] sm:$0xff]
      %v8194 = vld [vmem:[#allocation5 + $0x138] sm:$0xff]
      %v8195 = vld [vmem:[#allocation5 + $0x140] sm:$0xff]
      %v8196 = vld [vmem:[#allocation5 + $0x148] sm:$0xff]
      %v8197 = vld [vmem:[#allocation5 + $0x150] sm:$0xff]
      %v8198 = vld [vmem:[#allocation5 + $0x158] sm:$0xff]
      %v8199 = vld [vmem:[#allocation5 + $0x160] sm:$0xff]
      %v8200 = vld [vmem:[#allocation5 + $0x168] sm:$0xff]
      %v8201 = vld [vmem:[#allocation5 + $0x170] sm:$0xff]
      %v8202 = vld [vmem:[#allocation5 + $0x178] sm:$0xff]
      %v8203 = vld [vmem:[#allocation5 + $0x180] sm:$0xff]
      %v8204 = vld [vmem:[#allocation5 + $0x188] sm:$0xff]
      %v8205 = vld [vmem:[#allocation5 + $0x190] sm:$0xff]
      %v8206 = vld [vmem:[#allocation5 + $0x198] sm:$0xff]
      %v8207 = vld [vmem:[#allocation5 + $0x1a0] sm:$0xff]
      %v8208 = vld [vmem:[#allocation5 + $0x1a8] sm:$0xff]
      %v8209 = vld [vmem:[#allocation5 + $0x1b0] sm:$0xff]
      %v8210 = vld [vmem:[#allocation5 + $0x1b8] sm:$0xff]
      %v8211 = vld [vmem:[#allocation5 + $0x1c0] sm:$0xff]
      %v8212 = vld [vmem:[#allocation5 + $0x1c8] sm:$0xff]
      %v8213 = vld [vmem:[#allocation5 + $0x1d0] sm:$0xff]
      %v8214 = vld [vmem:[#allocation5 + $0x1d8] sm:$0xff]
      %v8215 = vld [vmem:[#allocation5 + $0x1e0] sm:$0xff]
      %v8216 = vld [vmem:[#allocation5 + $0x1e8] sm:$0xff]
      %v8217 = vld [vmem:[#allocation5 + $0x1f0] sm:$0xff]
      %v8218 = vld [vmem:[#allocation5 + $0x1f8] sm:$0xff]
      %v8219 = vld [vmem:[#allocation5 + $0x200] sm:$0xff]
      %v8220 = vld [vmem:[#allocation5 + $0x208] sm:$0xff]
      %v8221 = vld [vmem:[#allocation5 + $0x210] sm:$0xff]
      %v8222 = vld [vmem:[#allocation5 + $0x218] sm:$0xff]
      %v8223 = vld [vmem:[#allocation5 + $0x220] sm:$0xff]
      %v8224 = vld [vmem:[#allocation5 + $0x228] sm:$0xff]
      %v8225 = vld [vmem:[#allocation5 + $0x230] sm:$0xff]
      %v8226 = vld [vmem:[#allocation5 + $0x238] sm:$0xff]
      %8227 = vst [vmem:[#allocation1] ss:$4 sm:$0xff] %v6432
      %s8228 = scalar_lea.vmem [#allocation1], 32
      %8229 = vst [vmem:[%s8228] ss:$4 sm:$0xff] %v6433
      %v8230 = vld.sshfl [vmem:[#allocation1] sm:$0xff pattern:$0x73625140]
      %v8231 = vld.sshfl [vmem:[#allocation1 + $0x8] sm:$0xff pattern:$0x73625140]
      %v8232 = vld.sshfl [vmem:[#allocation1 + $0x10] sm:$0xff pattern:$0x73625140]
      %v8233 = vld.sshfl [vmem:[#allocation1 + $0x18] sm:$0xff pattern:$0x73625140]
      %v8234 = vld.sshfl [vmem:[#allocation1 + $0x20] sm:$0xff pattern:$0x73625140]
      %v8311 = vunpack.c.l.b16 %v8155
      %v8312 = vunpack.c.h.b16 %v8155
      %v8313 = vunpack.c.l.b16 %v8156
      %v8314 = vunpack.c.h.b16 %v8156
      %v8315 = vunpack.c.l.b16 %v8157
      %v8316 = vunpack.c.h.b16 %v8157
      %v8317 = vunpack.c.l.b16 %v8158
      %v8318 = vunpack.c.h.b16 %v8158
      %v8319 = vunpack.c.l.b16 %v8159
      %v8320 = vunpack.c.h.b16 %v8159
      %v8321 = vunpack.c.l.b16 %v8160
      %v8322 = vunpack.c.h.b16 %v8160
      %v8323 = vunpack.c.l.b16 %v8161
      %v8324 = vunpack.c.h.b16 %v8161
      %v8325 = vunpack.c.l.b16 %v8162
      %v8326 = vunpack.c.h.b16 %v8162
      %v8327 = vunpack.c.l.b16 %v8163
      %v8328 = vunpack.c.h.b16 %v8163
      %v8329 = vunpack.c.l.b16 %v8164
      %v8330 = vunpack.c.h.b16 %v8164
      %v8331 = vunpack.c.l.b16 %v8165
      %v8332 = vunpack.c.h.b16 %v8165
      %v8333 = vunpack.c.l.b16 %v8166
      %v8334 = vunpack.c.h.b16 %v8166
      %v8335 = vunpack.c.l.b16 %v8167
      %v8336 = vunpack.c.h.b16 %v8167
      %v8337 = vunpack.c.l.b16 %v8168
      %v8338 = vunpack.c.h.b16 %v8168
      %v8339 = vunpack.c.l.b16 %v8169
      %v8340 = vunpack.c.h.b16 %v8169
      %v8341 = vunpack.c.l.b16 %v8170
      %v8342 = vunpack.c.h.b16 %v8170
      %v8343 = vunpack.c.l.b16 %v8171
      %v8344 = vunpack.c.h.b16 %v8171
      %v8345 = vunpack.c.l.b16 %v8172
      %v8346 = vunpack.c.h.b16 %v8172
      %v8347 = vunpack.c.l.b16 %v8173
      %v8348 = vunpack.c.h.b16 %v8173
      %v8349 = vunpack.c.l.b16 %v8174
      %v8350 = vunpack.c.h.b16 %v8174
      %v8351 = vunpack.c.l.b16 %v8175
      %v8352 = vunpack.c.h.b16 %v8175
      %v8353 = vunpack.c.l.b16 %v8176
      %v8354 = vunpack.c.h.b16 %v8176
      %v8355 = vunpack.c.l.b16 %v8177
      %v8356 = vunpack.c.h.b16 %v8177
      %v8357 = vunpack.c.l.b16 %v8178
      %v8358 = vunpack.c.h.b16 %v8178
      %v8359 = vunpack.c.l.b16 %v8179
      %v8360 = vunpack.c.h.b16 %v8179
      %v8361 = vunpack.c.l.b16 %v8180
      %v8362 = vunpack.c.h.b16 %v8180
      %v8363 = vunpack.c.l.b16 %v8181
      %v8364 = vunpack.c.h.b16 %v8181
      %v8365 = vunpack.c.l.b16 %v8182
      %v8366 = vunpack.c.h.b16 %v8182
      %v8367 = vunpack.c.l.b16 %v8183
      %v8368 = vunpack.c.h.b16 %v8183
      %v8369 = vunpack.c.l.b16 %v8184
      %v8370 = vunpack.c.h.b16 %v8184
      %v8371 = vunpack.c.l.b16 %v8185
      %v8372 = vunpack.c.h.b16 %v8185
      %v8373 = vunpack.c.l.b16 %v8186
      %v8374 = vunpack.c.h.b16 %v8186
      %v8375 = vunpack.c.l.b16 %v8187
      %v8376 = vunpack.c.h.b16 %v8187
      %v8377 = vunpack.c.l.b16 %v8188
      %v8378 = vunpack.c.h.b16 %v8188
      %v8379 = vunpack.c.l.b16 %v8189
      %v8380 = vunpack.c.h.b16 %v8189
      %v8381 = vunpack.c.l.b16 %v8190
      %v8382 = vunpack.c.h.b16 %v8190
      %v8383 = vunpack.c.l.b16 %v8191
      %v8384 = vunpack.c.h.b16 %v8191
      %v8385 = vunpack.c.l.b16 %v8192
      %v8386 = vunpack.c.h.b16 %v8192
      %v8387 = vunpack.c.l.b16 %v8193
      %v8388 = vunpack.c.h.b16 %v8193
      %v8389 = vunpack.c.l.b16 %v8194
      %v8390 = vunpack.c.h.b16 %v8194
      %v8391 = vunpack.c.l.b16 %v8195
      %v8392 = vunpack.c.h.b16 %v8195
      %v8393 = vunpack.c.l.b16 %v8196
      %v8394 = vunpack.c.h.b16 %v8196
      %v8395 = vunpack.c.l.b16 %v8197
      %v8396 = vunpack.c.h.b16 %v8197
      %v8397 = vunpack.c.l.b16 %v8198
      %v8398 = vunpack.c.h.b16 %v8198
      %v8399 = vunpack.c.l.b16 %v8199
      %v8400 = vunpack.c.h.b16 %v8199
      %v8401 = vunpack.c.l.b16 %v8200
      %v8402 = vunpack.c.h.b16 %v8200
      %v8403 = vunpack.c.l.b16 %v8201
      %v8404 = vunpack.c.h.b16 %v8201
      %v8405 = vunpack.c.l.b16 %v8202
      %v8406 = vunpack.c.h.b16 %v8202
      %v8407 = vunpack.c.l.b16 %v8203
      %v8408 = vunpack.c.h.b16 %v8203
      %v8409 = vunpack.c.l.b16 %v8204
      %v8410 = vunpack.c.h.b16 %v8204
      %v8411 = vunpack.c.l.b16 %v8205
      %v8412 = vunpack.c.h.b16 %v8205
      %v8413 = vunpack.c.l.b16 %v8206
      %v8414 = vunpack.c.h.b16 %v8206
      %v8415 = vunpack.c.l.b16 %v8207
      %v8416 = vunpack.c.h.b16 %v8207
      %v8417 = vunpack.c.l.b16 %v8208
      %v8418 = vunpack.c.h.b16 %v8208
      %v8419 = vunpack.c.l.b16 %v8209
      %v8420 = vunpack.c.h.b16 %v8209
      %v8421 = vunpack.c.l.b16 %v8210
      %v8422 = vunpack.c.h.b16 %v8210
      %v8423 = vunpack.c.l.b16 %v8211
      %v8424 = vunpack.c.h.b16 %v8211
      %v8425 = vunpack.c.l.b16 %v8212
      %v8426 = vunpack.c.h.b16 %v8212
      %v8427 = vunpack.c.l.b16 %v8213
      %v8428 = vunpack.c.h.b16 %v8213
      %v8429 = vunpack.c.l.b16 %v8214
      %v8430 = vunpack.c.h.b16 %v8214
      %v8431 = vunpack.c.l.b16 %v8215
      %v8432 = vunpack.c.h.b16 %v8215
      %v8433 = vunpack.c.l.b16 %v8216
      %v8434 = vunpack.c.h.b16 %v8216
      %v8435 = vunpack.c.l.b16 %v8217
      %v8436 = vunpack.c.h.b16 %v8217
      %v8437 = vunpack.c.l.b16 %v8218
      %v8438 = vunpack.c.h.b16 %v8218
      %v8439 = vunpack.c.l.b16 %v8219
      %v8440 = vunpack.c.h.b16 %v8219
      %v8441 = vunpack.c.l.b16 %v8220
      %v8442 = vunpack.c.h.b16 %v8220
      %v8443 = vunpack.c.l.b16 %v8221
      %v8444 = vunpack.c.h.b16 %v8221
      %v8445 = vunpack.c.l.b16 %v8222
      %v8446 = vunpack.c.h.b16 %v8222
      %v8447 = vunpack.c.l.b16 %v8223
      %v8448 = vunpack.c.h.b16 %v8223
      %v8449 = vunpack.c.l.b16 %v8224
      %v8450 = vunpack.c.h.b16 %v8224
      %v8451 = vunpack.c.l.b16 %v8225
      %v8452 = vunpack.c.h.b16 %v8225
      %v8453 = vunpack.c.l.b16 %v8226
      %v8454 = vunpack.c.h.b16 %v8226
      %v8455 = vpack.c.b16 %v8313, %v8311
      %v8456 = vpack.c.b16 %v8314, %v8312
      %v8457 = vpack.c.b16 %v8317, %v8315
      %v8458 = vpack.c.b16 %v8318, %v8316
      %v8459 = vpack.c.b16 %v8321, %v8319
      %v8460 = vpack.c.b16 %v8322, %v8320
      %v8461 = vpack.c.b16 %v8325, %v8323
      %v8462 = vpack.c.b16 %v8326, %v8324
      %v8463 = vpack.c.b16 %v8329, %v8327
      %v8464 = vpack.c.b16 %v8330, %v8328
      %v8465 = vpack.c.b16 %v8333, %v8331
      %v8466 = vpack.c.b16 %v8334, %v8332
      %v8467 = vpack.c.b16 %v8337, %v8335
      %v8468 = vpack.c.b16 %v8338, %v8336
      %v8469 = vpack.c.b16 %v8341, %v8339
      %v8470 = vpack.c.b16 %v8342, %v8340
      %v8471 = vpack.c.b16 %v8345, %v8343
      %v8472 = vpack.c.b16 %v8346, %v8344
      %v8473 = vpack.c.b16 %v8349, %v8347
      %v8474 = vpack.c.b16 %v8350, %v8348
      %v8475 = vpack.c.b16 %v8353, %v8351
      %v8476 = vpack.c.b16 %v8354, %v8352
      %v8477 = vpack.c.b16 %v8357, %v8355
      %v8478 = vpack.c.b16 %v8358, %v8356
      %v8479 = vpack.c.b16 %v8361, %v8359
      %v8480 = vpack.c.b16 %v8362, %v8360
      %v8481 = vpack.c.b16 %v8365, %v8363
      %v8482 = vpack.c.b16 %v8366, %v8364
      %v8483 = vpack.c.b16 %v8369, %v8367
      %v8484 = vpack.c.b16 %v8370, %v8368
      %v8485 = vpack.c.b16 %v8373, %v8371
      %v8486 = vpack.c.b16 %v8374, %v8372
      %v8487 = vpack.c.b16 %v8377, %v8375
      %v8488 = vpack.c.b16 %v8378, %v8376
      %v8489 = vpack.c.b16 %v8381, %v8379
      %v8490 = vpack.c.b16 %v8382, %v8380
      %v8491 = vpack.c.b16 %v8385, %v8383
      %v8492 = vpack.c.b16 %v8386, %v8384
      %v8493 = vpack.c.b16 %v8389, %v8387
      %v8494 = vpack.c.b16 %v8390, %v8388
      %v8495 = vpack.c.b16 %v8393, %v8391
      %v8496 = vpack.c.b16 %v8394, %v8392
      %v8497 = vpack.c.b16 %v8397, %v8395
      %v8498 = vpack.c.b16 %v8398, %v8396
      %v8499 = vpack.c.b16 %v8401, %v8399
      %v8500 = vpack.c.b16 %v8402, %v8400
      %v8501 = vpack.c.b16 %v8405, %v8403
      %v8502 = vpack.c.b16 %v8406, %v8404
      %v8503 = vpack.c.b16 %v8409, %v8407
      %v8504 = vpack.c.b16 %v8410, %v8408
      %v8505 = vpack.c.b16 %v8413, %v8411
      %v8506 = vpack.c.b16 %v8414, %v8412
      %v8507 = vpack.c.b16 %v8417, %v8415
      %v8508 = vpack.c.b16 %v8418, %v8416
      %v8509 = vpack.c.b16 %v8421, %v8419
      %v8510 = vpack.c.b16 %v8422, %v8420
      %v8511 = vpack.c.b16 %v8425, %v8423
      %v8512 = vpack.c.b16 %v8426, %v8424
      %v8513 = vpack.c.b16 %v8429, %v8427
      %v8514 = vpack.c.b16 %v8430, %v8428
      %v8515 = vpack.c.b16 %v8433, %v8431
      %v8516 = vpack.c.b16 %v8434, %v8432
      %v8517 = vpack.c.b16 %v8437, %v8435
      %v8518 = vpack.c.b16 %v8438, %v8436
      %v8519 = vpack.c.b16 %v8441, %v8439
      %v8520 = vpack.c.b16 %v8442, %v8440
      %v8521 = vpack.c.b16 %v8445, %v8443
      %v8522 = vpack.c.b16 %v8446, %v8444
      %v8523 = vpack.c.b16 %v8449, %v8447
      %v8524 = vpack.c.b16 %v8450, %v8448
      %v8525 = vpack.c.b16 %v8453, %v8451
      %v8526 = vpack.c.b16 %v8454, %v8452
      %v8599 = vsel %vm7419, %v8234, 0
      %8601 = vmatpush.bf16.msra.mxu0 %v8469
      %8602 = vmatpush.bf16.msra.mxu0 %v8467
      %8603 = vmatpush.bf16.msra.mxu0 %v8465
      %8604 = vmatpush.bf16.msra.mxu0 %v8463
      %8605 = vmatpush.bf16.msra.mxu0 %v8461
      %8606 = vmatpush.bf16.msra.mxu0 %v8459
      %8607 = vmatpush.bf16.msra.mxu0 %v8457
      %8608 = vmatpush.bf16.msra.mxu0 %v8455
      %8609 = vmatmul.bf16.gmra.mxu0 %v8230
      %v8610 = vpop.f32.mrf.mxu0
      %v8611 = vadd.f32 0.0, %v8610
      %v8612 = vpop.f32.mrf.mxu0
      %8613 = vdwg.mxu0
      %8614 = vmatpush.bf16.msra.mxu0 %v8485
      %8615 = vmatpush.bf16.msra.mxu0 %v8483
      %8616 = vmatpush.bf16.msra.mxu0 %v8481
      %8617 = vmatpush.bf16.msra.mxu0 %v8479
      %8618 = vmatpush.bf16.msra.mxu0 %v8477
      %8619 = vmatpush.bf16.msra.mxu0 %v8475
      %8620 = vmatpush.bf16.msra.mxu0 %v8473
      %8621 = vmatpush.bf16.msra.mxu0 %v8471
      %8622 = vmatmul.bf16.gmra.mxu0 %v8231
      %v8623 = vpop.f32.mrf.mxu0
      %v8624 = vadd.f32 %v8611, %v8623
      %v8625 = vpop.f32.mrf.mxu0
      %8626 = vdwg.mxu0
      %8627 = vmatpush.bf16.msra.mxu0 %v8501
      %8628 = vmatpush.bf16.msra.mxu0 %v8499
      %8629 = vmatpush.bf16.msra.mxu0 %v8497
      %8630 = vmatpush.bf16.msra.mxu0 %v8495
      %8631 = vmatpush.bf16.msra.mxu0 %v8493
      %8632 = vmatpush.bf16.msra.mxu0 %v8491
      %8633 = vmatpush.bf16.msra.mxu0 %v8489
      %8634 = vmatpush.bf16.msra.mxu0 %v8487
      %8635 = vmatmul.bf16.gmra.mxu0 %v8232
      %v8636 = vpop.f32.mrf.mxu0
      %v8637 = vadd.f32 %v8624, %v8636
      %v8638 = vpop.f32.mrf.mxu0
      %8639 = vdwg.mxu0
      %8640 = vmatpush.bf16.msra.mxu0 %v8517
      %8641 = vmatpush.bf16.msra.mxu0 %v8515
      %8642 = vmatpush.bf16.msra.mxu0 %v8513
      %8643 = vmatpush.bf16.msra.mxu0 %v8511
      %8644 = vmatpush.bf16.msra.mxu0 %v8509
      %8645 = vmatpush.bf16.msra.mxu0 %v8507
      %8646 = vmatpush.bf16.msra.mxu0 %v8505
      %8647 = vmatpush.bf16.msra.mxu0 %v8503
      %8648 = vmatmul.bf16.gmra.mxu0 %v8233
      %v8649 = vpop.f32.mrf.mxu0
      %v8650 = vadd.f32 %v8637, %v8649
      %v8651 = vpop.f32.mrf.mxu0
      %8652 = vdwg.mxu0
      %8653 = vmatpush.bf16.msra.mxu0 0
      %8654 = vmatpush.bf16.msra.mxu0 0
      %8655 = vmatpush.bf16.msra.mxu0 0
      %8656 = vmatpush.bf16.msra.mxu0 0
      %8657 = vmatpush.bf16.msra.mxu0 %v8525
      %8658 = vmatpush.bf16.msra.mxu0 %v8523
      %8659 = vmatpush.bf16.msra.mxu0 %v8521
      %8660 = vmatpush.bf16.msra.mxu0 %v8519
      %8661 = vmatmul.bf16.gmra.mxu0 %v8599
      %v8662 = vpop.f32.mrf.mxu0
      %v8663 = vadd.f32 %v8650, %v8662
      %v8664 = vpop.f32.mrf.mxu0
      %8665 = vdwg.mxu0
      %8666 = vmatpush.bf16.msra.mxu0 %v8470
      %8667 = vmatpush.bf16.msra.mxu0 %v8468
      %8668 = vmatpush.bf16.msra.mxu0 %v8466
      %8669 = vmatpush.bf16.msra.mxu0 %v8464
      %8670 = vmatpush.bf16.msra.mxu0 %v8462
      %8671 = vmatpush.bf16.msra.mxu0 %v8460
      %8672 = vmatpush.bf16.msra.mxu0 %v8458
      %8673 = vmatpush.bf16.msra.mxu0 %v8456
      %8674 = vmatmul.bf16.gmra.mxu0 %v8230
      %v8675 = vpop.f32.mrf.mxu0
      %v8676 = vadd.f32 0.0, %v8675
      %v8677 = vpop.f32.mrf.mxu0
      %8678 = vdwg.mxu0
      %8679 = vmatpush.bf16.msra.mxu0 %v8486
      %8680 = vmatpush.bf16.msra.mxu0 %v8484
      %8681 = vmatpush.bf16.msra.mxu0 %v8482
      %8682 = vmatpush.bf16.msra.mxu0 %v8480
      %8683 = vmatpush.bf16.msra.mxu0 %v8478
      %8684 = vmatpush.bf16.msra.mxu0 %v8476
      %8685 = vmatpush.bf16.msra.mxu0 %v8474
      %8686 = vmatpush.bf16.msra.mxu0 %v8472
      %8687 = vmatmul.bf16.gmra.mxu0 %v8231
      %v8688 = vpop.f32.mrf.mxu0
      %v8689 = vadd.f32 %v8676, %v8688
      %v8690 = vpop.f32.mrf.mxu0
      %8691 = vdwg.mxu0
      %8692 = vmatpush.bf16.msra.mxu0 %v8502
      %8693 = vmatpush.bf16.msra.mxu0 %v8500
      %8694 = vmatpush.bf16.msra.mxu0 %v8498
      %8695 = vmatpush.bf16.msra.mxu0 %v8496
      %8696 = vmatpush.bf16.msra.mxu0 %v8494
      %8697 = vmatpush.bf16.msra.mxu0 %v8492
      %8698 = vmatpush.bf16.msra.mxu0 %v8490
      %8699 = vmatpush.bf16.msra.mxu0 %v8488
      %8700 = vmatmul.bf16.gmra.mxu0 %v8232
      %v8701 = vpop.f32.mrf.mxu0
      %v8702 = vadd.f32 %v8689, %v8701
      %v8703 = vpop.f32.mrf.mxu0
      %8704 = vdwg.mxu0
      %8705 = vmatpush.bf16.msra.mxu0 %v8518
      %8706 = vmatpush.bf16.msra.mxu0 %v8516
      %8707 = vmatpush.bf16.msra.mxu0 %v8514
      %8708 = vmatpush.bf16.msra.mxu0 %v8512
      %8709 = vmatpush.bf16.msra.mxu0 %v8510
      %8710 = vmatpush.bf16.msra.mxu0 %v8508
      %8711 = vmatpush.bf16.msra.mxu0 %v8506
      %8712 = vmatpush.bf16.msra.mxu0 %v8504
      %8713 = vmatmul.bf16.gmra.mxu0 %v8233
      %v8714 = vpop.f32.mrf.mxu0
      %v8715 = vadd.f32 %v8702, %v8714
      %v8716 = vpop.f32.mrf.mxu0
      %8717 = vdwg.mxu0
      %8718 = vmatpush.bf16.msra.mxu0 0
      %8719 = vmatpush.bf16.msra.mxu0 0
      %8720 = vmatpush.bf16.msra.mxu0 0
      %8721 = vmatpush.bf16.msra.mxu0 0
      %8722 = vmatpush.bf16.msra.mxu0 %v8526
      %8723 = vmatpush.bf16.msra.mxu0 %v8524
      %8724 = vmatpush.bf16.msra.mxu0 %v8522
      %8725 = vmatpush.bf16.msra.mxu0 %v8520
      %8726 = vmatmul.bf16.gmra.mxu0 %v8599
      %v8727 = vpop.f32.mrf.mxu0
      %v8728 = vadd.f32 %v8715, %v8727
      %v8729 = vpop.f32.mrf.mxu0
      %8730 = vdwg.mxu0
      %v8731 = vld [vmem:[%s246 + $0x4] sm:$0xff]
      %v8734 = vrot.slane %v8728, 4
      %v8735 = vsel %vm6442, %v8663, %v8734
      %8736 = vrot.lane.b32.xlu0 %v8735, 35
      %v8737 = vpop.permute.xlu0 %8736
      %v8738 = vrot.slane %v8737, 4
      %vm8739 = vcmask 285696
      %v8740 = vsel %vm8739, %v8738, %v8737
      %v8742 = vsub.f32 %v8731, %v8740
      %8744 = vrot.lane.b32.xlu0 %v8742, 109
      %v8745 = vpop.permute.xlu0 %8744
      %v8746 = vrot.slane %v8745, 4
      %v8747 = vsel %vm7568, %v8745, %v8746
      %vm8749 = vcmask 1043584
      %vm8750 = vcmask 261124
      %vm8751 = vmor %vm8750, %vm8749
      %8752 = vst.msk [vmem:[%s251 + $0x4] sm:$0xff] %vm8751, %v8747
      %p8753 = scmp.lt.s32.totalorder %s17, 1
      %s8754 = scalar_select %p8753, %s17, 1
      %s8755 = smul.addr %s8754, 3
      %s8756 = smul.addr %s8755, 4
      %s8757 = scalar_lea.vmem %s6, %s8756
      // Predicated region
      $region52: #{dncnn_forward.1} parent=43 // pred_check
        %p8758 = pneg %p166
      $region53: #{dncnn_forward.1} parent=43 // pred_check_branch
        %8760 = sbr.rel (%p8758) target = $region55
      $region54: #{dncnn_forward.1} parent=43 // pred_region
        _
      $region55: #{dncnn_forward.1} parent=43 // pred_fallthru
        _
    $region44: #{dncnn_forward.1} parent=5 // pred_fallthru
      _
    %p8761 = scmp.le.s32.totalorder 2, %s12
    // Predicated region
    $region56: #{dncnn_forward.1} parent=5 // pred_check
      %p8762 = pneg %p8761
    $region57: #{dncnn_forward.1} parent=5 // pred_check_branch
      %8764 = sbr.rel (%p8762) target = $region59
    $region58: #{dncnn_forward.1} parent=5 // pred_region
      %s8765 = ssub.s32 %s12, 2
      // Predicated region
      $region60: #{dncnn_forward.1} parent=58 // pred_check
        %p8766 = pneg %p172
      $region61: #{dncnn_forward.1} parent=58 // pred_check_branch
        %8768 = sbr.rel (%p8766) target = $region63
      $region62: #{dncnn_forward.1} parent=58 // pred_region
        %p8769 = scmp.lt.s32.totalorder %s18, 1
        %s8770 = scalar_select %p8769, %s18, 1
        %s8771 = smul.addr %s8770, 3
        %s8772 = smul.addr %s8771, 4
        %s8773 = scalar_lea.vmem %s6, %s8772
      $region63: #{dncnn_forward.1} parent=58 // pred_fallthru
        _
    $region59: #{dncnn_forward.1} parent=5 // pred_fallthru
      _
  $region6: #{dncnn_forward.1} parent=0 // loop_footer
    %s16 = sadd.s32 1, %s12
  $region7: #{dncnn_forward.1} parent=0 // loop_footer_branch
    %11 = sbr.rel target = $region3
  $region8: #{dncnn_forward.1} parent=0 // loop_exit
    _

</llo_original>
